<compile_context>
chip_gen: v7x
topology: tpu7x:2x2x1
jax: 0.10.0
libtpu: 0.0.40
codegen_flags: <defaults>
</compile_context>

<pallas_src>
import numpy as np
import jax
import jax.numpy as jnp
from jax.experimental import pallas as pl
from jax.experimental.pallas import tpu as pltpu

# ----------------------------- model configuration --------------------------
nz = 100          # latent dimension (DCGAN default)
ngf = 8           # base feature maps (kept small)
nc = 3            # output image channels
N = 2             # batch size
K4 = 4            # kernel size of every ConvTranspose2d

# (Cin, Cout, Hin, stride, pad, has_bn)   with Hout = (Hin-1)*s - 2p + 4
LAYERS = (
    (nz,      ngf * 8,  1, 1, 0, True),    # 1x1   -> 4x4
    (ngf * 8, ngf * 4,  4, 2, 1, True),    # 4x4   -> 8x8
    (ngf * 4, ngf * 2,  8, 2, 1, True),    # 8x8   -> 16x16
    (ngf * 2, ngf,     16, 2, 1, True),    # 16x16 -> 32x32
    (ngf,     nc,      32, 2, 1, False),   # 32x32 -> 64x64, Tanh
)
N_LAYERS = len(LAYERS)
H_OUT = 64
OUT_COLS = 256                              # 64*nc = 192 padded to lane-dense 256
Z_ROWS = max(8, ((N + 7) // 8) * 8)         # pad latent rows to a sublane tile
Z_COLS = ((nz + 127) // 128) * 128          # pad latent cols to a lane tile
_EPS = 1e-5


# ------------------------------ Pallas kernel --------------------------------

def _make_kernel(cfg):
    """Whole-network kernel.

    Ref order:
      inputs : z, K_hbm[0..4] (pl.ANY), R_wide[0..4], P[bn layers], GB[bn layers]
      outputs: out
      scratch: t_stack, K_vmem[0..4], dma_sems
    """
    n_l = len(cfg)
    n_bn = sum(1 for c in cfg if c["bn"])

    def kernel(*refs):
        i0 = 0
        z_ref = refs[i0]; i0 += 1
        k_hbm = refs[i0:i0 + n_l]; i0 += n_l
        r_refs = refs[i0:i0 + n_l]; i0 += n_l
        p_refs = refs[i0:i0 + n_bn]; i0 += n_bn
        gb_refs = refs[i0:i0 + n_bn]; i0 += n_bn
        out_ref = refs[i0]; i0 += 1
        t_ref = refs[i0]; i0 += 1
        k_buf = refs[i0:i0 + n_l]; i0 += n_l
        sem = refs[i0]

        # Kick off every layer's Toeplitz-weight DMA now; layers 1..4 copy in
        # while earlier layers compute.
        copies = [pltpu.make_async_copy(k_hbm[l], k_buf[l], sem.at[l])
                  for l in range(n_l)]
        for cp in copies:
            cp.start()

        x = z_ref[...]                        # (Z_ROWS, Z_COLS) padded latent
        bn_i = 0
        for l, layer in enumerate(cfg):
            copies[l].wait()                  # this layer's weights are resident
            rows_x = layer["rows_x"]          # static Python ints
            cols = layer["cols"]
            kb = k_buf[l]                     # (4, Wi*Cin(pad), cols)

            # 4 K-matmuls, stacked on sublanes in the shared scratch ...
            for kh in range(K4):
                t_ref[kh * rows_x:(kh + 1) * rows_x, 0:cols] = jnp.dot(
                    x, kb[kh], preferred_element_type=jnp.float32)
            # ... then ONE wide row-spread matmul finishes the conv-transpose.
            acc = jnp.dot(r_refs[l][...], t_ref[0:K4 * rows_x, 0:cols],
                          preferred_element_type=jnp.float32)   # (N*Ho, cols)

            if layer["bn"]:
                p_ref = p_refs[bn_i]
                gb_ref = gb_refs[bn_i]
                bn_i += 1
                # Single-pass batch stats over exactly the real N*Ho*Wo elems.
                colsum = jnp.sum(acc, axis=0, keepdims=True)           # (1, cols)
                sqsum = jnp.sum(acc * acc, axis=0, keepdims=True)      # (1, cols)
                stats = jnp.concatenate([colsum, sqsum], axis=0)       # (2, cols)
                sums = jnp.dot(stats, p_ref[...],
                               preferred_element_type=jnp.float32) * layer["inv_nhw"]
                mean = sums[0:1, :]
                var = jnp.maximum(sums[1:2, :] - mean * mean, 0.0)
                scale = gb_ref[0:1, :] * jax.lax.rsqrt(var + _EPS)
                shift = gb_ref[1:2, :] - mean * scale
                x = jnp.maximum(acc * scale + shift, 0.0)              # BN + ReLU
            else:
                x = jnp.tanh(acc)                                      # final Tanh
        out_ref[...] = x                       # (N*64, 256); cols 192.. are 0
    return kernel


# --------------------- host-side (one-time) weight transform -----------------

def _build_operands(params):
    """Turn every ConvTranspose2d into matrices so the kernel only does 2-D
    matmuls.  K[kh][ix*Cin+ci, ox*Cout+co] = w[ci,co,kh,kw] where
    ox = s*ix - p + kw;  R_wide[n*Ho+oy, kh*rows_x + n*Hi+iy] = 1 where
    oy = s*iy - p + kh."""
    k_ops, r_ops, p_ops, gb_ops, cfg = [], [], [], [], []
    for li, (cin, cout, hi, s, pad, bn) in enumerate(LAYERS):
        wi = hi
        ho = (hi - 1) * s - 2 * pad + K4
        wo = ho
        w = np.asarray(jax.device_get(params[f"w{li + 1}"]), np.float32)  # (Cin,Cout,4,4)

        cols = wo * cout
        cols_pad = ((cols + 127) // 128) * 128          # 256 for every layer
        rows_k = wi * cin
        rows_k_pad = Z_COLS if li == 0 else rows_k      # latent rows padded to 128

        kmat = np.zeros((K4, rows_k_pad, cols_pad), np.float32)
        for kh in range(K4):
            for kw in range(K4):
                for ix in range(wi):
                    ox = s * ix - pad + kw
                    if 0 <= ox < wo:
                        kmat[kh, ix * cin:(ix + 1) * cin,
                             ox * cout:(ox + 1) * cout] += w[:, :, kh, kw]

        rows_x = Z_ROWS if li == 0 else N * hi
        rwide = np.zeros((N * ho, K4 * rows_x), np.float32)
        for kh in range(K4):
            for n in range(N):
                for iy in range(hi):
                    oy = s * iy - pad + kh
                    if 0 <= oy < ho:
                        rwide[n * ho + oy, kh * rows_x + n * hi + iy] = 1.0

        k_ops.append(jnp.asarray(kmat))
        r_ops.append(jnp.asarray(rwide))

        if bn:
            # 0/1 channel projector: sums over all ox positions per channel and
            # broadcasts the result back to every (ox, c) column.
            proj = np.kron(np.ones((wo, wo), np.float32),
                           np.eye(cout, dtype=np.float32))          # (cols, cols)
            gamma = np.asarray(jax.device_get(params[f"g{li + 1}"]), np.float32)
            beta = np.asarray(jax.device_get(params[f"b{li + 1}"]), np.float32)
            gb = np.stack([np.tile(gamma, wo), np.tile(beta, wo)], axis=0)  # (2, cols)
            p_ops.append(jnp.asarray(proj))
            gb_ops.append(jnp.asarray(gb))

        cfg.append(dict(bn=bn, rows_x=rows_x, cols=cols_pad,
                        inv_nhw=1.0 / float(N * ho * wo)))
    return k_ops, r_ops, p_ops, gb_ops, cfg


def build_generator(params):
    k_ops, r_ops, p_ops, gb_ops, cfg = _build_operands(params)
    kernel = _make_kernel(cfg)

    t_rows = max(K4 * c["rows_x"] for c in cfg)      # 256
    t_cols = max(c["cols"] for c in cfg)             # 256

    vmem = pltpu.MemorySpace.VMEM
    in_specs = (
        [pl.BlockSpec(memory_space=vmem)]                       # latent z
        + [pl.BlockSpec(memory_space=pl.ANY)] * len(k_ops)      # K stay in HBM
        + [pl.BlockSpec(memory_space=vmem)] * (len(r_ops) + len(p_ops) + len(gb_ops))
    )
    scratch_shapes = (
        [pltpu.VMEM((t_rows, t_cols), jnp.float32)]             # t_stack
        + [pltpu.VMEM(tuple(k.shape), jnp.float32) for k in k_ops]
        + [pltpu.SemaphoreType.DMA((len(k_ops),))]
    )

    call = pl.pallas_call(
        kernel,
        out_shape=jax.ShapeDtypeStruct((N * H_OUT, OUT_COLS), jnp.float32),
        in_specs=in_specs,
        out_specs=pl.BlockSpec(memory_space=vmem),
        scratch_shapes=scratch_shapes,
        compiler_params=pltpu.CompilerParams(
            vmem_limit_bytes=32 * 1024 * 1024),
    )

    operands = tuple(k_ops) + tuple(r_ops) + tuple(p_ops) + tuple(gb_ops)

    @jax.jit
    def forward(z, operands):
        zp = jnp.zeros((Z_ROWS, Z_COLS), jnp.float32)
        zp = zp.at[:N, :nz].set(z.reshape(N, nz))
        flat = call(zp, *operands)                      # (N*64, 256)
        img = flat[:, :H_OUT * nc].reshape(N, H_OUT, H_OUT, nc)  # rows=(n,oy), cols=(ox,c)
        return img.transpose(0, 3, 1, 2)                # NCHW like PyTorch

    return forward, operands


# ----------------------------- pure-JAX reference ----------------------------

def _ref_forward(z, params):
    x = z
    for i, (cin, cout, hi, s, pad, bn) in enumerate(LAYERS, start=1):
        w = params[f"w{i}"]                                  # (Cin, Cout, 4, 4)
        w_conv = jnp.flip(w, (2, 3)).transpose(1, 0, 2, 3)   # (Cout, Cin, 4, 4)
        pad_amt = K4 - 1 - pad
        x = jax.lax.conv_general_dilated(
            x, w_conv, window_strides=(1, 1),
            padding=[(pad_amt, pad_amt), (pad_amt, pad_amt)],
            lhs_dilation=(s, s),
            dimension_numbers=("NCHW", "OIHW", "NCHW"))
        if bn:
            g = params[f"g{i}"].reshape(1, -1, 1, 1)
            b = params[f"b{i}"].reshape(1, -1, 1, 1)
            mean = jnp.mean(x, axis=(0, 2, 3), keepdims=True)
            var = jnp.mean(jnp.square(x - mean), axis=(0, 2, 3), keepdims=True)
            x = (x - mean) * jax.lax.rsqrt(var + _EPS) * g + b
            x = jnp.maximum(x, 0.0)
        else:
            x = jnp.tanh(x)
    return x


# ----------------------------------- main ------------------------------------

if __name__ == "__main__":
    key = jax.random.PRNGKey(0)
    params = {}
    for i, (cin, cout, hi, s, pad, bn) in enumerate(LAYERS, start=1):
        key, kw = jax.random.split(key)
        params[f"w{i}"] = 0.02 * jax.random.normal(
            kw, (cin, cout, K4, K4), jnp.float32)            # PyTorch ConvT layout
        if bn:
            key, kg, kb = jax.random.split(key, 3)
            params[f"g{i}"] = 1.0 + 0.1 * jax.random.normal(kg, (cout,), jnp.float32)
            params[f"b{i}"] = 0.1 * jax.random.normal(kb, (cout,), jnp.float32)

    key, kz = jax.random.split(key)
    z = jax.random.normal(kz, (N, nz, 1, 1), jnp.float32)

    forward, ops = build_generator(params)
    out = jax.block_until_ready(forward(z, ops))
    ref = jax.block_until_ready(_ref_forward(z, params))

    assert out.shape == (N, nc, H_OUT, H_OUT), out.shape
    assert jnp.allclose(out, ref, rtol=2e-3, atol=2e-3), (
        float(jnp.max(jnp.abs(out - ref))))
    print("KERNEL_OK")
</pallas_src>

<mosaic_0001>
module attributes {stable_mosaic.version = 11 : i64} {
  func.func @kernel(%arg0: memref<8x128xf32, #tpu.memory_space<vmem>>, %arg1: memref<4x128x256xf32, #tpu.memory_space<any>>, %arg2: memref<4x256x256xf32, #tpu.memory_space<any>>, %arg3: memref<4x256x256xf32, #tpu.memory_space<any>>, %arg4: memref<4x256x256xf32, #tpu.memory_space<any>>, %arg5: memref<4x256x256xf32, #tpu.memory_space<any>>, %arg6: memref<8x32xf32, #tpu.memory_space<vmem>>, %arg7: memref<16x32xf32, #tpu.memory_space<vmem>>, %arg8: memref<32x64xf32, #tpu.memory_space<vmem>>, %arg9: memref<64x128xf32, #tpu.memory_space<vmem>>, %arg10: memref<128x256xf32, #tpu.memory_space<vmem>>, %arg11: memref<256x256xf32, #tpu.memory_space<vmem>>, %arg12: memref<256x256xf32, #tpu.memory_space<vmem>>, %arg13: memref<256x256xf32, #tpu.memory_space<vmem>>, %arg14: memref<256x256xf32, #tpu.memory_space<vmem>>, %arg15: memref<2x256xf32, #tpu.memory_space<vmem>>, %arg16: memref<2x256xf32, #tpu.memory_space<vmem>>, %arg17: memref<2x256xf32, #tpu.memory_space<vmem>>, %arg18: memref<2x256xf32, #tpu.memory_space<vmem>>, %arg19: memref<128x256xf32, #tpu.memory_space<vmem>>, %arg20: memref<256x256xf32, #tpu.memory_space<vmem>>, %arg21: memref<4x128x256xf32, #tpu.memory_space<vmem>>, %arg22: memref<4x256x256xf32, #tpu.memory_space<vmem>>, %arg23: memref<4x256x256xf32, #tpu.memory_space<vmem>>, %arg24: memref<4x256x256xf32, #tpu.memory_space<vmem>>, %arg25: memref<4x256x256xf32, #tpu.memory_space<vmem>>, %arg26: memref<5x!tpu.dma_semaphore, #tpu.memory_space<semaphore_mem>>) attributes {dimension_semantics = [], scalar_prefetch = 0 : i64, scratch_operands = 7 : i64, tpu.core_type = #tpu.core_type<tc>} {
    %c0_i32 = arith.constant 0 : i32
    %0 = tpu.memref_slice %arg26[%c0_i32] : memref<5x!tpu.dma_semaphore, #tpu.memory_space<semaphore_mem>> -> memref<1x!tpu.dma_semaphore, #tpu.memory_space<semaphore_mem>>
    %1 = tpu.memref_squeeze %0 : memref<1x!tpu.dma_semaphore, #tpu.memory_space<semaphore_mem>> -> memref<!tpu.dma_semaphore, #tpu.memory_space<semaphore_mem>>
    tpu.enqueue_dma source(%arg1 : memref<4x128x256xf32, #tpu.memory_space<any>>) target(%arg21 : memref<4x128x256xf32, #tpu.memory_space<vmem>>) target_semaphore(%1 : memref<!tpu.dma_semaphore, #tpu.memory_space<semaphore_mem>>)
    %c1_i32 = arith.constant 1 : i32
    %2 = tpu.memref_slice %arg26[%c1_i32] : memref<5x!tpu.dma_semaphore, #tpu.memory_space<semaphore_mem>> -> memref<1x!tpu.dma_semaphore, #tpu.memory_space<semaphore_mem>>
    %3 = tpu.memref_squeeze %2 : memref<1x!tpu.dma_semaphore, #tpu.memory_space<semaphore_mem>> -> memref<!tpu.dma_semaphore, #tpu.memory_space<semaphore_mem>>
    tpu.enqueue_dma source(%arg2 : memref<4x256x256xf32, #tpu.memory_space<any>>) target(%arg22 : memref<4x256x256xf32, #tpu.memory_space<vmem>>) target_semaphore(%3 : memref<!tpu.dma_semaphore, #tpu.memory_space<semaphore_mem>>)
    %c2_i32 = arith.constant 2 : i32
    %4 = tpu.memref_slice %arg26[%c2_i32] : memref<5x!tpu.dma_semaphore, #tpu.memory_space<semaphore_mem>> -> memref<1x!tpu.dma_semaphore, #tpu.memory_space<semaphore_mem>>
    %5 = tpu.memref_squeeze %4 : memref<1x!tpu.dma_semaphore, #tpu.memory_space<semaphore_mem>> -> memref<!tpu.dma_semaphore, #tpu.memory_space<semaphore_mem>>
    tpu.enqueue_dma source(%arg3 : memref<4x256x256xf32, #tpu.memory_space<any>>) target(%arg23 : memref<4x256x256xf32, #tpu.memory_space<vmem>>) target_semaphore(%5 : memref<!tpu.dma_semaphore, #tpu.memory_space<semaphore_mem>>)
    %c3_i32 = arith.constant 3 : i32
    %6 = tpu.memref_slice %arg26[%c3_i32] : memref<5x!tpu.dma_semaphore, #tpu.memory_space<semaphore_mem>> -> memref<1x!tpu.dma_semaphore, #tpu.memory_space<semaphore_mem>>
    %7 = tpu.memref_squeeze %6 : memref<1x!tpu.dma_semaphore, #tpu.memory_space<semaphore_mem>> -> memref<!tpu.dma_semaphore, #tpu.memory_space<semaphore_mem>>
    tpu.enqueue_dma source(%arg4 : memref<4x256x256xf32, #tpu.memory_space<any>>) target(%arg24 : memref<4x256x256xf32, #tpu.memory_space<vmem>>) target_semaphore(%7 : memref<!tpu.dma_semaphore, #tpu.memory_space<semaphore_mem>>)
    %c4_i32 = arith.constant 4 : i32
    %8 = tpu.memref_slice %arg26[%c4_i32] : memref<5x!tpu.dma_semaphore, #tpu.memory_space<semaphore_mem>> -> memref<1x!tpu.dma_semaphore, #tpu.memory_space<semaphore_mem>>
    %9 = tpu.memref_squeeze %8 : memref<1x!tpu.dma_semaphore, #tpu.memory_space<semaphore_mem>> -> memref<!tpu.dma_semaphore, #tpu.memory_space<semaphore_mem>>
    tpu.enqueue_dma source(%arg5 : memref<4x256x256xf32, #tpu.memory_space<any>>) target(%arg25 : memref<4x256x256xf32, #tpu.memory_space<vmem>>) target_semaphore(%9 : memref<!tpu.dma_semaphore, #tpu.memory_space<semaphore_mem>>)
    %c0 = arith.constant 0 : index
    %c0_0 = arith.constant 0 : index
    %10 = vector.load %arg0[%c0, %c0_0] : memref<8x128xf32, #tpu.memory_space<vmem>>, vector<8x128xf32>
    %c0_i32_1 = arith.constant 0 : i32
    %11 = tpu.memref_slice %arg26[%c0_i32_1] : memref<5x!tpu.dma_semaphore, #tpu.memory_space<semaphore_mem>> -> memref<1x!tpu.dma_semaphore, #tpu.memory_space<semaphore_mem>>
    %12 = tpu.memref_squeeze %11 : memref<1x!tpu.dma_semaphore, #tpu.memory_space<semaphore_mem>> -> memref<!tpu.dma_semaphore, #tpu.memory_space<semaphore_mem>>
    tpu.wait_dma2 semaphore(%12 : memref<!tpu.dma_semaphore, #tpu.memory_space<semaphore_mem>>) src(%arg1 : memref<4x128x256xf32, #tpu.memory_space<any>>) dst(%arg21 : memref<4x128x256xf32, #tpu.memory_space<vmem>>)
    %c0_2 = arith.constant 0 : index
    %c0_3 = arith.constant 0 : index
    %c0_4 = arith.constant 0 : index
    %13 = vector.load %arg21[%c0_2, %c0_3, %c0_4] : memref<4x128x256xf32, #tpu.memory_space<vmem>>, vector<1x128x256xf32>
    %14 = vector.shape_cast %13 : vector<1x128x256xf32> to vector<128x256xf32>
    %cst = arith.constant dense<0.000000e+00> : vector<8x256xf32>
    %15 = tpu.matmul %10, %14, %cst {dimension_numbers = #tpu.dot_dimension_numbers<[1], [0], [0], [1], [0, 0, 1, 1], [], []>} : vector<8x128xf32>, vector<128x256xf32>, vector<8x256xf32> -> vector<8x256xf32>
    %c0_5 = arith.constant 0 : index
    %c0_6 = arith.constant 0 : index
    %16 = vector.load %arg20[%c0_5, %c0_6] : memref<256x256xf32, #tpu.memory_space<vmem>>, vector<8x256xf32>
    tpu.vector_store %arg20[%c0_5, %c0_6], %15 {strides = array<i32>} : memref<256x256xf32, #tpu.memory_space<vmem>>, vector<8x256xf32>,
    %c1 = arith.constant 1 : index
    %c0_7 = arith.constant 0 : index
    %c0_8 = arith.constant 0 : index
    %17 = vector.load %arg21[%c1, %c0_7, %c0_8] : memref<4x128x256xf32, #tpu.memory_space<vmem>>, vector<1x128x256xf32>
    %18 = vector.shape_cast %17 : vector<1x128x256xf32> to vector<128x256xf32>
    %cst_9 = arith.constant dense<0.000000e+00> : vector<8x256xf32>
    %19 = tpu.matmul %10, %18, %cst_9 {dimension_numbers = #tpu.dot_dimension_numbers<[1], [0], [0], [1], [0, 0, 1, 1], [], []>} : vector<8x128xf32>, vector<128x256xf32>, vector<8x256xf32> -> vector<8x256xf32>
    %c8 = arith.constant 8 : index
    %c0_10 = arith.constant 0 : index
    %20 = vector.load %arg20[%c8, %c0_10] : memref<256x256xf32, #tpu.memory_space<vmem>>, vector<8x256xf32>
    tpu.vector_store %arg20[%c8, %c0_10], %19 {strides = array<i32>} : memref<256x256xf32, #tpu.memory_space<vmem>>, vector<8x256xf32>,
    %c2 = arith.constant 2 : index
    %c0_11 = arith.constant 0 : index
    %c0_12 = arith.constant 0 : index
    %21 = vector.load %arg21[%c2, %c0_11, %c0_12] : memref<4x128x256xf32, #tpu.memory_space<vmem>>, vector<1x128x256xf32>
    %22 = vector.shape_cast %21 : vector<1x128x256xf32> to vector<128x256xf32>
    %cst_13 = arith.constant dense<0.000000e+00> : vector<8x256xf32>
    %23 = tpu.matmul %10, %22, %cst_13 {dimension_numbers = #tpu.dot_dimension_numbers<[1], [0], [0], [1], [0, 0, 1, 1], [], []>} : vector<8x128xf32>, vector<128x256xf32>, vector<8x256xf32> -> vector<8x256xf32>
    %c16 = arith.constant 16 : index
    %c0_14 = arith.constant 0 : index
    %24 = vector.load %arg20[%c16, %c0_14] : memref<256x256xf32, #tpu.memory_space<vmem>>, vector<8x256xf32>
    tpu.vector_store %arg20[%c16, %c0_14], %23 {strides = array<i32>} : memref<256x256xf32, #tpu.memory_space<vmem>>, vector<8x256xf32>,
    %c3 = arith.constant 3 : index
    %c0_15 = arith.constant 0 : index
    %c0_16 = arith.constant 0 : index
    %25 = vector.load %arg21[%c3, %c0_15, %c0_16] : memref<4x128x256xf32, #tpu.memory_space<vmem>>, vector<1x128x256xf32>
    %26 = vector.shape_cast %25 : vector<1x128x256xf32> to vector<128x256xf32>
    %cst_17 = arith.constant dense<0.000000e+00> : vector<8x256xf32>
    %27 = tpu.matmul %10, %26, %cst_17 {dimension_numbers = #tpu.dot_dimension_numbers<[1], [0], [0], [1], [0, 0, 1, 1], [], []>} : vector<8x128xf32>, vector<128x256xf32>, vector<8x256xf32> -> vector<8x256xf32>
    %c24 = arith.constant 24 : index
    %c0_18 = arith.constant 0 : index
    %28 = vector.load %arg20[%c24, %c0_18] : memref<256x256xf32, #tpu.memory_space<vmem>>, vector<8x256xf32>
    tpu.vector_store %arg20[%c24, %c0_18], %27 {strides = array<i32>} : memref<256x256xf32, #tpu.memory_space<vmem>>, vector<8x256xf32>,
    %c0_19 = arith.constant 0 : index
    %c0_20 = arith.constant 0 : index
    %29 = vector.load %arg6[%c0_19, %c0_20] : memref<8x32xf32, #tpu.memory_space<vmem>>, vector<8x32xf32>
    %c0_21 = arith.constant 0 : index
    %c0_22 = arith.constant 0 : index
    %30 = vector.load %arg20[%c0_21, %c0_22] : memref<256x256xf32, #tpu.memory_space<vmem>>, vector<32x256xf32>
    %cst_23 = arith.constant dense<0.000000e+00> : vector<8x256xf32>
    %31 = tpu.matmul %29, %30, %cst_23 {dimension_numbers = #tpu.dot_dimension_numbers<[1], [0], [0], [1], [0, 0, 1, 1], [], []>} : vector<8x32xf32>, vector<32x256xf32>, vector<8x256xf32> -> vector<8x256xf32>
    %cst_24 = arith.constant dense<0.000000e+00> : vector<256xf32>
    %32 = vector.multi_reduction <add>, %31, %cst_24 [0] : vector<8x256xf32> to vector<256xf32>
    %33 = vector.shape_cast %32 : vector<256xf32> to vector<1x256xf32>
    %34 = arith.mulf %31, %31 : vector<8x256xf32>
    %cst_25 = arith.constant dense<0.000000e+00> : vector<256xf32>
    %35 = vector.multi_reduction <add>, %34, %cst_25 [0] : vector<8x256xf32> to vector<256xf32>
    %36 = vector.shape_cast %35 : vector<256xf32> to vector<1x256xf32>
    %37 = tpu.concatenate %33, %36 in 0 : vector<1x256xf32>, vector<1x256xf32> -> vector<2x256xf32>
    %c0_26 = arith.constant 0 : index
    %c0_27 = arith.constant 0 : index
    %38 = vector.load %arg11[%c0_26, %c0_27] : memref<256x256xf32, #tpu.memory_space<vmem>>, vector<256x256xf32>
    %cst_28 = arith.constant dense<0.000000e+00> : vector<2x256xf32>
    %39 = tpu.matmul %37, %38, %cst_28 {dimension_numbers = #tpu.dot_dimension_numbers<[1], [0], [0], [1], [0, 0, 1, 1], [], []>} : vector<2x256xf32>, vector<256x256xf32>, vector<2x256xf32> -> vector<2x256xf32>
    %cst_29 = arith.constant 3.125000e-02 : f32
    %40 = vector.broadcast %cst_29 : f32 to vector<2x256xf32>
    %41 = arith.mulf %39, %40 : vector<2x256xf32>
    %42 = vector.extract_strided_slice %41 {offsets = [0, 0], sizes = [1, 256], strides = [1, 1]} : vector<2x256xf32> to vector<1x256xf32>
    %43 = vector.extract_strided_slice %41 {offsets = [1, 0], sizes = [1, 256], strides = [1, 1]} : vector<2x256xf32> to vector<1x256xf32>
    %44 = arith.mulf %42, %42 : vector<1x256xf32>
    %45 = arith.subf %43, %44 : vector<1x256xf32>
    %cst_30 = arith.constant 0.000000e+00 : f32
    %46 = vector.broadcast %cst_30 : f32 to vector<1x256xf32>
    %47 = arith.maximumf %45, %46 : vector<1x256xf32>
    %c0_31 = arith.constant 0 : index
    %c0_32 = arith.constant 0 : index
    %48 = vector.load %arg15[%c0_31, %c0_32] : memref<2x256xf32, #tpu.memory_space<vmem>>, vector<1x256xf32>
    %cst_33 = arith.constant 9.99999974E-6 : f32
    %49 = vector.broadcast %cst_33 : f32 to vector<1x256xf32>
    %50 = arith.addf %47, %49 : vector<1x256xf32>
    %51 = math.rsqrt %50 : vector<1x256xf32>
    %52 = arith.mulf %48, %51 : vector<1x256xf32>
    %c1_34 = arith.constant 1 : index
    %c0_35 = arith.constant 0 : index
    %53 = vector.load %arg15[%c1_34, %c0_35] : memref<2x256xf32, #tpu.memory_space<vmem>>, vector<1x256xf32>
    %54 = arith.mulf %42, %52 : vector<1x256xf32>
    %55 = arith.subf %53, %54 : vector<1x256xf32>
    %56 = vector.broadcast %52 : vector<1x256xf32> to vector<8x256xf32>
    %57 = arith.mulf %31, %56 : vector<8x256xf32>
    %58 = vector.broadcast %55 : vector<1x256xf32> to vector<8x256xf32>
    %59 = arith.addf %57, %58 : vector<8x256xf32>
    %cst_36 = arith.constant 0.000000e+00 : f32
    %60 = vector.broadcast %cst_36 : f32 to vector<8x256xf32>
    %61 = arith.maximumf %59, %60 : vector<8x256xf32>
    %c1_i32_37 = arith.constant 1 : i32
    %62 = tpu.memref_slice %arg26[%c1_i32_37] : memref<5x!tpu.dma_semaphore, #tpu.memory_space<semaphore_mem>> -> memref<1x!tpu.dma_semaphore, #tpu.memory_space<semaphore_mem>>
    %63 = tpu.memref_squeeze %62 : memref<1x!tpu.dma_semaphore, #tpu.memory_space<semaphore_mem>> -> memref<!tpu.dma_semaphore, #tpu.memory_space<semaphore_mem>>
    tpu.wait_dma2 semaphore(%63 : memref<!tpu.dma_semaphore, #tpu.memory_space<semaphore_mem>>) src(%arg2 : memref<4x256x256xf32, #tpu.memory_space<any>>) dst(%arg22 : memref<4x256x256xf32, #tpu.memory_space<vmem>>)
    %c0_38 = arith.constant 0 : index
    %c0_39 = arith.constant 0 : index
    %c0_40 = arith.constant 0 : index
    %64 = vector.load %arg22[%c0_38, %c0_39, %c0_40] : memref<4x256x256xf32, #tpu.memory_space<vmem>>, vector<1x256x256xf32>
    %65 = vector.shape_cast %64 : vector<1x256x256xf32> to vector<256x256xf32>
    %cst_41 = arith.constant dense<0.000000e+00> : vector<8x256xf32>
    %66 = tpu.matmul %61, %65, %cst_41 {dimension_numbers = #tpu.dot_dimension_numbers<[1], [0], [0], [1], [0, 0, 1, 1], [], []>} : vector<8x256xf32>, vector<256x256xf32>, vector<8x256xf32> -> vector<8x256xf32>
    %c0_42 = arith.constant 0 : index
    %c0_43 = arith.constant 0 : index
    %67 = vector.load %arg20[%c0_42, %c0_43] : memref<256x256xf32, #tpu.memory_space<vmem>>, vector<8x256xf32>
    tpu.vector_store %arg20[%c0_42, %c0_43], %66 {strides = array<i32>} : memref<256x256xf32, #tpu.memory_space<vmem>>, vector<8x256xf32>,
    %c1_44 = arith.constant 1 : index
    %c0_45 = arith.constant 0 : index
    %c0_46 = arith.constant 0 : index
    %68 = vector.load %arg22[%c1_44, %c0_45, %c0_46] : memref<4x256x256xf32, #tpu.memory_space<vmem>>, vector<1x256x256xf32>
    %69 = vector.shape_cast %68 : vector<1x256x256xf32> to vector<256x256xf32>
    %cst_47 = arith.constant dense<0.000000e+00> : vector<8x256xf32>
    %70 = tpu.matmul %61, %69, %cst_47 {dimension_numbers = #tpu.dot_dimension_numbers<[1], [0], [0], [1], [0, 0, 1, 1], [], []>} : vector<8x256xf32>, vector<256x256xf32>, vector<8x256xf32> -> vector<8x256xf32>
    %c8_48 = arith.constant 8 : index
    %c0_49 = arith.constant 0 : index
    %71 = vector.load %arg20[%c8_48, %c0_49] : memref<256x256xf32, #tpu.memory_space<vmem>>, vector<8x256xf32>
    tpu.vector_store %arg20[%c8_48, %c0_49], %70 {strides = array<i32>} : memref<256x256xf32, #tpu.memory_space<vmem>>, vector<8x256xf32>,
    %c2_50 = arith.constant 2 : index
    %c0_51 = arith.constant 0 : index
    %c0_52 = arith.constant 0 : index
    %72 = vector.load %arg22[%c2_50, %c0_51, %c0_52] : memref<4x256x256xf32, #tpu.memory_space<vmem>>, vector<1x256x256xf32>
    %73 = vector.shape_cast %72 : vector<1x256x256xf32> to vector<256x256xf32>
    %cst_53 = arith.constant dense<0.000000e+00> : vector<8x256xf32>
    %74 = tpu.matmul %61, %73, %cst_53 {dimension_numbers = #tpu.dot_dimension_numbers<[1], [0], [0], [1], [0, 0, 1, 1], [], []>} : vector<8x256xf32>, vector<256x256xf32>, vector<8x256xf32> -> vector<8x256xf32>
    %c16_54 = arith.constant 16 : index
    %c0_55 = arith.constant 0 : index
    %75 = vector.load %arg20[%c16_54, %c0_55] : memref<256x256xf32, #tpu.memory_space<vmem>>, vector<8x256xf32>
    tpu.vector_store %arg20[%c16_54, %c0_55], %74 {strides = array<i32>} : memref<256x256xf32, #tpu.memory_space<vmem>>, vector<8x256xf32>,
    %c3_56 = arith.constant 3 : index
    %c0_57 = arith.constant 0 : index
    %c0_58 = arith.constant 0 : index
    %76 = vector.load %arg22[%c3_56, %c0_57, %c0_58] : memref<4x256x256xf32, #tpu.memory_space<vmem>>, vector<1x256x256xf32>
    %77 = vector.shape_cast %76 : vector<1x256x256xf32> to vector<256x256xf32>
    %cst_59 = arith.constant dense<0.000000e+00> : vector<8x256xf32>
    %78 = tpu.matmul %61, %77, %cst_59 {dimension_numbers = #tpu.dot_dimension_numbers<[1], [0], [0], [1], [0, 0, 1, 1], [], []>} : vector<8x256xf32>, vector<256x256xf32>, vector<8x256xf32> -> vector<8x256xf32>
    %c24_60 = arith.constant 24 : index
    %c0_61 = arith.constant 0 : index
    %79 = vector.load %arg20[%c24_60, %c0_61] : memref<256x256xf32, #tpu.memory_space<vmem>>, vector<8x256xf32>
    tpu.vector_store %arg20[%c24_60, %c0_61], %78 {strides = array<i32>} : memref<256x256xf32, #tpu.memory_space<vmem>>, vector<8x256xf32>,
    %c0_62 = arith.constant 0 : index
    %c0_63 = arith.constant 0 : index
    %80 = vector.load %arg7[%c0_62, %c0_63] : memref<16x32xf32, #tpu.memory_space<vmem>>, vector<16x32xf32>
    %c0_64 = arith.constant 0 : index
    %c0_65 = arith.constant 0 : index
    %81 = vector.load %arg20[%c0_64, %c0_65] : memref<256x256xf32, #tpu.memory_space<vmem>>, vector<32x256xf32>
    %cst_66 = arith.constant dense<0.000000e+00> : vector<16x256xf32>
    %82 = tpu.matmul %80, %81, %cst_66 {dimension_numbers = #tpu.dot_dimension_numbers<[1], [0], [0], [1], [0, 0, 1, 1], [], []>} : vector<16x32xf32>, vector<32x256xf32>, vector<16x256xf32> -> vector<16x256xf32>
    %cst_67 = arith.constant dense<0.000000e+00> : vector<256xf32>
    %83 = vector.multi_reduction <add>, %82, %cst_67 [0] : vector<16x256xf32> to vector<256xf32>
    %84 = vector.shape_cast %83 : vector<256xf32> to vector<1x256xf32>
    %85 = arith.mulf %82, %82 : vector<16x256xf32>
    %cst_68 = arith.constant dense<0.000000e+00> : vector<256xf32>
    %86 = vector.multi_reduction <add>, %85, %cst_68 [0] : vector<16x256xf32> to vector<256xf32>
    %87 = vector.shape_cast %86 : vector<256xf32> to vector<1x256xf32>
    %88 = tpu.concatenate %84, %87 in 0 : vector<1x256xf32>, vector<1x256xf32> -> vector<2x256xf32>
    %c0_69 = arith.constant 0 : index
    %c0_70 = arith.constant 0 : index
    %89 = vector.load %arg12[%c0_69, %c0_70] : memref<256x256xf32, #tpu.memory_space<vmem>>, vector<256x256xf32>
    %cst_71 = arith.constant dense<0.000000e+00> : vector<2x256xf32>
    %90 = tpu.matmul %88, %89, %cst_71 {dimension_numbers = #tpu.dot_dimension_numbers<[1], [0], [0], [1], [0, 0, 1, 1], [], []>} : vector<2x256xf32>, vector<256x256xf32>, vector<2x256xf32> -> vector<2x256xf32>
    %cst_72 = arith.constant 7.812500e-03 : f32
    %91 = vector.broadcast %cst_72 : f32 to vector<2x256xf32>
    %92 = arith.mulf %90, %91 : vector<2x256xf32>
    %93 = vector.extract_strided_slice %92 {offsets = [0, 0], sizes = [1, 256], strides = [1, 1]} : vector<2x256xf32> to vector<1x256xf32>
    %94 = vector.extract_strided_slice %92 {offsets = [1, 0], sizes = [1, 256], strides = [1, 1]} : vector<2x256xf32> to vector<1x256xf32>
    %95 = arith.mulf %93, %93 : vector<1x256xf32>
    %96 = arith.subf %94, %95 : vector<1x256xf32>
    %cst_73 = arith.constant 0.000000e+00 : f32
    %97 = vector.broadcast %cst_73 : f32 to vector<1x256xf32>
    %98 = arith.maximumf %96, %97 : vector<1x256xf32>
    %c0_74 = arith.constant 0 : index
    %c0_75 = arith.constant 0 : index
    %99 = vector.load %arg16[%c0_74, %c0_75] : memref<2x256xf32, #tpu.memory_space<vmem>>, vector<1x256xf32>
    %cst_76 = arith.constant 9.99999974E-6 : f32
    %100 = vector.broadcast %cst_76 : f32 to vector<1x256xf32>
    %101 = arith.addf %98, %100 : vector<1x256xf32>
    %102 = math.rsqrt %101 : vector<1x256xf32>
    %103 = arith.mulf %99, %102 : vector<1x256xf32>
    %c1_77 = arith.constant 1 : index
    %c0_78 = arith.constant 0 : index
    %104 = vector.load %arg16[%c1_77, %c0_78] : memref<2x256xf32, #tpu.memory_space<vmem>>, vector<1x256xf32>
    %105 = arith.mulf %93, %103 : vector<1x256xf32>
    %106 = arith.subf %104, %105 : vector<1x256xf32>
    %107 = vector.broadcast %103 : vector<1x256xf32> to vector<16x256xf32>
    %108 = arith.mulf %82, %107 : vector<16x256xf32>
    %109 = vector.broadcast %106 : vector<1x256xf32> to vector<16x256xf32>
    %110 = arith.addf %108, %109 : vector<16x256xf32>
    %cst_79 = arith.constant 0.000000e+00 : f32
    %111 = vector.broadcast %cst_79 : f32 to vector<16x256xf32>
    %112 = arith.maximumf %110, %111 : vector<16x256xf32>
    %c2_i32_80 = arith.constant 2 : i32
    %113 = tpu.memref_slice %arg26[%c2_i32_80] : memref<5x!tpu.dma_semaphore, #tpu.memory_space<semaphore_mem>> -> memref<1x!tpu.dma_semaphore, #tpu.memory_space<semaphore_mem>>
    %114 = tpu.memref_squeeze %113 : memref<1x!tpu.dma_semaphore, #tpu.memory_space<semaphore_mem>> -> memref<!tpu.dma_semaphore, #tpu.memory_space<semaphore_mem>>
    tpu.wait_dma2 semaphore(%114 : memref<!tpu.dma_semaphore, #tpu.memory_space<semaphore_mem>>) src(%arg3 : memref<4x256x256xf32, #tpu.memory_space<any>>) dst(%arg23 : memref<4x256x256xf32, #tpu.memory_space<vmem>>)
    %c0_81 = arith.constant 0 : index
    %c0_82 = arith.constant 0 : index
    %c0_83 = arith.constant 0 : index
    %115 = vector.load %arg23[%c0_81, %c0_82, %c0_83] : memref<4x256x256xf32, #tpu.memory_space<vmem>>, vector<1x256x256xf32>
    %116 = vector.shape_cast %115 : vector<1x256x256xf32> to vector<256x256xf32>
    %cst_84 = arith.constant dense<0.000000e+00> : vector<16x256xf32>
    %117 = tpu.matmul %112, %116, %cst_84 {dimension_numbers = #tpu.dot_dimension_numbers<[1], [0], [0], [1], [0, 0, 1, 1], [], []>} : vector<16x256xf32>, vector<256x256xf32>, vector<16x256xf32> -> vector<16x256xf32>
    %c0_85 = arith.constant 0 : index
    %c0_86 = arith.constant 0 : index
    %118 = vector.load %arg20[%c0_85, %c0_86] : memref<256x256xf32, #tpu.memory_space<vmem>>, vector<16x256xf32>
    tpu.vector_store %arg20[%c0_85, %c0_86], %117 {strides = array<i32>} : memref<256x256xf32, #tpu.memory_space<vmem>>, vector<16x256xf32>,
    %c1_87 = arith.constant 1 : index
    %c0_88 = arith.constant 0 : index
    %c0_89 = arith.constant 0 : index
    %119 = vector.load %arg23[%c1_87, %c0_88, %c0_89] : memref<4x256x256xf32, #tpu.memory_space<vmem>>, vector<1x256x256xf32>
    %120 = vector.shape_cast %119 : vector<1x256x256xf32> to vector<256x256xf32>
    %cst_90 = arith.constant dense<0.000000e+00> : vector<16x256xf32>
    %121 = tpu.matmul %112, %120, %cst_90 {dimension_numbers = #tpu.dot_dimension_numbers<[1], [0], [0], [1], [0, 0, 1, 1], [], []>} : vector<16x256xf32>, vector<256x256xf32>, vector<16x256xf32> -> vector<16x256xf32>
    %c16_91 = arith.constant 16 : index
    %c0_92 = arith.constant 0 : index
    %122 = vector.load %arg20[%c16_91, %c0_92] : memref<256x256xf32, #tpu.memory_space<vmem>>, vector<16x256xf32>
    tpu.vector_store %arg20[%c16_91, %c0_92], %121 {strides = array<i32>} : memref<256x256xf32, #tpu.memory_space<vmem>>, vector<16x256xf32>,
    %c2_93 = arith.constant 2 : index
    %c0_94 = arith.constant 0 : index
    %c0_95 = arith.constant 0 : index
    %123 = vector.load %arg23[%c2_93, %c0_94, %c0_95] : memref<4x256x256xf32, #tpu.memory_space<vmem>>, vector<1x256x256xf32>
    %124 = vector.shape_cast %123 : vector<1x256x256xf32> to vector<256x256xf32>
    %cst_96 = arith.constant dense<0.000000e+00> : vector<16x256xf32>
    %125 = tpu.matmul %112, %124, %cst_96 {dimension_numbers = #tpu.dot_dimension_numbers<[1], [0], [0], [1], [0, 0, 1, 1], [], []>} : vector<16x256xf32>, vector<256x256xf32>, vector<16x256xf32> -> vector<16x256xf32>
    %c32 = arith.constant 32 : index
    %c0_97 = arith.constant 0 : index
    %126 = vector.load %arg20[%c32, %c0_97] : memref<256x256xf32, #tpu.memory_space<vmem>>, vector<16x256xf32>
    tpu.vector_store %arg20[%c32, %c0_97], %125 {strides = array<i32>} : memref<256x256xf32, #tpu.memory_space<vmem>>, vector<16x256xf32>,
    %c3_98 = arith.constant 3 : index
    %c0_99 = arith.constant 0 : index
    %c0_100 = arith.constant 0 : index
    %127 = vector.load %arg23[%c3_98, %c0_99, %c0_100] : memref<4x256x256xf32, #tpu.memory_space<vmem>>, vector<1x256x256xf32>
    %128 = vector.shape_cast %127 : vector<1x256x256xf32> to vector<256x256xf32>
    %cst_101 = arith.constant dense<0.000000e+00> : vector<16x256xf32>
    %129 = tpu.matmul %112, %128, %cst_101 {dimension_numbers = #tpu.dot_dimension_numbers<[1], [0], [0], [1], [0, 0, 1, 1], [], []>} : vector<16x256xf32>, vector<256x256xf32>, vector<16x256xf32> -> vector<16x256xf32>
    %c48 = arith.constant 48 : index
    %c0_102 = arith.constant 0 : index
    %130 = vector.load %arg20[%c48, %c0_102] : memref<256x256xf32, #tpu.memory_space<vmem>>, vector<16x256xf32>
    tpu.vector_store %arg20[%c48, %c0_102], %129 {strides = array<i32>} : memref<256x256xf32, #tpu.memory_space<vmem>>, vector<16x256xf32>,
    %c0_103 = arith.constant 0 : index
    %c0_104 = arith.constant 0 : index
    %131 = vector.load %arg8[%c0_103, %c0_104] : memref<32x64xf32, #tpu.memory_space<vmem>>, vector<32x64xf32>
    %c0_105 = arith.constant 0 : index
    %c0_106 = arith.constant 0 : index
    %132 = vector.load %arg20[%c0_105, %c0_106] : memref<256x256xf32, #tpu.memory_space<vmem>>, vector<64x256xf32>
    %cst_107 = arith.constant dense<0.000000e+00> : vector<32x256xf32>
    %133 = tpu.matmul %131, %132, %cst_107 {dimension_numbers = #tpu.dot_dimension_numbers<[1], [0], [0], [1], [0, 0, 1, 1], [], []>} : vector<32x64xf32>, vector<64x256xf32>, vector<32x256xf32> -> vector<32x256xf32>
    %cst_108 = arith.constant dense<0.000000e+00> : vector<256xf32>
    %134 = vector.multi_reduction <add>, %133, %cst_108 [0] : vector<32x256xf32> to vector<256xf32>
    %135 = vector.shape_cast %134 : vector<256xf32> to vector<1x256xf32>
    %136 = arith.mulf %133, %133 : vector<32x256xf32>
    %cst_109 = arith.constant dense<0.000000e+00> : vector<256xf32>
    %137 = vector.multi_reduction <add>, %136, %cst_109 [0] : vector<32x256xf32> to vector<256xf32>
    %138 = vector.shape_cast %137 : vector<256xf32> to vector<1x256xf32>
    %139 = tpu.concatenate %135, %138 in 0 : vector<1x256xf32>, vector<1x256xf32> -> vector<2x256xf32>
    %c0_110 = arith.constant 0 : index
    %c0_111 = arith.constant 0 : index
    %140 = vector.load %arg13[%c0_110, %c0_111] : memref<256x256xf32, #tpu.memory_space<vmem>>, vector<256x256xf32>
    %cst_112 = arith.constant dense<0.000000e+00> : vector<2x256xf32>
    %141 = tpu.matmul %139, %140, %cst_112 {dimension_numbers = #tpu.dot_dimension_numbers<[1], [0], [0], [1], [0, 0, 1, 1], [], []>} : vector<2x256xf32>, vector<256x256xf32>, vector<2x256xf32> -> vector<2x256xf32>
    %cst_113 = arith.constant 0.001953125 : f32
    %142 = vector.broadcast %cst_113 : f32 to vector<2x256xf32>
    %143 = arith.mulf %141, %142 : vector<2x256xf32>
    %144 = vector.extract_strided_slice %143 {offsets = [0, 0], sizes = [1, 256], strides = [1, 1]} : vector<2x256xf32> to vector<1x256xf32>
    %145 = vector.extract_strided_slice %143 {offsets = [1, 0], sizes = [1, 256], strides = [1, 1]} : vector<2x256xf32> to vector<1x256xf32>
    %146 = arith.mulf %144, %144 : vector<1x256xf32>
    %147 = arith.subf %145, %146 : vector<1x256xf32>
    %cst_114 = arith.constant 0.000000e+00 : f32
    %148 = vector.broadcast %cst_114 : f32 to vector<1x256xf32>
    %149 = arith.maximumf %147, %148 : vector<1x256xf32>
    %c0_115 = arith.constant 0 : index
    %c0_116 = arith.constant 0 : index
    %150 = vector.load %arg17[%c0_115, %c0_116] : memref<2x256xf32, #tpu.memory_space<vmem>>, vector<1x256xf32>
    %cst_117 = arith.constant 9.99999974E-6 : f32
    %151 = vector.broadcast %cst_117 : f32 to vector<1x256xf32>
    %152 = arith.addf %149, %151 : vector<1x256xf32>
    %153 = math.rsqrt %152 : vector<1x256xf32>
    %154 = arith.mulf %150, %153 : vector<1x256xf32>
    %c1_118 = arith.constant 1 : index
    %c0_119 = arith.constant 0 : index
    %155 = vector.load %arg17[%c1_118, %c0_119] : memref<2x256xf32, #tpu.memory_space<vmem>>, vector<1x256xf32>
    %156 = arith.mulf %144, %154 : vector<1x256xf32>
    %157 = arith.subf %155, %156 : vector<1x256xf32>
    %158 = vector.broadcast %154 : vector<1x256xf32> to vector<32x256xf32>
    %159 = arith.mulf %133, %158 : vector<32x256xf32>
    %160 = vector.broadcast %157 : vector<1x256xf32> to vector<32x256xf32>
    %161 = arith.addf %159, %160 : vector<32x256xf32>
    %cst_120 = arith.constant 0.000000e+00 : f32
    %162 = vector.broadcast %cst_120 : f32 to vector<32x256xf32>
    %163 = arith.maximumf %161, %162 : vector<32x256xf32>
    %c3_i32_121 = arith.constant 3 : i32
    %164 = tpu.memref_slice %arg26[%c3_i32_121] : memref<5x!tpu.dma_semaphore, #tpu.memory_space<semaphore_mem>> -> memref<1x!tpu.dma_semaphore, #tpu.memory_space<semaphore_mem>>
    %165 = tpu.memref_squeeze %164 : memref<1x!tpu.dma_semaphore, #tpu.memory_space<semaphore_mem>> -> memref<!tpu.dma_semaphore, #tpu.memory_space<semaphore_mem>>
    tpu.wait_dma2 semaphore(%165 : memref<!tpu.dma_semaphore, #tpu.memory_space<semaphore_mem>>) src(%arg4 : memref<4x256x256xf32, #tpu.memory_space<any>>) dst(%arg24 : memref<4x256x256xf32, #tpu.memory_space<vmem>>)
    %c0_122 = arith.constant 0 : index
    %c0_123 = arith.constant 0 : index
    %c0_124 = arith.constant 0 : index
    %166 = vector.load %arg24[%c0_122, %c0_123, %c0_124] : memref<4x256x256xf32, #tpu.memory_space<vmem>>, vector<1x256x256xf32>
    %167 = vector.shape_cast %166 : vector<1x256x256xf32> to vector<256x256xf32>
    %cst_125 = arith.constant dense<0.000000e+00> : vector<32x256xf32>
    %168 = tpu.matmul %163, %167, %cst_125 {dimension_numbers = #tpu.dot_dimension_numbers<[1], [0], [0], [1], [0, 0, 1, 1], [], []>} : vector<32x256xf32>, vector<256x256xf32>, vector<32x256xf32> -> vector<32x256xf32>
    %c0_126 = arith.constant 0 : index
    %c0_127 = arith.constant 0 : index
    %169 = vector.load %arg20[%c0_126, %c0_127] : memref<256x256xf32, #tpu.memory_space<vmem>>, vector<32x256xf32>
    tpu.vector_store %arg20[%c0_126, %c0_127], %168 {strides = array<i32>} : memref<256x256xf32, #tpu.memory_space<vmem>>, vector<32x256xf32>,
    %c1_128 = arith.constant 1 : index
    %c0_129 = arith.constant 0 : index
    %c0_130 = arith.constant 0 : index
    %170 = vector.load %arg24[%c1_128, %c0_129, %c0_130] : memref<4x256x256xf32, #tpu.memory_space<vmem>>, vector<1x256x256xf32>
    %171 = vector.shape_cast %170 : vector<1x256x256xf32> to vector<256x256xf32>
    %cst_131 = arith.constant dense<0.000000e+00> : vector<32x256xf32>
    %172 = tpu.matmul %163, %171, %cst_131 {dimension_numbers = #tpu.dot_dimension_numbers<[1], [0], [0], [1], [0, 0, 1, 1], [], []>} : vector<32x256xf32>, vector<256x256xf32>, vector<32x256xf32> -> vector<32x256xf32>
    %c32_132 = arith.constant 32 : index
    %c0_133 = arith.constant 0 : index
    %173 = vector.load %arg20[%c32_132, %c0_133] : memref<256x256xf32, #tpu.memory_space<vmem>>, vector<32x256xf32>
    tpu.vector_store %arg20[%c32_132, %c0_133], %172 {strides = array<i32>} : memref<256x256xf32, #tpu.memory_space<vmem>>, vector<32x256xf32>,
    %c2_134 = arith.constant 2 : index
    %c0_135 = arith.constant 0 : index
    %c0_136 = arith.constant 0 : index
    %174 = vector.load %arg24[%c2_134, %c0_135, %c0_136] : memref<4x256x256xf32, #tpu.memory_space<vmem>>, vector<1x256x256xf32>
    %175 = vector.shape_cast %174 : vector<1x256x256xf32> to vector<256x256xf32>
    %cst_137 = arith.constant dense<0.000000e+00> : vector<32x256xf32>
    %176 = tpu.matmul %163, %175, %cst_137 {dimension_numbers = #tpu.dot_dimension_numbers<[1], [0], [0], [1], [0, 0, 1, 1], [], []>} : vector<32x256xf32>, vector<256x256xf32>, vector<32x256xf32> -> vector<32x256xf32>
    %c64 = arith.constant 64 : index
    %c0_138 = arith.constant 0 : index
    %177 = vector.load %arg20[%c64, %c0_138] : memref<256x256xf32, #tpu.memory_space<vmem>>, vector<32x256xf32>
    tpu.vector_store %arg20[%c64, %c0_138], %176 {strides = array<i32>} : memref<256x256xf32, #tpu.memory_space<vmem>>, vector<32x256xf32>,
    %c3_139 = arith.constant 3 : index
    %c0_140 = arith.constant 0 : index
    %c0_141 = arith.constant 0 : index
    %178 = vector.load %arg24[%c3_139, %c0_140, %c0_141] : memref<4x256x256xf32, #tpu.memory_space<vmem>>, vector<1x256x256xf32>
    %179 = vector.shape_cast %178 : vector<1x256x256xf32> to vector<256x256xf32>
    %cst_142 = arith.constant dense<0.000000e+00> : vector<32x256xf32>
    %180 = tpu.matmul %163, %179, %cst_142 {dimension_numbers = #tpu.dot_dimension_numbers<[1], [0], [0], [1], [0, 0, 1, 1], [], []>} : vector<32x256xf32>, vector<256x256xf32>, vector<32x256xf32> -> vector<32x256xf32>
    %c96 = arith.constant 96 : index
    %c0_143 = arith.constant 0 : index
    %181 = vector.load %arg20[%c96, %c0_143] : memref<256x256xf32, #tpu.memory_space<vmem>>, vector<32x256xf32>
    tpu.vector_store %arg20[%c96, %c0_143], %180 {strides = array<i32>} : memref<256x256xf32, #tpu.memory_space<vmem>>, vector<32x256xf32>,
    %c0_144 = arith.constant 0 : index
    %c0_145 = arith.constant 0 : index
    %182 = vector.load %arg9[%c0_144, %c0_145] : memref<64x128xf32, #tpu.memory_space<vmem>>, vector<64x128xf32>
    %c0_146 = arith.constant 0 : index
    %c0_147 = arith.constant 0 : index
    %183 = vector.load %arg20[%c0_146, %c0_147] : memref<256x256xf32, #tpu.memory_space<vmem>>, vector<128x256xf32>
    %cst_148 = arith.constant dense<0.000000e+00> : vector<64x256xf32>
    %184 = tpu.matmul %182, %183, %cst_148 {dimension_numbers = #tpu.dot_dimension_numbers<[1], [0], [0], [1], [0, 0, 1, 1], [], []>} : vector<64x128xf32>, vector<128x256xf32>, vector<64x256xf32> -> vector<64x256xf32>
    %cst_149 = arith.constant dense<0.000000e+00> : vector<256xf32>
    %185 = vector.multi_reduction <add>, %184, %cst_149 [0] : vector<64x256xf32> to vector<256xf32>
    %186 = vector.shape_cast %185 : vector<256xf32> to vector<1x256xf32>
    %187 = arith.mulf %184, %184 : vector<64x256xf32>
    %cst_150 = arith.constant dense<0.000000e+00> : vector<256xf32>
    %188 = vector.multi_reduction <add>, %187, %cst_150 [0] : vector<64x256xf32> to vector<256xf32>
    %189 = vector.shape_cast %188 : vector<256xf32> to vector<1x256xf32>
    %190 = tpu.concatenate %186, %189 in 0 : vector<1x256xf32>, vector<1x256xf32> -> vector<2x256xf32>
    %c0_151 = arith.constant 0 : index
    %c0_152 = arith.constant 0 : index
    %191 = vector.load %arg14[%c0_151, %c0_152] : memref<256x256xf32, #tpu.memory_space<vmem>>, vector<256x256xf32>
    %cst_153 = arith.constant dense<0.000000e+00> : vector<2x256xf32>
    %192 = tpu.matmul %190, %191, %cst_153 {dimension_numbers = #tpu.dot_dimension_numbers<[1], [0], [0], [1], [0, 0, 1, 1], [], []>} : vector<2x256xf32>, vector<256x256xf32>, vector<2x256xf32> -> vector<2x256xf32>
    %cst_154 = arith.constant 4.8828125E-4 : f32
    %193 = vector.broadcast %cst_154 : f32 to vector<2x256xf32>
    %194 = arith.mulf %192, %193 : vector<2x256xf32>
    %195 = vector.extract_strided_slice %194 {offsets = [0, 0], sizes = [1, 256], strides = [1, 1]} : vector<2x256xf32> to vector<1x256xf32>
    %196 = vector.extract_strided_slice %194 {offsets = [1, 0], sizes = [1, 256], strides = [1, 1]} : vector<2x256xf32> to vector<1x256xf32>
    %197 = arith.mulf %195, %195 : vector<1x256xf32>
    %198 = arith.subf %196, %197 : vector<1x256xf32>
    %cst_155 = arith.constant 0.000000e+00 : f32
    %199 = vector.broadcast %cst_155 : f32 to vector<1x256xf32>
    %200 = arith.maximumf %198, %199 : vector<1x256xf32>
    %c0_156 = arith.constant 0 : index
    %c0_157 = arith.constant 0 : index
    %201 = vector.load %arg18[%c0_156, %c0_157] : memref<2x256xf32, #tpu.memory_space<vmem>>, vector<1x256xf32>
    %cst_158 = arith.constant 9.99999974E-6 : f32
    %202 = vector.broadcast %cst_158 : f32 to vector<1x256xf32>
    %203 = arith.addf %200, %202 : vector<1x256xf32>
    %204 = math.rsqrt %203 : vector<1x256xf32>
    %205 = arith.mulf %201, %204 : vector<1x256xf32>
    %c1_159 = arith.constant 1 : index
    %c0_160 = arith.constant 0 : index
    %206 = vector.load %arg18[%c1_159, %c0_160] : memref<2x256xf32, #tpu.memory_space<vmem>>, vector<1x256xf32>
    %207 = arith.mulf %195, %205 : vector<1x256xf32>
    %208 = arith.subf %206, %207 : vector<1x256xf32>
    %209 = vector.broadcast %205 : vector<1x256xf32> to vector<64x256xf32>
    %210 = arith.mulf %184, %209 : vector<64x256xf32>
    %211 = vector.broadcast %208 : vector<1x256xf32> to vector<64x256xf32>
    %212 = arith.addf %210, %211 : vector<64x256xf32>
    %cst_161 = arith.constant 0.000000e+00 : f32
    %213 = vector.broadcast %cst_161 : f32 to vector<64x256xf32>
    %214 = arith.maximumf %212, %213 : vector<64x256xf32>
    %c4_i32_162 = arith.constant 4 : i32
    %215 = tpu.memref_slice %arg26[%c4_i32_162] : memref<5x!tpu.dma_semaphore, #tpu.memory_space<semaphore_mem>> -> memref<1x!tpu.dma_semaphore, #tpu.memory_space<semaphore_mem>>
    %216 = tpu.memref_squeeze %215 : memref<1x!tpu.dma_semaphore, #tpu.memory_space<semaphore_mem>> -> memref<!tpu.dma_semaphore, #tpu.memory_space<semaphore_mem>>
    tpu.wait_dma2 semaphore(%216 : memref<!tpu.dma_semaphore, #tpu.memory_space<semaphore_mem>>) src(%arg5 : memref<4x256x256xf32, #tpu.memory_space<any>>) dst(%arg25 : memref<4x256x256xf32, #tpu.memory_space<vmem>>)
    %c0_163 = arith.constant 0 : index
    %c0_164 = arith.constant 0 : index
    %c0_165 = arith.constant 0 : index
    %217 = vector.load %arg25[%c0_163, %c0_164, %c0_165] : memref<4x256x256xf32, #tpu.memory_space<vmem>>, vector<1x256x256xf32>
    %218 = vector.shape_cast %217 : vector<1x256x256xf32> to vector<256x256xf32>
    %cst_166 = arith.constant dense<0.000000e+00> : vector<64x256xf32>
    %219 = tpu.matmul %214, %218, %cst_166 {dimension_numbers = #tpu.dot_dimension_numbers<[1], [0], [0], [1], [0, 0, 1, 1], [], []>} : vector<64x256xf32>, vector<256x256xf32>, vector<64x256xf32> -> vector<64x256xf32>
    %c0_167 = arith.constant 0 : index
    %c0_168 = arith.constant 0 : index
    %220 = vector.load %arg20[%c0_167, %c0_168] : memref<256x256xf32, #tpu.memory_space<vmem>>, vector<64x256xf32>
    tpu.vector_store %arg20[%c0_167, %c0_168], %219 {strides = array<i32>} : memref<256x256xf32, #tpu.memory_space<vmem>>, vector<64x256xf32>,
    %c1_169 = arith.constant 1 : index
    %c0_170 = arith.constant 0 : index
    %c0_171 = arith.constant 0 : index
    %221 = vector.load %arg25[%c1_169, %c0_170, %c0_171] : memref<4x256x256xf32, #tpu.memory_space<vmem>>, vector<1x256x256xf32>
    %222 = vector.shape_cast %221 : vector<1x256x256xf32> to vector<256x256xf32>
    %cst_172 = arith.constant dense<0.000000e+00> : vector<64x256xf32>
    %223 = tpu.matmul %214, %222, %cst_172 {dimension_numbers = #tpu.dot_dimension_numbers<[1], [0], [0], [1], [0, 0, 1, 1], [], []>} : vector<64x256xf32>, vector<256x256xf32>, vector<64x256xf32> -> vector<64x256xf32>
    %c64_173 = arith.constant 64 : index
    %c0_174 = arith.constant 0 : index
    %224 = vector.load %arg20[%c64_173, %c0_174] : memref<256x256xf32, #tpu.memory_space<vmem>>, vector<64x256xf32>
    tpu.vector_store %arg20[%c64_173, %c0_174], %223 {strides = array<i32>} : memref<256x256xf32, #tpu.memory_space<vmem>>, vector<64x256xf32>,
    %c2_175 = arith.constant 2 : index
    %c0_176 = arith.constant 0 : index
    %c0_177 = arith.constant 0 : index
    %225 = vector.load %arg25[%c2_175, %c0_176, %c0_177] : memref<4x256x256xf32, #tpu.memory_space<vmem>>, vector<1x256x256xf32>
    %226 = vector.shape_cast %225 : vector<1x256x256xf32> to vector<256x256xf32>
    %cst_178 = arith.constant dense<0.000000e+00> : vector<64x256xf32>
    %227 = tpu.matmul %214, %226, %cst_178 {dimension_numbers = #tpu.dot_dimension_numbers<[1], [0], [0], [1], [0, 0, 1, 1], [], []>} : vector<64x256xf32>, vector<256x256xf32>, vector<64x256xf32> -> vector<64x256xf32>
    %c128 = arith.constant 128 : index
    %c0_179 = arith.constant 0 : index
    %228 = vector.load %arg20[%c128, %c0_179] : memref<256x256xf32, #tpu.memory_space<vmem>>, vector<64x256xf32>
    tpu.vector_store %arg20[%c128, %c0_179], %227 {strides = array<i32>} : memref<256x256xf32, #tpu.memory_space<vmem>>, vector<64x256xf32>,
    %c3_180 = arith.constant 3 : index
    %c0_181 = arith.constant 0 : index
    %c0_182 = arith.constant 0 : index
    %229 = vector.load %arg25[%c3_180, %c0_181, %c0_182] : memref<4x256x256xf32, #tpu.memory_space<vmem>>, vector<1x256x256xf32>
    %230 = vector.shape_cast %229 : vector<1x256x256xf32> to vector<256x256xf32>
    %cst_183 = arith.constant dense<0.000000e+00> : vector<64x256xf32>
    %231 = tpu.matmul %214, %230, %cst_183 {dimension_numbers = #tpu.dot_dimension_numbers<[1], [0], [0], [1], [0, 0, 1, 1], [], []>} : vector<64x256xf32>, vector<256x256xf32>, vector<64x256xf32> -> vector<64x256xf32>
    %c192 = arith.constant 192 : index
    %c0_184 = arith.constant 0 : index
    %232 = vector.load %arg20[%c192, %c0_184] : memref<256x256xf32, #tpu.memory_space<vmem>>, vector<64x256xf32>
    tpu.vector_store %arg20[%c192, %c0_184], %231 {strides = array<i32>} : memref<256x256xf32, #tpu.memory_space<vmem>>, vector<64x256xf32>,
    %c0_185 = arith.constant 0 : index
    %c0_186 = arith.constant 0 : index
    %233 = vector.load %arg10[%c0_185, %c0_186] : memref<128x256xf32, #tpu.memory_space<vmem>>, vector<128x256xf32>
    %c0_187 = arith.constant 0 : index
    %c0_188 = arith.constant 0 : index
    %234 = vector.load %arg20[%c0_187, %c0_188] : memref<256x256xf32, #tpu.memory_space<vmem>>, vector<256x256xf32>
    %cst_189 = arith.constant dense<0.000000e+00> : vector<128x256xf32>
    %235 = tpu.matmul %233, %234, %cst_189 {dimension_numbers = #tpu.dot_dimension_numbers<[1], [0], [0], [1], [0, 0, 1, 1], [], []>} : vector<128x256xf32>, vector<256x256xf32>, vector<128x256xf32> -> vector<128x256xf32>
    %236 = math.tanh %235 : vector<128x256xf32>
    %c0_190 = arith.constant 0 : index
    %c0_191 = arith.constant 0 : index
    %237 = vector.load %arg19[%c0_190, %c0_191] : memref<128x256xf32, #tpu.memory_space<vmem>>, vector<128x256xf32>
    tpu.vector_store %arg19[%c0_190, %c0_191], %236 {strides = array<i32>} : memref<128x256xf32, #tpu.memory_space<vmem>>, vector<128x256xf32>,
    return
  }
}

</mosaic_0001>

<llo_original>
// kernel: forward.1
$region0: #{forward.1}
  #allocation0 [shape = 'u32[]', space=smem, size = 0x4, offset = 0x4, fixed_abs, tag = 'smem constant byte address 0x4 - core index']
  #allocation1 [shape = 'u32[144,128]{1,0:T(1,128)}', space=vmem, size = 0x12000, scoped, tag = 'internal scratch']
  #allocation2 [shape = 'f32[256,256]{1,0:T(8,128)}', space=vmem, size = 0x40000, scoped, tag = 'scratch operand']
  #allocation3 [shape = 'f32[4,128,256]{2,1,0:T(8,128)}', space=vmem, size = 0x80000, scoped, tag = 'scratch operand']
  #allocation4 [shape = 'f32[4,256,256]{2,1,0:T(8,128)}', space=vmem, size = 0x100000, scoped, tag = 'scratch operand']
  #allocation5 [shape = 'f32[4,256,256]{2,1,0:T(8,128)}', space=vmem, size = 0x100000, scoped, tag = 'scratch operand']
  #allocation6 [shape = 'f32[4,256,256]{2,1,0:T(8,128)}', space=vmem, size = 0x100000, scoped, tag = 'scratch operand']
  #allocation7 [shape = 'f32[4,256,256]{2,1,0:T(8,128)}', space=vmem, size = 0x100000, scoped, tag = 'scratch operand']
  #allocation8 [shape = 's32[5]{0}', space=sflag, size = 0x14, scoped, tag = 'scratch operand']
  #allocation20 [shape = 's32[]', space=sflag, size = 0x4, offset = 0, fixed_abs, tag = 'sflag constant byte address 0x0 - dummy sync flag']
  #allocation21 [shape = 's32[]', space=sflag, size = 0x4, offset = 0, fixed_abs, tag = 'sflag constant byte address 0x0 - dummy sync flag']
  #allocation22 [shape = 'u32[]', space=smem, size = 0x4, offset = 0x44, fixed_abs, tag = 'smem constant byte address 0x44 - assertion arg 0']
  #allocation23 [shape = 'u32[]', space=smem, size = 0x4, offset = 0x48, fixed_abs, tag = 'smem constant byte address 0x48 - assertion arg 1']
  #allocation24 [shape = 's32[]', space=sflag, size = 0x4, offset = 0, fixed_abs, tag = 'sflag constant byte address 0x0 - dummy sync flag']
  #allocation25 [shape = 's32[]', space=sflag, size = 0x4, offset = 0, fixed_abs, tag = 'sflag constant byte address 0x0 - dummy sync flag']
  #allocation26 [shape = 's32[]', space=sflag, size = 0x4, offset = 0, fixed_abs, tag = 'sflag constant byte address 0x0 - dummy sync flag']
  #allocation27 [shape = 's32[]', space=sflag, size = 0x4, offset = 0, fixed_abs, tag = 'sflag constant byte address 0x0 - dummy sync flag']
  #allocation28 [shape = 's32[]', space=sflag, size = 0x4, offset = 0, fixed_abs, tag = 'sflag constant byte address 0x0 - dummy sync flag']
  #allocation29 [shape = 's32[]', space=sflag, size = 0x4, offset = 0, fixed_abs, tag = 'sflag constant byte address 0x0 - dummy sync flag']
  #allocation30 [shape = 's32[]', space=sflag, size = 0x4, offset = 0, fixed_abs, tag = 'sflag constant byte address 0x0 - dummy sync flag']
  #allocation31 [shape = 's32[]', space=sflag, size = 0x4, offset = 0, fixed_abs, tag = 'sflag constant byte address 0x0 - dummy sync flag']
  %s0 = inlined_call_operand.vmem [shape: f32[8,128], index: 0, kind: input, shape index: {}]
  %s1 = inlined_call_operand.hbm [shape: f32[4,128,256], index: 1, kind: input, shape index: {}]
  %s2 = inlined_call_operand.hbm [shape: f32[4,256,256], index: 2, kind: input, shape index: {}]
  %s3 = inlined_call_operand.hbm [shape: f32[4,256,256], index: 3, kind: input, shape index: {}]
  %s4 = inlined_call_operand.hbm [shape: f32[4,256,256], index: 4, kind: input, shape index: {}]
  %s5 = inlined_call_operand.hbm [shape: f32[4,256,256], index: 5, kind: input, shape index: {}]
  %s6 = inlined_call_operand.vmem [shape: f32[8,32], index: 6, kind: input, shape index: {}]
  %s7 = inlined_call_operand.hbm [shape: f32[16,32], index: 7, kind: input, shape index: {}]
  %s8 = inlined_call_operand.vmem [shape: f32[32,64], index: 8, kind: input, shape index: {}]
  %s9 = inlined_call_operand.hbm [shape: f32[64,128], index: 9, kind: input, shape index: {}]
  %s10 = inlined_call_operand.hbm [shape: f32[128,256], index: 10, kind: input, shape index: {}]
  %s11 = inlined_call_operand.hbm [shape: f32[256,256], index: 11, kind: input, shape index: {}]
  %s12 = inlined_call_operand.hbm [shape: f32[256,256], index: 12, kind: input, shape index: {}]
  %s13 = inlined_call_operand.hbm [shape: f32[256,256], index: 13, kind: input, shape index: {}]
  %s14 = inlined_call_operand.hbm [shape: f32[256,256], index: 14, kind: input, shape index: {}]
  %s15 = inlined_call_operand.vmem [shape: f32[2,256], index: 15, kind: input, shape index: {}]
  %s16 = inlined_call_operand.vmem [shape: f32[2,256], index: 16, kind: input, shape index: {}]
  %s17 = inlined_call_operand.vmem [shape: f32[2,256], index: 17, kind: input, shape index: {}]
  %s18 = inlined_call_operand.vmem [shape: f32[2,256], index: 18, kind: input, shape index: {}]
  %s19 = inlined_call_operand.vmem [shape: f32[128,256], index: 19, kind: output, shape index: {}]
  %s20 = sld [smem:[#allocation0]]
  $region114: #{forward.1} parent=0
    _
  %s22 = ssub.s32 1, %s20
  %s23 = scalar_select 0, %s22, %s20
  $region1: #{forward.1} parent=0
    #allocation9 [shape = 'u8[8192]{0}', space=vmem, size = 0x2000, scoped, tag = 'input window, operand 7, single buffered']
    #allocation10 [shape = 's32[1]{0}', space=sflag, size = 0x4, scoped, tag = 'scoped memory for forward.1']
    #allocation11 [shape = 'u8[32768]{0}', space=vmem, size = 0x8000, scoped, tag = 'input window, operand 9, single buffered']
    #allocation12 [shape = 's32[1]{0}', space=sflag, size = 0x4, scoped, tag = 'scoped memory for forward.1']
    #allocation13 [shape = 'u8[131072]{0}', space=vmem, size = 0x20000, scoped, tag = 'input window, operand 10, single buffered']
    #allocation14 [shape = 'u8[262144]{0}', space=vmem, size = 0x40000, scoped, tag = 'input window, operand 11, single buffered']
    #allocation15 [shape = 's32[1]{0}', space=sflag, size = 0x4, scoped, tag = 'scoped memory for forward.1']
    #allocation16 [shape = 'u8[262144]{0}', space=vmem, size = 0x40000, scoped, tag = 'input window, operand 12, single buffered']
    #allocation17 [shape = 'u8[262144]{0}', space=vmem, size = 0x40000, scoped, tag = 'input window, operand 13, single buffered']
    #allocation18 [shape = 's32[1]{0}', space=sflag, size = 0x4, scoped, tag = 'scoped memory for forward.1']
    #allocation19 [shape = 'u8[262144]{0}', space=vmem, size = 0x40000, scoped, tag = 'input window, operand 14, single buffered']
    %24 = vsyncpa [#allocation10], 0
    %25 = vsyncpa [#allocation12], 0
    %26 = vsyncpa [#allocation15], 0
    %27 = vsyncpa [#allocation18], 0
    // Predicated region
    $region2: #{forward.1} parent=1 // pred_check
      _
    $region3: #{forward.1} parent=1 // pred_check_branch
      %29 = sbr.rel (0) target = $region5
    $region4: #{forward.1} parent=1 // pred_region
      _
    $region5: #{forward.1} parent=1 // pred_fallthru
      _
    // Predicated region
    $region6: #{forward.1} parent=1 // pred_check
      _
    $region7: #{forward.1} parent=1 // pred_check_branch
      %31 = sbr.rel (0) target = $region9
    $region8: #{forward.1} parent=1 // pred_region
      _
    $region9: #{forward.1} parent=1 // pred_fallthru
      _
    // Predicated region
    $region10: #{forward.1} parent=1 // pred_check
      _
    $region11: #{forward.1} parent=1 // pred_check_branch
      %33 = sbr.rel (0) target = $region13
    $region12: #{forward.1} parent=1 // pred_region
      %s35 = ssub.s32 256, 256
      %36 = vsyncadd [#allocation10], %s35
      %s37 = sshll.u32 [#allocation9], 4
      %s38 = int_to_ptr.vmem [resolvable:$true] %s37
      %43 = dma.hbm_to_vmem [thread:$0]  %s7, 256, %s38, [#allocation10], 128, 128, 8
    $region13: #{forward.1} parent=1 // pred_fallthru
      _
    // Predicated region
    $region14: #{forward.1} parent=1 // pred_check
      _
    $region15: #{forward.1} parent=1 // pred_check_branch
      %45 = sbr.rel (0) target = $region17
    $region16: #{forward.1} parent=1 // pred_region
      _
    $region17: #{forward.1} parent=1 // pred_fallthru
      _
    // Predicated region
    $region18: #{forward.1} parent=1 // pred_check
      _
    $region19: #{forward.1} parent=1 // pred_check_branch
      %47 = sbr.rel (0) target = $region21
    $region20: #{forward.1} parent=1 // pred_region
      %s49 = ssub.s32 1024, 1024
      %50 = vsyncadd [#allocation12], %s49
      %s51 = sshll.u32 [#allocation11], 4
      %s52 = int_to_ptr.vmem [resolvable:$true] %s51
      %57 = dma.hbm_to_vmem [thread:$0]  %s9, 1024, %s52, [#allocation12], 128, 128, 8
    $region21: #{forward.1} parent=1 // pred_fallthru
      _
    // Predicated region
    $region22: #{forward.1} parent=1 // pred_check
      _
    $region23: #{forward.1} parent=1 // pred_check_branch
      %59 = sbr.rel (0) target = $region25
    $region24: #{forward.1} parent=1 // pred_region
      %s61 = ssub.s32 4096, 4096
      %62 = vsyncadd [#allocation12], %s61
      %s63 = sshll.u32 [#allocation13], 4
      %s64 = int_to_ptr.vmem [resolvable:$true] %s63
      %69 = dma.hbm_to_vmem [thread:$0]  %s10, 4096, %s64, [#allocation12], 256, 256, 16
    $region25: #{forward.1} parent=1 // pred_fallthru
      _
    // Predicated region
    $region26: #{forward.1} parent=1 // pred_check
      _
    $region27: #{forward.1} parent=1 // pred_check_branch
      %71 = sbr.rel (0) target = $region29
    $region28: #{forward.1} parent=1 // pred_region
      %s73 = ssub.s32 8192, 8192
      %74 = vsyncadd [#allocation15], %s73
      %s75 = sshll.u32 [#allocation14], 4
      %s76 = int_to_ptr.vmem [resolvable:$true] %s75
      %81 = dma.hbm_to_vmem [thread:$0]  %s11, 8192, %s76, [#allocation15], 256, 256, 16
    $region29: #{forward.1} parent=1 // pred_fallthru
      _
    // Predicated region
    $region30: #{forward.1} parent=1 // pred_check
      _
    $region31: #{forward.1} parent=1 // pred_check_branch
      %83 = sbr.rel (0) target = $region33
    $region32: #{forward.1} parent=1 // pred_region
      %s85 = ssub.s32 8192, 8192
      %86 = vsyncadd [#allocation15], %s85
      %s87 = sshll.u32 [#allocation16], 4
      %s88 = int_to_ptr.vmem [resolvable:$true] %s87
      %93 = dma.hbm_to_vmem [thread:$0]  %s12, 8192, %s88, [#allocation15], 256, 256, 16
    $region33: #{forward.1} parent=1 // pred_fallthru
      _
    // Predicated region
    $region34: #{forward.1} parent=1 // pred_check
      _
    $region35: #{forward.1} parent=1 // pred_check_branch
      %95 = sbr.rel (0) target = $region37
    $region36: #{forward.1} parent=1 // pred_region
      %s97 = ssub.s32 8192, 8192
      %98 = vsyncadd [#allocation18], %s97
      %s99 = sshll.u32 [#allocation17], 4
      %s100 = int_to_ptr.vmem [resolvable:$true] %s99
      %105 = dma.hbm_to_vmem [thread:$0]  %s13, 8192, %s100, [#allocation18], 256, 256, 16
    $region37: #{forward.1} parent=1 // pred_fallthru
      _
    // Predicated region
    $region38: #{forward.1} parent=1 // pred_check
      _
    $region39: #{forward.1} parent=1 // pred_check_branch
      %107 = sbr.rel (0) target = $region41
    $region40: #{forward.1} parent=1 // pred_region
      %s109 = ssub.s32 8192, 8192
      %110 = vsyncadd [#allocation18], %s109
      %s111 = sshll.u32 [#allocation19], 4
      %s112 = int_to_ptr.vmem [resolvable:$true] %s111
      %117 = dma.hbm_to_vmem [thread:$0]  %s14, 8192, %s112, [#allocation18], 256, 256, 16
    $region41: #{forward.1} parent=1 // pred_fallthru
      _
    // Predicated region
    $region42: #{forward.1} parent=1 // pred_check
      _
    $region43: #{forward.1} parent=1 // pred_check_branch
      %119 = sbr.rel (0) target = $region45
    $region44: #{forward.1} parent=1 // pred_region
      _
    $region45: #{forward.1} parent=1 // pred_fallthru
      _
    // Predicated region
    $region46: #{forward.1} parent=1 // pred_check
      _
    $region47: #{forward.1} parent=1 // pred_check_branch
      %121 = sbr.rel (0) target = $region49
    $region48: #{forward.1} parent=1 // pred_region
      _
    $region49: #{forward.1} parent=1 // pred_fallthru
      _
    // Predicated region
    $region50: #{forward.1} parent=1 // pred_check
      _
    $region51: #{forward.1} parent=1 // pred_check_branch
      %123 = sbr.rel (0) target = $region53
    $region52: #{forward.1} parent=1 // pred_region
      _
    $region53: #{forward.1} parent=1 // pred_fallthru
      _
    // Predicated region
    $region54: #{forward.1} parent=1 // pred_check
      _
    $region55: #{forward.1} parent=1 // pred_check_branch
      %125 = sbr.rel (0) target = $region57
    $region56: #{forward.1} parent=1 // pred_region
      _
    $region57: #{forward.1} parent=1 // pred_fallthru
      _
    // Predicated region
    $region58: #{forward.1} parent=1 // pred_check
      _
    $region59: #{forward.1} parent=1 // pred_check_branch
      %127 = sbr.rel (0) target = $region61
    $region60: #{forward.1} parent=1 // pred_region
      %128 = dma.done [#allocation10], 256
    $region61: #{forward.1} parent=1 // pred_fallthru
      _
    // Predicated region
    $region62: #{forward.1} parent=1 // pred_check
      _
    $region63: #{forward.1} parent=1 // pred_check_branch
      %130 = sbr.rel (0) target = $region65
    $region64: #{forward.1} parent=1 // pred_region
      %131 = dma.done [#allocation12], 1024
    $region65: #{forward.1} parent=1 // pred_fallthru
      _
    // Predicated region
    $region66: #{forward.1} parent=1 // pred_check
      _
    $region67: #{forward.1} parent=1 // pred_check_branch
      %133 = sbr.rel (0) target = $region69
    $region68: #{forward.1} parent=1 // pred_region
      %134 = dma.done [#allocation12], 4096
    $region69: #{forward.1} parent=1 // pred_fallthru
      _
    // Predicated region
    $region70: #{forward.1} parent=1 // pred_check
      _
    $region71: #{forward.1} parent=1 // pred_check_branch
      %136 = sbr.rel (0) target = $region73
    $region72: #{forward.1} parent=1 // pred_region
      %137 = dma.done [#allocation15], 8192
    $region73: #{forward.1} parent=1 // pred_fallthru
      _
    // Predicated region
    $region74: #{forward.1} parent=1 // pred_check
      _
    $region75: #{forward.1} parent=1 // pred_check_branch
      %139 = sbr.rel (0) target = $region77
    $region76: #{forward.1} parent=1 // pred_region
      %140 = dma.done [#allocation15], 8192
    $region77: #{forward.1} parent=1 // pred_fallthru
      _
    // Predicated region
    $region78: #{forward.1} parent=1 // pred_check
      _
    $region79: #{forward.1} parent=1 // pred_check_branch
      %142 = sbr.rel (0) target = $region81
    $region80: #{forward.1} parent=1 // pred_region
      %143 = dma.done [#allocation18], 8192
    $region81: #{forward.1} parent=1 // pred_fallthru
      _
    // Predicated region
    $region82: #{forward.1} parent=1 // pred_check
      _
    $region83: #{forward.1} parent=1 // pred_check_branch
      %145 = sbr.rel (0) target = $region85
    $region84: #{forward.1} parent=1 // pred_region
      %146 = dma.done [#allocation18], 8192
    $region85: #{forward.1} parent=1 // pred_fallthru
      _
    // Predicated region
    $region86: #{forward.1} parent=1 // pred_check
      _
    $region87: #{forward.1} parent=1 // pred_check_branch
      %148 = sbr.rel target = $region89
    $region88: #{forward.1} parent=1 // pred_region
      %149 = sst [smem:[#allocation22]] [#allocation21]
      %150 = sst [smem:[#allocation23]] [#allocation20]
    $region89: #{forward.1} parent=1 // pred_fallthru
      _
    %152 = shalt.err (0)
    %s154 = sshll.u32 [#allocation3], 4
    %s155 = int_to_ptr.vmem [resolvable:$true] %s154
    %157 = dma.hbm_to_vmem [thread:$0]  %s1, 16384, %s155, [#allocation8]
    %s158 = scalar_lea.sflag [#allocation8], 1
    // Predicated region
    $region90: #{forward.1} parent=1 // pred_check
      _
    $region91: #{forward.1} parent=1 // pred_check_branch
      %160 = sbr.rel target = $region93
    $region92: #{forward.1} parent=1 // pred_region
      %161 = sst [smem:[#allocation22]] [#allocation25]
      %162 = sst [smem:[#allocation23]] [#allocation24]
    $region93: #{forward.1} parent=1 // pred_fallthru
      _
    %164 = shalt.err (0)
    %s166 = sshll.u32 [#allocation4], 4
    %s167 = int_to_ptr.vmem [resolvable:$true] %s166
    %169 = dma.hbm_to_vmem [thread:$0]  %s2, 32768, %s167, %s158
    %s170 = scalar_lea.sflag [#allocation8], 2
    // Predicated region
    $region94: #{forward.1} parent=1 // pred_check
      _
    $region95: #{forward.1} parent=1 // pred_check_branch
      %172 = sbr.rel target = $region97
    $region96: #{forward.1} parent=1 // pred_region
      %173 = sst [smem:[#allocation22]] [#allocation27]
      %174 = sst [smem:[#allocation23]] [#allocation26]
    $region97: #{forward.1} parent=1 // pred_fallthru
      _
    %176 = shalt.err (0)
    %s178 = sshll.u32 [#allocation5], 4
    %s179 = int_to_ptr.vmem [resolvable:$true] %s178
    %181 = dma.hbm_to_vmem [thread:$0]  %s3, 32768, %s179, %s170
    %s182 = scalar_lea.sflag [#allocation8], 3
    // Predicated region
    $region98: #{forward.1} parent=1 // pred_check
      _
    $region99: #{forward.1} parent=1 // pred_check_branch
      %184 = sbr.rel target = $region101
    $region100: #{forward.1} parent=1 // pred_region
      %185 = sst [smem:[#allocation22]] [#allocation29]
      %186 = sst [smem:[#allocation23]] [#allocation28]
    $region101: #{forward.1} parent=1 // pred_fallthru
      _
    %188 = shalt.err (0)
    %s190 = sshll.u32 [#allocation6], 4
    %s191 = int_to_ptr.vmem [resolvable:$true] %s190
    %193 = dma.hbm_to_vmem [thread:$0]  %s4, 32768, %s191, %s182
    %s194 = scalar_lea.sflag [#allocation8], 4
    // Predicated region
    $region102: #{forward.1} parent=1 // pred_check
      _
    $region103: #{forward.1} parent=1 // pred_check_branch
      %196 = sbr.rel target = $region105
    $region104: #{forward.1} parent=1 // pred_region
      %197 = sst [smem:[#allocation22]] [#allocation31]
      %198 = sst [smem:[#allocation23]] [#allocation30]
    $region105: #{forward.1} parent=1 // pred_fallthru
      _
    %200 = shalt.err (0)
    %s202 = sshll.u32 [#allocation7], 4
    %s203 = int_to_ptr.vmem [resolvable:$true] %s202
    %205 = dma.hbm_to_vmem [thread:$0]  %s5, 32768, %s203, %s194
    %v206 = vld [vmem:[%s0] sm:$0xff]
    %s207 = smul.u32 8, 4
    %s208 = smul.u32 %s207, 16
    %s209 = smul.u32 %s208, 2
    %s210 = sshll.u32 %s209, 4
    %211 = dma.done [#allocation8], %s210
    %v212 = vld [vmem:[#allocation3] sm:$0xff]
    %v213 = vld [vmem:[#allocation3 + $0x8] sm:$0xff]
    %v214 = vld [vmem:[#allocation3 + $0x10] sm:$0xff]
    %v215 = vld [vmem:[#allocation3 + $0x18] sm:$0xff]
    %v216 = vld [vmem:[#allocation3 + $0x20] sm:$0xff]
    %v217 = vld [vmem:[#allocation3 + $0x28] sm:$0xff]
    %v218 = vld [vmem:[#allocation3 + $0x30] sm:$0xff]
    %v219 = vld [vmem:[#allocation3 + $0x38] sm:$0xff]
    %v220 = vld [vmem:[#allocation3 + $0x40] sm:$0xff]
    %v221 = vld [vmem:[#allocation3 + $0x48] sm:$0xff]
    %v222 = vld [vmem:[#allocation3 + $0x50] sm:$0xff]
    %v223 = vld [vmem:[#allocation3 + $0x58] sm:$0xff]
    %v224 = vld [vmem:[#allocation3 + $0x60] sm:$0xff]
    %v225 = vld [vmem:[#allocation3 + $0x68] sm:$0xff]
    %v226 = vld [vmem:[#allocation3 + $0x70] sm:$0xff]
    %v227 = vld [vmem:[#allocation3 + $0x78] sm:$0xff]
    %v228 = vld [vmem:[#allocation3 + $0x80] sm:$0xff]
    %v229 = vld [vmem:[#allocation3 + $0x88] sm:$0xff]
    %v230 = vld [vmem:[#allocation3 + $0x90] sm:$0xff]
    %v231 = vld [vmem:[#allocation3 + $0x98] sm:$0xff]
    %v232 = vld [vmem:[#allocation3 + $0xa0] sm:$0xff]
    %v233 = vld [vmem:[#allocation3 + $0xa8] sm:$0xff]
    %v234 = vld [vmem:[#allocation3 + $0xb0] sm:$0xff]
    %v235 = vld [vmem:[#allocation3 + $0xb8] sm:$0xff]
    %v236 = vld [vmem:[#allocation3 + $0xc0] sm:$0xff]
    %v237 = vld [vmem:[#allocation3 + $0xc8] sm:$0xff]
    %v238 = vld [vmem:[#allocation3 + $0xd0] sm:$0xff]
    %v239 = vld [vmem:[#allocation3 + $0xd8] sm:$0xff]
    %v240 = vld [vmem:[#allocation3 + $0xe0] sm:$0xff]
    %v241 = vld [vmem:[#allocation3 + $0xe8] sm:$0xff]
    %v242 = vld [vmem:[#allocation3 + $0xf0] sm:$0xff]
    %v243 = vld [vmem:[#allocation3 + $0xf8] sm:$0xff]
    %244 = vmatprep.subr.mxu0 %v213
    %245 = vmatpush1.msra.mxu0 %v212
    %246 = vmatprep.subr.mxu0 %v215
    %247 = vmatpush1.msra.mxu0 %v214
    %248 = vmatprep.subr.mxu0 %v217
    %249 = vmatpush1.msra.mxu0 %v216
    %250 = vmatprep.subr.mxu0 %v219
    %251 = vmatpush1.msra.mxu0 %v218
    %252 = vmatprep.subr.mxu0 %v221
    %253 = vmatpush1.msra.mxu0 %v220
    %254 = vmatprep.subr.mxu0 %v223
    %255 = vmatpush1.msra.mxu0 %v222
    %256 = vmatprep.subr.mxu0 %v225
    %257 = vmatpush1.msra.mxu0 %v224
    %258 = vmatprep.subr.mxu0 %v227
    %259 = vmatpush1.msra.mxu0 %v226
    %260 = vmatprep.subr.mxu0 %v229
    %261 = vmatpush1.msra.mxu0 %v228
    %262 = vmatprep.subr.mxu0 %v231
    %263 = vmatpush1.msra.mxu0 %v230
    %264 = vmatprep.subr.mxu0 %v233
    %265 = vmatpush1.msra.mxu0 %v232
    %266 = vmatprep.subr.mxu0 %v235
    %267 = vmatpush1.msra.mxu0 %v234
    %268 = vmatprep.subr.mxu0 %v237
    %269 = vmatpush1.msra.mxu0 %v236
    %270 = vmatprep.subr.mxu0 %v239
    %271 = vmatpush1.msra.mxu0 %v238
    %272 = vmatprep.subr.mxu0 %v241
    %273 = vmatpush1.msra.mxu0 %v240
    %274 = vmatprep.subr.mxu0 %v243
    %275 = vmatpush1.msra.mxu0 %v242
    %276 = vmatprep.subr.mxu0 0.0
    %277 = vmatpush1.msra.mxu0 0.0
    %278 = vmatprep.subr.mxu0 0.0
    %279 = vmatpush1.msra.mxu0 0.0
    %280 = vmatprep.subr.mxu0 0.0
    %281 = vmatpush1.msra.mxu0 0.0
    %282 = vmatprep.subr.mxu0 0.0
    %283 = vmatpush1.msra.mxu0 0.0
    %284 = vmatprep.subr.mxu0 0.0
    %285 = vmatpush1.msra.mxu0 0.0
    %286 = vmatprep.subr.mxu0 0.0
    %287 = vmatpush1.msra.mxu0 0.0
    %288 = vmatprep.subr.mxu0 0.0
    %289 = vmatpush1.msra.mxu0 0.0
    %290 = vmatprep.subr.mxu0 0.0
    %291 = vmatpush1.msra.mxu0 0.0
    %292 = vmatprep.subr.mxu0 0.0
    %293 = vmatpush1.msra.mxu0 0.0
    %294 = vmatprep.subr.mxu0 0.0
    %295 = vmatpush1.msra.mxu0 0.0
    %296 = vmatprep.subr.mxu0 0.0
    %297 = vmatpush1.msra.mxu0 0.0
    %298 = vmatprep.subr.mxu0 0.0
    %299 = vmatpush1.msra.mxu0 0.0
    %300 = vmatprep.subr.mxu0 0.0
    %301 = vmatpush1.msra.mxu0 0.0
    %302 = vmatprep.subr.mxu0 0.0
    %303 = vmatpush1.msra.mxu0 0.0
    %304 = vmatprep.subr.mxu0 0.0
    %305 = vmatpush1.msra.mxu0 0.0
    %306 = vmatprep.subr.mxu0 0.0
    %307 = vmatpush1.msra.mxu0 0.0
    %308 = vmatprep.mubr.f32.mxu0 0.0
    %309 = vmatmul.mubr.f32.gmra.mrb[0].mxu0 %v206
    %v310 = vpop.f32.mrb[0].mxu0
    %v311 = vadd.f32 0.0, %v310
    %v312 = vpop.f32.mrb[0].mxu0
    %v313 = vadd.f32 0.0, %v312
    %314 = vdwg.mxu0
    %315 = vst [vmem:[#allocation2] sm:$0xff] %v311
    %316 = vst [vmem:[#allocation2 + $0x8] sm:$0xff] %v313
    %s317 = scalar_lea.vmem [#allocation3], 256
    %v318 = vld [vmem:[%s317] sm:$0xff]
    %v319 = vld [vmem:[%s317 + $0x8] sm:$0xff]
    %v320 = vld [vmem:[%s317 + $0x10] sm:$0xff]
    %v321 = vld [vmem:[%s317 + $0x18] sm:$0xff]
    %v322 = vld [vmem:[%s317 + $0x20] sm:$0xff]
    %v323 = vld [vmem:[%s317 + $0x28] sm:$0xff]
    %v324 = vld [vmem:[%s317 + $0x30] sm:$0xff]
    %v325 = vld [vmem:[%s317 + $0x38] sm:$0xff]
    %v326 = vld [vmem:[%s317 + $0x40] sm:$0xff]
    %v327 = vld [vmem:[%s317 + $0x48] sm:$0xff]
    %v328 = vld [vmem:[%s317 + $0x50] sm:$0xff]
    %v329 = vld [vmem:[%s317 + $0x58] sm:$0xff]
    %v330 = vld [vmem:[%s317 + $0x60] sm:$0xff]
    %v331 = vld [vmem:[%s317 + $0x68] sm:$0xff]
    %v332 = vld [vmem:[%s317 + $0x70] sm:$0xff]
    %v333 = vld [vmem:[%s317 + $0x78] sm:$0xff]
    %v334 = vld [vmem:[%s317 + $0x80] sm:$0xff]
    %v335 = vld [vmem:[%s317 + $0x88] sm:$0xff]
    %v336 = vld [vmem:[%s317 + $0x90] sm:$0xff]
    %v337 = vld [vmem:[%s317 + $0x98] sm:$0xff]
    %v338 = vld [vmem:[%s317 + $0xa0] sm:$0xff]
    %v339 = vld [vmem:[%s317 + $0xa8] sm:$0xff]
    %v340 = vld [vmem:[%s317 + $0xb0] sm:$0xff]
    %v341 = vld [vmem:[%s317 + $0xb8] sm:$0xff]
    %v342 = vld [vmem:[%s317 + $0xc0] sm:$0xff]
    %v343 = vld [vmem:[%s317 + $0xc8] sm:$0xff]
    %v344 = vld [vmem:[%s317 + $0xd0] sm:$0xff]
    %v345 = vld [vmem:[%s317 + $0xd8] sm:$0xff]
    %v346 = vld [vmem:[%s317 + $0xe0] sm:$0xff]
    %v347 = vld [vmem:[%s317 + $0xe8] sm:$0xff]
    %v348 = vld [vmem:[%s317 + $0xf0] sm:$0xff]
    %v349 = vld [vmem:[%s317 + $0xf8] sm:$0xff]
    %350 = vmatprep.subr.mxu0 %v319
    %351 = vmatpush1.msra.mxu0 %v318
    %352 = vmatprep.subr.mxu0 %v321
    %353 = vmatpush1.msra.mxu0 %v320
    %354 = vmatprep.subr.mxu0 %v323
    %355 = vmatpush1.msra.mxu0 %v322
    %356 = vmatprep.subr.mxu0 %v325
    %357 = vmatpush1.msra.mxu0 %v324
    %358 = vmatprep.subr.mxu0 %v327
    %359 = vmatpush1.msra.mxu0 %v326
    %360 = vmatprep.subr.mxu0 %v329
    %361 = vmatpush1.msra.mxu0 %v328
    %362 = vmatprep.subr.mxu0 %v331
    %363 = vmatpush1.msra.mxu0 %v330
    %364 = vmatprep.subr.mxu0 %v333
    %365 = vmatpush1.msra.mxu0 %v332
    %366 = vmatprep.subr.mxu0 %v335
    %367 = vmatpush1.msra.mxu0 %v334
    %368 = vmatprep.subr.mxu0 %v337
    %369 = vmatpush1.msra.mxu0 %v336
    %370 = vmatprep.subr.mxu0 %v339
    %371 = vmatpush1.msra.mxu0 %v338
    %372 = vmatprep.subr.mxu0 %v341
    %373 = vmatpush1.msra.mxu0 %v340
    %374 = vmatprep.subr.mxu0 %v343
    %375 = vmatpush1.msra.mxu0 %v342
    %376 = vmatprep.subr.mxu0 %v345
    %377 = vmatpush1.msra.mxu0 %v344
    %378 = vmatprep.subr.mxu0 %v347
    %379 = vmatpush1.msra.mxu0 %v346
    %380 = vmatprep.subr.mxu0 %v349
    %381 = vmatpush1.msra.mxu0 %v348
    %382 = vmatprep.subr.mxu0 0.0
    %383 = vmatpush1.msra.mxu0 0.0
    %384 = vmatprep.subr.mxu0 0.0
    %385 = vmatpush1.msra.mxu0 0.0
    %386 = vmatprep.subr.mxu0 0.0
    %387 = vmatpush1.msra.mxu0 0.0
    %388 = vmatprep.subr.mxu0 0.0
    %389 = vmatpush1.msra.mxu0 0.0
    %390 = vmatprep.subr.mxu0 0.0
    %391 = vmatpush1.msra.mxu0 0.0
    %392 = vmatprep.subr.mxu0 0.0
    %393 = vmatpush1.msra.mxu0 0.0
    %394 = vmatprep.subr.mxu0 0.0
    %395 = vmatpush1.msra.mxu0 0.0
    %396 = vmatprep.subr.mxu0 0.0
    %397 = vmatpush1.msra.mxu0 0.0
    %398 = vmatprep.subr.mxu0 0.0
    %399 = vmatpush1.msra.mxu0 0.0
    %400 = vmatprep.subr.mxu0 0.0
    %401 = vmatpush1.msra.mxu0 0.0
    %402 = vmatprep.subr.mxu0 0.0
    %403 = vmatpush1.msra.mxu0 0.0
    %404 = vmatprep.subr.mxu0 0.0
    %405 = vmatpush1.msra.mxu0 0.0
    %406 = vmatprep.subr.mxu0 0.0
    %407 = vmatpush1.msra.mxu0 0.0
    %408 = vmatprep.subr.mxu0 0.0
    %409 = vmatpush1.msra.mxu0 0.0
    %410 = vmatprep.subr.mxu0 0.0
    %411 = vmatpush1.msra.mxu0 0.0
    %412 = vmatprep.subr.mxu0 0.0
    %413 = vmatpush1.msra.mxu0 0.0
    %414 = vmatprep.mubr.f32.mxu0 0.0
    %415 = vmatmul.mubr.f32.gmra.mrb[0].mxu0 %v206
    %v416 = vpop.f32.mrb[0].mxu0
    %v417 = vadd.f32 0.0, %v416
    %v418 = vpop.f32.mrb[0].mxu0
    %v419 = vadd.f32 0.0, %v418
    %420 = vdwg.mxu0
    %421 = vst [vmem:[#allocation2 + $0x10] sm:$0xff] %v417
    %422 = vst [vmem:[#allocation2 + $0x18] sm:$0xff] %v419
    %s423 = scalar_lea.vmem [#allocation3], 512
    %v424 = vld [vmem:[%s423] sm:$0xff]
    %v425 = vld [vmem:[%s423 + $0x8] sm:$0xff]
    %v426 = vld [vmem:[%s423 + $0x10] sm:$0xff]
    %v427 = vld [vmem:[%s423 + $0x18] sm:$0xff]
    %v428 = vld [vmem:[%s423 + $0x20] sm:$0xff]
    %v429 = vld [vmem:[%s423 + $0x28] sm:$0xff]
    %v430 = vld [vmem:[%s423 + $0x30] sm:$0xff]
    %v431 = vld [vmem:[%s423 + $0x38] sm:$0xff]
    %v432 = vld [vmem:[%s423 + $0x40] sm:$0xff]
    %v433 = vld [vmem:[%s423 + $0x48] sm:$0xff]
    %v434 = vld [vmem:[%s423 + $0x50] sm:$0xff]
    %v435 = vld [vmem:[%s423 + $0x58] sm:$0xff]
    %v436 = vld [vmem:[%s423 + $0x60] sm:$0xff]
    %v437 = vld [vmem:[%s423 + $0x68] sm:$0xff]
    %v438 = vld [vmem:[%s423 + $0x70] sm:$0xff]
    %v439 = vld [vmem:[%s423 + $0x78] sm:$0xff]
    %v440 = vld [vmem:[%s423 + $0x80] sm:$0xff]
    %v441 = vld [vmem:[%s423 + $0x88] sm:$0xff]
    %v442 = vld [vmem:[%s423 + $0x90] sm:$0xff]
    %v443 = vld [vmem:[%s423 + $0x98] sm:$0xff]
    %v444 = vld [vmem:[%s423 + $0xa0] sm:$0xff]
    %v445 = vld [vmem:[%s423 + $0xa8] sm:$0xff]
    %v446 = vld [vmem:[%s423 + $0xb0] sm:$0xff]
    %v447 = vld [vmem:[%s423 + $0xb8] sm:$0xff]
    %v448 = vld [vmem:[%s423 + $0xc0] sm:$0xff]
    %v449 = vld [vmem:[%s423 + $0xc8] sm:$0xff]
    %v450 = vld [vmem:[%s423 + $0xd0] sm:$0xff]
    %v451 = vld [vmem:[%s423 + $0xd8] sm:$0xff]
    %v452 = vld [vmem:[%s423 + $0xe0] sm:$0xff]
    %v453 = vld [vmem:[%s423 + $0xe8] sm:$0xff]
    %v454 = vld [vmem:[%s423 + $0xf0] sm:$0xff]
    %v455 = vld [vmem:[%s423 + $0xf8] sm:$0xff]
    %456 = vmatprep.subr.mxu0 %v425
    %457 = vmatpush1.msra.mxu0 %v424
    %458 = vmatprep.subr.mxu0 %v427
    %459 = vmatpush1.msra.mxu0 %v426
    %460 = vmatprep.subr.mxu0 %v429
    %461 = vmatpush1.msra.mxu0 %v428
    %462 = vmatprep.subr.mxu0 %v431
    %463 = vmatpush1.msra.mxu0 %v430
    %464 = vmatprep.subr.mxu0 %v433
    %465 = vmatpush1.msra.mxu0 %v432
    %466 = vmatprep.subr.mxu0 %v435
    %467 = vmatpush1.msra.mxu0 %v434
    %468 = vmatprep.subr.mxu0 %v437
    %469 = vmatpush1.msra.mxu0 %v436
    %470 = vmatprep.subr.mxu0 %v439
    %471 = vmatpush1.msra.mxu0 %v438
    %472 = vmatprep.subr.mxu0 %v441
    %473 = vmatpush1.msra.mxu0 %v440
    %474 = vmatprep.subr.mxu0 %v443
    %475 = vmatpush1.msra.mxu0 %v442
    %476 = vmatprep.subr.mxu0 %v445
    %477 = vmatpush1.msra.mxu0 %v444
    %478 = vmatprep.subr.mxu0 %v447
    %479 = vmatpush1.msra.mxu0 %v446
    %480 = vmatprep.subr.mxu0 %v449
    %481 = vmatpush1.msra.mxu0 %v448
    %482 = vmatprep.subr.mxu0 %v451
    %483 = vmatpush1.msra.mxu0 %v450
    %484 = vmatprep.subr.mxu0 %v453
    %485 = vmatpush1.msra.mxu0 %v452
    %486 = vmatprep.subr.mxu0 %v455
    %487 = vmatpush1.msra.mxu0 %v454
    %488 = vmatprep.subr.mxu0 0.0
    %489 = vmatpush1.msra.mxu0 0.0
    %490 = vmatprep.subr.mxu0 0.0
    %491 = vmatpush1.msra.mxu0 0.0
    %492 = vmatprep.subr.mxu0 0.0
    %493 = vmatpush1.msra.mxu0 0.0
    %494 = vmatprep.subr.mxu0 0.0
    %495 = vmatpush1.msra.mxu0 0.0
    %496 = vmatprep.subr.mxu0 0.0
    %497 = vmatpush1.msra.mxu0 0.0
    %498 = vmatprep.subr.mxu0 0.0
    %499 = vmatpush1.msra.mxu0 0.0
    %500 = vmatprep.subr.mxu0 0.0
    %501 = vmatpush1.msra.mxu0 0.0
    %502 = vmatprep.subr.mxu0 0.0
    %503 = vmatpush1.msra.mxu0 0.0
    %504 = vmatprep.subr.mxu0 0.0
    %505 = vmatpush1.msra.mxu0 0.0
    %506 = vmatprep.subr.mxu0 0.0
    %507 = vmatpush1.msra.mxu0 0.0
    %508 = vmatprep.subr.mxu0 0.0
    %509 = vmatpush1.msra.mxu0 0.0
    %510 = vmatprep.subr.mxu0 0.0
    %511 = vmatpush1.msra.mxu0 0.0
    %512 = vmatprep.subr.mxu0 0.0
    %513 = vmatpush1.msra.mxu0 0.0
    %514 = vmatprep.subr.mxu0 0.0
    %515 = vmatpush1.msra.mxu0 0.0
    %516 = vmatprep.subr.mxu0 0.0
    %517 = vmatpush1.msra.mxu0 0.0
    %518 = vmatprep.subr.mxu0 0.0
    %519 = vmatpush1.msra.mxu0 0.0
    %520 = vmatprep.mubr.f32.mxu0 0.0
    %521 = vmatmul.mubr.f32.gmra.mrb[0].mxu0 %v206
    %v522 = vpop.f32.mrb[0].mxu0
    %v523 = vadd.f32 0.0, %v522
    %v524 = vpop.f32.mrb[0].mxu0
    %v525 = vadd.f32 0.0, %v524
    %526 = vdwg.mxu0
    %527 = vst [vmem:[#allocation2 + $0x20] sm:$0xff] %v523
    %528 = vst [vmem:[#allocation2 + $0x28] sm:$0xff] %v525
    %s529 = scalar_lea.vmem [#allocation3], 768
    %v530 = vld [vmem:[%s529] sm:$0xff]
    %v531 = vld [vmem:[%s529 + $0x8] sm:$0xff]
    %v532 = vld [vmem:[%s529 + $0x10] sm:$0xff]
    %v533 = vld [vmem:[%s529 + $0x18] sm:$0xff]
    %v534 = vld [vmem:[%s529 + $0x20] sm:$0xff]
    %v535 = vld [vmem:[%s529 + $0x28] sm:$0xff]
    %v536 = vld [vmem:[%s529 + $0x30] sm:$0xff]
    %v537 = vld [vmem:[%s529 + $0x38] sm:$0xff]
    %v538 = vld [vmem:[%s529 + $0x40] sm:$0xff]
    %v539 = vld [vmem:[%s529 + $0x48] sm:$0xff]
    %v540 = vld [vmem:[%s529 + $0x50] sm:$0xff]
    %v541 = vld [vmem:[%s529 + $0x58] sm:$0xff]
    %v542 = vld [vmem:[%s529 + $0x60] sm:$0xff]
    %v543 = vld [vmem:[%s529 + $0x68] sm:$0xff]
    %v544 = vld [vmem:[%s529 + $0x70] sm:$0xff]
    %v545 = vld [vmem:[%s529 + $0x78] sm:$0xff]
    %v546 = vld [vmem:[%s529 + $0x80] sm:$0xff]
    %v547 = vld [vmem:[%s529 + $0x88] sm:$0xff]
    %v548 = vld [vmem:[%s529 + $0x90] sm:$0xff]
    %v549 = vld [vmem:[%s529 + $0x98] sm:$0xff]
    %v550 = vld [vmem:[%s529 + $0xa0] sm:$0xff]
    %v551 = vld [vmem:[%s529 + $0xa8] sm:$0xff]
    %v552 = vld [vmem:[%s529 + $0xb0] sm:$0xff]
    %v553 = vld [vmem:[%s529 + $0xb8] sm:$0xff]
    %v554 = vld [vmem:[%s529 + $0xc0] sm:$0xff]
    %v555 = vld [vmem:[%s529 + $0xc8] sm:$0xff]
    %v556 = vld [vmem:[%s529 + $0xd0] sm:$0xff]
    %v557 = vld [vmem:[%s529 + $0xd8] sm:$0xff]
    %v558 = vld [vmem:[%s529 + $0xe0] sm:$0xff]
    %v559 = vld [vmem:[%s529 + $0xe8] sm:$0xff]
    %v560 = vld [vmem:[%s529 + $0xf0] sm:$0xff]
    %v561 = vld [vmem:[%s529 + $0xf8] sm:$0xff]
    %562 = vmatprep.subr.mxu0 %v531
    %563 = vmatpush1.msra.mxu0 %v530
    %564 = vmatprep.subr.mxu0 %v533
    %565 = vmatpush1.msra.mxu0 %v532
    %566 = vmatprep.subr.mxu0 %v535
    %567 = vmatpush1.msra.mxu0 %v534
    %568 = vmatprep.subr.mxu0 %v537
    %569 = vmatpush1.msra.mxu0 %v536
    %570 = vmatprep.subr.mxu0 %v539
    %571 = vmatpush1.msra.mxu0 %v538
    %572 = vmatprep.subr.mxu0 %v541
    %573 = vmatpush1.msra.mxu0 %v540
    %574 = vmatprep.subr.mxu0 %v543
    %575 = vmatpush1.msra.mxu0 %v542
    %576 = vmatprep.subr.mxu0 %v545
    %577 = vmatpush1.msra.mxu0 %v544
    %578 = vmatprep.subr.mxu0 %v547
    %579 = vmatpush1.msra.mxu0 %v546
    %580 = vmatprep.subr.mxu0 %v549
    %581 = vmatpush1.msra.mxu0 %v548
    %582 = vmatprep.subr.mxu0 %v551
    %583 = vmatpush1.msra.mxu0 %v550
    %584 = vmatprep.subr.mxu0 %v553
    %585 = vmatpush1.msra.mxu0 %v552
    %586 = vmatprep.subr.mxu0 %v555
    %587 = vmatpush1.msra.mxu0 %v554
    %588 = vmatprep.subr.mxu0 %v557
    %589 = vmatpush1.msra.mxu0 %v556
    %590 = vmatprep.subr.mxu0 %v559
    %591 = vmatpush1.msra.mxu0 %v558
    %592 = vmatprep.subr.mxu0 %v561
    %593 = vmatpush1.msra.mxu0 %v560
    %594 = vmatprep.subr.mxu0 0.0
    %595 = vmatpush1.msra.mxu0 0.0
    %596 = vmatprep.subr.mxu0 0.0
    %597 = vmatpush1.msra.mxu0 0.0
    %598 = vmatprep.subr.mxu0 0.0
    %599 = vmatpush1.msra.mxu0 0.0
    %600 = vmatprep.subr.mxu0 0.0
    %601 = vmatpush1.msra.mxu0 0.0
    %602 = vmatprep.subr.mxu0 0.0
    %603 = vmatpush1.msra.mxu0 0.0
    %604 = vmatprep.subr.mxu0 0.0
    %605 = vmatpush1.msra.mxu0 0.0
    %606 = vmatprep.subr.mxu0 0.0
    %607 = vmatpush1.msra.mxu0 0.0
    %608 = vmatprep.subr.mxu0 0.0
    %609 = vmatpush1.msra.mxu0 0.0
    %610 = vmatprep.subr.mxu0 0.0
    %611 = vmatpush1.msra.mxu0 0.0
    %612 = vmatprep.subr.mxu0 0.0
    %613 = vmatpush1.msra.mxu0 0.0
    %614 = vmatprep.subr.mxu0 0.0
    %615 = vmatpush1.msra.mxu0 0.0
    %616 = vmatprep.subr.mxu0 0.0
    %617 = vmatpush1.msra.mxu0 0.0
    %618 = vmatprep.subr.mxu0 0.0
    %619 = vmatpush1.msra.mxu0 0.0
    %620 = vmatprep.subr.mxu0 0.0
    %621 = vmatpush1.msra.mxu0 0.0
    %622 = vmatprep.subr.mxu0 0.0
    %623 = vmatpush1.msra.mxu0 0.0
    %624 = vmatprep.subr.mxu0 0.0
    %625 = vmatpush1.msra.mxu0 0.0
    %626 = vmatprep.mubr.f32.mxu0 0.0
    %627 = vmatmul.mubr.f32.gmra.mrb[0].mxu0 %v206
    %v628 = vpop.f32.mrb[0].mxu0
    %v629 = vadd.f32 0.0, %v628
    %v630 = vpop.f32.mrb[0].mxu0
    %v631 = vadd.f32 0.0, %v630
    %632 = vdwg.mxu0
    %633 = vst [vmem:[#allocation2 + $0x30] sm:$0xff] %v629
    %634 = vst [vmem:[#allocation2 + $0x38] sm:$0xff] %v631
    %v635 = vld [vmem:[%s6] sm:$0xff]
    %v636 = vld [vmem:[#allocation2] sm:$0xff]
    %v637 = vld [vmem:[#allocation2 + $0x8] sm:$0xff]
    %v638 = vld [vmem:[#allocation2 + $0x10] sm:$0xff]
    %v639 = vld [vmem:[#allocation2 + $0x18] sm:$0xff]
    %v640 = vld [vmem:[#allocation2 + $0x20] sm:$0xff]
    %v641 = vld [vmem:[#allocation2 + $0x28] sm:$0xff]
    %v642 = vld [vmem:[#allocation2 + $0x30] sm:$0xff]
    %v643 = vld [vmem:[#allocation2 + $0x38] sm:$0xff]
    %vm644 = vcmask 261120
    %v646 = vsel %vm644, %v635, 0
    %648 = vmatprep.subr.mxu0 %v637
    %649 = vmatpush1.msra.mxu0 %v636
    %650 = vmatprep.subr.mxu0 %v639
    %651 = vmatpush1.msra.mxu0 %v638
    %652 = vmatprep.subr.mxu0 %v641
    %653 = vmatpush1.msra.mxu0 %v640
    %654 = vmatprep.subr.mxu0 %v643
    %655 = vmatpush1.msra.mxu0 %v642
    %656 = vmatprep.subr.mxu0 0.0
    %657 = vmatpush1.msra.mxu0 0.0
    %658 = vmatprep.subr.mxu0 0.0
    %659 = vmatpush1.msra.mxu0 0.0
    %660 = vmatprep.subr.mxu0 0.0
    %661 = vmatpush1.msra.mxu0 0.0
    %662 = vmatprep.subr.mxu0 0.0
    %663 = vmatpush1.msra.mxu0 0.0
    %664 = vmatprep.subr.mxu0 0.0
    %665 = vmatpush1.msra.mxu0 0.0
    %666 = vmatprep.subr.mxu0 0.0
    %667 = vmatpush1.msra.mxu0 0.0
    %668 = vmatprep.subr.mxu0 0.0
    %669 = vmatpush1.msra.mxu0 0.0
    %670 = vmatprep.subr.mxu0 0.0
    %671 = vmatpush1.msra.mxu0 0.0
    %672 = vmatprep.subr.mxu0 0.0
    %673 = vmatpush1.msra.mxu0 0.0
    %674 = vmatprep.subr.mxu0 0.0
    %675 = vmatpush1.msra.mxu0 0.0
    %676 = vmatprep.subr.mxu0 0.0
    %677 = vmatpush1.msra.mxu0 0.0
    %678 = vmatprep.subr.mxu0 0.0
    %679 = vmatpush1.msra.mxu0 0.0
    %680 = vmatprep.subr.mxu0 0.0
    %681 = vmatpush1.msra.mxu0 0.0
    %682 = vmatprep.subr.mxu0 0.0
    %683 = vmatpush1.msra.mxu0 0.0
    %684 = vmatprep.subr.mxu0 0.0
    %685 = vmatpush1.msra.mxu0 0.0
    %686 = vmatprep.subr.mxu0 0.0
    %687 = vmatpush1.msra.mxu0 0.0
    %688 = vmatprep.subr.mxu0 0.0
    %689 = vmatpush1.msra.mxu0 0.0
    %690 = vmatprep.subr.mxu0 0.0
    %691 = vmatpush1.msra.mxu0 0.0
    %692 = vmatprep.subr.mxu0 0.0
    %693 = vmatpush1.msra.mxu0 0.0
    %694 = vmatprep.subr.mxu0 0.0
    %695 = vmatpush1.msra.mxu0 0.0
    %696 = vmatprep.subr.mxu0 0.0
    %697 = vmatpush1.msra.mxu0 0.0
    %698 = vmatprep.subr.mxu0 0.0
    %699 = vmatpush1.msra.mxu0 0.0
    %700 = vmatprep.subr.mxu0 0.0
    %701 = vmatpush1.msra.mxu0 0.0
    %702 = vmatprep.subr.mxu0 0.0
    %703 = vmatpush1.msra.mxu0 0.0
    %704 = vmatprep.subr.mxu0 0.0
    %705 = vmatpush1.msra.mxu0 0.0
    %706 = vmatprep.subr.mxu0 0.0
    %707 = vmatpush1.msra.mxu0 0.0
    %708 = vmatprep.subr.mxu0 0.0
    %709 = vmatpush1.msra.mxu0 0.0
    %710 = vmatprep.subr.mxu0 0.0
    %711 = vmatpush1.msra.mxu0 0.0
    %712 = vmatprep.mubr.f32.mxu0 0.0
    %713 = vmatmul.mubr.f32.gmra.mrb[0].mxu0 %v646
    %v714 = vpop.f32.mrb[0].mxu0
    %v715 = vadd.f32 0.0, %v714
    %v716 = vpop.f32.mrb[0].mxu0
    %v717 = vadd.f32 0.0, %v716
    %718 = vdwg.mxu0
    %v719 = vrot.slane %v715, 4
    %v720 = vadd.f32 %v715, %v719
    %v721 = vrot.slane %v720, 2
    %v722 = vadd.f32 %v720, %v721
    %v723 = vrot.slane %v722, 1
    %v724 = vadd.f32 %v722, %v723
    %v725 = vrot.slane %v717, 4
    %v726 = vadd.f32 %v717, %v725
    %v727 = vrot.slane %v726, 2
    %v728 = vadd.f32 %v726, %v727
    %v729 = vrot.slane %v728, 1
    %v730 = vadd.f32 %v728, %v729
    %v731 = vmul.f32 %v715, %v715
    %v732 = vmul.f32 %v717, %v717
    %v733 = vrot.slane %v731, 4
    %v734 = vadd.f32 %v731, %v733
    %v735 = vrot.slane %v734, 2
    %v736 = vadd.f32 %v734, %v735
    %v737 = vrot.slane %v736, 1
    %v738 = vadd.f32 %v736, %v737
    %v739 = vrot.slane %v732, 4
    %v740 = vadd.f32 %v732, %v739
    %v741 = vrot.slane %v740, 2
    %v742 = vadd.f32 %v740, %v741
    %v743 = vrot.slane %v742, 1
    %v744 = vadd.f32 %v742, %v743
    %vm745 = vcmask 1040384
    %v746 = vsel %vm745, %v724, %v738
    %v747 = vsel %vm745, %v730, %v744
    %v748 = vld [vmem:[#allocation14] sm:$0xff]
    %v749 = vld [vmem:[#allocation14 + $0x8] sm:$0xff]
    %v750 = vld [vmem:[#allocation14 + $0x10] sm:$0xff]
    %v751 = vld [vmem:[#allocation14 + $0x18] sm:$0xff]
    %v752 = vld [vmem:[#allocation14 + $0x20] sm:$0xff]
    %v753 = vld [vmem:[#allocation14 + $0x28] sm:$0xff]
    %v754 = vld [vmem:[#allocation14 + $0x30] sm:$0xff]
    %v755 = vld [vmem:[#allocation14 + $0x38] sm:$0xff]
    %v756 = vld [vmem:[#allocation14 + $0x40] sm:$0xff]
    %v757 = vld [vmem:[#allocation14 + $0x48] sm:$0xff]
    %v758 = vld [vmem:[#allocation14 + $0x50] sm:$0xff]
    %v759 = vld [vmem:[#allocation14 + $0x58] sm:$0xff]
    %v760 = vld [vmem:[#allocation14 + $0x60] sm:$0xff]
    %v761 = vld [vmem:[#allocation14 + $0x68] sm:$0xff]
    %v762 = vld [vmem:[#allocation14 + $0x70] sm:$0xff]
    %v763 = vld [vmem:[#allocation14 + $0x78] sm:$0xff]
    %v764 = vld [vmem:[#allocation14 + $0x80] sm:$0xff]
    %v765 = vld [vmem:[#allocation14 + $0x88] sm:$0xff]
    %v766 = vld [vmem:[#allocation14 + $0x90] sm:$0xff]
    %v767 = vld [vmem:[#allocation14 + $0x98] sm:$0xff]
    %v768 = vld [vmem:[#allocation14 + $0xa0] sm:$0xff]
    %v769 = vld [vmem:[#allocation14 + $0xa8] sm:$0xff]
    %v770 = vld [vmem:[#allocation14 + $0xb0] sm:$0xff]
    %v771 = vld [vmem:[#allocation14 + $0xb8] sm:$0xff]
    %v772 = vld [vmem:[#allocation14 + $0xc0] sm:$0xff]
    %v773 = vld [vmem:[#allocation14 + $0xc8] sm:$0xff]
    %v774 = vld [vmem:[#allocation14 + $0xd0] sm:$0xff]
    %v775 = vld [vmem:[#allocation14 + $0xd8] sm:$0xff]
    %v776 = vld [vmem:[#allocation14 + $0xe0] sm:$0xff]
    %v777 = vld [vmem:[#allocation14 + $0xe8] sm:$0xff]
    %v778 = vld [vmem:[#allocation14 + $0xf0] sm:$0xff]
    %v779 = vld [vmem:[#allocation14 + $0xf8] sm:$0xff]
    %v780 = vld [vmem:[#allocation14 + $0x100] sm:$0xff]
    %v781 = vld [vmem:[#allocation14 + $0x108] sm:$0xff]
    %v782 = vld [vmem:[#allocation14 + $0x110] sm:$0xff]
    %v783 = vld [vmem:[#allocation14 + $0x118] sm:$0xff]
    %v784 = vld [vmem:[#allocation14 + $0x120] sm:$0xff]
    %v785 = vld [vmem:[#allocation14 + $0x128] sm:$0xff]
    %v786 = vld [vmem:[#allocation14 + $0x130] sm:$0xff]
    %v787 = vld [vmem:[#allocation14 + $0x138] sm:$0xff]
    %v788 = vld [vmem:[#allocation14 + $0x140] sm:$0xff]
    %v789 = vld [vmem:[#allocation14 + $0x148] sm:$0xff]
    %v790 = vld [vmem:[#allocation14 + $0x150] sm:$0xff]
    %v791 = vld [vmem:[#allocation14 + $0x158] sm:$0xff]
    %v792 = vld [vmem:[#allocation14 + $0x160] sm:$0xff]
    %v793 = vld [vmem:[#allocation14 + $0x168] sm:$0xff]
    %v794 = vld [vmem:[#allocation14 + $0x170] sm:$0xff]
    %v795 = vld [vmem:[#allocation14 + $0x178] sm:$0xff]
    %v796 = vld [vmem:[#allocation14 + $0x180] sm:$0xff]
    %v797 = vld [vmem:[#allocation14 + $0x188] sm:$0xff]
    %v798 = vld [vmem:[#allocation14 + $0x190] sm:$0xff]
    %v799 = vld [vmem:[#allocation14 + $0x198] sm:$0xff]
    %v800 = vld [vmem:[#allocation14 + $0x1a0] sm:$0xff]
    %v801 = vld [vmem:[#allocation14 + $0x1a8] sm:$0xff]
    %v802 = vld [vmem:[#allocation14 + $0x1b0] sm:$0xff]
    %v803 = vld [vmem:[#allocation14 + $0x1b8] sm:$0xff]
    %v804 = vld [vmem:[#allocation14 + $0x1c0] sm:$0xff]
    %v805 = vld [vmem:[#allocation14 + $0x1c8] sm:$0xff]
    %v806 = vld [vmem:[#allocation14 + $0x1d0] sm:$0xff]
    %v807 = vld [vmem:[#allocation14 + $0x1d8] sm:$0xff]
    %v808 = vld [vmem:[#allocation14 + $0x1e0] sm:$0xff]
    %v809 = vld [vmem:[#allocation14 + $0x1e8] sm:$0xff]
    %v810 = vld [vmem:[#allocation14 + $0x1f0] sm:$0xff]
    %v811 = vld [vmem:[#allocation14 + $0x1f8] sm:$0xff]
    %812 = vmatprep.subr.mxu0 %v749
    %813 = vmatpush1.msra.mxu0 %v748
    %814 = vmatprep.subr.mxu0 %v751
    %815 = vmatpush1.msra.mxu0 %v750
    %816 = vmatprep.subr.mxu0 %v753
    %817 = vmatpush1.msra.mxu0 %v752
    %818 = vmatprep.subr.mxu0 %v755
    %819 = vmatpush1.msra.mxu0 %v754
    %820 = vmatprep.subr.mxu0 %v757
    %821 = vmatpush1.msra.mxu0 %v756
    %822 = vmatprep.subr.mxu0 %v759
    %823 = vmatpush1.msra.mxu0 %v758
    %824 = vmatprep.subr.mxu0 %v761
    %825 = vmatpush1.msra.mxu0 %v760
    %826 = vmatprep.subr.mxu0 %v763
    %827 = vmatpush1.msra.mxu0 %v762
    %828 = vmatprep.subr.mxu0 %v765
    %829 = vmatpush1.msra.mxu0 %v764
    %830 = vmatprep.subr.mxu0 %v767
    %831 = vmatpush1.msra.mxu0 %v766
    %832 = vmatprep.subr.mxu0 %v769
    %833 = vmatpush1.msra.mxu0 %v768
    %834 = vmatprep.subr.mxu0 %v771
    %835 = vmatpush1.msra.mxu0 %v770
    %836 = vmatprep.subr.mxu0 %v773
    %837 = vmatpush1.msra.mxu0 %v772
    %838 = vmatprep.subr.mxu0 %v775
    %839 = vmatpush1.msra.mxu0 %v774
    %840 = vmatprep.subr.mxu0 %v777
    %841 = vmatpush1.msra.mxu0 %v776
    %842 = vmatprep.subr.mxu0 %v779
    %843 = vmatpush1.msra.mxu0 %v778
    %844 = vmatprep.subr.mxu0 %v781
    %845 = vmatpush1.msra.mxu0 %v780
    %846 = vmatprep.subr.mxu0 %v783
    %847 = vmatpush1.msra.mxu0 %v782
    %848 = vmatprep.subr.mxu0 %v785
    %849 = vmatpush1.msra.mxu0 %v784
    %850 = vmatprep.subr.mxu0 %v787
    %851 = vmatpush1.msra.mxu0 %v786
    %852 = vmatprep.subr.mxu0 %v789
    %853 = vmatpush1.msra.mxu0 %v788
    %854 = vmatprep.subr.mxu0 %v791
    %855 = vmatpush1.msra.mxu0 %v790
    %856 = vmatprep.subr.mxu0 %v793
    %857 = vmatpush1.msra.mxu0 %v792
    %858 = vmatprep.subr.mxu0 %v795
    %859 = vmatpush1.msra.mxu0 %v794
    %860 = vmatprep.subr.mxu0 %v797
    %861 = vmatpush1.msra.mxu0 %v796
    %862 = vmatprep.subr.mxu0 %v799
    %863 = vmatpush1.msra.mxu0 %v798
    %864 = vmatprep.subr.mxu0 %v801
    %865 = vmatpush1.msra.mxu0 %v800
    %866 = vmatprep.subr.mxu0 %v803
    %867 = vmatpush1.msra.mxu0 %v802
    %868 = vmatprep.subr.mxu0 %v805
    %869 = vmatpush1.msra.mxu0 %v804
    %870 = vmatprep.subr.mxu0 %v807
    %871 = vmatpush1.msra.mxu0 %v806
    %872 = vmatprep.subr.mxu0 %v809
    %873 = vmatpush1.msra.mxu0 %v808
    %874 = vmatprep.subr.mxu0 %v811
    %875 = vmatpush1.msra.mxu0 %v810
    %876 = vmatprep.mubr.f32.mxu0 %v747
    %877 = vmatmul.mubr.f32.gmra.mrb[0].mxu0 %v746
    %v878 = vpop.f32.mrb[0].mxu0
    %v879 = vadd.f32 0.0, %v878
    %v880 = vpop.f32.mrb[0].mxu0
    %v881 = vadd.f32 0.0, %v880
    %882 = vdwg.mxu0
    %v883 = vmul.f32 %v879, 0.03125
    %v884 = vmul.f32 %v881, 0.03125
    %v885 = vmul.f32 %v883, %v883
    %v886 = vmul.f32 %v884, %v884
    %v889 = vrot.slane %v885, 7
    %v890 = vrot.slane %v886, 7
    %v893 = vsub.f32 %v883, %v889
    %v894 = vsub.f32 %v884, %v890
    %v895 = vmax.f32 %v893, 0.0
    %v896 = vmax.f32 %v894, 0.0
    %v897 = vld [vmem:[%s15] ss:$2 sm:$0x3]
    %v898 = vadd.f32 %v895, 1e-05
    %v899 = vadd.f32 %v896, 1e-05
    %v900 = vrsqrt.pop %v898
    %v901 = vrsqrt.pop %v899
    %v904 = vcombine.low %v900, %v901
    %v906 = vunpack.c.l.s4 1966171168
    %v907 = vunpack.c.0.s8 %v906
    %v908 = vlaneseq
    %v909 = vshrl.u32 %v908, 7
    %v910 = vsub.s32 %v907, %v909
    %v911 = vrot.slane %v904, %v910
    %v912 = vcombine.high %v911, %v911
    %v914 = vunpack.c.l.s4 1966171168
    %v915 = vunpack.c.0.s8 %v914
    %v916 = vlaneseq
    %v917 = vshrl.u32 %v916, 7
    %v918 = vsub.s32 %v915, %v917
    %v919 = vrot.slane %v912, %v918
    %v921 = vmul.f32 %v897, %v919
    %s922 = scalar_lea.vmem %s15, 1
    %v923 = vld [vmem:[%s922] ss:$2 sm:$0x3]
    %v925 = vlaneseq
    %v926 = vshrl.u32 %v925, 7
    %v927 = vsub.s32 0, %v926
    %v928 = vrot.slane %v921, %v927
    %v929 = vlaneseq
    %v930 = vshrl.u32 %v929, 7
    %v931 = vsub.s32 1, %v930
    %v932 = vrot.slane %v921, %v931
    %v935 = vmul.f32 %v883, %v928
    %v936 = vmul.f32 %v884, %v932
    %v939 = vcombine.low %v935, %v936
    %v941 = vunpack.c.l.s4 1966171168
    %v942 = vunpack.c.0.s8 %v941
    %v943 = vlaneseq
    %v944 = vshrl.u32 %v943, 7
    %v945 = vsub.s32 %v942, %v944
    %v946 = vrot.slane %v939, %v945
    %v948 = vunpack.c.l.s4 1966171168
    %v949 = vunpack.c.0.s8 %v948
    %v950 = vlaneseq
    %v951 = vshrl.u32 %v950, 7
    %v952 = vsub.s32 %v949, %v951
    %v953 = vrot.slane %v946, %v952
    %v955 = vsub.f32 %v923, %v953
    %v956 = vmul.f32 %v715, %v928
    %v957 = vmul.f32 %v717, %v932
    %v959 = vlaneseq
    %v960 = vshrl.u32 %v959, 7
    %v961 = vsub.s32 0, %v960
    %v962 = vrot.slane %v955, %v961
    %v963 = vlaneseq
    %v964 = vshrl.u32 %v963, 7
    %v965 = vsub.s32 1, %v964
    %v966 = vrot.slane %v955, %v965
    %v969 = vadd.f32 %v956, %v962
    %v970 = vadd.f32 %v957, %v966
    %v971 = vmax.f32 %v969, 0.0
    %v972 = vmax.f32 %v970, 0.0
    %s973 = smul.u32 %s207, 32
    %s974 = smul.u32 %s973, 2
    %s975 = sshll.u32 %s974, 4
    %976 = dma.done %s158, %s975
    %v977 = vld [vmem:[#allocation4] sm:$0xff]
    %v978 = vld [vmem:[#allocation4 + $0x8] sm:$0xff]
    %v979 = vld [vmem:[#allocation4 + $0x10] sm:$0xff]
    %v980 = vld [vmem:[#allocation4 + $0x18] sm:$0xff]
    %v981 = vld [vmem:[#allocation4 + $0x20] sm:$0xff]
    %v982 = vld [vmem:[#allocation4 + $0x28] sm:$0xff]
    %v983 = vld [vmem:[#allocation4 + $0x30] sm:$0xff]
    %v984 = vld [vmem:[#allocation4 + $0x38] sm:$0xff]
    %v985 = vld [vmem:[#allocation4 + $0x40] sm:$0xff]
    %v986 = vld [vmem:[#allocation4 + $0x48] sm:$0xff]
    %v987 = vld [vmem:[#allocation4 + $0x50] sm:$0xff]
    %v988 = vld [vmem:[#allocation4 + $0x58] sm:$0xff]
    %v989 = vld [vmem:[#allocation4 + $0x60] sm:$0xff]
    %v990 = vld [vmem:[#allocation4 + $0x68] sm:$0xff]
    %v991 = vld [vmem:[#allocation4 + $0x70] sm:$0xff]
    %v992 = vld [vmem:[#allocation4 + $0x78] sm:$0xff]
    %v993 = vld [vmem:[#allocation4 + $0x80] sm:$0xff]
    %v994 = vld [vmem:[#allocation4 + $0x88] sm:$0xff]
    %v995 = vld [vmem:[#allocation4 + $0x90] sm:$0xff]
    %v996 = vld [vmem:[#allocation4 + $0x98] sm:$0xff]
    %v997 = vld [vmem:[#allocation4 + $0xa0] sm:$0xff]
    %v998 = vld [vmem:[#allocation4 + $0xa8] sm:$0xff]
    %v999 = vld [vmem:[#allocation4 + $0xb0] sm:$0xff]
    %v1000 = vld [vmem:[#allocation4 + $0xb8] sm:$0xff]
    %v1001 = vld [vmem:[#allocation4 + $0xc0] sm:$0xff]
    %v1002 = vld [vmem:[#allocation4 + $0xc8] sm:$0xff]
    %v1003 = vld [vmem:[#allocation4 + $0xd0] sm:$0xff]
    %v1004 = vld [vmem:[#allocation4 + $0xd8] sm:$0xff]
    %v1005 = vld [vmem:[#allocation4 + $0xe0] sm:$0xff]
    %v1006 = vld [vmem:[#allocation4 + $0xe8] sm:$0xff]
    %v1007 = vld [vmem:[#allocation4 + $0xf0] sm:$0xff]
    %v1008 = vld [vmem:[#allocation4 + $0xf8] sm:$0xff]
    %v1009 = vld [vmem:[#allocation4 + $0x100] sm:$0xff]
    %v1010 = vld [vmem:[#allocation4 + $0x108] sm:$0xff]
    %v1011 = vld [vmem:[#allocation4 + $0x110] sm:$0xff]
    %v1012 = vld [vmem:[#allocation4 + $0x118] sm:$0xff]
    %v1013 = vld [vmem:[#allocation4 + $0x120] sm:$0xff]
    %v1014 = vld [vmem:[#allocation4 + $0x128] sm:$0xff]
    %v1015 = vld [vmem:[#allocation4 + $0x130] sm:$0xff]
    %v1016 = vld [vmem:[#allocation4 + $0x138] sm:$0xff]
    %v1017 = vld [vmem:[#allocation4 + $0x140] sm:$0xff]
    %v1018 = vld [vmem:[#allocation4 + $0x148] sm:$0xff]
    %v1019 = vld [vmem:[#allocation4 + $0x150] sm:$0xff]
    %v1020 = vld [vmem:[#allocation4 + $0x158] sm:$0xff]
    %v1021 = vld [vmem:[#allocation4 + $0x160] sm:$0xff]
    %v1022 = vld [vmem:[#allocation4 + $0x168] sm:$0xff]
    %v1023 = vld [vmem:[#allocation4 + $0x170] sm:$0xff]
    %v1024 = vld [vmem:[#allocation4 + $0x178] sm:$0xff]
    %v1025 = vld [vmem:[#allocation4 + $0x180] sm:$0xff]
    %v1026 = vld [vmem:[#allocation4 + $0x188] sm:$0xff]
    %v1027 = vld [vmem:[#allocation4 + $0x190] sm:$0xff]
    %v1028 = vld [vmem:[#allocation4 + $0x198] sm:$0xff]
    %v1029 = vld [vmem:[#allocation4 + $0x1a0] sm:$0xff]
    %v1030 = vld [vmem:[#allocation4 + $0x1a8] sm:$0xff]
    %v1031 = vld [vmem:[#allocation4 + $0x1b0] sm:$0xff]
    %v1032 = vld [vmem:[#allocation4 + $0x1b8] sm:$0xff]
    %v1033 = vld [vmem:[#allocation4 + $0x1c0] sm:$0xff]
    %v1034 = vld [vmem:[#allocation4 + $0x1c8] sm:$0xff]
    %v1035 = vld [vmem:[#allocation4 + $0x1d0] sm:$0xff]
    %v1036 = vld [vmem:[#allocation4 + $0x1d8] sm:$0xff]
    %v1037 = vld [vmem:[#allocation4 + $0x1e0] sm:$0xff]
    %v1038 = vld [vmem:[#allocation4 + $0x1e8] sm:$0xff]
    %v1039 = vld [vmem:[#allocation4 + $0x1f0] sm:$0xff]
    %v1040 = vld [vmem:[#allocation4 + $0x1f8] sm:$0xff]
    %1041 = vmatprep.subr.mxu0 %v978
    %1042 = vmatpush1.msra.mxu0 %v977
    %1043 = vmatprep.subr.mxu0 %v980
    %1044 = vmatpush1.msra.mxu0 %v979
    %1045 = vmatprep.subr.mxu0 %v982
    %1046 = vmatpush1.msra.mxu0 %v981
    %1047 = vmatprep.subr.mxu0 %v984
    %1048 = vmatpush1.msra.mxu0 %v983
    %1049 = vmatprep.subr.mxu0 %v986
    %1050 = vmatpush1.msra.mxu0 %v985
    %1051 = vmatprep.subr.mxu0 %v988
    %1052 = vmatpush1.msra.mxu0 %v987
    %1053 = vmatprep.subr.mxu0 %v990
    %1054 = vmatpush1.msra.mxu0 %v989
    %1055 = vmatprep.subr.mxu0 %v992
    %1056 = vmatpush1.msra.mxu0 %v991
    %1057 = vmatprep.subr.mxu0 %v994
    %1058 = vmatpush1.msra.mxu0 %v993
    %1059 = vmatprep.subr.mxu0 %v996
    %1060 = vmatpush1.msra.mxu0 %v995
    %1061 = vmatprep.subr.mxu0 %v998
    %1062 = vmatpush1.msra.mxu0 %v997
    %1063 = vmatprep.subr.mxu0 %v1000
    %1064 = vmatpush1.msra.mxu0 %v999
    %1065 = vmatprep.subr.mxu0 %v1002
    %1066 = vmatpush1.msra.mxu0 %v1001
    %1067 = vmatprep.subr.mxu0 %v1004
    %1068 = vmatpush1.msra.mxu0 %v1003
    %1069 = vmatprep.subr.mxu0 %v1006
    %1070 = vmatpush1.msra.mxu0 %v1005
    %1071 = vmatprep.subr.mxu0 %v1008
    %1072 = vmatpush1.msra.mxu0 %v1007
    %1073 = vmatprep.subr.mxu0 %v1010
    %1074 = vmatpush1.msra.mxu0 %v1009
    %1075 = vmatprep.subr.mxu0 %v1012
    %1076 = vmatpush1.msra.mxu0 %v1011
    %1077 = vmatprep.subr.mxu0 %v1014
    %1078 = vmatpush1.msra.mxu0 %v1013
    %1079 = vmatprep.subr.mxu0 %v1016
    %1080 = vmatpush1.msra.mxu0 %v1015
    %1081 = vmatprep.subr.mxu0 %v1018
    %1082 = vmatpush1.msra.mxu0 %v1017
    %1083 = vmatprep.subr.mxu0 %v1020
    %1084 = vmatpush1.msra.mxu0 %v1019
    %1085 = vmatprep.subr.mxu0 %v1022
    %1086 = vmatpush1.msra.mxu0 %v1021
    %1087 = vmatprep.subr.mxu0 %v1024
    %1088 = vmatpush1.msra.mxu0 %v1023
    %1089 = vmatprep.subr.mxu0 %v1026
    %1090 = vmatpush1.msra.mxu0 %v1025
    %1091 = vmatprep.subr.mxu0 %v1028
    %1092 = vmatpush1.msra.mxu0 %v1027
    %1093 = vmatprep.subr.mxu0 %v1030
    %1094 = vmatpush1.msra.mxu0 %v1029
    %1095 = vmatprep.subr.mxu0 %v1032
    %1096 = vmatpush1.msra.mxu0 %v1031
    %1097 = vmatprep.subr.mxu0 %v1034
    %1098 = vmatpush1.msra.mxu0 %v1033
    %1099 = vmatprep.subr.mxu0 %v1036
    %1100 = vmatpush1.msra.mxu0 %v1035
    %1101 = vmatprep.subr.mxu0 %v1038
    %1102 = vmatpush1.msra.mxu0 %v1037
    %1103 = vmatprep.subr.mxu0 %v1040
    %1104 = vmatpush1.msra.mxu0 %v1039
    %1105 = vmatprep.mubr.f32.mxu0 %v972
    %1106 = vmatmul.mubr.f32.gmra.mrb[0].mxu0 %v971
    %v1107 = vpop.f32.mrb[0].mxu0
    %v1108 = vadd.f32 0.0, %v1107
    %v1109 = vpop.f32.mrb[0].mxu0
    %v1110 = vadd.f32 0.0, %v1109
    %1111 = vdwg.mxu0
    %1112 = vst [vmem:[#allocation2] sm:$0xff] %v1108
    %1113 = vst [vmem:[#allocation2 + $0x8] sm:$0xff] %v1110
    %s1114 = scalar_lea.vmem [#allocation4], 512
    %v1115 = vld [vmem:[%s1114] sm:$0xff]
    %v1116 = vld [vmem:[%s1114 + $0x8] sm:$0xff]
    %v1117 = vld [vmem:[%s1114 + $0x10] sm:$0xff]
    %v1118 = vld [vmem:[%s1114 + $0x18] sm:$0xff]
    %v1119 = vld [vmem:[%s1114 + $0x20] sm:$0xff]
    %v1120 = vld [vmem:[%s1114 + $0x28] sm:$0xff]
    %v1121 = vld [vmem:[%s1114 + $0x30] sm:$0xff]
    %v1122 = vld [vmem:[%s1114 + $0x38] sm:$0xff]
    %v1123 = vld [vmem:[%s1114 + $0x40] sm:$0xff]
    %v1124 = vld [vmem:[%s1114 + $0x48] sm:$0xff]
    %v1125 = vld [vmem:[%s1114 + $0x50] sm:$0xff]
    %v1126 = vld [vmem:[%s1114 + $0x58] sm:$0xff]
    %v1127 = vld [vmem:[%s1114 + $0x60] sm:$0xff]
    %v1128 = vld [vmem:[%s1114 + $0x68] sm:$0xff]
    %v1129 = vld [vmem:[%s1114 + $0x70] sm:$0xff]
    %v1130 = vld [vmem:[%s1114 + $0x78] sm:$0xff]
    %v1131 = vld [vmem:[%s1114 + $0x80] sm:$0xff]
    %v1132 = vld [vmem:[%s1114 + $0x88] sm:$0xff]
    %v1133 = vld [vmem:[%s1114 + $0x90] sm:$0xff]
    %v1134 = vld [vmem:[%s1114 + $0x98] sm:$0xff]
    %v1135 = vld [vmem:[%s1114 + $0xa0] sm:$0xff]
    %v1136 = vld [vmem:[%s1114 + $0xa8] sm:$0xff]
    %v1137 = vld [vmem:[%s1114 + $0xb0] sm:$0xff]
    %v1138 = vld [vmem:[%s1114 + $0xb8] sm:$0xff]
    %v1139 = vld [vmem:[%s1114 + $0xc0] sm:$0xff]
    %v1140 = vld [vmem:[%s1114 + $0xc8] sm:$0xff]
    %v1141 = vld [vmem:[%s1114 + $0xd0] sm:$0xff]
    %v1142 = vld [vmem:[%s1114 + $0xd8] sm:$0xff]
    %v1143 = vld [vmem:[%s1114 + $0xe0] sm:$0xff]
    %v1144 = vld [vmem:[%s1114 + $0xe8] sm:$0xff]
    %v1145 = vld [vmem:[%s1114 + $0xf0] sm:$0xff]
    %v1146 = vld [vmem:[%s1114 + $0xf8] sm:$0xff]
    %v1147 = vld [vmem:[%s1114 + $0x100] sm:$0xff]
    %v1148 = vld [vmem:[%s1114 + $0x108] sm:$0xff]
    %v1149 = vld [vmem:[%s1114 + $0x110] sm:$0xff]
    %v1150 = vld [vmem:[%s1114 + $0x118] sm:$0xff]
    %v1151 = vld [vmem:[%s1114 + $0x120] sm:$0xff]
    %v1152 = vld [vmem:[%s1114 + $0x128] sm:$0xff]
    %v1153 = vld [vmem:[%s1114 + $0x130] sm:$0xff]
    %v1154 = vld [vmem:[%s1114 + $0x138] sm:$0xff]
    %v1155 = vld [vmem:[%s1114 + $0x140] sm:$0xff]
    %v1156 = vld [vmem:[%s1114 + $0x148] sm:$0xff]
    %v1157 = vld [vmem:[%s1114 + $0x150] sm:$0xff]
    %v1158 = vld [vmem:[%s1114 + $0x158] sm:$0xff]
    %v1159 = vld [vmem:[%s1114 + $0x160] sm:$0xff]
    %v1160 = vld [vmem:[%s1114 + $0x168] sm:$0xff]
    %v1161 = vld [vmem:[%s1114 + $0x170] sm:$0xff]
    %v1162 = vld [vmem:[%s1114 + $0x178] sm:$0xff]
    %v1163 = vld [vmem:[%s1114 + $0x180] sm:$0xff]
    %v1164 = vld [vmem:[%s1114 + $0x188] sm:$0xff]
    %v1165 = vld [vmem:[%s1114 + $0x190] sm:$0xff]
    %v1166 = vld [vmem:[%s1114 + $0x198] sm:$0xff]
    %v1167 = vld [vmem:[%s1114 + $0x1a0] sm:$0xff]
    %v1168 = vld [vmem:[%s1114 + $0x1a8] sm:$0xff]
    %v1169 = vld [vmem:[%s1114 + $0x1b0] sm:$0xff]
    %v1170 = vld [vmem:[%s1114 + $0x1b8] sm:$0xff]
    %v1171 = vld [vmem:[%s1114 + $0x1c0] sm:$0xff]
    %v1172 = vld [vmem:[%s1114 + $0x1c8] sm:$0xff]
    %v1173 = vld [vmem:[%s1114 + $0x1d0] sm:$0xff]
    %v1174 = vld [vmem:[%s1114 + $0x1d8] sm:$0xff]
    %v1175 = vld [vmem:[%s1114 + $0x1e0] sm:$0xff]
    %v1176 = vld [vmem:[%s1114 + $0x1e8] sm:$0xff]
    %v1177 = vld [vmem:[%s1114 + $0x1f0] sm:$0xff]
    %v1178 = vld [vmem:[%s1114 + $0x1f8] sm:$0xff]
    %1179 = vmatprep.subr.mxu0 %v1116
    %1180 = vmatpush1.msra.mxu0 %v1115
    %1181 = vmatprep.subr.mxu0 %v1118
    %1182 = vmatpush1.msra.mxu0 %v1117
    %1183 = vmatprep.subr.mxu0 %v1120
    %1184 = vmatpush1.msra.mxu0 %v1119
    %1185 = vmatprep.subr.mxu0 %v1122
    %1186 = vmatpush1.msra.mxu0 %v1121
    %1187 = vmatprep.subr.mxu0 %v1124
    %1188 = vmatpush1.msra.mxu0 %v1123
    %1189 = vmatprep.subr.mxu0 %v1126
    %1190 = vmatpush1.msra.mxu0 %v1125
    %1191 = vmatprep.subr.mxu0 %v1128
    %1192 = vmatpush1.msra.mxu0 %v1127
    %1193 = vmatprep.subr.mxu0 %v1130
    %1194 = vmatpush1.msra.mxu0 %v1129
    %1195 = vmatprep.subr.mxu0 %v1132
    %1196 = vmatpush1.msra.mxu0 %v1131
    %1197 = vmatprep.subr.mxu0 %v1134
    %1198 = vmatpush1.msra.mxu0 %v1133
    %1199 = vmatprep.subr.mxu0 %v1136
    %1200 = vmatpush1.msra.mxu0 %v1135
    %1201 = vmatprep.subr.mxu0 %v1138
    %1202 = vmatpush1.msra.mxu0 %v1137
    %1203 = vmatprep.subr.mxu0 %v1140
    %1204 = vmatpush1.msra.mxu0 %v1139
    %1205 = vmatprep.subr.mxu0 %v1142
    %1206 = vmatpush1.msra.mxu0 %v1141
    %1207 = vmatprep.subr.mxu0 %v1144
    %1208 = vmatpush1.msra.mxu0 %v1143
    %1209 = vmatprep.subr.mxu0 %v1146
    %1210 = vmatpush1.msra.mxu0 %v1145
    %1211 = vmatprep.subr.mxu0 %v1148
    %1212 = vmatpush1.msra.mxu0 %v1147
    %1213 = vmatprep.subr.mxu0 %v1150
    %1214 = vmatpush1.msra.mxu0 %v1149
    %1215 = vmatprep.subr.mxu0 %v1152
    %1216 = vmatpush1.msra.mxu0 %v1151
    %1217 = vmatprep.subr.mxu0 %v1154
    %1218 = vmatpush1.msra.mxu0 %v1153
    %1219 = vmatprep.subr.mxu0 %v1156
    %1220 = vmatpush1.msra.mxu0 %v1155
    %1221 = vmatprep.subr.mxu0 %v1158
    %1222 = vmatpush1.msra.mxu0 %v1157
    %1223 = vmatprep.subr.mxu0 %v1160
    %1224 = vmatpush1.msra.mxu0 %v1159
    %1225 = vmatprep.subr.mxu0 %v1162
    %1226 = vmatpush1.msra.mxu0 %v1161
    %1227 = vmatprep.subr.mxu0 %v1164
    %1228 = vmatpush1.msra.mxu0 %v1163
    %1229 = vmatprep.subr.mxu0 %v1166
    %1230 = vmatpush1.msra.mxu0 %v1165
    %1231 = vmatprep.subr.mxu0 %v1168
    %1232 = vmatpush1.msra.mxu0 %v1167
    %1233 = vmatprep.subr.mxu0 %v1170
    %1234 = vmatpush1.msra.mxu0 %v1169
    %1235 = vmatprep.subr.mxu0 %v1172
    %1236 = vmatpush1.msra.mxu0 %v1171
    %1237 = vmatprep.subr.mxu0 %v1174
    %1238 = vmatpush1.msra.mxu0 %v1173
    %1239 = vmatprep.subr.mxu0 %v1176
    %1240 = vmatpush1.msra.mxu0 %v1175
    %1241 = vmatprep.subr.mxu0 %v1178
    %1242 = vmatpush1.msra.mxu0 %v1177
    %1243 = vmatprep.mubr.f32.mxu0 %v972
    %1244 = vmatmul.mubr.f32.gmra.mrb[0].mxu0 %v971
    %v1245 = vpop.f32.mrb[0].mxu0
    %v1246 = vadd.f32 0.0, %v1245
    %v1247 = vpop.f32.mrb[0].mxu0
    %v1248 = vadd.f32 0.0, %v1247
    %1249 = vdwg.mxu0
    %1250 = vst [vmem:[#allocation2 + $0x10] sm:$0xff] %v1246
    %1251 = vst [vmem:[#allocation2 + $0x18] sm:$0xff] %v1248
    %s1252 = scalar_lea.vmem [#allocation4], 1024
    %v1253 = vld [vmem:[%s1252] sm:$0xff]
    %v1254 = vld [vmem:[%s1252 + $0x8] sm:$0xff]
    %v1255 = vld [vmem:[%s1252 + $0x10] sm:$0xff]
    %v1256 = vld [vmem:[%s1252 + $0x18] sm:$0xff]
    %v1257 = vld [vmem:[%s1252 + $0x20] sm:$0xff]
    %v1258 = vld [vmem:[%s1252 + $0x28] sm:$0xff]
    %v1259 = vld [vmem:[%s1252 + $0x30] sm:$0xff]
    %v1260 = vld [vmem:[%s1252 + $0x38] sm:$0xff]
    %v1261 = vld [vmem:[%s1252 + $0x40] sm:$0xff]
    %v1262 = vld [vmem:[%s1252 + $0x48] sm:$0xff]
    %v1263 = vld [vmem:[%s1252 + $0x50] sm:$0xff]
    %v1264 = vld [vmem:[%s1252 + $0x58] sm:$0xff]
    %v1265 = vld [vmem:[%s1252 + $0x60] sm:$0xff]
    %v1266 = vld [vmem:[%s1252 + $0x68] sm:$0xff]
    %v1267 = vld [vmem:[%s1252 + $0x70] sm:$0xff]
    %v1268 = vld [vmem:[%s1252 + $0x78] sm:$0xff]
    %v1269 = vld [vmem:[%s1252 + $0x80] sm:$0xff]
    %v1270 = vld [vmem:[%s1252 + $0x88] sm:$0xff]
    %v1271 = vld [vmem:[%s1252 + $0x90] sm:$0xff]
    %v1272 = vld [vmem:[%s1252 + $0x98] sm:$0xff]
    %v1273 = vld [vmem:[%s1252 + $0xa0] sm:$0xff]
    %v1274 = vld [vmem:[%s1252 + $0xa8] sm:$0xff]
    %v1275 = vld [vmem:[%s1252 + $0xb0] sm:$0xff]
    %v1276 = vld [vmem:[%s1252 + $0xb8] sm:$0xff]
    %v1277 = vld [vmem:[%s1252 + $0xc0] sm:$0xff]
    %v1278 = vld [vmem:[%s1252 + $0xc8] sm:$0xff]
    %v1279 = vld [vmem:[%s1252 + $0xd0] sm:$0xff]
    %v1280 = vld [vmem:[%s1252 + $0xd8] sm:$0xff]
    %v1281 = vld [vmem:[%s1252 + $0xe0] sm:$0xff]
    %v1282 = vld [vmem:[%s1252 + $0xe8] sm:$0xff]
    %v1283 = vld [vmem:[%s1252 + $0xf0] sm:$0xff]
    %v1284 = vld [vmem:[%s1252 + $0xf8] sm:$0xff]
    %v1285 = vld [vmem:[%s1252 + $0x100] sm:$0xff]
    %v1286 = vld [vmem:[%s1252 + $0x108] sm:$0xff]
    %v1287 = vld [vmem:[%s1252 + $0x110] sm:$0xff]
    %v1288 = vld [vmem:[%s1252 + $0x118] sm:$0xff]
    %v1289 = vld [vmem:[%s1252 + $0x120] sm:$0xff]
    %v1290 = vld [vmem:[%s1252 + $0x128] sm:$0xff]
    %v1291 = vld [vmem:[%s1252 + $0x130] sm:$0xff]
    %v1292 = vld [vmem:[%s1252 + $0x138] sm:$0xff]
    %v1293 = vld [vmem:[%s1252 + $0x140] sm:$0xff]
    %v1294 = vld [vmem:[%s1252 + $0x148] sm:$0xff]
    %v1295 = vld [vmem:[%s1252 + $0x150] sm:$0xff]
    %v1296 = vld [vmem:[%s1252 + $0x158] sm:$0xff]
    %v1297 = vld [vmem:[%s1252 + $0x160] sm:$0xff]
    %v1298 = vld [vmem:[%s1252 + $0x168] sm:$0xff]
    %v1299 = vld [vmem:[%s1252 + $0x170] sm:$0xff]
    %v1300 = vld [vmem:[%s1252 + $0x178] sm:$0xff]
    %v1301 = vld [vmem:[%s1252 + $0x180] sm:$0xff]
    %v1302 = vld [vmem:[%s1252 + $0x188] sm:$0xff]
    %v1303 = vld [vmem:[%s1252 + $0x190] sm:$0xff]
    %v1304 = vld [vmem:[%s1252 + $0x198] sm:$0xff]
    %v1305 = vld [vmem:[%s1252 + $0x1a0] sm:$0xff]
    %v1306 = vld [vmem:[%s1252 + $0x1a8] sm:$0xff]
    %v1307 = vld [vmem:[%s1252 + $0x1b0] sm:$0xff]
    %v1308 = vld [vmem:[%s1252 + $0x1b8] sm:$0xff]
    %v1309 = vld [vmem:[%s1252 + $0x1c0] sm:$0xff]
    %v1310 = vld [vmem:[%s1252 + $0x1c8] sm:$0xff]
    %v1311 = vld [vmem:[%s1252 + $0x1d0] sm:$0xff]
    %v1312 = vld [vmem:[%s1252 + $0x1d8] sm:$0xff]
    %v1313 = vld [vmem:[%s1252 + $0x1e0] sm:$0xff]
    %v1314 = vld [vmem:[%s1252 + $0x1e8] sm:$0xff]
    %v1315 = vld [vmem:[%s1252 + $0x1f0] sm:$0xff]
    %v1316 = vld [vmem:[%s1252 + $0x1f8] sm:$0xff]
    %1317 = vmatprep.subr.mxu0 %v1254
    %1318 = vmatpush1.msra.mxu0 %v1253
    %1319 = vmatprep.subr.mxu0 %v1256
    %1320 = vmatpush1.msra.mxu0 %v1255
    %1321 = vmatprep.subr.mxu0 %v1258
    %1322 = vmatpush1.msra.mxu0 %v1257
    %1323 = vmatprep.subr.mxu0 %v1260
    %1324 = vmatpush1.msra.mxu0 %v1259
    %1325 = vmatprep.subr.mxu0 %v1262
    %1326 = vmatpush1.msra.mxu0 %v1261
    %1327 = vmatprep.subr.mxu0 %v1264
    %1328 = vmatpush1.msra.mxu0 %v1263
    %1329 = vmatprep.subr.mxu0 %v1266
    %1330 = vmatpush1.msra.mxu0 %v1265
    %1331 = vmatprep.subr.mxu0 %v1268
    %1332 = vmatpush1.msra.mxu0 %v1267
    %1333 = vmatprep.subr.mxu0 %v1270
    %1334 = vmatpush1.msra.mxu0 %v1269
    %1335 = vmatprep.subr.mxu0 %v1272
    %1336 = vmatpush1.msra.mxu0 %v1271
    %1337 = vmatprep.subr.mxu0 %v1274
    %1338 = vmatpush1.msra.mxu0 %v1273
    %1339 = vmatprep.subr.mxu0 %v1276
    %1340 = vmatpush1.msra.mxu0 %v1275
    %1341 = vmatprep.subr.mxu0 %v1278
    %1342 = vmatpush1.msra.mxu0 %v1277
    %1343 = vmatprep.subr.mxu0 %v1280
    %1344 = vmatpush1.msra.mxu0 %v1279
    %1345 = vmatprep.subr.mxu0 %v1282
    %1346 = vmatpush1.msra.mxu0 %v1281
    %1347 = vmatprep.subr.mxu0 %v1284
    %1348 = vmatpush1.msra.mxu0 %v1283
    %1349 = vmatprep.subr.mxu0 %v1286
    %1350 = vmatpush1.msra.mxu0 %v1285
    %1351 = vmatprep.subr.mxu0 %v1288
    %1352 = vmatpush1.msra.mxu0 %v1287
    %1353 = vmatprep.subr.mxu0 %v1290
    %1354 = vmatpush1.msra.mxu0 %v1289
    %1355 = vmatprep.subr.mxu0 %v1292
    %1356 = vmatpush1.msra.mxu0 %v1291
    %1357 = vmatprep.subr.mxu0 %v1294
    %1358 = vmatpush1.msra.mxu0 %v1293
    %1359 = vmatprep.subr.mxu0 %v1296
    %1360 = vmatpush1.msra.mxu0 %v1295
    %1361 = vmatprep.subr.mxu0 %v1298
    %1362 = vmatpush1.msra.mxu0 %v1297
    %1363 = vmatprep.subr.mxu0 %v1300
    %1364 = vmatpush1.msra.mxu0 %v1299
    %1365 = vmatprep.subr.mxu0 %v1302
    %1366 = vmatpush1.msra.mxu0 %v1301
    %1367 = vmatprep.subr.mxu0 %v1304
    %1368 = vmatpush1.msra.mxu0 %v1303
    %1369 = vmatprep.subr.mxu0 %v1306
    %1370 = vmatpush1.msra.mxu0 %v1305
    %1371 = vmatprep.subr.mxu0 %v1308
    %1372 = vmatpush1.msra.mxu0 %v1307
    %1373 = vmatprep.subr.mxu0 %v1310
    %1374 = vmatpush1.msra.mxu0 %v1309
    %1375 = vmatprep.subr.mxu0 %v1312
    %1376 = vmatpush1.msra.mxu0 %v1311
    %1377 = vmatprep.subr.mxu0 %v1314
    %1378 = vmatpush1.msra.mxu0 %v1313
    %1379 = vmatprep.subr.mxu0 %v1316
    %1380 = vmatpush1.msra.mxu0 %v1315
    %1381 = vmatprep.mubr.f32.mxu0 %v972
    %1382 = vmatmul.mubr.f32.gmra.mrb[0].mxu0 %v971
    %v1383 = vpop.f32.mrb[0].mxu0
    %v1384 = vadd.f32 0.0, %v1383
    %v1385 = vpop.f32.mrb[0].mxu0
    %v1386 = vadd.f32 0.0, %v1385
    %1387 = vdwg.mxu0
    %1388 = vst [vmem:[#allocation2 + $0x20] sm:$0xff] %v1384
    %1389 = vst [vmem:[#allocation2 + $0x28] sm:$0xff] %v1386
    %s1390 = scalar_lea.vmem [#allocation4], 1536
    %v1391 = vld [vmem:[%s1390] sm:$0xff]
    %v1392 = vld [vmem:[%s1390 + $0x8] sm:$0xff]
    %v1393 = vld [vmem:[%s1390 + $0x10] sm:$0xff]
    %v1394 = vld [vmem:[%s1390 + $0x18] sm:$0xff]
    %v1395 = vld [vmem:[%s1390 + $0x20] sm:$0xff]
    %v1396 = vld [vmem:[%s1390 + $0x28] sm:$0xff]
    %v1397 = vld [vmem:[%s1390 + $0x30] sm:$0xff]
    %v1398 = vld [vmem:[%s1390 + $0x38] sm:$0xff]
    %v1399 = vld [vmem:[%s1390 + $0x40] sm:$0xff]
    %v1400 = vld [vmem:[%s1390 + $0x48] sm:$0xff]
    %v1401 = vld [vmem:[%s1390 + $0x50] sm:$0xff]
    %v1402 = vld [vmem:[%s1390 + $0x58] sm:$0xff]
    %v1403 = vld [vmem:[%s1390 + $0x60] sm:$0xff]
    %v1404 = vld [vmem:[%s1390 + $0x68] sm:$0xff]
    %v1405 = vld [vmem:[%s1390 + $0x70] sm:$0xff]
    %v1406 = vld [vmem:[%s1390 + $0x78] sm:$0xff]
    %v1407 = vld [vmem:[%s1390 + $0x80] sm:$0xff]
    %v1408 = vld [vmem:[%s1390 + $0x88] sm:$0xff]
    %v1409 = vld [vmem:[%s1390 + $0x90] sm:$0xff]
    %v1410 = vld [vmem:[%s1390 + $0x98] sm:$0xff]
    %v1411 = vld [vmem:[%s1390 + $0xa0] sm:$0xff]
    %v1412 = vld [vmem:[%s1390 + $0xa8] sm:$0xff]
    %v1413 = vld [vmem:[%s1390 + $0xb0] sm:$0xff]
    %v1414 = vld [vmem:[%s1390 + $0xb8] sm:$0xff]
    %v1415 = vld [vmem:[%s1390 + $0xc0] sm:$0xff]
    %v1416 = vld [vmem:[%s1390 + $0xc8] sm:$0xff]
    %v1417 = vld [vmem:[%s1390 + $0xd0] sm:$0xff]
    %v1418 = vld [vmem:[%s1390 + $0xd8] sm:$0xff]
    %v1419 = vld [vmem:[%s1390 + $0xe0] sm:$0xff]
    %v1420 = vld [vmem:[%s1390 + $0xe8] sm:$0xff]
    %v1421 = vld [vmem:[%s1390 + $0xf0] sm:$0xff]
    %v1422 = vld [vmem:[%s1390 + $0xf8] sm:$0xff]
    %v1423 = vld [vmem:[%s1390 + $0x100] sm:$0xff]
    %v1424 = vld [vmem:[%s1390 + $0x108] sm:$0xff]
    %v1425 = vld [vmem:[%s1390 + $0x110] sm:$0xff]
    %v1426 = vld [vmem:[%s1390 + $0x118] sm:$0xff]
    %v1427 = vld [vmem:[%s1390 + $0x120] sm:$0xff]
    %v1428 = vld [vmem:[%s1390 + $0x128] sm:$0xff]
    %v1429 = vld [vmem:[%s1390 + $0x130] sm:$0xff]
    %v1430 = vld [vmem:[%s1390 + $0x138] sm:$0xff]
    %v1431 = vld [vmem:[%s1390 + $0x140] sm:$0xff]
    %v1432 = vld [vmem:[%s1390 + $0x148] sm:$0xff]
    %v1433 = vld [vmem:[%s1390 + $0x150] sm:$0xff]
    %v1434 = vld [vmem:[%s1390 + $0x158] sm:$0xff]
    %v1435 = vld [vmem:[%s1390 + $0x160] sm:$0xff]
    %v1436 = vld [vmem:[%s1390 + $0x168] sm:$0xff]
    %v1437 = vld [vmem:[%s1390 + $0x170] sm:$0xff]
    %v1438 = vld [vmem:[%s1390 + $0x178] sm:$0xff]
    %v1439 = vld [vmem:[%s1390 + $0x180] sm:$0xff]
    %v1440 = vld [vmem:[%s1390 + $0x188] sm:$0xff]
    %v1441 = vld [vmem:[%s1390 + $0x190] sm:$0xff]
    %v1442 = vld [vmem:[%s1390 + $0x198] sm:$0xff]
    %v1443 = vld [vmem:[%s1390 + $0x1a0] sm:$0xff]
    %v1444 = vld [vmem:[%s1390 + $0x1a8] sm:$0xff]
    %v1445 = vld [vmem:[%s1390 + $0x1b0] sm:$0xff]
    %v1446 = vld [vmem:[%s1390 + $0x1b8] sm:$0xff]
    %v1447 = vld [vmem:[%s1390 + $0x1c0] sm:$0xff]
    %v1448 = vld [vmem:[%s1390 + $0x1c8] sm:$0xff]
    %v1449 = vld [vmem:[%s1390 + $0x1d0] sm:$0xff]
    %v1450 = vld [vmem:[%s1390 + $0x1d8] sm:$0xff]
    %v1451 = vld [vmem:[%s1390 + $0x1e0] sm:$0xff]
    %v1452 = vld [vmem:[%s1390 + $0x1e8] sm:$0xff]
    %v1453 = vld [vmem:[%s1390 + $0x1f0] sm:$0xff]
    %v1454 = vld [vmem:[%s1390 + $0x1f8] sm:$0xff]
    %1455 = vmatprep.subr.mxu0 %v1392
    %1456 = vmatpush1.msra.mxu0 %v1391
    %1457 = vmatprep.subr.mxu0 %v1394
    %1458 = vmatpush1.msra.mxu0 %v1393
    %1459 = vmatprep.subr.mxu0 %v1396
    %1460 = vmatpush1.msra.mxu0 %v1395
    %1461 = vmatprep.subr.mxu0 %v1398
    %1462 = vmatpush1.msra.mxu0 %v1397
    %1463 = vmatprep.subr.mxu0 %v1400
    %1464 = vmatpush1.msra.mxu0 %v1399
    %1465 = vmatprep.subr.mxu0 %v1402
    %1466 = vmatpush1.msra.mxu0 %v1401
    %1467 = vmatprep.subr.mxu0 %v1404
    %1468 = vmatpush1.msra.mxu0 %v1403
    %1469 = vmatprep.subr.mxu0 %v1406
    %1470 = vmatpush1.msra.mxu0 %v1405
    %1471 = vmatprep.subr.mxu0 %v1408
    %1472 = vmatpush1.msra.mxu0 %v1407
    %1473 = vmatprep.subr.mxu0 %v1410
    %1474 = vmatpush1.msra.mxu0 %v1409
    %1475 = vmatprep.subr.mxu0 %v1412
    %1476 = vmatpush1.msra.mxu0 %v1411
    %1477 = vmatprep.subr.mxu0 %v1414
    %1478 = vmatpush1.msra.mxu0 %v1413
    %1479 = vmatprep.subr.mxu0 %v1416
    %1480 = vmatpush1.msra.mxu0 %v1415
    %1481 = vmatprep.subr.mxu0 %v1418
    %1482 = vmatpush1.msra.mxu0 %v1417
    %1483 = vmatprep.subr.mxu0 %v1420
    %1484 = vmatpush1.msra.mxu0 %v1419
    %1485 = vmatprep.subr.mxu0 %v1422
    %1486 = vmatpush1.msra.mxu0 %v1421
    %1487 = vmatprep.subr.mxu0 %v1424
    %1488 = vmatpush1.msra.mxu0 %v1423
    %1489 = vmatprep.subr.mxu0 %v1426
    %1490 = vmatpush1.msra.mxu0 %v1425
    %1491 = vmatprep.subr.mxu0 %v1428
    %1492 = vmatpush1.msra.mxu0 %v1427
    %1493 = vmatprep.subr.mxu0 %v1430
    %1494 = vmatpush1.msra.mxu0 %v1429
    %1495 = vmatprep.subr.mxu0 %v1432
    %1496 = vmatpush1.msra.mxu0 %v1431
    %1497 = vmatprep.subr.mxu0 %v1434
    %1498 = vmatpush1.msra.mxu0 %v1433
    %1499 = vmatprep.subr.mxu0 %v1436
    %1500 = vmatpush1.msra.mxu0 %v1435
    %1501 = vmatprep.subr.mxu0 %v1438
    %1502 = vmatpush1.msra.mxu0 %v1437
    %1503 = vmatprep.subr.mxu0 %v1440
    %1504 = vmatpush1.msra.mxu0 %v1439
    %1505 = vmatprep.subr.mxu0 %v1442
    %1506 = vmatpush1.msra.mxu0 %v1441
    %1507 = vmatprep.subr.mxu0 %v1444
    %1508 = vmatpush1.msra.mxu0 %v1443
    %1509 = vmatprep.subr.mxu0 %v1446
    %1510 = vmatpush1.msra.mxu0 %v1445
    %1511 = vmatprep.subr.mxu0 %v1448
    %1512 = vmatpush1.msra.mxu0 %v1447
    %1513 = vmatprep.subr.mxu0 %v1450
    %1514 = vmatpush1.msra.mxu0 %v1449
    %1515 = vmatprep.subr.mxu0 %v1452
    %1516 = vmatpush1.msra.mxu0 %v1451
    %1517 = vmatprep.subr.mxu0 %v1454
    %1518 = vmatpush1.msra.mxu0 %v1453
    %1519 = vmatprep.mubr.f32.mxu0 %v972
    %1520 = vmatmul.mubr.f32.gmra.mrb[0].mxu0 %v971
    %v1521 = vpop.f32.mrb[0].mxu0
    %v1522 = vadd.f32 0.0, %v1521
    %v1523 = vpop.f32.mrb[0].mxu0
    %v1524 = vadd.f32 0.0, %v1523
    %1525 = vdwg.mxu0
    %1526 = vst [vmem:[#allocation2 + $0x30] sm:$0xff] %v1522
    %1527 = vst [vmem:[#allocation2 + $0x38] sm:$0xff] %v1524
    %v1528 = vld [vmem:[#allocation9] sm:$0xff]
    %v1529 = vld [vmem:[#allocation9 + $0x8] sm:$0xff]
    %v1530 = vld [vmem:[#allocation2] sm:$0xff]
    %v1531 = vld [vmem:[#allocation2 + $0x8] sm:$0xff]
    %v1532 = vld [vmem:[#allocation2 + $0x10] sm:$0xff]
    %v1533 = vld [vmem:[#allocation2 + $0x18] sm:$0xff]
    %v1534 = vld [vmem:[#allocation2 + $0x20] sm:$0xff]
    %v1535 = vld [vmem:[#allocation2 + $0x28] sm:$0xff]
    %v1536 = vld [vmem:[#allocation2 + $0x30] sm:$0xff]
    %v1537 = vld [vmem:[#allocation2 + $0x38] sm:$0xff]
    %v1539 = vsel %vm644, %v1528, 0
    %v1542 = vsel %vm644, %v1529, 0
    %1544 = vmatprep.subr.mxu0 %v1531
    %1545 = vmatpush1.msra.mxu0 %v1530
    %1546 = vmatprep.subr.mxu0 %v1533
    %1547 = vmatpush1.msra.mxu0 %v1532
    %1548 = vmatprep.subr.mxu0 %v1535
    %1549 = vmatpush1.msra.mxu0 %v1534
    %1550 = vmatprep.subr.mxu0 %v1537
    %1551 = vmatpush1.msra.mxu0 %v1536
    %1552 = vmatprep.subr.mxu0 0.0
    %1553 = vmatpush1.msra.mxu0 0.0
    %1554 = vmatprep.subr.mxu0 0.0
    %1555 = vmatpush1.msra.mxu0 0.0
    %1556 = vmatprep.subr.mxu0 0.0
    %1557 = vmatpush1.msra.mxu0 0.0
    %1558 = vmatprep.subr.mxu0 0.0
    %1559 = vmatpush1.msra.mxu0 0.0
    %1560 = vmatprep.subr.mxu0 0.0
    %1561 = vmatpush1.msra.mxu0 0.0
    %1562 = vmatprep.subr.mxu0 0.0
    %1563 = vmatpush1.msra.mxu0 0.0
    %1564 = vmatprep.subr.mxu0 0.0
    %1565 = vmatpush1.msra.mxu0 0.0
    %1566 = vmatprep.subr.mxu0 0.0
    %1567 = vmatpush1.msra.mxu0 0.0
    %1568 = vmatprep.subr.mxu0 0.0
    %1569 = vmatpush1.msra.mxu0 0.0
    %1570 = vmatprep.subr.mxu0 0.0
    %1571 = vmatpush1.msra.mxu0 0.0
    %1572 = vmatprep.subr.mxu0 0.0
    %1573 = vmatpush1.msra.mxu0 0.0
    %1574 = vmatprep.subr.mxu0 0.0
    %1575 = vmatpush1.msra.mxu0 0.0
    %1576 = vmatprep.subr.mxu0 0.0
    %1577 = vmatpush1.msra.mxu0 0.0
    %1578 = vmatprep.subr.mxu0 0.0
    %1579 = vmatpush1.msra.mxu0 0.0
    %1580 = vmatprep.subr.mxu0 0.0
    %1581 = vmatpush1.msra.mxu0 0.0
    %1582 = vmatprep.subr.mxu0 0.0
    %1583 = vmatpush1.msra.mxu0 0.0
    %1584 = vmatprep.subr.mxu0 0.0
    %1585 = vmatpush1.msra.mxu0 0.0
    %1586 = vmatprep.subr.mxu0 0.0
    %1587 = vmatpush1.msra.mxu0 0.0
    %1588 = vmatprep.subr.mxu0 0.0
    %1589 = vmatpush1.msra.mxu0 0.0
    %1590 = vmatprep.subr.mxu0 0.0
    %1591 = vmatpush1.msra.mxu0 0.0
    %1592 = vmatprep.subr.mxu0 0.0
    %1593 = vmatpush1.msra.mxu0 0.0
    %1594 = vmatprep.subr.mxu0 0.0
    %1595 = vmatpush1.msra.mxu0 0.0
    %1596 = vmatprep.subr.mxu0 0.0
    %1597 = vmatpush1.msra.mxu0 0.0
    %1598 = vmatprep.subr.mxu0 0.0
    %1599 = vmatpush1.msra.mxu0 0.0
    %1600 = vmatprep.subr.mxu0 0.0
    %1601 = vmatpush1.msra.mxu0 0.0
    %1602 = vmatprep.subr.mxu0 0.0
    %1603 = vmatpush1.msra.mxu0 0.0
    %1604 = vmatprep.subr.mxu0 0.0
    %1605 = vmatpush1.msra.mxu0 0.0
    %1606 = vmatprep.subr.mxu0 0.0
    %1607 = vmatpush1.msra.mxu0 0.0
    %1608 = vmatprep.mubr.f32.mxu0 0.0
    %1609 = vmatmul.mubr.f32.gmra.mrb[0].mxu0 %v1539
    %v1610 = vpop.f32.mrb[0].mxu0
    %v1611 = vadd.f32 0.0, %v1610
    %v1612 = vpop.f32.mrb[0].mxu0
    %v1613 = vadd.f32 0.0, %v1612
    %1614 = vmatprep.mubr.f32.mxu0 0.0
    %1615 = vmatmul.mubr.f32.gmra.mrb[0].mxu0 %v1542
    %v1616 = vpop.f32.mrb[0].mxu0
    %v1617 = vadd.f32 0.0, %v1616
    %v1618 = vpop.f32.mrb[0].mxu0
    %v1619 = vadd.f32 0.0, %v1618
    %1620 = vdwg.mxu0
    %v1621 = vadd.f32 %v1611, %v1617
    %v1622 = vrot.slane %v1621, 4
    %v1623 = vadd.f32 %v1621, %v1622
    %v1624 = vrot.slane %v1623, 2
    %v1625 = vadd.f32 %v1623, %v1624
    %v1626 = vrot.slane %v1625, 1
    %v1627 = vadd.f32 %v1625, %v1626
    %v1628 = vadd.f32 %v1613, %v1619
    %v1629 = vrot.slane %v1628, 4
    %v1630 = vadd.f32 %v1628, %v1629
    %v1631 = vrot.slane %v1630, 2
    %v1632 = vadd.f32 %v1630, %v1631
    %v1633 = vrot.slane %v1632, 1
    %v1634 = vadd.f32 %v1632, %v1633
    %v1635 = vmul.f32 %v1611, %v1611
    %v1636 = vmul.f32 %v1613, %v1613
    %v1637 = vmul.f32 %v1617, %v1617
    %v1638 = vmul.f32 %v1619, %v1619
    %v1639 = vadd.f32 %v1635, %v1637
    %v1640 = vrot.slane %v1639, 4
    %v1641 = vadd.f32 %v1639, %v1640
    %v1642 = vrot.slane %v1641, 2
    %v1643 = vadd.f32 %v1641, %v1642
    %v1644 = vrot.slane %v1643, 1
    %v1645 = vadd.f32 %v1643, %v1644
    %v1646 = vadd.f32 %v1636, %v1638
    %v1647 = vrot.slane %v1646, 4
    %v1648 = vadd.f32 %v1646, %v1647
    %v1649 = vrot.slane %v1648, 2
    %v1650 = vadd.f32 %v1648, %v1649
    %v1651 = vrot.slane %v1650, 1
    %v1652 = vadd.f32 %v1650, %v1651
    %v1653 = vsel %vm745, %v1627, %v1645
    %v1654 = vsel %vm745, %v1634, %v1652
    %v1655 = vld [vmem:[#allocation16] sm:$0xff]
    %v1656 = vld [vmem:[#allocation16 + $0x8] sm:$0xff]
    %v1657 = vld [vmem:[#allocation16 + $0x10] sm:$0xff]
    %v1658 = vld [vmem:[#allocation16 + $0x18] sm:$0xff]
    %v1659 = vld [vmem:[#allocation16 + $0x20] sm:$0xff]
    %v1660 = vld [vmem:[#allocation16 + $0x28] sm:$0xff]
    %v1661 = vld [vmem:[#allocation16 + $0x30] sm:$0xff]
    %v1662 = vld [vmem:[#allocation16 + $0x38] sm:$0xff]
    %v1663 = vld [vmem:[#allocation16 + $0x40] sm:$0xff]
    %v1664 = vld [vmem:[#allocation16 + $0x48] sm:$0xff]
    %v1665 = vld [vmem:[#allocation16 + $0x50] sm:$0xff]
    %v1666 = vld [vmem:[#allocation16 + $0x58] sm:$0xff]
    %v1667 = vld [vmem:[#allocation16 + $0x60] sm:$0xff]
    %v1668 = vld [vmem:[#allocation16 + $0x68] sm:$0xff]
    %v1669 = vld [vmem:[#allocation16 + $0x70] sm:$0xff]
    %v1670 = vld [vmem:[#allocation16 + $0x78] sm:$0xff]
    %v1671 = vld [vmem:[#allocation16 + $0x80] sm:$0xff]
    %v1672 = vld [vmem:[#allocation16 + $0x88] sm:$0xff]
    %v1673 = vld [vmem:[#allocation16 + $0x90] sm:$0xff]
    %v1674 = vld [vmem:[#allocation16 + $0x98] sm:$0xff]
    %v1675 = vld [vmem:[#allocation16 + $0xa0] sm:$0xff]
    %v1676 = vld [vmem:[#allocation16 + $0xa8] sm:$0xff]
    %v1677 = vld [vmem:[#allocation16 + $0xb0] sm:$0xff]
    %v1678 = vld [vmem:[#allocation16 + $0xb8] sm:$0xff]
    %v1679 = vld [vmem:[#allocation16 + $0xc0] sm:$0xff]
    %v1680 = vld [vmem:[#allocation16 + $0xc8] sm:$0xff]
    %v1681 = vld [vmem:[#allocation16 + $0xd0] sm:$0xff]
    %v1682 = vld [vmem:[#allocation16 + $0xd8] sm:$0xff]
    %v1683 = vld [vmem:[#allocation16 + $0xe0] sm:$0xff]
    %v1684 = vld [vmem:[#allocation16 + $0xe8] sm:$0xff]
    %v1685 = vld [vmem:[#allocation16 + $0xf0] sm:$0xff]
    %v1686 = vld [vmem:[#allocation16 + $0xf8] sm:$0xff]
    %v1687 = vld [vmem:[#allocation16 + $0x100] sm:$0xff]
    %v1688 = vld [vmem:[#allocation16 + $0x108] sm:$0xff]
    %v1689 = vld [vmem:[#allocation16 + $0x110] sm:$0xff]
    %v1690 = vld [vmem:[#allocation16 + $0x118] sm:$0xff]
    %v1691 = vld [vmem:[#allocation16 + $0x120] sm:$0xff]
    %v1692 = vld [vmem:[#allocation16 + $0x128] sm:$0xff]
    %v1693 = vld [vmem:[#allocation16 + $0x130] sm:$0xff]
    %v1694 = vld [vmem:[#allocation16 + $0x138] sm:$0xff]
    %v1695 = vld [vmem:[#allocation16 + $0x140] sm:$0xff]
    %v1696 = vld [vmem:[#allocation16 + $0x148] sm:$0xff]
    %v1697 = vld [vmem:[#allocation16 + $0x150] sm:$0xff]
    %v1698 = vld [vmem:[#allocation16 + $0x158] sm:$0xff]
    %v1699 = vld [vmem:[#allocation16 + $0x160] sm:$0xff]
    %v1700 = vld [vmem:[#allocation16 + $0x168] sm:$0xff]
    %v1701 = vld [vmem:[#allocation16 + $0x170] sm:$0xff]
    %v1702 = vld [vmem:[#allocation16 + $0x178] sm:$0xff]
    %v1703 = vld [vmem:[#allocation16 + $0x180] sm:$0xff]
    %v1704 = vld [vmem:[#allocation16 + $0x188] sm:$0xff]
    %v1705 = vld [vmem:[#allocation16 + $0x190] sm:$0xff]
    %v1706 = vld [vmem:[#allocation16 + $0x198] sm:$0xff]
    %v1707 = vld [vmem:[#allocation16 + $0x1a0] sm:$0xff]
    %v1708 = vld [vmem:[#allocation16 + $0x1a8] sm:$0xff]
    %v1709 = vld [vmem:[#allocation16 + $0x1b0] sm:$0xff]
    %v1710 = vld [vmem:[#allocation16 + $0x1b8] sm:$0xff]
    %v1711 = vld [vmem:[#allocation16 + $0x1c0] sm:$0xff]
    %v1712 = vld [vmem:[#allocation16 + $0x1c8] sm:$0xff]
    %v1713 = vld [vmem:[#allocation16 + $0x1d0] sm:$0xff]
    %v1714 = vld [vmem:[#allocation16 + $0x1d8] sm:$0xff]
    %v1715 = vld [vmem:[#allocation16 + $0x1e0] sm:$0xff]
    %v1716 = vld [vmem:[#allocation16 + $0x1e8] sm:$0xff]
    %v1717 = vld [vmem:[#allocation16 + $0x1f0] sm:$0xff]
    %v1718 = vld [vmem:[#allocation16 + $0x1f8] sm:$0xff]
    %1719 = vmatprep.subr.mxu0 %v1656
    %1720 = vmatpush1.msra.mxu0 %v1655
    %1721 = vmatprep.subr.mxu0 %v1658
    %1722 = vmatpush1.msra.mxu0 %v1657
    %1723 = vmatprep.subr.mxu0 %v1660
    %1724 = vmatpush1.msra.mxu0 %v1659
    %1725 = vmatprep.subr.mxu0 %v1662
    %1726 = vmatpush1.msra.mxu0 %v1661
    %1727 = vmatprep.subr.mxu0 %v1664
    %1728 = vmatpush1.msra.mxu0 %v1663
    %1729 = vmatprep.subr.mxu0 %v1666
    %1730 = vmatpush1.msra.mxu0 %v1665
    %1731 = vmatprep.subr.mxu0 %v1668
    %1732 = vmatpush1.msra.mxu0 %v1667
    %1733 = vmatprep.subr.mxu0 %v1670
    %1734 = vmatpush1.msra.mxu0 %v1669
    %1735 = vmatprep.subr.mxu0 %v1672
    %1736 = vmatpush1.msra.mxu0 %v1671
    %1737 = vmatprep.subr.mxu0 %v1674
    %1738 = vmatpush1.msra.mxu0 %v1673
    %1739 = vmatprep.subr.mxu0 %v1676
    %1740 = vmatpush1.msra.mxu0 %v1675
    %1741 = vmatprep.subr.mxu0 %v1678
    %1742 = vmatpush1.msra.mxu0 %v1677
    %1743 = vmatprep.subr.mxu0 %v1680
    %1744 = vmatpush1.msra.mxu0 %v1679
    %1745 = vmatprep.subr.mxu0 %v1682
    %1746 = vmatpush1.msra.mxu0 %v1681
    %1747 = vmatprep.subr.mxu0 %v1684
    %1748 = vmatpush1.msra.mxu0 %v1683
    %1749 = vmatprep.subr.mxu0 %v1686
    %1750 = vmatpush1.msra.mxu0 %v1685
    %1751 = vmatprep.subr.mxu0 %v1688
    %1752 = vmatpush1.msra.mxu0 %v1687
    %1753 = vmatprep.subr.mxu0 %v1690
    %1754 = vmatpush1.msra.mxu0 %v1689
    %1755 = vmatprep.subr.mxu0 %v1692
    %1756 = vmatpush1.msra.mxu0 %v1691
    %1757 = vmatprep.subr.mxu0 %v1694
    %1758 = vmatpush1.msra.mxu0 %v1693
    %1759 = vmatprep.subr.mxu0 %v1696
    %1760 = vmatpush1.msra.mxu0 %v1695
    %1761 = vmatprep.subr.mxu0 %v1698
    %1762 = vmatpush1.msra.mxu0 %v1697
    %1763 = vmatprep.subr.mxu0 %v1700
    %1764 = vmatpush1.msra.mxu0 %v1699
    %1765 = vmatprep.subr.mxu0 %v1702
    %1766 = vmatpush1.msra.mxu0 %v1701
    %1767 = vmatprep.subr.mxu0 %v1704
    %1768 = vmatpush1.msra.mxu0 %v1703
    %1769 = vmatprep.subr.mxu0 %v1706
    %1770 = vmatpush1.msra.mxu0 %v1705
    %1771 = vmatprep.subr.mxu0 %v1708
    %1772 = vmatpush1.msra.mxu0 %v1707
    %1773 = vmatprep.subr.mxu0 %v1710
    %1774 = vmatpush1.msra.mxu0 %v1709
    %1775 = vmatprep.subr.mxu0 %v1712
    %1776 = vmatpush1.msra.mxu0 %v1711
    %1777 = vmatprep.subr.mxu0 %v1714
    %1778 = vmatpush1.msra.mxu0 %v1713
    %1779 = vmatprep.subr.mxu0 %v1716
    %1780 = vmatpush1.msra.mxu0 %v1715
    %1781 = vmatprep.subr.mxu0 %v1718
    %1782 = vmatpush1.msra.mxu0 %v1717
    %1783 = vmatprep.mubr.f32.mxu0 %v1654
    %1784 = vmatmul.mubr.f32.gmra.mrb[0].mxu0 %v1653
    %v1785 = vpop.f32.mrb[0].mxu0
    %v1786 = vadd.f32 0.0, %v1785
    %v1787 = vpop.f32.mrb[0].mxu0
    %v1788 = vadd.f32 0.0, %v1787
    %1789 = vdwg.mxu0
    %v1790 = vmul.f32 %v1786, 0.0078125
    %v1791 = vmul.f32 %v1788, 0.0078125
    %v1792 = vmul.f32 %v1790, %v1790
    %v1793 = vmul.f32 %v1791, %v1791
    %v1796 = vrot.slane %v1792, 7
    %v1797 = vrot.slane %v1793, 7
    %v1800 = vsub.f32 %v1790, %v1796
    %v1801 = vsub.f32 %v1791, %v1797
    %v1802 = vmax.f32 %v1800, 0.0
    %v1803 = vmax.f32 %v1801, 0.0
    %v1804 = vld [vmem:[%s16] ss:$2 sm:$0x3]
    %v1805 = vadd.f32 %v1802, 1e-05
    %v1806 = vadd.f32 %v1803, 1e-05
    %v1807 = vrsqrt.pop %v1805
    %v1808 = vrsqrt.pop %v1806
    %v1811 = vcombine.low %v1807, %v1808
    %v1813 = vunpack.c.l.s4 1966171168
    %v1814 = vunpack.c.0.s8 %v1813
    %v1815 = vlaneseq
    %v1816 = vshrl.u32 %v1815, 7
    %v1817 = vsub.s32 %v1814, %v1816
    %v1818 = vrot.slane %v1811, %v1817
    %v1819 = vcombine.high %v1818, %v1818
    %v1821 = vunpack.c.l.s4 1966171168
    %v1822 = vunpack.c.0.s8 %v1821
    %v1823 = vlaneseq
    %v1824 = vshrl.u32 %v1823, 7
    %v1825 = vsub.s32 %v1822, %v1824
    %v1826 = vrot.slane %v1819, %v1825
    %v1828 = vmul.f32 %v1804, %v1826
    %s1829 = scalar_lea.vmem %s16, 1
    %v1830 = vld [vmem:[%s1829] ss:$2 sm:$0x3]
    %v1832 = vlaneseq
    %v1833 = vshrl.u32 %v1832, 7
    %v1834 = vsub.s32 0, %v1833
    %v1835 = vrot.slane %v1828, %v1834
    %v1836 = vlaneseq
    %v1837 = vshrl.u32 %v1836, 7
    %v1838 = vsub.s32 1, %v1837
    %v1839 = vrot.slane %v1828, %v1838
    %v1842 = vmul.f32 %v1790, %v1835
    %v1843 = vmul.f32 %v1791, %v1839
    %v1846 = vcombine.low %v1842, %v1843
    %v1848 = vunpack.c.l.s4 1966171168
    %v1849 = vunpack.c.0.s8 %v1848
    %v1850 = vlaneseq
    %v1851 = vshrl.u32 %v1850, 7
    %v1852 = vsub.s32 %v1849, %v1851
    %v1853 = vrot.slane %v1846, %v1852
    %v1855 = vunpack.c.l.s4 1966171168
    %v1856 = vunpack.c.0.s8 %v1855
    %v1857 = vlaneseq
    %v1858 = vshrl.u32 %v1857, 7
    %v1859 = vsub.s32 %v1856, %v1858
    %v1860 = vrot.slane %v1853, %v1859
    %v1862 = vsub.f32 %v1830, %v1860
    %v1863 = vmul.f32 %v1611, %v1835
    %v1864 = vmul.f32 %v1613, %v1839
    %v1865 = vmul.f32 %v1617, %v1835
    %v1866 = vmul.f32 %v1619, %v1839
    %v1868 = vlaneseq
    %v1869 = vshrl.u32 %v1868, 7
    %v1870 = vsub.s32 0, %v1869
    %v1871 = vrot.slane %v1862, %v1870
    %v1872 = vlaneseq
    %v1873 = vshrl.u32 %v1872, 7
    %v1874 = vsub.s32 1, %v1873
    %v1875 = vrot.slane %v1862, %v1874
    %v1878 = vadd.f32 %v1863, %v1871
    %v1879 = vadd.f32 %v1864, %v1875
    %v1880 = vadd.f32 %v1865, %v1871
    %v1881 = vadd.f32 %v1866, %v1875
    %v1882 = vmax.f32 %v1878, 0.0
    %v1883 = vmax.f32 %v1879, 0.0
    %v1884 = vmax.f32 %v1880, 0.0
    %v1885 = vmax.f32 %v1881, 0.0
    %s1886 = sshll.u32 %s974, 4
    %1887 = dma.done %s170, %s1886
    %v1888 = vld [vmem:[#allocation5] sm:$0xff]
    %v1889 = vld [vmem:[#allocation5 + $0x8] sm:$0xff]
    %v1890 = vld [vmem:[#allocation5 + $0x10] sm:$0xff]
    %v1891 = vld [vmem:[#allocation5 + $0x18] sm:$0xff]
    %v1892 = vld [vmem:[#allocation5 + $0x20] sm:$0xff]
    %v1893 = vld [vmem:[#allocation5 + $0x28] sm:$0xff]
    %v1894 = vld [vmem:[#allocation5 + $0x30] sm:$0xff]
    %v1895 = vld [vmem:[#allocation5 + $0x38] sm:$0xff]
    %v1896 = vld [vmem:[#allocation5 + $0x40] sm:$0xff]
    %v1897 = vld [vmem:[#allocation5 + $0x48] sm:$0xff]
    %v1898 = vld [vmem:[#allocation5 + $0x50] sm:$0xff]
    %v1899 = vld [vmem:[#allocation5 + $0x58] sm:$0xff]
    %v1900 = vld [vmem:[#allocation5 + $0x60] sm:$0xff]
    %v1901 = vld [vmem:[#allocation5 + $0x68] sm:$0xff]
    %v1902 = vld [vmem:[#allocation5 + $0x70] sm:$0xff]
    %v1903 = vld [vmem:[#allocation5 + $0x78] sm:$0xff]
    %v1904 = vld [vmem:[#allocation5 + $0x80] sm:$0xff]
    %v1905 = vld [vmem:[#allocation5 + $0x88] sm:$0xff]
    %v1906 = vld [vmem:[#allocation5 + $0x90] sm:$0xff]
    %v1907 = vld [vmem:[#allocation5 + $0x98] sm:$0xff]
    %v1908 = vld [vmem:[#allocation5 + $0xa0] sm:$0xff]
    %v1909 = vld [vmem:[#allocation5 + $0xa8] sm:$0xff]
    %v1910 = vld [vmem:[#allocation5 + $0xb0] sm:$0xff]
    %v1911 = vld [vmem:[#allocation5 + $0xb8] sm:$0xff]
    %v1912 = vld [vmem:[#allocation5 + $0xc0] sm:$0xff]
    %v1913 = vld [vmem:[#allocation5 + $0xc8] sm:$0xff]
    %v1914 = vld [vmem:[#allocation5 + $0xd0] sm:$0xff]
    %v1915 = vld [vmem:[#allocation5 + $0xd8] sm:$0xff]
    %v1916 = vld [vmem:[#allocation5 + $0xe0] sm:$0xff]
    %v1917 = vld [vmem:[#allocation5 + $0xe8] sm:$0xff]
    %v1918 = vld [vmem:[#allocation5 + $0xf0] sm:$0xff]
    %v1919 = vld [vmem:[#allocation5 + $0xf8] sm:$0xff]
    %v1920 = vld [vmem:[#allocation5 + $0x100] sm:$0xff]
    %v1921 = vld [vmem:[#allocation5 + $0x108] sm:$0xff]
    %v1922 = vld [vmem:[#allocation5 + $0x110] sm:$0xff]
    %v1923 = vld [vmem:[#allocation5 + $0x118] sm:$0xff]
    %v1924 = vld [vmem:[#allocation5 + $0x120] sm:$0xff]
    %v1925 = vld [vmem:[#allocation5 + $0x128] sm:$0xff]
    %v1926 = vld [vmem:[#allocation5 + $0x130] sm:$0xff]
    %v1927 = vld [vmem:[#allocation5 + $0x138] sm:$0xff]
    %v1928 = vld [vmem:[#allocation5 + $0x140] sm:$0xff]
    %v1929 = vld [vmem:[#allocation5 + $0x148] sm:$0xff]
    %v1930 = vld [vmem:[#allocation5 + $0x150] sm:$0xff]
    %v1931 = vld [vmem:[#allocation5 + $0x158] sm:$0xff]
    %v1932 = vld [vmem:[#allocation5 + $0x160] sm:$0xff]
    %v1933 = vld [vmem:[#allocation5 + $0x168] sm:$0xff]
    %v1934 = vld [vmem:[#allocation5 + $0x170] sm:$0xff]
    %v1935 = vld [vmem:[#allocation5 + $0x178] sm:$0xff]
    %v1936 = vld [vmem:[#allocation5 + $0x180] sm:$0xff]
    %v1937 = vld [vmem:[#allocation5 + $0x188] sm:$0xff]
    %v1938 = vld [vmem:[#allocation5 + $0x190] sm:$0xff]
    %v1939 = vld [vmem:[#allocation5 + $0x198] sm:$0xff]
    %v1940 = vld [vmem:[#allocation5 + $0x1a0] sm:$0xff]
    %v1941 = vld [vmem:[#allocation5 + $0x1a8] sm:$0xff]
    %v1942 = vld [vmem:[#allocation5 + $0x1b0] sm:$0xff]
    %v1943 = vld [vmem:[#allocation5 + $0x1b8] sm:$0xff]
    %v1944 = vld [vmem:[#allocation5 + $0x1c0] sm:$0xff]
    %v1945 = vld [vmem:[#allocation5 + $0x1c8] sm:$0xff]
    %v1946 = vld [vmem:[#allocation5 + $0x1d0] sm:$0xff]
    %v1947 = vld [vmem:[#allocation5 + $0x1d8] sm:$0xff]
    %v1948 = vld [vmem:[#allocation5 + $0x1e0] sm:$0xff]
    %v1949 = vld [vmem:[#allocation5 + $0x1e8] sm:$0xff]
    %v1950 = vld [vmem:[#allocation5 + $0x1f0] sm:$0xff]
    %v1951 = vld [vmem:[#allocation5 + $0x1f8] sm:$0xff]
    %1952 = vmatprep.subr.mxu0 %v1889
    %1953 = vmatpush1.msra.mxu0 %v1888
    %1954 = vmatprep.subr.mxu0 %v1891
    %1955 = vmatpush1.msra.mxu0 %v1890
    %1956 = vmatprep.subr.mxu0 %v1893
    %1957 = vmatpush1.msra.mxu0 %v1892
    %1958 = vmatprep.subr.mxu0 %v1895
    %1959 = vmatpush1.msra.mxu0 %v1894
    %1960 = vmatprep.subr.mxu0 %v1897
    %1961 = vmatpush1.msra.mxu0 %v1896
    %1962 = vmatprep.subr.mxu0 %v1899
    %1963 = vmatpush1.msra.mxu0 %v1898
    %1964 = vmatprep.subr.mxu0 %v1901
    %1965 = vmatpush1.msra.mxu0 %v1900
    %1966 = vmatprep.subr.mxu0 %v1903
    %1967 = vmatpush1.msra.mxu0 %v1902
    %1968 = vmatprep.subr.mxu0 %v1905
    %1969 = vmatpush1.msra.mxu0 %v1904
    %1970 = vmatprep.subr.mxu0 %v1907
    %1971 = vmatpush1.msra.mxu0 %v1906
    %1972 = vmatprep.subr.mxu0 %v1909
    %1973 = vmatpush1.msra.mxu0 %v1908
    %1974 = vmatprep.subr.mxu0 %v1911
    %1975 = vmatpush1.msra.mxu0 %v1910
    %1976 = vmatprep.subr.mxu0 %v1913
    %1977 = vmatpush1.msra.mxu0 %v1912
    %1978 = vmatprep.subr.mxu0 %v1915
    %1979 = vmatpush1.msra.mxu0 %v1914
    %1980 = vmatprep.subr.mxu0 %v1917
    %1981 = vmatpush1.msra.mxu0 %v1916
    %1982 = vmatprep.subr.mxu0 %v1919
    %1983 = vmatpush1.msra.mxu0 %v1918
    %1984 = vmatprep.subr.mxu0 %v1921
    %1985 = vmatpush1.msra.mxu0 %v1920
    %1986 = vmatprep.subr.mxu0 %v1923
    %1987 = vmatpush1.msra.mxu0 %v1922
    %1988 = vmatprep.subr.mxu0 %v1925
    %1989 = vmatpush1.msra.mxu0 %v1924
    %1990 = vmatprep.subr.mxu0 %v1927
    %1991 = vmatpush1.msra.mxu0 %v1926
    %1992 = vmatprep.subr.mxu0 %v1929
    %1993 = vmatpush1.msra.mxu0 %v1928
    %1994 = vmatprep.subr.mxu0 %v1931
    %1995 = vmatpush1.msra.mxu0 %v1930
    %1996 = vmatprep.subr.mxu0 %v1933
    %1997 = vmatpush1.msra.mxu0 %v1932
    %1998 = vmatprep.subr.mxu0 %v1935
    %1999 = vmatpush1.msra.mxu0 %v1934
    %2000 = vmatprep.subr.mxu0 %v1937
    %2001 = vmatpush1.msra.mxu0 %v1936
    %2002 = vmatprep.subr.mxu0 %v1939
    %2003 = vmatpush1.msra.mxu0 %v1938
    %2004 = vmatprep.subr.mxu0 %v1941
    %2005 = vmatpush1.msra.mxu0 %v1940
    %2006 = vmatprep.subr.mxu0 %v1943
    %2007 = vmatpush1.msra.mxu0 %v1942
    %2008 = vmatprep.subr.mxu0 %v1945
    %2009 = vmatpush1.msra.mxu0 %v1944
    %2010 = vmatprep.subr.mxu0 %v1947
    %2011 = vmatpush1.msra.mxu0 %v1946
    %2012 = vmatprep.subr.mxu0 %v1949
    %2013 = vmatpush1.msra.mxu0 %v1948
    %2014 = vmatprep.subr.mxu0 %v1951
    %2015 = vmatpush1.msra.mxu0 %v1950
    %2016 = vmatprep.mubr.f32.mxu0 %v1883
    %2017 = vmatmul.mubr.f32.gmra.mrb[0].mxu0 %v1882
    %v2018 = vpop.f32.mrb[0].mxu0
    %v2019 = vadd.f32 0.0, %v2018
    %v2020 = vpop.f32.mrb[0].mxu0
    %v2021 = vadd.f32 0.0, %v2020
    %2022 = vmatprep.mubr.f32.mxu0 %v1885
    %2023 = vmatmul.mubr.f32.gmra.mrb[0].mxu0 %v1884
    %v2024 = vpop.f32.mrb[0].mxu0
    %v2025 = vadd.f32 0.0, %v2024
    %v2026 = vpop.f32.mrb[0].mxu0
    %v2027 = vadd.f32 0.0, %v2026
    %2028 = vdwg.mxu0
    %2029 = vst [vmem:[#allocation2] sm:$0xff] %v2019
    %2030 = vst [vmem:[#allocation2 + $0x8] sm:$0xff] %v2021
    %2031 = vst [vmem:[#allocation2 + $0x10] sm:$0xff] %v2025
    %2032 = vst [vmem:[#allocation2 + $0x18] sm:$0xff] %v2027
    %s2033 = scalar_lea.vmem [#allocation5], 512
    %v2034 = vld [vmem:[%s2033] sm:$0xff]
    %v2035 = vld [vmem:[%s2033 + $0x8] sm:$0xff]
    %v2036 = vld [vmem:[%s2033 + $0x10] sm:$0xff]
    %v2037 = vld [vmem:[%s2033 + $0x18] sm:$0xff]
    %v2038 = vld [vmem:[%s2033 + $0x20] sm:$0xff]
    %v2039 = vld [vmem:[%s2033 + $0x28] sm:$0xff]
    %v2040 = vld [vmem:[%s2033 + $0x30] sm:$0xff]
    %v2041 = vld [vmem:[%s2033 + $0x38] sm:$0xff]
    %v2042 = vld [vmem:[%s2033 + $0x40] sm:$0xff]
    %v2043 = vld [vmem:[%s2033 + $0x48] sm:$0xff]
    %v2044 = vld [vmem:[%s2033 + $0x50] sm:$0xff]
    %v2045 = vld [vmem:[%s2033 + $0x58] sm:$0xff]
    %v2046 = vld [vmem:[%s2033 + $0x60] sm:$0xff]
    %v2047 = vld [vmem:[%s2033 + $0x68] sm:$0xff]
    %v2048 = vld [vmem:[%s2033 + $0x70] sm:$0xff]
    %v2049 = vld [vmem:[%s2033 + $0x78] sm:$0xff]
    %v2050 = vld [vmem:[%s2033 + $0x80] sm:$0xff]
    %v2051 = vld [vmem:[%s2033 + $0x88] sm:$0xff]
    %v2052 = vld [vmem:[%s2033 + $0x90] sm:$0xff]
    %v2053 = vld [vmem:[%s2033 + $0x98] sm:$0xff]
    %v2054 = vld [vmem:[%s2033 + $0xa0] sm:$0xff]
    %v2055 = vld [vmem:[%s2033 + $0xa8] sm:$0xff]
    %v2056 = vld [vmem:[%s2033 + $0xb0] sm:$0xff]
    %v2057 = vld [vmem:[%s2033 + $0xb8] sm:$0xff]
    %v2058 = vld [vmem:[%s2033 + $0xc0] sm:$0xff]
    %v2059 = vld [vmem:[%s2033 + $0xc8] sm:$0xff]
    %v2060 = vld [vmem:[%s2033 + $0xd0] sm:$0xff]
    %v2061 = vld [vmem:[%s2033 + $0xd8] sm:$0xff]
    %v2062 = vld [vmem:[%s2033 + $0xe0] sm:$0xff]
    %v2063 = vld [vmem:[%s2033 + $0xe8] sm:$0xff]
    %v2064 = vld [vmem:[%s2033 + $0xf0] sm:$0xff]
    %v2065 = vld [vmem:[%s2033 + $0xf8] sm:$0xff]
    %v2066 = vld [vmem:[%s2033 + $0x100] sm:$0xff]
    %v2067 = vld [vmem:[%s2033 + $0x108] sm:$0xff]
    %v2068 = vld [vmem:[%s2033 + $0x110] sm:$0xff]
    %v2069 = vld [vmem:[%s2033 + $0x118] sm:$0xff]
    %v2070 = vld [vmem:[%s2033 + $0x120] sm:$0xff]
    %v2071 = vld [vmem:[%s2033 + $0x128] sm:$0xff]
    %v2072 = vld [vmem:[%s2033 + $0x130] sm:$0xff]
    %v2073 = vld [vmem:[%s2033 + $0x138] sm:$0xff]
    %v2074 = vld [vmem:[%s2033 + $0x140] sm:$0xff]
    %v2075 = vld [vmem:[%s2033 + $0x148] sm:$0xff]
    %v2076 = vld [vmem:[%s2033 + $0x150] sm:$0xff]
    %v2077 = vld [vmem:[%s2033 + $0x158] sm:$0xff]
    %v2078 = vld [vmem:[%s2033 + $0x160] sm:$0xff]
    %v2079 = vld [vmem:[%s2033 + $0x168] sm:$0xff]
    %v2080 = vld [vmem:[%s2033 + $0x170] sm:$0xff]
    %v2081 = vld [vmem:[%s2033 + $0x178] sm:$0xff]
    %v2082 = vld [vmem:[%s2033 + $0x180] sm:$0xff]
    %v2083 = vld [vmem:[%s2033 + $0x188] sm:$0xff]
    %v2084 = vld [vmem:[%s2033 + $0x190] sm:$0xff]
    %v2085 = vld [vmem:[%s2033 + $0x198] sm:$0xff]
    %v2086 = vld [vmem:[%s2033 + $0x1a0] sm:$0xff]
    %v2087 = vld [vmem:[%s2033 + $0x1a8] sm:$0xff]
    %v2088 = vld [vmem:[%s2033 + $0x1b0] sm:$0xff]
    %v2089 = vld [vmem:[%s2033 + $0x1b8] sm:$0xff]
    %v2090 = vld [vmem:[%s2033 + $0x1c0] sm:$0xff]
    %v2091 = vld [vmem:[%s2033 + $0x1c8] sm:$0xff]
    %v2092 = vld [vmem:[%s2033 + $0x1d0] sm:$0xff]
    %v2093 = vld [vmem:[%s2033 + $0x1d8] sm:$0xff]
    %v2094 = vld [vmem:[%s2033 + $0x1e0] sm:$0xff]
    %v2095 = vld [vmem:[%s2033 + $0x1e8] sm:$0xff]
    %v2096 = vld [vmem:[%s2033 + $0x1f0] sm:$0xff]
    %v2097 = vld [vmem:[%s2033 + $0x1f8] sm:$0xff]
    %2098 = vmatprep.subr.mxu0 %v2035
    %2099 = vmatpush1.msra.mxu0 %v2034
    %2100 = vmatprep.subr.mxu0 %v2037
    %2101 = vmatpush1.msra.mxu0 %v2036
    %2102 = vmatprep.subr.mxu0 %v2039
    %2103 = vmatpush1.msra.mxu0 %v2038
    %2104 = vmatprep.subr.mxu0 %v2041
    %2105 = vmatpush1.msra.mxu0 %v2040
    %2106 = vmatprep.subr.mxu0 %v2043
    %2107 = vmatpush1.msra.mxu0 %v2042
    %2108 = vmatprep.subr.mxu0 %v2045
    %2109 = vmatpush1.msra.mxu0 %v2044
    %2110 = vmatprep.subr.mxu0 %v2047
    %2111 = vmatpush1.msra.mxu0 %v2046
    %2112 = vmatprep.subr.mxu0 %v2049
    %2113 = vmatpush1.msra.mxu0 %v2048
    %2114 = vmatprep.subr.mxu0 %v2051
    %2115 = vmatpush1.msra.mxu0 %v2050
    %2116 = vmatprep.subr.mxu0 %v2053
    %2117 = vmatpush1.msra.mxu0 %v2052
    %2118 = vmatprep.subr.mxu0 %v2055
    %2119 = vmatpush1.msra.mxu0 %v2054
    %2120 = vmatprep.subr.mxu0 %v2057
    %2121 = vmatpush1.msra.mxu0 %v2056
    %2122 = vmatprep.subr.mxu0 %v2059
    %2123 = vmatpush1.msra.mxu0 %v2058
    %2124 = vmatprep.subr.mxu0 %v2061
    %2125 = vmatpush1.msra.mxu0 %v2060
    %2126 = vmatprep.subr.mxu0 %v2063
    %2127 = vmatpush1.msra.mxu0 %v2062
    %2128 = vmatprep.subr.mxu0 %v2065
    %2129 = vmatpush1.msra.mxu0 %v2064
    %2130 = vmatprep.subr.mxu0 %v2067
    %2131 = vmatpush1.msra.mxu0 %v2066
    %2132 = vmatprep.subr.mxu0 %v2069
    %2133 = vmatpush1.msra.mxu0 %v2068
    %2134 = vmatprep.subr.mxu0 %v2071
    %2135 = vmatpush1.msra.mxu0 %v2070
    %2136 = vmatprep.subr.mxu0 %v2073
    %2137 = vmatpush1.msra.mxu0 %v2072
    %2138 = vmatprep.subr.mxu0 %v2075
    %2139 = vmatpush1.msra.mxu0 %v2074
    %2140 = vmatprep.subr.mxu0 %v2077
    %2141 = vmatpush1.msra.mxu0 %v2076
    %2142 = vmatprep.subr.mxu0 %v2079
    %2143 = vmatpush1.msra.mxu0 %v2078
    %2144 = vmatprep.subr.mxu0 %v2081
    %2145 = vmatpush1.msra.mxu0 %v2080
    %2146 = vmatprep.subr.mxu0 %v2083
    %2147 = vmatpush1.msra.mxu0 %v2082
    %2148 = vmatprep.subr.mxu0 %v2085
    %2149 = vmatpush1.msra.mxu0 %v2084
    %2150 = vmatprep.subr.mxu0 %v2087
    %2151 = vmatpush1.msra.mxu0 %v2086
    %2152 = vmatprep.subr.mxu0 %v2089
    %2153 = vmatpush1.msra.mxu0 %v2088
    %2154 = vmatprep.subr.mxu0 %v2091
    %2155 = vmatpush1.msra.mxu0 %v2090
    %2156 = vmatprep.subr.mxu0 %v2093
    %2157 = vmatpush1.msra.mxu0 %v2092
    %2158 = vmatprep.subr.mxu0 %v2095
    %2159 = vmatpush1.msra.mxu0 %v2094
    %2160 = vmatprep.subr.mxu0 %v2097
    %2161 = vmatpush1.msra.mxu0 %v2096
    %2162 = vmatprep.mubr.f32.mxu0 %v1883
    %2163 = vmatmul.mubr.f32.gmra.mrb[0].mxu0 %v1882
    %v2164 = vpop.f32.mrb[0].mxu0
    %v2165 = vadd.f32 0.0, %v2164
    %v2166 = vpop.f32.mrb[0].mxu0
    %v2167 = vadd.f32 0.0, %v2166
    %2168 = vmatprep.mubr.f32.mxu0 %v1885
    %2169 = vmatmul.mubr.f32.gmra.mrb[0].mxu0 %v1884
    %v2170 = vpop.f32.mrb[0].mxu0
    %v2171 = vadd.f32 0.0, %v2170
    %v2172 = vpop.f32.mrb[0].mxu0
    %v2173 = vadd.f32 0.0, %v2172
    %2174 = vdwg.mxu0
    %2175 = vst [vmem:[#allocation2 + $0x20] sm:$0xff] %v2165
    %2176 = vst [vmem:[#allocation2 + $0x28] sm:$0xff] %v2167
    %2177 = vst [vmem:[#allocation2 + $0x30] sm:$0xff] %v2171
    %2178 = vst [vmem:[#allocation2 + $0x38] sm:$0xff] %v2173
    %s2179 = scalar_lea.vmem [#allocation5], 1024
    %v2180 = vld [vmem:[%s2179] sm:$0xff]
    %v2181 = vld [vmem:[%s2179 + $0x8] sm:$0xff]
    %v2182 = vld [vmem:[%s2179 + $0x10] sm:$0xff]
    %v2183 = vld [vmem:[%s2179 + $0x18] sm:$0xff]
    %v2184 = vld [vmem:[%s2179 + $0x20] sm:$0xff]
    %v2185 = vld [vmem:[%s2179 + $0x28] sm:$0xff]
    %v2186 = vld [vmem:[%s2179 + $0x30] sm:$0xff]
    %v2187 = vld [vmem:[%s2179 + $0x38] sm:$0xff]
    %v2188 = vld [vmem:[%s2179 + $0x40] sm:$0xff]
    %v2189 = vld [vmem:[%s2179 + $0x48] sm:$0xff]
    %v2190 = vld [vmem:[%s2179 + $0x50] sm:$0xff]
    %v2191 = vld [vmem:[%s2179 + $0x58] sm:$0xff]
    %v2192 = vld [vmem:[%s2179 + $0x60] sm:$0xff]
    %v2193 = vld [vmem:[%s2179 + $0x68] sm:$0xff]
    %v2194 = vld [vmem:[%s2179 + $0x70] sm:$0xff]
    %v2195 = vld [vmem:[%s2179 + $0x78] sm:$0xff]
    %v2196 = vld [vmem:[%s2179 + $0x80] sm:$0xff]
    %v2197 = vld [vmem:[%s2179 + $0x88] sm:$0xff]
    %v2198 = vld [vmem:[%s2179 + $0x90] sm:$0xff]
    %v2199 = vld [vmem:[%s2179 + $0x98] sm:$0xff]
    %v2200 = vld [vmem:[%s2179 + $0xa0] sm:$0xff]
    %v2201 = vld [vmem:[%s2179 + $0xa8] sm:$0xff]
    %v2202 = vld [vmem:[%s2179 + $0xb0] sm:$0xff]
    %v2203 = vld [vmem:[%s2179 + $0xb8] sm:$0xff]
    %v2204 = vld [vmem:[%s2179 + $0xc0] sm:$0xff]
    %v2205 = vld [vmem:[%s2179 + $0xc8] sm:$0xff]
    %v2206 = vld [vmem:[%s2179 + $0xd0] sm:$0xff]
    %v2207 = vld [vmem:[%s2179 + $0xd8] sm:$0xff]
    %v2208 = vld [vmem:[%s2179 + $0xe0] sm:$0xff]
    %v2209 = vld [vmem:[%s2179 + $0xe8] sm:$0xff]
    %v2210 = vld [vmem:[%s2179 + $0xf0] sm:$0xff]
    %v2211 = vld [vmem:[%s2179 + $0xf8] sm:$0xff]
    %v2212 = vld [vmem:[%s2179 + $0x100] sm:$0xff]
    %v2213 = vld [vmem:[%s2179 + $0x108] sm:$0xff]
    %v2214 = vld [vmem:[%s2179 + $0x110] sm:$0xff]
    %v2215 = vld [vmem:[%s2179 + $0x118] sm:$0xff]
    %v2216 = vld [vmem:[%s2179 + $0x120] sm:$0xff]
    %v2217 = vld [vmem:[%s2179 + $0x128] sm:$0xff]
    %v2218 = vld [vmem:[%s2179 + $0x130] sm:$0xff]
    %v2219 = vld [vmem:[%s2179 + $0x138] sm:$0xff]
    %v2220 = vld [vmem:[%s2179 + $0x140] sm:$0xff]
    %v2221 = vld [vmem:[%s2179 + $0x148] sm:$0xff]
    %v2222 = vld [vmem:[%s2179 + $0x150] sm:$0xff]
    %v2223 = vld [vmem:[%s2179 + $0x158] sm:$0xff]
    %v2224 = vld [vmem:[%s2179 + $0x160] sm:$0xff]
    %v2225 = vld [vmem:[%s2179 + $0x168] sm:$0xff]
    %v2226 = vld [vmem:[%s2179 + $0x170] sm:$0xff]
    %v2227 = vld [vmem:[%s2179 + $0x178] sm:$0xff]
    %v2228 = vld [vmem:[%s2179 + $0x180] sm:$0xff]
    %v2229 = vld [vmem:[%s2179 + $0x188] sm:$0xff]
    %v2230 = vld [vmem:[%s2179 + $0x190] sm:$0xff]
    %v2231 = vld [vmem:[%s2179 + $0x198] sm:$0xff]
    %v2232 = vld [vmem:[%s2179 + $0x1a0] sm:$0xff]
    %v2233 = vld [vmem:[%s2179 + $0x1a8] sm:$0xff]
    %v2234 = vld [vmem:[%s2179 + $0x1b0] sm:$0xff]
    %v2235 = vld [vmem:[%s2179 + $0x1b8] sm:$0xff]
    %v2236 = vld [vmem:[%s2179 + $0x1c0] sm:$0xff]
    %v2237 = vld [vmem:[%s2179 + $0x1c8] sm:$0xff]
    %v2238 = vld [vmem:[%s2179 + $0x1d0] sm:$0xff]
    %v2239 = vld [vmem:[%s2179 + $0x1d8] sm:$0xff]
    %v2240 = vld [vmem:[%s2179 + $0x1e0] sm:$0xff]
    %v2241 = vld [vmem:[%s2179 + $0x1e8] sm:$0xff]
    %v2242 = vld [vmem:[%s2179 + $0x1f0] sm:$0xff]
    %v2243 = vld [vmem:[%s2179 + $0x1f8] sm:$0xff]
    %2244 = vmatprep.subr.mxu0 %v2181
    %2245 = vmatpush1.msra.mxu0 %v2180
    %2246 = vmatprep.subr.mxu0 %v2183
    %2247 = vmatpush1.msra.mxu0 %v2182
    %2248 = vmatprep.subr.mxu0 %v2185
    %2249 = vmatpush1.msra.mxu0 %v2184
    %2250 = vmatprep.subr.mxu0 %v2187
    %2251 = vmatpush1.msra.mxu0 %v2186
    %2252 = vmatprep.subr.mxu0 %v2189
    %2253 = vmatpush1.msra.mxu0 %v2188
    %2254 = vmatprep.subr.mxu0 %v2191
    %2255 = vmatpush1.msra.mxu0 %v2190
    %2256 = vmatprep.subr.mxu0 %v2193
    %2257 = vmatpush1.msra.mxu0 %v2192
    %2258 = vmatprep.subr.mxu0 %v2195
    %2259 = vmatpush1.msra.mxu0 %v2194
    %2260 = vmatprep.subr.mxu0 %v2197
    %2261 = vmatpush1.msra.mxu0 %v2196
    %2262 = vmatprep.subr.mxu0 %v2199
    %2263 = vmatpush1.msra.mxu0 %v2198
    %2264 = vmatprep.subr.mxu0 %v2201
    %2265 = vmatpush1.msra.mxu0 %v2200
    %2266 = vmatprep.subr.mxu0 %v2203
    %2267 = vmatpush1.msra.mxu0 %v2202
    %2268 = vmatprep.subr.mxu0 %v2205
    %2269 = vmatpush1.msra.mxu0 %v2204
    %2270 = vmatprep.subr.mxu0 %v2207
    %2271 = vmatpush1.msra.mxu0 %v2206
    %2272 = vmatprep.subr.mxu0 %v2209
    %2273 = vmatpush1.msra.mxu0 %v2208
    %2274 = vmatprep.subr.mxu0 %v2211
    %2275 = vmatpush1.msra.mxu0 %v2210
    %2276 = vmatprep.subr.mxu0 %v2213
    %2277 = vmatpush1.msra.mxu0 %v2212
    %2278 = vmatprep.subr.mxu0 %v2215
    %2279 = vmatpush1.msra.mxu0 %v2214
    %2280 = vmatprep.subr.mxu0 %v2217
    %2281 = vmatpush1.msra.mxu0 %v2216
    %2282 = vmatprep.subr.mxu0 %v2219
    %2283 = vmatpush1.msra.mxu0 %v2218
    %2284 = vmatprep.subr.mxu0 %v2221
    %2285 = vmatpush1.msra.mxu0 %v2220
    %2286 = vmatprep.subr.mxu0 %v2223
    %2287 = vmatpush1.msra.mxu0 %v2222
    %2288 = vmatprep.subr.mxu0 %v2225
    %2289 = vmatpush1.msra.mxu0 %v2224
    %2290 = vmatprep.subr.mxu0 %v2227
    %2291 = vmatpush1.msra.mxu0 %v2226
    %2292 = vmatprep.subr.mxu0 %v2229
    %2293 = vmatpush1.msra.mxu0 %v2228
    %2294 = vmatprep.subr.mxu0 %v2231
    %2295 = vmatpush1.msra.mxu0 %v2230
    %2296 = vmatprep.subr.mxu0 %v2233
    %2297 = vmatpush1.msra.mxu0 %v2232
    %2298 = vmatprep.subr.mxu0 %v2235
    %2299 = vmatpush1.msra.mxu0 %v2234
    %2300 = vmatprep.subr.mxu0 %v2237
    %2301 = vmatpush1.msra.mxu0 %v2236
    %2302 = vmatprep.subr.mxu0 %v2239
    %2303 = vmatpush1.msra.mxu0 %v2238
    %2304 = vmatprep.subr.mxu0 %v2241
    %2305 = vmatpush1.msra.mxu0 %v2240
    %2306 = vmatprep.subr.mxu0 %v2243
    %2307 = vmatpush1.msra.mxu0 %v2242
    %2308 = vmatprep.mubr.f32.mxu0 %v1883
    %2309 = vmatmul.mubr.f32.gmra.mrb[0].mxu0 %v1882
    %v2310 = vpop.f32.mrb[0].mxu0
    %v2311 = vadd.f32 0.0, %v2310
    %v2312 = vpop.f32.mrb[0].mxu0
    %v2313 = vadd.f32 0.0, %v2312
    %2314 = vmatprep.mubr.f32.mxu0 %v1885
    %2315 = vmatmul.mubr.f32.gmra.mrb[0].mxu0 %v1884
    %v2316 = vpop.f32.mrb[0].mxu0
    %v2317 = vadd.f32 0.0, %v2316
    %v2318 = vpop.f32.mrb[0].mxu0
    %v2319 = vadd.f32 0.0, %v2318
    %2320 = vdwg.mxu0
    %2321 = vst [vmem:[#allocation2 + $0x40] sm:$0xff] %v2311
    %2322 = vst [vmem:[#allocation2 + $0x48] sm:$0xff] %v2313
    %2323 = vst [vmem:[#allocation2 + $0x50] sm:$0xff] %v2317
    %2324 = vst [vmem:[#allocation2 + $0x58] sm:$0xff] %v2319
    %s2325 = scalar_lea.vmem [#allocation5], 1536
    %v2326 = vld [vmem:[%s2325] sm:$0xff]
    %v2327 = vld [vmem:[%s2325 + $0x8] sm:$0xff]
    %v2328 = vld [vmem:[%s2325 + $0x10] sm:$0xff]
    %v2329 = vld [vmem:[%s2325 + $0x18] sm:$0xff]
    %v2330 = vld [vmem:[%s2325 + $0x20] sm:$0xff]
    %v2331 = vld [vmem:[%s2325 + $0x28] sm:$0xff]
    %v2332 = vld [vmem:[%s2325 + $0x30] sm:$0xff]
    %v2333 = vld [vmem:[%s2325 + $0x38] sm:$0xff]
    %v2334 = vld [vmem:[%s2325 + $0x40] sm:$0xff]
    %v2335 = vld [vmem:[%s2325 + $0x48] sm:$0xff]
    %v2336 = vld [vmem:[%s2325 + $0x50] sm:$0xff]
    %v2337 = vld [vmem:[%s2325 + $0x58] sm:$0xff]
    %v2338 = vld [vmem:[%s2325 + $0x60] sm:$0xff]
    %v2339 = vld [vmem:[%s2325 + $0x68] sm:$0xff]
    %v2340 = vld [vmem:[%s2325 + $0x70] sm:$0xff]
    %v2341 = vld [vmem:[%s2325 + $0x78] sm:$0xff]
    %v2342 = vld [vmem:[%s2325 + $0x80] sm:$0xff]
    %v2343 = vld [vmem:[%s2325 + $0x88] sm:$0xff]
    %v2344 = vld [vmem:[%s2325 + $0x90] sm:$0xff]
    %v2345 = vld [vmem:[%s2325 + $0x98] sm:$0xff]
    %v2346 = vld [vmem:[%s2325 + $0xa0] sm:$0xff]
    %v2347 = vld [vmem:[%s2325 + $0xa8] sm:$0xff]
    %v2348 = vld [vmem:[%s2325 + $0xb0] sm:$0xff]
    %v2349 = vld [vmem:[%s2325 + $0xb8] sm:$0xff]
    %v2350 = vld [vmem:[%s2325 + $0xc0] sm:$0xff]
    %v2351 = vld [vmem:[%s2325 + $0xc8] sm:$0xff]
    %v2352 = vld [vmem:[%s2325 + $0xd0] sm:$0xff]
    %v2353 = vld [vmem:[%s2325 + $0xd8] sm:$0xff]
    %v2354 = vld [vmem:[%s2325 + $0xe0] sm:$0xff]
    %v2355 = vld [vmem:[%s2325 + $0xe8] sm:$0xff]
    %v2356 = vld [vmem:[%s2325 + $0xf0] sm:$0xff]
    %v2357 = vld [vmem:[%s2325 + $0xf8] sm:$0xff]
    %v2358 = vld [vmem:[%s2325 + $0x100] sm:$0xff]
    %v2359 = vld [vmem:[%s2325 + $0x108] sm:$0xff]
    %v2360 = vld [vmem:[%s2325 + $0x110] sm:$0xff]
    %v2361 = vld [vmem:[%s2325 + $0x118] sm:$0xff]
    %v2362 = vld [vmem:[%s2325 + $0x120] sm:$0xff]
    %v2363 = vld [vmem:[%s2325 + $0x128] sm:$0xff]
    %v2364 = vld [vmem:[%s2325 + $0x130] sm:$0xff]
    %v2365 = vld [vmem:[%s2325 + $0x138] sm:$0xff]
    %v2366 = vld [vmem:[%s2325 + $0x140] sm:$0xff]
    %v2367 = vld [vmem:[%s2325 + $0x148] sm:$0xff]
    %v2368 = vld [vmem:[%s2325 + $0x150] sm:$0xff]
    %v2369 = vld [vmem:[%s2325 + $0x158] sm:$0xff]
    %v2370 = vld [vmem:[%s2325 + $0x160] sm:$0xff]
    %v2371 = vld [vmem:[%s2325 + $0x168] sm:$0xff]
    %v2372 = vld [vmem:[%s2325 + $0x170] sm:$0xff]
    %v2373 = vld [vmem:[%s2325 + $0x178] sm:$0xff]
    %v2374 = vld [vmem:[%s2325 + $0x180] sm:$0xff]
    %v2375 = vld [vmem:[%s2325 + $0x188] sm:$0xff]
    %v2376 = vld [vmem:[%s2325 + $0x190] sm:$0xff]
    %v2377 = vld [vmem:[%s2325 + $0x198] sm:$0xff]
    %v2378 = vld [vmem:[%s2325 + $0x1a0] sm:$0xff]
    %v2379 = vld [vmem:[%s2325 + $0x1a8] sm:$0xff]
    %v2380 = vld [vmem:[%s2325 + $0x1b0] sm:$0xff]
    %v2381 = vld [vmem:[%s2325 + $0x1b8] sm:$0xff]
    %v2382 = vld [vmem:[%s2325 + $0x1c0] sm:$0xff]
    %v2383 = vld [vmem:[%s2325 + $0x1c8] sm:$0xff]
    %v2384 = vld [vmem:[%s2325 + $0x1d0] sm:$0xff]
    %v2385 = vld [vmem:[%s2325 + $0x1d8] sm:$0xff]
    %v2386 = vld [vmem:[%s2325 + $0x1e0] sm:$0xff]
    %v2387 = vld [vmem:[%s2325 + $0x1e8] sm:$0xff]
    %v2388 = vld [vmem:[%s2325 + $0x1f0] sm:$0xff]
    %v2389 = vld [vmem:[%s2325 + $0x1f8] sm:$0xff]
    %2390 = vmatprep.subr.mxu0 %v2327
    %2391 = vmatpush1.msra.mxu0 %v2326
    %2392 = vmatprep.subr.mxu0 %v2329
    %2393 = vmatpush1.msra.mxu0 %v2328
    %2394 = vmatprep.subr.mxu0 %v2331
    %2395 = vmatpush1.msra.mxu0 %v2330
    %2396 = vmatprep.subr.mxu0 %v2333
    %2397 = vmatpush1.msra.mxu0 %v2332
    %2398 = vmatprep.subr.mxu0 %v2335
    %2399 = vmatpush1.msra.mxu0 %v2334
    %2400 = vmatprep.subr.mxu0 %v2337
    %2401 = vmatpush1.msra.mxu0 %v2336
    %2402 = vmatprep.subr.mxu0 %v2339
    %2403 = vmatpush1.msra.mxu0 %v2338
    %2404 = vmatprep.subr.mxu0 %v2341
    %2405 = vmatpush1.msra.mxu0 %v2340
    %2406 = vmatprep.subr.mxu0 %v2343
    %2407 = vmatpush1.msra.mxu0 %v2342
    %2408 = vmatprep.subr.mxu0 %v2345
    %2409 = vmatpush1.msra.mxu0 %v2344
    %2410 = vmatprep.subr.mxu0 %v2347
    %2411 = vmatpush1.msra.mxu0 %v2346
    %2412 = vmatprep.subr.mxu0 %v2349
    %2413 = vmatpush1.msra.mxu0 %v2348
    %2414 = vmatprep.subr.mxu0 %v2351
    %2415 = vmatpush1.msra.mxu0 %v2350
    %2416 = vmatprep.subr.mxu0 %v2353
    %2417 = vmatpush1.msra.mxu0 %v2352
    %2418 = vmatprep.subr.mxu0 %v2355
    %2419 = vmatpush1.msra.mxu0 %v2354
    %2420 = vmatprep.subr.mxu0 %v2357
    %2421 = vmatpush1.msra.mxu0 %v2356
    %2422 = vmatprep.subr.mxu0 %v2359
    %2423 = vmatpush1.msra.mxu0 %v2358
    %2424 = vmatprep.subr.mxu0 %v2361
    %2425 = vmatpush1.msra.mxu0 %v2360
    %2426 = vmatprep.subr.mxu0 %v2363
    %2427 = vmatpush1.msra.mxu0 %v2362
    %2428 = vmatprep.subr.mxu0 %v2365
    %2429 = vmatpush1.msra.mxu0 %v2364
    %2430 = vmatprep.subr.mxu0 %v2367
    %2431 = vmatpush1.msra.mxu0 %v2366
    %2432 = vmatprep.subr.mxu0 %v2369
    %2433 = vmatpush1.msra.mxu0 %v2368
    %2434 = vmatprep.subr.mxu0 %v2371
    %2435 = vmatpush1.msra.mxu0 %v2370
    %2436 = vmatprep.subr.mxu0 %v2373
    %2437 = vmatpush1.msra.mxu0 %v2372
    %2438 = vmatprep.subr.mxu0 %v2375
    %2439 = vmatpush1.msra.mxu0 %v2374
    %2440 = vmatprep.subr.mxu0 %v2377
    %2441 = vmatpush1.msra.mxu0 %v2376
    %2442 = vmatprep.subr.mxu0 %v2379
    %2443 = vmatpush1.msra.mxu0 %v2378
    %2444 = vmatprep.subr.mxu0 %v2381
    %2445 = vmatpush1.msra.mxu0 %v2380
    %2446 = vmatprep.subr.mxu0 %v2383
    %2447 = vmatpush1.msra.mxu0 %v2382
    %2448 = vmatprep.subr.mxu0 %v2385
    %2449 = vmatpush1.msra.mxu0 %v2384
    %2450 = vmatprep.subr.mxu0 %v2387
    %2451 = vmatpush1.msra.mxu0 %v2386
    %2452 = vmatprep.subr.mxu0 %v2389
    %2453 = vmatpush1.msra.mxu0 %v2388
    %2454 = vmatprep.mubr.f32.mxu0 %v1883
    %2455 = vmatmul.mubr.f32.gmra.mrb[0].mxu0 %v1882
    %v2456 = vpop.f32.mrb[0].mxu0
    %v2457 = vadd.f32 0.0, %v2456
    %v2458 = vpop.f32.mrb[0].mxu0
    %v2459 = vadd.f32 0.0, %v2458
    %2460 = vmatprep.mubr.f32.mxu0 %v1885
    %2461 = vmatmul.mubr.f32.gmra.mrb[0].mxu0 %v1884
    %v2462 = vpop.f32.mrb[0].mxu0
    %v2463 = vadd.f32 0.0, %v2462
    %v2464 = vpop.f32.mrb[0].mxu0
    %v2465 = vadd.f32 0.0, %v2464
    %2466 = vdwg.mxu0
    %2467 = vst [vmem:[#allocation2 + $0x60] sm:$0xff] %v2457
    %2468 = vst [vmem:[#allocation2 + $0x68] sm:$0xff] %v2459
    %2469 = vst [vmem:[#allocation2 + $0x70] sm:$0xff] %v2463
    %2470 = vst [vmem:[#allocation2 + $0x78] sm:$0xff] %v2465
    %v2471 = vld [vmem:[%s8] sm:$0xff]
    %v2472 = vld [vmem:[%s8 + $0x8] sm:$0xff]
    %v2473 = vld [vmem:[%s8 + $0x10] sm:$0xff]
    %v2474 = vld [vmem:[%s8 + $0x18] sm:$0xff]
    %v2475 = vld [vmem:[#allocation2] sm:$0xff]
    %v2476 = vld [vmem:[#allocation2 + $0x8] sm:$0xff]
    %v2477 = vld [vmem:[#allocation2 + $0x10] sm:$0xff]
    %v2478 = vld [vmem:[#allocation2 + $0x18] sm:$0xff]
    %v2479 = vld [vmem:[#allocation2 + $0x20] sm:$0xff]
    %v2480 = vld [vmem:[#allocation2 + $0x28] sm:$0xff]
    %v2481 = vld [vmem:[#allocation2 + $0x30] sm:$0xff]
    %v2482 = vld [vmem:[#allocation2 + $0x38] sm:$0xff]
    %v2483 = vld [vmem:[#allocation2 + $0x40] sm:$0xff]
    %v2484 = vld [vmem:[#allocation2 + $0x48] sm:$0xff]
    %v2485 = vld [vmem:[#allocation2 + $0x50] sm:$0xff]
    %v2486 = vld [vmem:[#allocation2 + $0x58] sm:$0xff]
    %v2487 = vld [vmem:[#allocation2 + $0x60] sm:$0xff]
    %v2488 = vld [vmem:[#allocation2 + $0x68] sm:$0xff]
    %v2489 = vld [vmem:[#allocation2 + $0x70] sm:$0xff]
    %v2490 = vld [vmem:[#allocation2 + $0x78] sm:$0xff]
    %vm2491 = vcmask 523264
    %v2493 = vsel %vm2491, %v2471, 0
    %v2496 = vsel %vm2491, %v2472, 0
    %v2499 = vsel %vm2491, %v2473, 0
    %v2502 = vsel %vm2491, %v2474, 0
    %2504 = vmatprep.subr.mxu0 %v2476
    %2505 = vmatpush1.msra.mxu0 %v2475
    %2506 = vmatprep.subr.mxu0 %v2478
    %2507 = vmatpush1.msra.mxu0 %v2477
    %2508 = vmatprep.subr.mxu0 %v2480
    %2509 = vmatpush1.msra.mxu0 %v2479
    %2510 = vmatprep.subr.mxu0 %v2482
    %2511 = vmatpush1.msra.mxu0 %v2481
    %2512 = vmatprep.subr.mxu0 %v2484
    %2513 = vmatpush1.msra.mxu0 %v2483
    %2514 = vmatprep.subr.mxu0 %v2486
    %2515 = vmatpush1.msra.mxu0 %v2485
    %2516 = vmatprep.subr.mxu0 %v2488
    %2517 = vmatpush1.msra.mxu0 %v2487
    %2518 = vmatprep.subr.mxu0 %v2490
    %2519 = vmatpush1.msra.mxu0 %v2489
    %2520 = vmatprep.subr.mxu0 0.0
    %2521 = vmatpush1.msra.mxu0 0.0
    %2522 = vmatprep.subr.mxu0 0.0
    %2523 = vmatpush1.msra.mxu0 0.0
    %2524 = vmatprep.subr.mxu0 0.0
    %2525 = vmatpush1.msra.mxu0 0.0
    %2526 = vmatprep.subr.mxu0 0.0
    %2527 = vmatpush1.msra.mxu0 0.0
    %2528 = vmatprep.subr.mxu0 0.0
    %2529 = vmatpush1.msra.mxu0 0.0
    %2530 = vmatprep.subr.mxu0 0.0
    %2531 = vmatpush1.msra.mxu0 0.0
    %2532 = vmatprep.subr.mxu0 0.0
    %2533 = vmatpush1.msra.mxu0 0.0
    %2534 = vmatprep.subr.mxu0 0.0
    %2535 = vmatpush1.msra.mxu0 0.0
    %2536 = vmatprep.subr.mxu0 0.0
    %2537 = vmatpush1.msra.mxu0 0.0
    %2538 = vmatprep.subr.mxu0 0.0
    %2539 = vmatpush1.msra.mxu0 0.0
    %2540 = vmatprep.subr.mxu0 0.0
    %2541 = vmatpush1.msra.mxu0 0.0
    %2542 = vmatprep.subr.mxu0 0.0
    %2543 = vmatpush1.msra.mxu0 0.0
    %2544 = vmatprep.subr.mxu0 0.0
    %2545 = vmatpush1.msra.mxu0 0.0
    %2546 = vmatprep.subr.mxu0 0.0
    %2547 = vmatpush1.msra.mxu0 0.0
    %2548 = vmatprep.subr.mxu0 0.0
    %2549 = vmatpush1.msra.mxu0 0.0
    %2550 = vmatprep.subr.mxu0 0.0
    %2551 = vmatpush1.msra.mxu0 0.0
    %2552 = vmatprep.subr.mxu0 0.0
    %2553 = vmatpush1.msra.mxu0 0.0
    %2554 = vmatprep.subr.mxu0 0.0
    %2555 = vmatpush1.msra.mxu0 0.0
    %2556 = vmatprep.subr.mxu0 0.0
    %2557 = vmatpush1.msra.mxu0 0.0
    %2558 = vmatprep.subr.mxu0 0.0
    %2559 = vmatpush1.msra.mxu0 0.0
    %2560 = vmatprep.subr.mxu0 0.0
    %2561 = vmatpush1.msra.mxu0 0.0
    %2562 = vmatprep.subr.mxu0 0.0
    %2563 = vmatpush1.msra.mxu0 0.0
    %2564 = vmatprep.subr.mxu0 0.0
    %2565 = vmatpush1.msra.mxu0 0.0
    %2566 = vmatprep.subr.mxu0 0.0
    %2567 = vmatpush1.msra.mxu0 0.0
    %2568 = vmatprep.mubr.f32.mxu0 0.0
    %2569 = vmatmul.mubr.f32.gmra.mrb[0].mxu0 %v2493
    %v2570 = vpop.f32.mrb[0].mxu0
    %v2571 = vadd.f32 0.0, %v2570
    %v2572 = vpop.f32.mrb[0].mxu0
    %v2573 = vadd.f32 0.0, %v2572
    %2574 = vmatprep.mubr.f32.mxu0 0.0
    %2575 = vmatmul.mubr.f32.gmra.mrb[0].mxu0 %v2496
    %v2576 = vpop.f32.mrb[0].mxu0
    %v2577 = vadd.f32 0.0, %v2576
    %v2578 = vpop.f32.mrb[0].mxu0
    %v2579 = vadd.f32 0.0, %v2578
    %2580 = vmatprep.mubr.f32.mxu0 0.0
    %2581 = vmatmul.mubr.f32.gmra.mrb[0].mxu0 %v2499
    %v2582 = vpop.f32.mrb[0].mxu0
    %v2583 = vadd.f32 0.0, %v2582
    %v2584 = vpop.f32.mrb[0].mxu0
    %v2585 = vadd.f32 0.0, %v2584
    %2586 = vmatprep.mubr.f32.mxu0 0.0
    %2587 = vmatmul.mubr.f32.gmra.mrb[0].mxu0 %v2502
    %v2588 = vpop.f32.mrb[0].mxu0
    %v2589 = vadd.f32 0.0, %v2588
    %v2590 = vpop.f32.mrb[0].mxu0
    %v2591 = vadd.f32 0.0, %v2590
    %2592 = vdwg.mxu0
    %v2593 = vadd.f32 %v2571, %v2577
    %v2594 = vadd.f32 %v2593, %v2583
    %v2595 = vadd.f32 %v2594, %v2589
    %v2596 = vrot.slane %v2595, 4
    %v2597 = vadd.f32 %v2595, %v2596
    %v2598 = vrot.slane %v2597, 2
    %v2599 = vadd.f32 %v2597, %v2598
    %v2600 = vrot.slane %v2599, 1
    %v2601 = vadd.f32 %v2599, %v2600
    %v2602 = vadd.f32 %v2573, %v2579
    %v2603 = vadd.f32 %v2602, %v2585
    %v2604 = vadd.f32 %v2603, %v2591
    %v2605 = vrot.slane %v2604, 4
    %v2606 = vadd.f32 %v2604, %v2605
    %v2607 = vrot.slane %v2606, 2
    %v2608 = vadd.f32 %v2606, %v2607
    %v2609 = vrot.slane %v2608, 1
    %v2610 = vadd.f32 %v2608, %v2609
    %v2611 = vmul.f32 %v2571, %v2571
    %v2612 = vmul.f32 %v2573, %v2573
    %v2613 = vmul.f32 %v2577, %v2577
    %v2614 = vmul.f32 %v2579, %v2579
    %v2615 = vmul.f32 %v2583, %v2583
    %v2616 = vmul.f32 %v2585, %v2585
    %v2617 = vmul.f32 %v2589, %v2589
    %v2618 = vmul.f32 %v2591, %v2591
    %v2619 = vadd.f32 %v2611, %v2613
    %v2620 = vadd.f32 %v2619, %v2615
    %v2621 = vadd.f32 %v2620, %v2617
    %v2622 = vrot.slane %v2621, 4
    %v2623 = vadd.f32 %v2621, %v2622
    %v2624 = vrot.slane %v2623, 2
    %v2625 = vadd.f32 %v2623, %v2624
    %v2626 = vrot.slane %v2625, 1
    %v2627 = vadd.f32 %v2625, %v2626
    %v2628 = vadd.f32 %v2612, %v2614
    %v2629 = vadd.f32 %v2628, %v2616
    %v2630 = vadd.f32 %v2629, %v2618
    %v2631 = vrot.slane %v2630, 4
    %v2632 = vadd.f32 %v2630, %v2631
    %v2633 = vrot.slane %v2632, 2
    %v2634 = vadd.f32 %v2632, %v2633
    %v2635 = vrot.slane %v2634, 1
    %v2636 = vadd.f32 %v2634, %v2635
    %v2637 = vsel %vm745, %v2601, %v2627
    %v2638 = vsel %vm745, %v2610, %v2636
    %v2639 = vld [vmem:[#allocation17] sm:$0xff]
    %v2640 = vld [vmem:[#allocation17 + $0x8] sm:$0xff]
    %v2641 = vld [vmem:[#allocation17 + $0x10] sm:$0xff]
    %v2642 = vld [vmem:[#allocation17 + $0x18] sm:$0xff]
    %v2643 = vld [vmem:[#allocation17 + $0x20] sm:$0xff]
    %v2644 = vld [vmem:[#allocation17 + $0x28] sm:$0xff]
    %v2645 = vld [vmem:[#allocation17 + $0x30] sm:$0xff]
    %v2646 = vld [vmem:[#allocation17 + $0x38] sm:$0xff]
    %v2647 = vld [vmem:[#allocation17 + $0x40] sm:$0xff]
    %v2648 = vld [vmem:[#allocation17 + $0x48] sm:$0xff]
    %v2649 = vld [vmem:[#allocation17 + $0x50] sm:$0xff]
    %v2650 = vld [vmem:[#allocation17 + $0x58] sm:$0xff]
    %v2651 = vld [vmem:[#allocation17 + $0x60] sm:$0xff]
    %v2652 = vld [vmem:[#allocation17 + $0x68] sm:$0xff]
    %v2653 = vld [vmem:[#allocation17 + $0x70] sm:$0xff]
    %v2654 = vld [vmem:[#allocation17 + $0x78] sm:$0xff]
    %v2655 = vld [vmem:[#allocation17 + $0x80] sm:$0xff]
    %v2656 = vld [vmem:[#allocation17 + $0x88] sm:$0xff]
    %v2657 = vld [vmem:[#allocation17 + $0x90] sm:$0xff]
    %v2658 = vld [vmem:[#allocation17 + $0x98] sm:$0xff]
    %v2659 = vld [vmem:[#allocation17 + $0xa0] sm:$0xff]
    %v2660 = vld [vmem:[#allocation17 + $0xa8] sm:$0xff]
    %v2661 = vld [vmem:[#allocation17 + $0xb0] sm:$0xff]
    %v2662 = vld [vmem:[#allocation17 + $0xb8] sm:$0xff]
    %v2663 = vld [vmem:[#allocation17 + $0xc0] sm:$0xff]
    %v2664 = vld [vmem:[#allocation17 + $0xc8] sm:$0xff]
    %v2665 = vld [vmem:[#allocation17 + $0xd0] sm:$0xff]
    %v2666 = vld [vmem:[#allocation17 + $0xd8] sm:$0xff]
    %v2667 = vld [vmem:[#allocation17 + $0xe0] sm:$0xff]
    %v2668 = vld [vmem:[#allocation17 + $0xe8] sm:$0xff]
    %v2669 = vld [vmem:[#allocation17 + $0xf0] sm:$0xff]
    %v2670 = vld [vmem:[#allocation17 + $0xf8] sm:$0xff]
    %v2671 = vld [vmem:[#allocation17 + $0x100] sm:$0xff]
    %v2672 = vld [vmem:[#allocation17 + $0x108] sm:$0xff]
    %v2673 = vld [vmem:[#allocation17 + $0x110] sm:$0xff]
    %v2674 = vld [vmem:[#allocation17 + $0x118] sm:$0xff]
    %v2675 = vld [vmem:[#allocation17 + $0x120] sm:$0xff]
    %v2676 = vld [vmem:[#allocation17 + $0x128] sm:$0xff]
    %v2677 = vld [vmem:[#allocation17 + $0x130] sm:$0xff]
    %v2678 = vld [vmem:[#allocation17 + $0x138] sm:$0xff]
    %v2679 = vld [vmem:[#allocation17 + $0x140] sm:$0xff]
    %v2680 = vld [vmem:[#allocation17 + $0x148] sm:$0xff]
    %v2681 = vld [vmem:[#allocation17 + $0x150] sm:$0xff]
    %v2682 = vld [vmem:[#allocation17 + $0x158] sm:$0xff]
    %v2683 = vld [vmem:[#allocation17 + $0x160] sm:$0xff]
    %v2684 = vld [vmem:[#allocation17 + $0x168] sm:$0xff]
    %v2685 = vld [vmem:[#allocation17 + $0x170] sm:$0xff]
    %v2686 = vld [vmem:[#allocation17 + $0x178] sm:$0xff]
    %v2687 = vld [vmem:[#allocation17 + $0x180] sm:$0xff]
    %v2688 = vld [vmem:[#allocation17 + $0x188] sm:$0xff]
    %v2689 = vld [vmem:[#allocation17 + $0x190] sm:$0xff]
    %v2690 = vld [vmem:[#allocation17 + $0x198] sm:$0xff]
    %v2691 = vld [vmem:[#allocation17 + $0x1a0] sm:$0xff]
    %v2692 = vld [vmem:[#allocation17 + $0x1a8] sm:$0xff]
    %v2693 = vld [vmem:[#allocation17 + $0x1b0] sm:$0xff]
    %v2694 = vld [vmem:[#allocation17 + $0x1b8] sm:$0xff]
    %v2695 = vld [vmem:[#allocation17 + $0x1c0] sm:$0xff]
    %v2696 = vld [vmem:[#allocation17 + $0x1c8] sm:$0xff]
    %v2697 = vld [vmem:[#allocation17 + $0x1d0] sm:$0xff]
    %v2698 = vld [vmem:[#allocation17 + $0x1d8] sm:$0xff]
    %v2699 = vld [vmem:[#allocation17 + $0x1e0] sm:$0xff]
    %v2700 = vld [vmem:[#allocation17 + $0x1e8] sm:$0xff]
    %v2701 = vld [vmem:[#allocation17 + $0x1f0] sm:$0xff]
    %v2702 = vld [vmem:[#allocation17 + $0x1f8] sm:$0xff]
    %2703 = vmatprep.subr.mxu0 %v2640
    %2704 = vmatpush1.msra.mxu0 %v2639
    %2705 = vmatprep.subr.mxu0 %v2642
    %2706 = vmatpush1.msra.mxu0 %v2641
    %2707 = vmatprep.subr.mxu0 %v2644
    %2708 = vmatpush1.msra.mxu0 %v2643
    %2709 = vmatprep.subr.mxu0 %v2646
    %2710 = vmatpush1.msra.mxu0 %v2645
    %2711 = vmatprep.subr.mxu0 %v2648
    %2712 = vmatpush1.msra.mxu0 %v2647
    %2713 = vmatprep.subr.mxu0 %v2650
    %2714 = vmatpush1.msra.mxu0 %v2649
    %2715 = vmatprep.subr.mxu0 %v2652
    %2716 = vmatpush1.msra.mxu0 %v2651
    %2717 = vmatprep.subr.mxu0 %v2654
    %2718 = vmatpush1.msra.mxu0 %v2653
    %2719 = vmatprep.subr.mxu0 %v2656
    %2720 = vmatpush1.msra.mxu0 %v2655
    %2721 = vmatprep.subr.mxu0 %v2658
    %2722 = vmatpush1.msra.mxu0 %v2657
    %2723 = vmatprep.subr.mxu0 %v2660
    %2724 = vmatpush1.msra.mxu0 %v2659
    %2725 = vmatprep.subr.mxu0 %v2662
    %2726 = vmatpush1.msra.mxu0 %v2661
    %2727 = vmatprep.subr.mxu0 %v2664
    %2728 = vmatpush1.msra.mxu0 %v2663
    %2729 = vmatprep.subr.mxu0 %v2666
    %2730 = vmatpush1.msra.mxu0 %v2665
    %2731 = vmatprep.subr.mxu0 %v2668
    %2732 = vmatpush1.msra.mxu0 %v2667
    %2733 = vmatprep.subr.mxu0 %v2670
    %2734 = vmatpush1.msra.mxu0 %v2669
    %2735 = vmatprep.subr.mxu0 %v2672
    %2736 = vmatpush1.msra.mxu0 %v2671
    %2737 = vmatprep.subr.mxu0 %v2674
    %2738 = vmatpush1.msra.mxu0 %v2673
    %2739 = vmatprep.subr.mxu0 %v2676
    %2740 = vmatpush1.msra.mxu0 %v2675
    %2741 = vmatprep.subr.mxu0 %v2678
    %2742 = vmatpush1.msra.mxu0 %v2677
    %2743 = vmatprep.subr.mxu0 %v2680
    %2744 = vmatpush1.msra.mxu0 %v2679
    %2745 = vmatprep.subr.mxu0 %v2682
    %2746 = vmatpush1.msra.mxu0 %v2681
    %2747 = vmatprep.subr.mxu0 %v2684
    %2748 = vmatpush1.msra.mxu0 %v2683
    %2749 = vmatprep.subr.mxu0 %v2686
    %2750 = vmatpush1.msra.mxu0 %v2685
    %2751 = vmatprep.subr.mxu0 %v2688
    %2752 = vmatpush1.msra.mxu0 %v2687
    %2753 = vmatprep.subr.mxu0 %v2690
    %2754 = vmatpush1.msra.mxu0 %v2689
    %2755 = vmatprep.subr.mxu0 %v2692
    %2756 = vmatpush1.msra.mxu0 %v2691
    %2757 = vmatprep.subr.mxu0 %v2694
    %2758 = vmatpush1.msra.mxu0 %v2693
    %2759 = vmatprep.subr.mxu0 %v2696
    %2760 = vmatpush1.msra.mxu0 %v2695
    %2761 = vmatprep.subr.mxu0 %v2698
    %2762 = vmatpush1.msra.mxu0 %v2697
    %2763 = vmatprep.subr.mxu0 %v2700
    %2764 = vmatpush1.msra.mxu0 %v2699
    %2765 = vmatprep.subr.mxu0 %v2702
    %2766 = vmatpush1.msra.mxu0 %v2701
    %2767 = vmatprep.mubr.f32.mxu0 %v2638
    %2768 = vmatmul.mubr.f32.gmra.mrb[0].mxu0 %v2637
    %v2769 = vpop.f32.mrb[0].mxu0
    %v2770 = vadd.f32 0.0, %v2769
    %v2771 = vpop.f32.mrb[0].mxu0
    %v2772 = vadd.f32 0.0, %v2771
    %2773 = vdwg.mxu0
    %v2774 = vmul.f32 %v2770, 0.001953125
    %v2775 = vmul.f32 %v2772, 0.001953125
    %v2776 = vmul.f32 %v2774, %v2774
    %v2777 = vmul.f32 %v2775, %v2775
    %v2780 = vrot.slane %v2776, 7
    %v2781 = vrot.slane %v2777, 7
    %v2784 = vsub.f32 %v2774, %v2780
    %v2785 = vsub.f32 %v2775, %v2781
    %v2786 = vmax.f32 %v2784, 0.0
    %v2787 = vmax.f32 %v2785, 0.0
    %v2788 = vld [vmem:[%s17] ss:$2 sm:$0x3]
    %v2789 = vadd.f32 %v2786, 1e-05
    %v2790 = vadd.f32 %v2787, 1e-05
    %v2791 = vrsqrt.pop %v2789
    %v2792 = vrsqrt.pop %v2790
    %v2795 = vcombine.low %v2791, %v2792
    %v2797 = vunpack.c.l.s4 1966171168
    %v2798 = vunpack.c.0.s8 %v2797
    %v2799 = vlaneseq
    %v2800 = vshrl.u32 %v2799, 7
    %v2801 = vsub.s32 %v2798, %v2800
    %v2802 = vrot.slane %v2795, %v2801
    %v2803 = vcombine.high %v2802, %v2802
    %v2805 = vunpack.c.l.s4 1966171168
    %v2806 = vunpack.c.0.s8 %v2805
    %v2807 = vlaneseq
    %v2808 = vshrl.u32 %v2807, 7
    %v2809 = vsub.s32 %v2806, %v2808
    %v2810 = vrot.slane %v2803, %v2809
    %v2812 = vmul.f32 %v2788, %v2810
    %s2813 = scalar_lea.vmem %s17, 1
    %v2814 = vld [vmem:[%s2813] ss:$2 sm:$0x3]
    %v2816 = vlaneseq
    %v2817 = vshrl.u32 %v2816, 7
    %v2818 = vsub.s32 0, %v2817
    %v2819 = vrot.slane %v2812, %v2818
    %v2820 = vlaneseq
    %v2821 = vshrl.u32 %v2820, 7
    %v2822 = vsub.s32 1, %v2821
    %v2823 = vrot.slane %v2812, %v2822
    %v2826 = vmul.f32 %v2774, %v2819
    %v2827 = vmul.f32 %v2775, %v2823
    %v2830 = vcombine.low %v2826, %v2827
    %v2832 = vunpack.c.l.s4 1966171168
    %v2833 = vunpack.c.0.s8 %v2832
    %v2834 = vlaneseq
    %v2835 = vshrl.u32 %v2834, 7
    %v2836 = vsub.s32 %v2833, %v2835
    %v2837 = vrot.slane %v2830, %v2836
    %v2839 = vunpack.c.l.s4 1966171168
    %v2840 = vunpack.c.0.s8 %v2839
    %v2841 = vlaneseq
    %v2842 = vshrl.u32 %v2841, 7
    %v2843 = vsub.s32 %v2840, %v2842
    %v2844 = vrot.slane %v2837, %v2843
    %v2846 = vsub.f32 %v2814, %v2844
    %v2847 = vmul.f32 %v2571, %v2819
    %v2848 = vmul.f32 %v2573, %v2823
    %v2849 = vmul.f32 %v2577, %v2819
    %v2850 = vmul.f32 %v2579, %v2823
    %v2851 = vmul.f32 %v2583, %v2819
    %v2852 = vmul.f32 %v2585, %v2823
    %v2853 = vmul.f32 %v2589, %v2819
    %v2854 = vmul.f32 %v2591, %v2823
    %v2856 = vlaneseq
    %v2857 = vshrl.u32 %v2856, 7
    %v2858 = vsub.s32 0, %v2857
    %v2859 = vrot.slane %v2846, %v2858
    %v2860 = vlaneseq
    %v2861 = vshrl.u32 %v2860, 7
    %v2862 = vsub.s32 1, %v2861
    %v2863 = vrot.slane %v2846, %v2862
    %v2866 = vadd.f32 %v2847, %v2859
    %v2867 = vadd.f32 %v2848, %v2863
    %v2868 = vadd.f32 %v2849, %v2859
    %v2869 = vadd.f32 %v2850, %v2863
    %v2870 = vadd.f32 %v2851, %v2859
    %v2871 = vadd.f32 %v2852, %v2863
    %v2872 = vadd.f32 %v2853, %v2859
    %v2873 = vadd.f32 %v2854, %v2863
    %v2874 = vmax.f32 %v2866, 0.0
    %v2875 = vmax.f32 %v2867, 0.0
    %v2876 = vmax.f32 %v2868, 0.0
    %v2877 = vmax.f32 %v2869, 0.0
    %v2878 = vmax.f32 %v2870, 0.0
    %v2879 = vmax.f32 %v2871, 0.0
    %v2880 = vmax.f32 %v2872, 0.0
    %v2881 = vmax.f32 %v2873, 0.0
    %s2882 = sshll.u32 %s974, 4
    %2883 = dma.done %s182, %s2882
    %v2884 = vld [vmem:[#allocation6] sm:$0xff]
    %v2885 = vld [vmem:[#allocation6 + $0x8] sm:$0xff]
    %v2886 = vld [vmem:[#allocation6 + $0x10] sm:$0xff]
    %v2887 = vld [vmem:[#allocation6 + $0x18] sm:$0xff]
    %v2888 = vld [vmem:[#allocation6 + $0x20] sm:$0xff]
    %v2889 = vld [vmem:[#allocation6 + $0x28] sm:$0xff]
    %v2890 = vld [vmem:[#allocation6 + $0x30] sm:$0xff]
    %v2891 = vld [vmem:[#allocation6 + $0x38] sm:$0xff]
    %v2892 = vld [vmem:[#allocation6 + $0x40] sm:$0xff]
    %v2893 = vld [vmem:[#allocation6 + $0x48] sm:$0xff]
    %v2894 = vld [vmem:[#allocation6 + $0x50] sm:$0xff]
    %v2895 = vld [vmem:[#allocation6 + $0x58] sm:$0xff]
    %v2896 = vld [vmem:[#allocation6 + $0x60] sm:$0xff]
    %v2897 = vld [vmem:[#allocation6 + $0x68] sm:$0xff]
    %v2898 = vld [vmem:[#allocation6 + $0x70] sm:$0xff]
    %v2899 = vld [vmem:[#allocation6 + $0x78] sm:$0xff]
    %v2900 = vld [vmem:[#allocation6 + $0x80] sm:$0xff]
    %v2901 = vld [vmem:[#allocation6 + $0x88] sm:$0xff]
    %v2902 = vld [vmem:[#allocation6 + $0x90] sm:$0xff]
    %v2903 = vld [vmem:[#allocation6 + $0x98] sm:$0xff]
    %v2904 = vld [vmem:[#allocation6 + $0xa0] sm:$0xff]
    %v2905 = vld [vmem:[#allocation6 + $0xa8] sm:$0xff]
    %v2906 = vld [vmem:[#allocation6 + $0xb0] sm:$0xff]
    %v2907 = vld [vmem:[#allocation6 + $0xb8] sm:$0xff]
    %v2908 = vld [vmem:[#allocation6 + $0xc0] sm:$0xff]
    %v2909 = vld [vmem:[#allocation6 + $0xc8] sm:$0xff]
    %v2910 = vld [vmem:[#allocation6 + $0xd0] sm:$0xff]
    %v2911 = vld [vmem:[#allocation6 + $0xd8] sm:$0xff]
    %v2912 = vld [vmem:[#allocation6 + $0xe0] sm:$0xff]
    %v2913 = vld [vmem:[#allocation6 + $0xe8] sm:$0xff]
    %v2914 = vld [vmem:[#allocation6 + $0xf0] sm:$0xff]
    %v2915 = vld [vmem:[#allocation6 + $0xf8] sm:$0xff]
    %v2916 = vld [vmem:[#allocation6 + $0x100] sm:$0xff]
    %v2917 = vld [vmem:[#allocation6 + $0x108] sm:$0xff]
    %v2918 = vld [vmem:[#allocation6 + $0x110] sm:$0xff]
    %v2919 = vld [vmem:[#allocation6 + $0x118] sm:$0xff]
    %v2920 = vld [vmem:[#allocation6 + $0x120] sm:$0xff]
    %v2921 = vld [vmem:[#allocation6 + $0x128] sm:$0xff]
    %v2922 = vld [vmem:[#allocation6 + $0x130] sm:$0xff]
    %v2923 = vld [vmem:[#allocation6 + $0x138] sm:$0xff]
    %v2924 = vld [vmem:[#allocation6 + $0x140] sm:$0xff]
    %v2925 = vld [vmem:[#allocation6 + $0x148] sm:$0xff]
    %v2926 = vld [vmem:[#allocation6 + $0x150] sm:$0xff]
    %v2927 = vld [vmem:[#allocation6 + $0x158] sm:$0xff]
    %v2928 = vld [vmem:[#allocation6 + $0x160] sm:$0xff]
    %v2929 = vld [vmem:[#allocation6 + $0x168] sm:$0xff]
    %v2930 = vld [vmem:[#allocation6 + $0x170] sm:$0xff]
    %v2931 = vld [vmem:[#allocation6 + $0x178] sm:$0xff]
    %v2932 = vld [vmem:[#allocation6 + $0x180] sm:$0xff]
    %v2933 = vld [vmem:[#allocation6 + $0x188] sm:$0xff]
    %v2934 = vld [vmem:[#allocation6 + $0x190] sm:$0xff]
    %v2935 = vld [vmem:[#allocation6 + $0x198] sm:$0xff]
    %v2936 = vld [vmem:[#allocation6 + $0x1a0] sm:$0xff]
    %v2937 = vld [vmem:[#allocation6 + $0x1a8] sm:$0xff]
    %v2938 = vld [vmem:[#allocation6 + $0x1b0] sm:$0xff]
    %v2939 = vld [vmem:[#allocation6 + $0x1b8] sm:$0xff]
    %v2940 = vld [vmem:[#allocation6 + $0x1c0] sm:$0xff]
    %v2941 = vld [vmem:[#allocation6 + $0x1c8] sm:$0xff]
    %v2942 = vld [vmem:[#allocation6 + $0x1d0] sm:$0xff]
    %v2943 = vld [vmem:[#allocation6 + $0x1d8] sm:$0xff]
    %v2944 = vld [vmem:[#allocation6 + $0x1e0] sm:$0xff]
    %v2945 = vld [vmem:[#allocation6 + $0x1e8] sm:$0xff]
    %v2946 = vld [vmem:[#allocation6 + $0x1f0] sm:$0xff]
    %v2947 = vld [vmem:[#allocation6 + $0x1f8] sm:$0xff]
    %2948 = vmatprep.subr.mxu0 %v2885
    %2949 = vmatpush1.msra.mxu0 %v2884
    %2950 = vmatprep.subr.mxu0 %v2887
    %2951 = vmatpush1.msra.mxu0 %v2886
    %2952 = vmatprep.subr.mxu0 %v2889
    %2953 = vmatpush1.msra.mxu0 %v2888
    %2954 = vmatprep.subr.mxu0 %v2891
    %2955 = vmatpush1.msra.mxu0 %v2890
    %2956 = vmatprep.subr.mxu0 %v2893
    %2957 = vmatpush1.msra.mxu0 %v2892
    %2958 = vmatprep.subr.mxu0 %v2895
    %2959 = vmatpush1.msra.mxu0 %v2894
    %2960 = vmatprep.subr.mxu0 %v2897
    %2961 = vmatpush1.msra.mxu0 %v2896
    %2962 = vmatprep.subr.mxu0 %v2899
    %2963 = vmatpush1.msra.mxu0 %v2898
    %2964 = vmatprep.subr.mxu0 %v2901
    %2965 = vmatpush1.msra.mxu0 %v2900
    %2966 = vmatprep.subr.mxu0 %v2903
    %2967 = vmatpush1.msra.mxu0 %v2902
    %2968 = vmatprep.subr.mxu0 %v2905
    %2969 = vmatpush1.msra.mxu0 %v2904
    %2970 = vmatprep.subr.mxu0 %v2907
    %2971 = vmatpush1.msra.mxu0 %v2906
    %2972 = vmatprep.subr.mxu0 %v2909
    %2973 = vmatpush1.msra.mxu0 %v2908
    %2974 = vmatprep.subr.mxu0 %v2911
    %2975 = vmatpush1.msra.mxu0 %v2910
    %2976 = vmatprep.subr.mxu0 %v2913
    %2977 = vmatpush1.msra.mxu0 %v2912
    %2978 = vmatprep.subr.mxu0 %v2915
    %2979 = vmatpush1.msra.mxu0 %v2914
    %2980 = vmatprep.subr.mxu0 %v2917
    %2981 = vmatpush1.msra.mxu0 %v2916
    %2982 = vmatprep.subr.mxu0 %v2919
    %2983 = vmatpush1.msra.mxu0 %v2918
    %2984 = vmatprep.subr.mxu0 %v2921
    %2985 = vmatpush1.msra.mxu0 %v2920
    %2986 = vmatprep.subr.mxu0 %v2923
    %2987 = vmatpush1.msra.mxu0 %v2922
    %2988 = vmatprep.subr.mxu0 %v2925
    %2989 = vmatpush1.msra.mxu0 %v2924
    %2990 = vmatprep.subr.mxu0 %v2927
    %2991 = vmatpush1.msra.mxu0 %v2926
    %2992 = vmatprep.subr.mxu0 %v2929
    %2993 = vmatpush1.msra.mxu0 %v2928
    %2994 = vmatprep.subr.mxu0 %v2931
    %2995 = vmatpush1.msra.mxu0 %v2930
    %2996 = vmatprep.subr.mxu0 %v2933
    %2997 = vmatpush1.msra.mxu0 %v2932
    %2998 = vmatprep.subr.mxu0 %v2935
    %2999 = vmatpush1.msra.mxu0 %v2934
    %3000 = vmatprep.subr.mxu0 %v2937
    %3001 = vmatpush1.msra.mxu0 %v2936
    %3002 = vmatprep.subr.mxu0 %v2939
    %3003 = vmatpush1.msra.mxu0 %v2938
    %3004 = vmatprep.subr.mxu0 %v2941
    %3005 = vmatpush1.msra.mxu0 %v2940
    %3006 = vmatprep.subr.mxu0 %v2943
    %3007 = vmatpush1.msra.mxu0 %v2942
    %3008 = vmatprep.subr.mxu0 %v2945
    %3009 = vmatpush1.msra.mxu0 %v2944
    %3010 = vmatprep.subr.mxu0 %v2947
    %3011 = vmatpush1.msra.mxu0 %v2946
    %3012 = vmatprep.mubr.f32.mxu0 %v2875
    %3013 = vmatmul.mubr.f32.gmra.mrb[0].mxu0 %v2874
    %v3014 = vpop.f32.mrb[0].mxu0
    %v3015 = vadd.f32 0.0, %v3014
    %v3016 = vpop.f32.mrb[0].mxu0
    %v3017 = vadd.f32 0.0, %v3016
    %3018 = vmatprep.mubr.f32.mxu0 %v2877
    %3019 = vmatmul.mubr.f32.gmra.mrb[0].mxu0 %v2876
    %v3020 = vpop.f32.mrb[0].mxu0
    %v3021 = vadd.f32 0.0, %v3020
    %v3022 = vpop.f32.mrb[0].mxu0
    %v3023 = vadd.f32 0.0, %v3022
    %3024 = vmatprep.mubr.f32.mxu0 %v2879
    %3025 = vmatmul.mubr.f32.gmra.mrb[0].mxu0 %v2878
    %v3026 = vpop.f32.mrb[0].mxu0
    %v3027 = vadd.f32 0.0, %v3026
    %v3028 = vpop.f32.mrb[0].mxu0
    %v3029 = vadd.f32 0.0, %v3028
    %3030 = vmatprep.mubr.f32.mxu0 %v2881
    %3031 = vmatmul.mubr.f32.gmra.mrb[0].mxu0 %v2880
    %v3032 = vpop.f32.mrb[0].mxu0
    %v3033 = vadd.f32 0.0, %v3032
    %v3034 = vpop.f32.mrb[0].mxu0
    %v3035 = vadd.f32 0.0, %v3034
    %3036 = vdwg.mxu0
    %3037 = vst [vmem:[#allocation2] sm:$0xff] %v3015
    %3038 = vst [vmem:[#allocation2 + $0x8] sm:$0xff] %v3017
    %3039 = vst [vmem:[#allocation2 + $0x10] sm:$0xff] %v3021
    %3040 = vst [vmem:[#allocation2 + $0x18] sm:$0xff] %v3023
    %3041 = vst [vmem:[#allocation2 + $0x20] sm:$0xff] %v3027
    %3042 = vst [vmem:[#allocation2 + $0x28] sm:$0xff] %v3029
    %3043 = vst [vmem:[#allocation2 + $0x30] sm:$0xff] %v3033
    %3044 = vst [vmem:[#allocation2 + $0x38] sm:$0xff] %v3035
    %s3045 = scalar_lea.vmem [#allocation6], 512
    %v3046 = vld [vmem:[%s3045] sm:$0xff]
    %v3047 = vld [vmem:[%s3045 + $0x8] sm:$0xff]
    %v3048 = vld [vmem:[%s3045 + $0x10] sm:$0xff]
    %v3049 = vld [vmem:[%s3045 + $0x18] sm:$0xff]
    %v3050 = vld [vmem:[%s3045 + $0x20] sm:$0xff]
    %v3051 = vld [vmem:[%s3045 + $0x28] sm:$0xff]
    %v3052 = vld [vmem:[%s3045 + $0x30] sm:$0xff]
    %v3053 = vld [vmem:[%s3045 + $0x38] sm:$0xff]
    %v3054 = vld [vmem:[%s3045 + $0x40] sm:$0xff]
    %v3055 = vld [vmem:[%s3045 + $0x48] sm:$0xff]
    %v3056 = vld [vmem:[%s3045 + $0x50] sm:$0xff]
    %v3057 = vld [vmem:[%s3045 + $0x58] sm:$0xff]
    %v3058 = vld [vmem:[%s3045 + $0x60] sm:$0xff]
    %v3059 = vld [vmem:[%s3045 + $0x68] sm:$0xff]
    %v3060 = vld [vmem:[%s3045 + $0x70] sm:$0xff]
    %v3061 = vld [vmem:[%s3045 + $0x78] sm:$0xff]
    %v3062 = vld [vmem:[%s3045 + $0x80] sm:$0xff]
    %v3063 = vld [vmem:[%s3045 + $0x88] sm:$0xff]
    %v3064 = vld [vmem:[%s3045 + $0x90] sm:$0xff]
    %v3065 = vld [vmem:[%s3045 + $0x98] sm:$0xff]
    %v3066 = vld [vmem:[%s3045 + $0xa0] sm:$0xff]
    %v3067 = vld [vmem:[%s3045 + $0xa8] sm:$0xff]
    %v3068 = vld [vmem:[%s3045 + $0xb0] sm:$0xff]
    %v3069 = vld [vmem:[%s3045 + $0xb8] sm:$0xff]
    %v3070 = vld [vmem:[%s3045 + $0xc0] sm:$0xff]
    %v3071 = vld [vmem:[%s3045 + $0xc8] sm:$0xff]
    %v3072 = vld [vmem:[%s3045 + $0xd0] sm:$0xff]
    %v3073 = vld [vmem:[%s3045 + $0xd8] sm:$0xff]
    %v3074 = vld [vmem:[%s3045 + $0xe0] sm:$0xff]
    %v3075 = vld [vmem:[%s3045 + $0xe8] sm:$0xff]
    %v3076 = vld [vmem:[%s3045 + $0xf0] sm:$0xff]
    %v3077 = vld [vmem:[%s3045 + $0xf8] sm:$0xff]
    %v3078 = vld [vmem:[%s3045 + $0x100] sm:$0xff]
    %v3079 = vld [vmem:[%s3045 + $0x108] sm:$0xff]
    %v3080 = vld [vmem:[%s3045 + $0x110] sm:$0xff]
    %v3081 = vld [vmem:[%s3045 + $0x118] sm:$0xff]
    %v3082 = vld [vmem:[%s3045 + $0x120] sm:$0xff]
    %v3083 = vld [vmem:[%s3045 + $0x128] sm:$0xff]
    %v3084 = vld [vmem:[%s3045 + $0x130] sm:$0xff]
    %v3085 = vld [vmem:[%s3045 + $0x138] sm:$0xff]
    %v3086 = vld [vmem:[%s3045 + $0x140] sm:$0xff]
    %v3087 = vld [vmem:[%s3045 + $0x148] sm:$0xff]
    %v3088 = vld [vmem:[%s3045 + $0x150] sm:$0xff]
    %v3089 = vld [vmem:[%s3045 + $0x158] sm:$0xff]
    %v3090 = vld [vmem:[%s3045 + $0x160] sm:$0xff]
    %v3091 = vld [vmem:[%s3045 + $0x168] sm:$0xff]
    %v3092 = vld [vmem:[%s3045 + $0x170] sm:$0xff]
    %v3093 = vld [vmem:[%s3045 + $0x178] sm:$0xff]
    %v3094 = vld [vmem:[%s3045 + $0x180] sm:$0xff]
    %v3095 = vld [vmem:[%s3045 + $0x188] sm:$0xff]
    %v3096 = vld [vmem:[%s3045 + $0x190] sm:$0xff]
    %v3097 = vld [vmem:[%s3045 + $0x198] sm:$0xff]
    %v3098 = vld [vmem:[%s3045 + $0x1a0] sm:$0xff]
    %v3099 = vld [vmem:[%s3045 + $0x1a8] sm:$0xff]
    %v3100 = vld [vmem:[%s3045 + $0x1b0] sm:$0xff]
    %v3101 = vld [vmem:[%s3045 + $0x1b8] sm:$0xff]
    %v3102 = vld [vmem:[%s3045 + $0x1c0] sm:$0xff]
    %v3103 = vld [vmem:[%s3045 + $0x1c8] sm:$0xff]
    %v3104 = vld [vmem:[%s3045 + $0x1d0] sm:$0xff]
    %v3105 = vld [vmem:[%s3045 + $0x1d8] sm:$0xff]
    %v3106 = vld [vmem:[%s3045 + $0x1e0] sm:$0xff]
    %v3107 = vld [vmem:[%s3045 + $0x1e8] sm:$0xff]
    %v3108 = vld [vmem:[%s3045 + $0x1f0] sm:$0xff]
    %v3109 = vld [vmem:[%s3045 + $0x1f8] sm:$0xff]
    %3110 = vmatprep.subr.mxu0 %v3047
    %3111 = vmatpush1.msra.mxu0 %v3046
    %3112 = vmatprep.subr.mxu0 %v3049
    %3113 = vmatpush1.msra.mxu0 %v3048
    %3114 = vmatprep.subr.mxu0 %v3051
    %3115 = vmatpush1.msra.mxu0 %v3050
    %3116 = vmatprep.subr.mxu0 %v3053
    %3117 = vmatpush1.msra.mxu0 %v3052
    %3118 = vmatprep.subr.mxu0 %v3055
    %3119 = vmatpush1.msra.mxu0 %v3054
    %3120 = vmatprep.subr.mxu0 %v3057
    %3121 = vmatpush1.msra.mxu0 %v3056
    %3122 = vmatprep.subr.mxu0 %v3059
    %3123 = vmatpush1.msra.mxu0 %v3058
    %3124 = vmatprep.subr.mxu0 %v3061
    %3125 = vmatpush1.msra.mxu0 %v3060
    %3126 = vmatprep.subr.mxu0 %v3063
    %3127 = vmatpush1.msra.mxu0 %v3062
    %3128 = vmatprep.subr.mxu0 %v3065
    %3129 = vmatpush1.msra.mxu0 %v3064
    %3130 = vmatprep.subr.mxu0 %v3067
    %3131 = vmatpush1.msra.mxu0 %v3066
    %3132 = vmatprep.subr.mxu0 %v3069
    %3133 = vmatpush1.msra.mxu0 %v3068
    %3134 = vmatprep.subr.mxu0 %v3071
    %3135 = vmatpush1.msra.mxu0 %v3070
    %3136 = vmatprep.subr.mxu0 %v3073
    %3137 = vmatpush1.msra.mxu0 %v3072
    %3138 = vmatprep.subr.mxu0 %v3075
    %3139 = vmatpush1.msra.mxu0 %v3074
    %3140 = vmatprep.subr.mxu0 %v3077
    %3141 = vmatpush1.msra.mxu0 %v3076
    %3142 = vmatprep.subr.mxu0 %v3079
    %3143 = vmatpush1.msra.mxu0 %v3078
    %3144 = vmatprep.subr.mxu0 %v3081
    %3145 = vmatpush1.msra.mxu0 %v3080
    %3146 = vmatprep.subr.mxu0 %v3083
    %3147 = vmatpush1.msra.mxu0 %v3082
    %3148 = vmatprep.subr.mxu0 %v3085
    %3149 = vmatpush1.msra.mxu0 %v3084
    %3150 = vmatprep.subr.mxu0 %v3087
    %3151 = vmatpush1.msra.mxu0 %v3086
    %3152 = vmatprep.subr.mxu0 %v3089
    %3153 = vmatpush1.msra.mxu0 %v3088
    %3154 = vmatprep.subr.mxu0 %v3091
    %3155 = vmatpush1.msra.mxu0 %v3090
    %3156 = vmatprep.subr.mxu0 %v3093
    %3157 = vmatpush1.msra.mxu0 %v3092
    %3158 = vmatprep.subr.mxu0 %v3095
    %3159 = vmatpush1.msra.mxu0 %v3094
    %3160 = vmatprep.subr.mxu0 %v3097
    %3161 = vmatpush1.msra.mxu0 %v3096
    %3162 = vmatprep.subr.mxu0 %v3099
    %3163 = vmatpush1.msra.mxu0 %v3098
    %3164 = vmatprep.subr.mxu0 %v3101
    %3165 = vmatpush1.msra.mxu0 %v3100
    %3166 = vmatprep.subr.mxu0 %v3103
    %3167 = vmatpush1.msra.mxu0 %v3102
    %3168 = vmatprep.subr.mxu0 %v3105
    %3169 = vmatpush1.msra.mxu0 %v3104
    %3170 = vmatprep.subr.mxu0 %v3107
    %3171 = vmatpush1.msra.mxu0 %v3106
    %3172 = vmatprep.subr.mxu0 %v3109
    %3173 = vmatpush1.msra.mxu0 %v3108
    %3174 = vmatprep.mubr.f32.mxu0 %v2875
    %3175 = vmatmul.mubr.f32.gmra.mrb[0].mxu0 %v2874
    %v3176 = vpop.f32.mrb[0].mxu0
    %v3177 = vadd.f32 0.0, %v3176
    %v3178 = vpop.f32.mrb[0].mxu0
    %v3179 = vadd.f32 0.0, %v3178
    %3180 = vmatprep.mubr.f32.mxu0 %v2877
    %3181 = vmatmul.mubr.f32.gmra.mrb[0].mxu0 %v2876
    %v3182 = vpop.f32.mrb[0].mxu0
    %v3183 = vadd.f32 0.0, %v3182
    %v3184 = vpop.f32.mrb[0].mxu0
    %v3185 = vadd.f32 0.0, %v3184
    %3186 = vmatprep.mubr.f32.mxu0 %v2879
    %3187 = vmatmul.mubr.f32.gmra.mrb[0].mxu0 %v2878
    %v3188 = vpop.f32.mrb[0].mxu0
    %v3189 = vadd.f32 0.0, %v3188
    %v3190 = vpop.f32.mrb[0].mxu0
    %v3191 = vadd.f32 0.0, %v3190
    %3192 = vmatprep.mubr.f32.mxu0 %v2881
    %3193 = vmatmul.mubr.f32.gmra.mrb[0].mxu0 %v2880
    %v3194 = vpop.f32.mrb[0].mxu0
    %v3195 = vadd.f32 0.0, %v3194
    %v3196 = vpop.f32.mrb[0].mxu0
    %v3197 = vadd.f32 0.0, %v3196
    %3198 = vdwg.mxu0
    %3199 = vst [vmem:[#allocation2 + $0x40] sm:$0xff] %v3177
    %3200 = vst [vmem:[#allocation2 + $0x48] sm:$0xff] %v3179
    %3201 = vst [vmem:[#allocation2 + $0x50] sm:$0xff] %v3183
    %3202 = vst [vmem:[#allocation2 + $0x58] sm:$0xff] %v3185
    %3203 = vst [vmem:[#allocation2 + $0x60] sm:$0xff] %v3189
    %3204 = vst [vmem:[#allocation2 + $0x68] sm:$0xff] %v3191
    %3205 = vst [vmem:[#allocation2 + $0x70] sm:$0xff] %v3195
    %3206 = vst [vmem:[#allocation2 + $0x78] sm:$0xff] %v3197
    %s3207 = scalar_lea.vmem [#allocation6], 1024
    %v3208 = vld [vmem:[%s3207] sm:$0xff]
    %v3209 = vld [vmem:[%s3207 + $0x8] sm:$0xff]
    %v3210 = vld [vmem:[%s3207 + $0x10] sm:$0xff]
    %v3211 = vld [vmem:[%s3207 + $0x18] sm:$0xff]
    %v3212 = vld [vmem:[%s3207 + $0x20] sm:$0xff]
    %v3213 = vld [vmem:[%s3207 + $0x28] sm:$0xff]
    %v3214 = vld [vmem:[%s3207 + $0x30] sm:$0xff]
    %v3215 = vld [vmem:[%s3207 + $0x38] sm:$0xff]
    %v3216 = vld [vmem:[%s3207 + $0x40] sm:$0xff]
    %v3217 = vld [vmem:[%s3207 + $0x48] sm:$0xff]
    %v3218 = vld [vmem:[%s3207 + $0x50] sm:$0xff]
    %v3219 = vld [vmem:[%s3207 + $0x58] sm:$0xff]
    %v3220 = vld [vmem:[%s3207 + $0x60] sm:$0xff]
    %v3221 = vld [vmem:[%s3207 + $0x68] sm:$0xff]
    %v3222 = vld [vmem:[%s3207 + $0x70] sm:$0xff]
    %v3223 = vld [vmem:[%s3207 + $0x78] sm:$0xff]
    %v3224 = vld [vmem:[%s3207 + $0x80] sm:$0xff]
    %v3225 = vld [vmem:[%s3207 + $0x88] sm:$0xff]
    %v3226 = vld [vmem:[%s3207 + $0x90] sm:$0xff]
    %v3227 = vld [vmem:[%s3207 + $0x98] sm:$0xff]
    %v3228 = vld [vmem:[%s3207 + $0xa0] sm:$0xff]
    %v3229 = vld [vmem:[%s3207 + $0xa8] sm:$0xff]
    %v3230 = vld [vmem:[%s3207 + $0xb0] sm:$0xff]
    %v3231 = vld [vmem:[%s3207 + $0xb8] sm:$0xff]
    %v3232 = vld [vmem:[%s3207 + $0xc0] sm:$0xff]
    %v3233 = vld [vmem:[%s3207 + $0xc8] sm:$0xff]
    %v3234 = vld [vmem:[%s3207 + $0xd0] sm:$0xff]
    %v3235 = vld [vmem:[%s3207 + $0xd8] sm:$0xff]
    %v3236 = vld [vmem:[%s3207 + $0xe0] sm:$0xff]
    %v3237 = vld [vmem:[%s3207 + $0xe8] sm:$0xff]
    %v3238 = vld [vmem:[%s3207 + $0xf0] sm:$0xff]
    %v3239 = vld [vmem:[%s3207 + $0xf8] sm:$0xff]
    %v3240 = vld [vmem:[%s3207 + $0x100] sm:$0xff]
    %v3241 = vld [vmem:[%s3207 + $0x108] sm:$0xff]
    %v3242 = vld [vmem:[%s3207 + $0x110] sm:$0xff]
    %v3243 = vld [vmem:[%s3207 + $0x118] sm:$0xff]
    %v3244 = vld [vmem:[%s3207 + $0x120] sm:$0xff]
    %v3245 = vld [vmem:[%s3207 + $0x128] sm:$0xff]
    %v3246 = vld [vmem:[%s3207 + $0x130] sm:$0xff]
    %v3247 = vld [vmem:[%s3207 + $0x138] sm:$0xff]
    %v3248 = vld [vmem:[%s3207 + $0x140] sm:$0xff]
    %v3249 = vld [vmem:[%s3207 + $0x148] sm:$0xff]
    %v3250 = vld [vmem:[%s3207 + $0x150] sm:$0xff]
    %v3251 = vld [vmem:[%s3207 + $0x158] sm:$0xff]
    %v3252 = vld [vmem:[%s3207 + $0x160] sm:$0xff]
    %v3253 = vld [vmem:[%s3207 + $0x168] sm:$0xff]
    %v3254 = vld [vmem:[%s3207 + $0x170] sm:$0xff]
    %v3255 = vld [vmem:[%s3207 + $0x178] sm:$0xff]
    %v3256 = vld [vmem:[%s3207 + $0x180] sm:$0xff]
    %v3257 = vld [vmem:[%s3207 + $0x188] sm:$0xff]
    %v3258 = vld [vmem:[%s3207 + $0x190] sm:$0xff]
    %v3259 = vld [vmem:[%s3207 + $0x198] sm:$0xff]
    %v3260 = vld [vmem:[%s3207 + $0x1a0] sm:$0xff]
    %v3261 = vld [vmem:[%s3207 + $0x1a8] sm:$0xff]
    %v3262 = vld [vmem:[%s3207 + $0x1b0] sm:$0xff]
    %v3263 = vld [vmem:[%s3207 + $0x1b8] sm:$0xff]
    %v3264 = vld [vmem:[%s3207 + $0x1c0] sm:$0xff]
    %v3265 = vld [vmem:[%s3207 + $0x1c8] sm:$0xff]
    %v3266 = vld [vmem:[%s3207 + $0x1d0] sm:$0xff]
    %v3267 = vld [vmem:[%s3207 + $0x1d8] sm:$0xff]
    %v3268 = vld [vmem:[%s3207 + $0x1e0] sm:$0xff]
    %v3269 = vld [vmem:[%s3207 + $0x1e8] sm:$0xff]
    %v3270 = vld [vmem:[%s3207 + $0x1f0] sm:$0xff]
    %v3271 = vld [vmem:[%s3207 + $0x1f8] sm:$0xff]
    %3272 = vmatprep.subr.mxu0 %v3209
    %3273 = vmatpush1.msra.mxu0 %v3208
    %3274 = vmatprep.subr.mxu0 %v3211
    %3275 = vmatpush1.msra.mxu0 %v3210
    %3276 = vmatprep.subr.mxu0 %v3213
    %3277 = vmatpush1.msra.mxu0 %v3212
    %3278 = vmatprep.subr.mxu0 %v3215
    %3279 = vmatpush1.msra.mxu0 %v3214
    %3280 = vmatprep.subr.mxu0 %v3217
    %3281 = vmatpush1.msra.mxu0 %v3216
    %3282 = vmatprep.subr.mxu0 %v3219
    %3283 = vmatpush1.msra.mxu0 %v3218
    %3284 = vmatprep.subr.mxu0 %v3221
    %3285 = vmatpush1.msra.mxu0 %v3220
    %3286 = vmatprep.subr.mxu0 %v3223
    %3287 = vmatpush1.msra.mxu0 %v3222
    %3288 = vmatprep.subr.mxu0 %v3225
    %3289 = vmatpush1.msra.mxu0 %v3224
    %3290 = vmatprep.subr.mxu0 %v3227
    %3291 = vmatpush1.msra.mxu0 %v3226
    %3292 = vmatprep.subr.mxu0 %v3229
    %3293 = vmatpush1.msra.mxu0 %v3228
    %3294 = vmatprep.subr.mxu0 %v3231
    %3295 = vmatpush1.msra.mxu0 %v3230
    %3296 = vmatprep.subr.mxu0 %v3233
    %3297 = vmatpush1.msra.mxu0 %v3232
    %3298 = vmatprep.subr.mxu0 %v3235
    %3299 = vmatpush1.msra.mxu0 %v3234
    %3300 = vmatprep.subr.mxu0 %v3237
    %3301 = vmatpush1.msra.mxu0 %v3236
    %3302 = vmatprep.subr.mxu0 %v3239
    %3303 = vmatpush1.msra.mxu0 %v3238
    %3304 = vmatprep.subr.mxu0 %v3241
    %3305 = vmatpush1.msra.mxu0 %v3240
    %3306 = vmatprep.subr.mxu0 %v3243
    %3307 = vmatpush1.msra.mxu0 %v3242
    %3308 = vmatprep.subr.mxu0 %v3245
    %3309 = vmatpush1.msra.mxu0 %v3244
    %3310 = vmatprep.subr.mxu0 %v3247
    %3311 = vmatpush1.msra.mxu0 %v3246
    %3312 = vmatprep.subr.mxu0 %v3249
    %3313 = vmatpush1.msra.mxu0 %v3248
    %3314 = vmatprep.subr.mxu0 %v3251
    %3315 = vmatpush1.msra.mxu0 %v3250
    %3316 = vmatprep.subr.mxu0 %v3253
    %3317 = vmatpush1.msra.mxu0 %v3252
    %3318 = vmatprep.subr.mxu0 %v3255
    %3319 = vmatpush1.msra.mxu0 %v3254
    %3320 = vmatprep.subr.mxu0 %v3257
    %3321 = vmatpush1.msra.mxu0 %v3256
    %3322 = vmatprep.subr.mxu0 %v3259
    %3323 = vmatpush1.msra.mxu0 %v3258
    %3324 = vmatprep.subr.mxu0 %v3261
    %3325 = vmatpush1.msra.mxu0 %v3260
    %3326 = vmatprep.subr.mxu0 %v3263
    %3327 = vmatpush1.msra.mxu0 %v3262
    %3328 = vmatprep.subr.mxu0 %v3265
    %3329 = vmatpush1.msra.mxu0 %v3264
    %3330 = vmatprep.subr.mxu0 %v3267
    %3331 = vmatpush1.msra.mxu0 %v3266
    %3332 = vmatprep.subr.mxu0 %v3269
    %3333 = vmatpush1.msra.mxu0 %v3268
    %3334 = vmatprep.subr.mxu0 %v3271
    %3335 = vmatpush1.msra.mxu0 %v3270
    %3336 = vmatprep.mubr.f32.mxu0 %v2875
    %3337 = vmatmul.mubr.f32.gmra.mrb[0].mxu0 %v2874
    %v3338 = vpop.f32.mrb[0].mxu0
    %v3339 = vadd.f32 0.0, %v3338
    %v3340 = vpop.f32.mrb[0].mxu0
    %v3341 = vadd.f32 0.0, %v3340
    %3342 = vmatprep.mubr.f32.mxu0 %v2877
    %3343 = vmatmul.mubr.f32.gmra.mrb[0].mxu0 %v2876
    %v3344 = vpop.f32.mrb[0].mxu0
    %v3345 = vadd.f32 0.0, %v3344
    %v3346 = vpop.f32.mrb[0].mxu0
    %v3347 = vadd.f32 0.0, %v3346
    %3348 = vmatprep.mubr.f32.mxu0 %v2879
    %3349 = vmatmul.mubr.f32.gmra.mrb[0].mxu0 %v2878
    %v3350 = vpop.f32.mrb[0].mxu0
    %v3351 = vadd.f32 0.0, %v3350
    %v3352 = vpop.f32.mrb[0].mxu0
    %v3353 = vadd.f32 0.0, %v3352
    %3354 = vmatprep.mubr.f32.mxu0 %v2881
    %3355 = vmatmul.mubr.f32.gmra.mrb[0].mxu0 %v2880
    %v3356 = vpop.f32.mrb[0].mxu0
    %v3357 = vadd.f32 0.0, %v3356
    %v3358 = vpop.f32.mrb[0].mxu0
    %v3359 = vadd.f32 0.0, %v3358
    %3360 = vdwg.mxu0
    %3361 = vst [vmem:[#allocation2 + $0x80] sm:$0xff] %v3339
    %3362 = vst [vmem:[#allocation2 + $0x88] sm:$0xff] %v3341
    %3363 = vst [vmem:[#allocation2 + $0x90] sm:$0xff] %v3345
    %3364 = vst [vmem:[#allocation2 + $0x98] sm:$0xff] %v3347
    %3365 = vst [vmem:[#allocation2 + $0xa0] sm:$0xff] %v3351
    %3366 = vst [vmem:[#allocation2 + $0xa8] sm:$0xff] %v3353
    %3367 = vst [vmem:[#allocation2 + $0xb0] sm:$0xff] %v3357
    %3368 = vst [vmem:[#allocation2 + $0xb8] sm:$0xff] %v3359
    %s3369 = scalar_lea.vmem [#allocation6], 1536
    %v3370 = vld [vmem:[%s3369] sm:$0xff]
    %v3371 = vld [vmem:[%s3369 + $0x8] sm:$0xff]
    %v3372 = vld [vmem:[%s3369 + $0x10] sm:$0xff]
    %v3373 = vld [vmem:[%s3369 + $0x18] sm:$0xff]
    %v3374 = vld [vmem:[%s3369 + $0x20] sm:$0xff]
    %v3375 = vld [vmem:[%s3369 + $0x28] sm:$0xff]
    %v3376 = vld [vmem:[%s3369 + $0x30] sm:$0xff]
    %v3377 = vld [vmem:[%s3369 + $0x38] sm:$0xff]
    %v3378 = vld [vmem:[%s3369 + $0x40] sm:$0xff]
    %v3379 = vld [vmem:[%s3369 + $0x48] sm:$0xff]
    %v3380 = vld [vmem:[%s3369 + $0x50] sm:$0xff]
    %v3381 = vld [vmem:[%s3369 + $0x58] sm:$0xff]
    %v3382 = vld [vmem:[%s3369 + $0x60] sm:$0xff]
    %v3383 = vld [vmem:[%s3369 + $0x68] sm:$0xff]
    %v3384 = vld [vmem:[%s3369 + $0x70] sm:$0xff]
    %v3385 = vld [vmem:[%s3369 + $0x78] sm:$0xff]
    %v3386 = vld [vmem:[%s3369 + $0x80] sm:$0xff]
    %v3387 = vld [vmem:[%s3369 + $0x88] sm:$0xff]
    %v3388 = vld [vmem:[%s3369 + $0x90] sm:$0xff]
    %v3389 = vld [vmem:[%s3369 + $0x98] sm:$0xff]
    %v3390 = vld [vmem:[%s3369 + $0xa0] sm:$0xff]
    %v3391 = vld [vmem:[%s3369 + $0xa8] sm:$0xff]
    %v3392 = vld [vmem:[%s3369 + $0xb0] sm:$0xff]
    %v3393 = vld [vmem:[%s3369 + $0xb8] sm:$0xff]
    %v3394 = vld [vmem:[%s3369 + $0xc0] sm:$0xff]
    %v3395 = vld [vmem:[%s3369 + $0xc8] sm:$0xff]
    %v3396 = vld [vmem:[%s3369 + $0xd0] sm:$0xff]
    %v3397 = vld [vmem:[%s3369 + $0xd8] sm:$0xff]
    %v3398 = vld [vmem:[%s3369 + $0xe0] sm:$0xff]
    %v3399 = vld [vmem:[%s3369 + $0xe8] sm:$0xff]
    %v3400 = vld [vmem:[%s3369 + $0xf0] sm:$0xff]
    %v3401 = vld [vmem:[%s3369 + $0xf8] sm:$0xff]
    %v3402 = vld [vmem:[%s3369 + $0x100] sm:$0xff]
    %v3403 = vld [vmem:[%s3369 + $0x108] sm:$0xff]
    %v3404 = vld [vmem:[%s3369 + $0x110] sm:$0xff]
    %v3405 = vld [vmem:[%s3369 + $0x118] sm:$0xff]
    %v3406 = vld [vmem:[%s3369 + $0x120] sm:$0xff]
    %v3407 = vld [vmem:[%s3369 + $0x128] sm:$0xff]
    %v3408 = vld [vmem:[%s3369 + $0x130] sm:$0xff]
    %v3409 = vld [vmem:[%s3369 + $0x138] sm:$0xff]
    %v3410 = vld [vmem:[%s3369 + $0x140] sm:$0xff]
    %v3411 = vld [vmem:[%s3369 + $0x148] sm:$0xff]
    %v3412 = vld [vmem:[%s3369 + $0x150] sm:$0xff]
    %v3413 = vld [vmem:[%s3369 + $0x158] sm:$0xff]
    %v3414 = vld [vmem:[%s3369 + $0x160] sm:$0xff]
    %v3415 = vld [vmem:[%s3369 + $0x168] sm:$0xff]
    %v3416 = vld [vmem:[%s3369 + $0x170] sm:$0xff]
    %v3417 = vld [vmem:[%s3369 + $0x178] sm:$0xff]
    %v3418 = vld [vmem:[%s3369 + $0x180] sm:$0xff]
    %v3419 = vld [vmem:[%s3369 + $0x188] sm:$0xff]
    %v3420 = vld [vmem:[%s3369 + $0x190] sm:$0xff]
    %v3421 = vld [vmem:[%s3369 + $0x198] sm:$0xff]
    %v3422 = vld [vmem:[%s3369 + $0x1a0] sm:$0xff]
    %v3423 = vld [vmem:[%s3369 + $0x1a8] sm:$0xff]
    %v3424 = vld [vmem:[%s3369 + $0x1b0] sm:$0xff]
    %v3425 = vld [vmem:[%s3369 + $0x1b8] sm:$0xff]
    %v3426 = vld [vmem:[%s3369 + $0x1c0] sm:$0xff]
    %v3427 = vld [vmem:[%s3369 + $0x1c8] sm:$0xff]
    %v3428 = vld [vmem:[%s3369 + $0x1d0] sm:$0xff]
    %v3429 = vld [vmem:[%s3369 + $0x1d8] sm:$0xff]
    %v3430 = vld [vmem:[%s3369 + $0x1e0] sm:$0xff]
    %v3431 = vld [vmem:[%s3369 + $0x1e8] sm:$0xff]
    %v3432 = vld [vmem:[%s3369 + $0x1f0] sm:$0xff]
    %v3433 = vld [vmem:[%s3369 + $0x1f8] sm:$0xff]
    %3434 = vmatprep.subr.mxu0 %v3371
    %3435 = vmatpush1.msra.mxu0 %v3370
    %3436 = vmatprep.subr.mxu0 %v3373
    %3437 = vmatpush1.msra.mxu0 %v3372
    %3438 = vmatprep.subr.mxu0 %v3375
    %3439 = vmatpush1.msra.mxu0 %v3374
    %3440 = vmatprep.subr.mxu0 %v3377
    %3441 = vmatpush1.msra.mxu0 %v3376
    %3442 = vmatprep.subr.mxu0 %v3379
    %3443 = vmatpush1.msra.mxu0 %v3378
    %3444 = vmatprep.subr.mxu0 %v3381
    %3445 = vmatpush1.msra.mxu0 %v3380
    %3446 = vmatprep.subr.mxu0 %v3383
    %3447 = vmatpush1.msra.mxu0 %v3382
    %3448 = vmatprep.subr.mxu0 %v3385
    %3449 = vmatpush1.msra.mxu0 %v3384
    %3450 = vmatprep.subr.mxu0 %v3387
    %3451 = vmatpush1.msra.mxu0 %v3386
    %3452 = vmatprep.subr.mxu0 %v3389
    %3453 = vmatpush1.msra.mxu0 %v3388
    %3454 = vmatprep.subr.mxu0 %v3391
    %3455 = vmatpush1.msra.mxu0 %v3390
    %3456 = vmatprep.subr.mxu0 %v3393
    %3457 = vmatpush1.msra.mxu0 %v3392
    %3458 = vmatprep.subr.mxu0 %v3395
    %3459 = vmatpush1.msra.mxu0 %v3394
    %3460 = vmatprep.subr.mxu0 %v3397
    %3461 = vmatpush1.msra.mxu0 %v3396
    %3462 = vmatprep.subr.mxu0 %v3399
    %3463 = vmatpush1.msra.mxu0 %v3398
    %3464 = vmatprep.subr.mxu0 %v3401
    %3465 = vmatpush1.msra.mxu0 %v3400
    %3466 = vmatprep.subr.mxu0 %v3403
    %3467 = vmatpush1.msra.mxu0 %v3402
    %3468 = vmatprep.subr.mxu0 %v3405
    %3469 = vmatpush1.msra.mxu0 %v3404
    %3470 = vmatprep.subr.mxu0 %v3407
    %3471 = vmatpush1.msra.mxu0 %v3406
    %3472 = vmatprep.subr.mxu0 %v3409
    %3473 = vmatpush1.msra.mxu0 %v3408
    %3474 = vmatprep.subr.mxu0 %v3411
    %3475 = vmatpush1.msra.mxu0 %v3410
    %3476 = vmatprep.subr.mxu0 %v3413
    %3477 = vmatpush1.msra.mxu0 %v3412
    %3478 = vmatprep.subr.mxu0 %v3415
    %3479 = vmatpush1.msra.mxu0 %v3414
    %3480 = vmatprep.subr.mxu0 %v3417
    %3481 = vmatpush1.msra.mxu0 %v3416
    %3482 = vmatprep.subr.mxu0 %v3419
    %3483 = vmatpush1.msra.mxu0 %v3418
    %3484 = vmatprep.subr.mxu0 %v3421
    %3485 = vmatpush1.msra.mxu0 %v3420
    %3486 = vmatprep.subr.mxu0 %v3423
    %3487 = vmatpush1.msra.mxu0 %v3422
    %3488 = vmatprep.subr.mxu0 %v3425
    %3489 = vmatpush1.msra.mxu0 %v3424
    %3490 = vmatprep.subr.mxu0 %v3427
    %3491 = vmatpush1.msra.mxu0 %v3426
    %3492 = vmatprep.subr.mxu0 %v3429
    %3493 = vmatpush1.msra.mxu0 %v3428
    %3494 = vmatprep.subr.mxu0 %v3431
    %3495 = vmatpush1.msra.mxu0 %v3430
    %3496 = vmatprep.subr.mxu0 %v3433
    %3497 = vmatpush1.msra.mxu0 %v3432
    %3498 = vmatprep.mubr.f32.mxu0 %v2875
    %3499 = vmatmul.mubr.f32.gmra.mrb[0].mxu0 %v2874
    %v3500 = vpop.f32.mrb[0].mxu0
    %v3501 = vadd.f32 0.0, %v3500
    %v3502 = vpop.f32.mrb[0].mxu0
    %v3503 = vadd.f32 0.0, %v3502
    %3504 = vmatprep.mubr.f32.mxu0 %v2877
    %3505 = vmatmul.mubr.f32.gmra.mrb[0].mxu0 %v2876
    %v3506 = vpop.f32.mrb[0].mxu0
    %v3507 = vadd.f32 0.0, %v3506
    %v3508 = vpop.f32.mrb[0].mxu0
    %v3509 = vadd.f32 0.0, %v3508
    %3510 = vmatprep.mubr.f32.mxu0 %v2879
    %3511 = vmatmul.mubr.f32.gmra.mrb[0].mxu0 %v2878
    %v3512 = vpop.f32.mrb[0].mxu0
    %v3513 = vadd.f32 0.0, %v3512
    %v3514 = vpop.f32.mrb[0].mxu0
    %v3515 = vadd.f32 0.0, %v3514
    %3516 = vmatprep.mubr.f32.mxu0 %v2881
    %3517 = vmatmul.mubr.f32.gmra.mrb[0].mxu0 %v2880
    %v3518 = vpop.f32.mrb[0].mxu0
    %v3519 = vadd.f32 0.0, %v3518
    %v3520 = vpop.f32.mrb[0].mxu0
    %v3521 = vadd.f32 0.0, %v3520
    %3522 = vdwg.mxu0
    %3523 = vst [vmem:[#allocation2 + $0xc0] sm:$0xff] %v3501
    %3524 = vst [vmem:[#allocation2 + $0xc8] sm:$0xff] %v3503
    %3525 = vst [vmem:[#allocation2 + $0xd0] sm:$0xff] %v3507
    %3526 = vst [vmem:[#allocation2 + $0xd8] sm:$0xff] %v3509
    %3527 = vst [vmem:[#allocation2 + $0xe0] sm:$0xff] %v3513
    %3528 = vst [vmem:[#allocation2 + $0xe8] sm:$0xff] %v3515
    %3529 = vst [vmem:[#allocation2 + $0xf0] sm:$0xff] %v3519
    %3530 = vst [vmem:[#allocation2 + $0xf8] sm:$0xff] %v3521
    %v3531 = vld [vmem:[#allocation11] sm:$0xff]
    %v3532 = vld [vmem:[#allocation11 + $0x8] sm:$0xff]
    %v3533 = vld [vmem:[#allocation11 + $0x10] sm:$0xff]
    %v3534 = vld [vmem:[#allocation11 + $0x18] sm:$0xff]
    %v3535 = vld [vmem:[#allocation11 + $0x20] sm:$0xff]
    %v3536 = vld [vmem:[#allocation11 + $0x28] sm:$0xff]
    %v3537 = vld [vmem:[#allocation11 + $0x30] sm:$0xff]
    %v3538 = vld [vmem:[#allocation11 + $0x38] sm:$0xff]
    %v3539 = vld [vmem:[#allocation2] sm:$0xff]
    %v3540 = vld [vmem:[#allocation2 + $0x8] sm:$0xff]
    %v3541 = vld [vmem:[#allocation2 + $0x10] sm:$0xff]
    %v3542 = vld [vmem:[#allocation2 + $0x18] sm:$0xff]
    %v3543 = vld [vmem:[#allocation2 + $0x20] sm:$0xff]
    %v3544 = vld [vmem:[#allocation2 + $0x28] sm:$0xff]
    %v3545 = vld [vmem:[#allocation2 + $0x30] sm:$0xff]
    %v3546 = vld [vmem:[#allocation2 + $0x38] sm:$0xff]
    %v3547 = vld [vmem:[#allocation2 + $0x40] sm:$0xff]
    %v3548 = vld [vmem:[#allocation2 + $0x48] sm:$0xff]
    %v3549 = vld [vmem:[#allocation2 + $0x50] sm:$0xff]
    %v3550 = vld [vmem:[#allocation2 + $0x58] sm:$0xff]
    %v3551 = vld [vmem:[#allocation2 + $0x60] sm:$0xff]
    %v3552 = vld [vmem:[#allocation2 + $0x68] sm:$0xff]
    %v3553 = vld [vmem:[#allocation2 + $0x70] sm:$0xff]
    %v3554 = vld [vmem:[#allocation2 + $0x78] sm:$0xff]
    %v3555 = vld [vmem:[#allocation2 + $0x80] sm:$0xff]
    %v3556 = vld [vmem:[#allocation2 + $0x88] sm:$0xff]
    %v3557 = vld [vmem:[#allocation2 + $0x90] sm:$0xff]
    %v3558 = vld [vmem:[#allocation2 + $0x98] sm:$0xff]
    %v3559 = vld [vmem:[#allocation2 + $0xa0] sm:$0xff]
    %v3560 = vld [vmem:[#allocation2 + $0xa8] sm:$0xff]
    %v3561 = vld [vmem:[#allocation2 + $0xb0] sm:$0xff]
    %v3562 = vld [vmem:[#allocation2 + $0xb8] sm:$0xff]
    %v3563 = vld [vmem:[#allocation2 + $0xc0] sm:$0xff]
    %v3564 = vld [vmem:[#allocation2 + $0xc8] sm:$0xff]
    %v3565 = vld [vmem:[#allocation2 + $0xd0] sm:$0xff]
    %v3566 = vld [vmem:[#allocation2 + $0xd8] sm:$0xff]
    %v3567 = vld [vmem:[#allocation2 + $0xe0] sm:$0xff]
    %v3568 = vld [vmem:[#allocation2 + $0xe8] sm:$0xff]
    %v3569 = vld [vmem:[#allocation2 + $0xf0] sm:$0xff]
    %v3570 = vld [vmem:[#allocation2 + $0xf8] sm:$0xff]
    %3571 = vmatprep.subr.mxu0 %v3540
    %3572 = vmatpush1.msra.mxu0 %v3539
    %3573 = vmatprep.subr.mxu0 %v3542
    %3574 = vmatpush1.msra.mxu0 %v3541
    %3575 = vmatprep.subr.mxu0 %v3544
    %3576 = vmatpush1.msra.mxu0 %v3543
    %3577 = vmatprep.subr.mxu0 %v3546
    %3578 = vmatpush1.msra.mxu0 %v3545
    %3579 = vmatprep.subr.mxu0 %v3548
    %3580 = vmatpush1.msra.mxu0 %v3547
    %3581 = vmatprep.subr.mxu0 %v3550
    %3582 = vmatpush1.msra.mxu0 %v3549
    %3583 = vmatprep.subr.mxu0 %v3552
    %3584 = vmatpush1.msra.mxu0 %v3551
    %3585 = vmatprep.subr.mxu0 %v3554
    %3586 = vmatpush1.msra.mxu0 %v3553
    %3587 = vmatprep.subr.mxu0 %v3556
    %3588 = vmatpush1.msra.mxu0 %v3555
    %3589 = vmatprep.subr.mxu0 %v3558
    %3590 = vmatpush1.msra.mxu0 %v3557
    %3591 = vmatprep.subr.mxu0 %v3560
    %3592 = vmatpush1.msra.mxu0 %v3559
    %3593 = vmatprep.subr.mxu0 %v3562
    %3594 = vmatpush1.msra.mxu0 %v3561
    %3595 = vmatprep.subr.mxu0 %v3564
    %3596 = vmatpush1.msra.mxu0 %v3563
    %3597 = vmatprep.subr.mxu0 %v3566
    %3598 = vmatpush1.msra.mxu0 %v3565
    %3599 = vmatprep.subr.mxu0 %v3568
    %3600 = vmatpush1.msra.mxu0 %v3567
    %3601 = vmatprep.subr.mxu0 %v3570
    %3602 = vmatpush1.msra.mxu0 %v3569
    %3603 = vmatprep.subr.mxu0 0.0
    %3604 = vmatpush1.msra.mxu0 0.0
    %3605 = vmatprep.subr.mxu0 0.0
    %3606 = vmatpush1.msra.mxu0 0.0
    %3607 = vmatprep.subr.mxu0 0.0
    %3608 = vmatpush1.msra.mxu0 0.0
    %3609 = vmatprep.subr.mxu0 0.0
    %3610 = vmatpush1.msra.mxu0 0.0
    %3611 = vmatprep.subr.mxu0 0.0
    %3612 = vmatpush1.msra.mxu0 0.0
    %3613 = vmatprep.subr.mxu0 0.0
    %3614 = vmatpush1.msra.mxu0 0.0
    %3615 = vmatprep.subr.mxu0 0.0
    %3616 = vmatpush1.msra.mxu0 0.0
    %3617 = vmatprep.subr.mxu0 0.0
    %3618 = vmatpush1.msra.mxu0 0.0
    %3619 = vmatprep.subr.mxu0 0.0
    %3620 = vmatpush1.msra.mxu0 0.0
    %3621 = vmatprep.subr.mxu0 0.0
    %3622 = vmatpush1.msra.mxu0 0.0
    %3623 = vmatprep.subr.mxu0 0.0
    %3624 = vmatpush1.msra.mxu0 0.0
    %3625 = vmatprep.subr.mxu0 0.0
    %3626 = vmatpush1.msra.mxu0 0.0
    %3627 = vmatprep.subr.mxu0 0.0
    %3628 = vmatpush1.msra.mxu0 0.0
    %3629 = vmatprep.subr.mxu0 0.0
    %3630 = vmatpush1.msra.mxu0 0.0
    %3631 = vmatprep.subr.mxu0 0.0
    %3632 = vmatpush1.msra.mxu0 0.0
    %3633 = vmatprep.subr.mxu0 0.0
    %3634 = vmatpush1.msra.mxu0 0.0
    %3635 = vmatprep.mubr.f32.mxu0 0.0
    %3636 = vmatmul.mubr.f32.gmra.mrb[0].mxu0 %v3531
    %v3637 = vpop.f32.mrb[0].mxu0
    %v3638 = vadd.f32 0.0, %v3637
    %v3639 = vpop.f32.mrb[0].mxu0
    %v3640 = vadd.f32 0.0, %v3639
    %3641 = vmatprep.mubr.f32.mxu0 0.0
    %3642 = vmatmul.mubr.f32.gmra.mrb[0].mxu0 %v3532
    %v3643 = vpop.f32.mrb[0].mxu0
    %v3644 = vadd.f32 0.0, %v3643
    %v3645 = vpop.f32.mrb[0].mxu0
    %v3646 = vadd.f32 0.0, %v3645
    %3647 = vmatprep.mubr.f32.mxu0 0.0
    %3648 = vmatmul.mubr.f32.gmra.mrb[0].mxu0 %v3533
    %v3649 = vpop.f32.mrb[0].mxu0
    %v3650 = vadd.f32 0.0, %v3649
    %v3651 = vpop.f32.mrb[0].mxu0
    %v3652 = vadd.f32 0.0, %v3651
    %3653 = vmatprep.mubr.f32.mxu0 0.0
    %3654 = vmatmul.mubr.f32.gmra.mrb[0].mxu0 %v3534
    %v3655 = vpop.f32.mrb[0].mxu0
    %v3656 = vadd.f32 0.0, %v3655
    %v3657 = vpop.f32.mrb[0].mxu0
    %v3658 = vadd.f32 0.0, %v3657
    %3659 = vmatprep.mubr.f32.mxu0 0.0
    %3660 = vmatmul.mubr.f32.gmra.mrb[0].mxu0 %v3535
    %v3661 = vpop.f32.mrb[0].mxu0
    %v3662 = vadd.f32 0.0, %v3661
    %v3663 = vpop.f32.mrb[0].mxu0
    %v3664 = vadd.f32 0.0, %v3663
    %3665 = vmatprep.mubr.f32.mxu0 0.0
    %3666 = vmatmul.mubr.f32.gmra.mrb[0].mxu0 %v3536
    %v3667 = vpop.f32.mrb[0].mxu0
    %v3668 = vadd.f32 0.0, %v3667
    %v3669 = vpop.f32.mrb[0].mxu0
    %v3670 = vadd.f32 0.0, %v3669
    %3671 = vmatprep.mubr.f32.mxu0 0.0
    %3672 = vmatmul.mubr.f32.gmra.mrb[0].mxu0 %v3537
    %v3673 = vpop.f32.mrb[0].mxu0
    %v3674 = vadd.f32 0.0, %v3673
    %v3675 = vpop.f32.mrb[0].mxu0
    %v3676 = vadd.f32 0.0, %v3675
    %3677 = vmatprep.mubr.f32.mxu0 0.0
    %3678 = vmatmul.mubr.f32.gmra.mrb[0].mxu0 %v3538
    %v3679 = vpop.f32.mrb[0].mxu0
    %v3680 = vadd.f32 0.0, %v3679
    %v3681 = vpop.f32.mrb[0].mxu0
    %v3682 = vadd.f32 0.0, %v3681
    %3683 = vdwg.mxu0
    %v3684 = vadd.f32 %v3638, %v3644
    %v3685 = vadd.f32 %v3684, %v3650
    %v3686 = vadd.f32 %v3685, %v3656
    %v3687 = vadd.f32 %v3686, %v3662
    %v3688 = vadd.f32 %v3687, %v3668
    %v3689 = vadd.f32 %v3688, %v3674
    %v3690 = vadd.f32 %v3689, %v3680
    %v3691 = vrot.slane %v3690, 4
    %v3692 = vadd.f32 %v3690, %v3691
    %v3693 = vrot.slane %v3692, 2
    %v3694 = vadd.f32 %v3692, %v3693
    %v3695 = vrot.slane %v3694, 1
    %v3696 = vadd.f32 %v3694, %v3695
    %v3697 = vadd.f32 %v3640, %v3646
    %v3698 = vadd.f32 %v3697, %v3652
    %v3699 = vadd.f32 %v3698, %v3658
    %v3700 = vadd.f32 %v3699, %v3664
    %v3701 = vadd.f32 %v3700, %v3670
    %v3702 = vadd.f32 %v3701, %v3676
    %v3703 = vadd.f32 %v3702, %v3682
    %v3704 = vrot.slane %v3703, 4
    %v3705 = vadd.f32 %v3703, %v3704
    %v3706 = vrot.slane %v3705, 2
    %v3707 = vadd.f32 %v3705, %v3706
    %v3708 = vrot.slane %v3707, 1
    %v3709 = vadd.f32 %v3707, %v3708
    %v3710 = vmul.f32 %v3638, %v3638
    %v3711 = vmul.f32 %v3640, %v3640
    %v3712 = vmul.f32 %v3644, %v3644
    %v3713 = vmul.f32 %v3646, %v3646
    %v3714 = vmul.f32 %v3650, %v3650
    %v3715 = vmul.f32 %v3652, %v3652
    %v3716 = vmul.f32 %v3656, %v3656
    %v3717 = vmul.f32 %v3658, %v3658
    %v3718 = vmul.f32 %v3662, %v3662
    %v3719 = vmul.f32 %v3664, %v3664
    %v3720 = vmul.f32 %v3668, %v3668
    %v3721 = vmul.f32 %v3670, %v3670
    %v3722 = vmul.f32 %v3674, %v3674
    %v3723 = vmul.f32 %v3676, %v3676
    %v3724 = vmul.f32 %v3680, %v3680
    %v3725 = vmul.f32 %v3682, %v3682
    %v3726 = vadd.f32 %v3710, %v3712
    %v3727 = vadd.f32 %v3726, %v3714
    %v3728 = vadd.f32 %v3727, %v3716
    %v3729 = vadd.f32 %v3728, %v3718
    %v3730 = vadd.f32 %v3729, %v3720
    %v3731 = vadd.f32 %v3730, %v3722
    %v3732 = vadd.f32 %v3731, %v3724
    %v3733 = vrot.slane %v3732, 4
    %v3734 = vadd.f32 %v3732, %v3733
    %v3735 = vrot.slane %v3734, 2
    %v3736 = vadd.f32 %v3734, %v3735
    %v3737 = vrot.slane %v3736, 1
    %v3738 = vadd.f32 %v3736, %v3737
    %v3739 = vadd.f32 %v3711, %v3713
    %v3740 = vadd.f32 %v3739, %v3715
    %v3741 = vadd.f32 %v3740, %v3717
    %v3742 = vadd.f32 %v3741, %v3719
    %v3743 = vadd.f32 %v3742, %v3721
    %v3744 = vadd.f32 %v3743, %v3723
    %v3745 = vadd.f32 %v3744, %v3725
    %v3746 = vrot.slane %v3745, 4
    %v3747 = vadd.f32 %v3745, %v3746
    %v3748 = vrot.slane %v3747, 2
    %v3749 = vadd.f32 %v3747, %v3748
    %v3750 = vrot.slane %v3749, 1
    %v3751 = vadd.f32 %v3749, %v3750
    %v3752 = vsel %vm745, %v3696, %v3738
    %v3753 = vsel %vm745, %v3709, %v3751
    %v3754 = vld [vmem:[#allocation19] sm:$0xff]
    %v3755 = vld [vmem:[#allocation19 + $0x8] sm:$0xff]
    %v3756 = vld [vmem:[#allocation19 + $0x10] sm:$0xff]
    %v3757 = vld [vmem:[#allocation19 + $0x18] sm:$0xff]
    %v3758 = vld [vmem:[#allocation19 + $0x20] sm:$0xff]
    %v3759 = vld [vmem:[#allocation19 + $0x28] sm:$0xff]
    %v3760 = vld [vmem:[#allocation19 + $0x30] sm:$0xff]
    %v3761 = vld [vmem:[#allocation19 + $0x38] sm:$0xff]
    %v3762 = vld [vmem:[#allocation19 + $0x40] sm:$0xff]
    %v3763 = vld [vmem:[#allocation19 + $0x48] sm:$0xff]
    %v3764 = vld [vmem:[#allocation19 + $0x50] sm:$0xff]
    %v3765 = vld [vmem:[#allocation19 + $0x58] sm:$0xff]
    %v3766 = vld [vmem:[#allocation19 + $0x60] sm:$0xff]
    %v3767 = vld [vmem:[#allocation19 + $0x68] sm:$0xff]
    %v3768 = vld [vmem:[#allocation19 + $0x70] sm:$0xff]
    %v3769 = vld [vmem:[#allocation19 + $0x78] sm:$0xff]
    %v3770 = vld [vmem:[#allocation19 + $0x80] sm:$0xff]
    %v3771 = vld [vmem:[#allocation19 + $0x88] sm:$0xff]
    %v3772 = vld [vmem:[#allocation19 + $0x90] sm:$0xff]
    %v3773 = vld [vmem:[#allocation19 + $0x98] sm:$0xff]
    %v3774 = vld [vmem:[#allocation19 + $0xa0] sm:$0xff]
    %v3775 = vld [vmem:[#allocation19 + $0xa8] sm:$0xff]
    %v3776 = vld [vmem:[#allocation19 + $0xb0] sm:$0xff]
    %v3777 = vld [vmem:[#allocation19 + $0xb8] sm:$0xff]
    %v3778 = vld [vmem:[#allocation19 + $0xc0] sm:$0xff]
    %v3779 = vld [vmem:[#allocation19 + $0xc8] sm:$0xff]
    %v3780 = vld [vmem:[#allocation19 + $0xd0] sm:$0xff]
    %v3781 = vld [vmem:[#allocation19 + $0xd8] sm:$0xff]
    %v3782 = vld [vmem:[#allocation19 + $0xe0] sm:$0xff]
    %v3783 = vld [vmem:[#allocation19 + $0xe8] sm:$0xff]
    %v3784 = vld [vmem:[#allocation19 + $0xf0] sm:$0xff]
    %v3785 = vld [vmem:[#allocation19 + $0xf8] sm:$0xff]
    %v3786 = vld [vmem:[#allocation19 + $0x100] sm:$0xff]
    %v3787 = vld [vmem:[#allocation19 + $0x108] sm:$0xff]
    %v3788 = vld [vmem:[#allocation19 + $0x110] sm:$0xff]
    %v3789 = vld [vmem:[#allocation19 + $0x118] sm:$0xff]
    %v3790 = vld [vmem:[#allocation19 + $0x120] sm:$0xff]
    %v3791 = vld [vmem:[#allocation19 + $0x128] sm:$0xff]
    %v3792 = vld [vmem:[#allocation19 + $0x130] sm:$0xff]
    %v3793 = vld [vmem:[#allocation19 + $0x138] sm:$0xff]
    %v3794 = vld [vmem:[#allocation19 + $0x140] sm:$0xff]
    %v3795 = vld [vmem:[#allocation19 + $0x148] sm:$0xff]
    %v3796 = vld [vmem:[#allocation19 + $0x150] sm:$0xff]
    %v3797 = vld [vmem:[#allocation19 + $0x158] sm:$0xff]
    %v3798 = vld [vmem:[#allocation19 + $0x160] sm:$0xff]
    %v3799 = vld [vmem:[#allocation19 + $0x168] sm:$0xff]
    %v3800 = vld [vmem:[#allocation19 + $0x170] sm:$0xff]
    %v3801 = vld [vmem:[#allocation19 + $0x178] sm:$0xff]
    %v3802 = vld [vmem:[#allocation19 + $0x180] sm:$0xff]
    %v3803 = vld [vmem:[#allocation19 + $0x188] sm:$0xff]
    %v3804 = vld [vmem:[#allocation19 + $0x190] sm:$0xff]
    %v3805 = vld [vmem:[#allocation19 + $0x198] sm:$0xff]
    %v3806 = vld [vmem:[#allocation19 + $0x1a0] sm:$0xff]
    %v3807 = vld [vmem:[#allocation19 + $0x1a8] sm:$0xff]
    %v3808 = vld [vmem:[#allocation19 + $0x1b0] sm:$0xff]
    %v3809 = vld [vmem:[#allocation19 + $0x1b8] sm:$0xff]
    %v3810 = vld [vmem:[#allocation19 + $0x1c0] sm:$0xff]
    %v3811 = vld [vmem:[#allocation19 + $0x1c8] sm:$0xff]
    %v3812 = vld [vmem:[#allocation19 + $0x1d0] sm:$0xff]
    %v3813 = vld [vmem:[#allocation19 + $0x1d8] sm:$0xff]
    %v3814 = vld [vmem:[#allocation19 + $0x1e0] sm:$0xff]
    %v3815 = vld [vmem:[#allocation19 + $0x1e8] sm:$0xff]
    %v3816 = vld [vmem:[#allocation19 + $0x1f0] sm:$0xff]
    %v3817 = vld [vmem:[#allocation19 + $0x1f8] sm:$0xff]
    %3818 = vmatprep.subr.mxu0 %v3755
    %3819 = vmatpush1.msra.mxu0 %v3754
    %3820 = vmatprep.subr.mxu0 %v3757
    %3821 = vmatpush1.msra.mxu0 %v3756
    %3822 = vmatprep.subr.mxu0 %v3759
    %3823 = vmatpush1.msra.mxu0 %v3758
    %3824 = vmatprep.subr.mxu0 %v3761
    %3825 = vmatpush1.msra.mxu0 %v3760
    %3826 = vmatprep.subr.mxu0 %v3763
    %3827 = vmatpush1.msra.mxu0 %v3762
    %3828 = vmatprep.subr.mxu0 %v3765
    %3829 = vmatpush1.msra.mxu0 %v3764
    %3830 = vmatprep.subr.mxu0 %v3767
    %3831 = vmatpush1.msra.mxu0 %v3766
    %3832 = vmatprep.subr.mxu0 %v3769
    %3833 = vmatpush1.msra.mxu0 %v3768
    %3834 = vmatprep.subr.mxu0 %v3771
    %3835 = vmatpush1.msra.mxu0 %v3770
    %3836 = vmatprep.subr.mxu0 %v3773
    %3837 = vmatpush1.msra.mxu0 %v3772
    %3838 = vmatprep.subr.mxu0 %v3775
    %3839 = vmatpush1.msra.mxu0 %v3774
    %3840 = vmatprep.subr.mxu0 %v3777
    %3841 = vmatpush1.msra.mxu0 %v3776
    %3842 = vmatprep.subr.mxu0 %v3779
    %3843 = vmatpush1.msra.mxu0 %v3778
    %3844 = vmatprep.subr.mxu0 %v3781
    %3845 = vmatpush1.msra.mxu0 %v3780
    %3846 = vmatprep.subr.mxu0 %v3783
    %3847 = vmatpush1.msra.mxu0 %v3782
    %3848 = vmatprep.subr.mxu0 %v3785
    %3849 = vmatpush1.msra.mxu0 %v3784
    %3850 = vmatprep.subr.mxu0 %v3787
    %3851 = vmatpush1.msra.mxu0 %v3786
    %3852 = vmatprep.subr.mxu0 %v3789
    %3853 = vmatpush1.msra.mxu0 %v3788
    %3854 = vmatprep.subr.mxu0 %v3791
    %3855 = vmatpush1.msra.mxu0 %v3790
    %3856 = vmatprep.subr.mxu0 %v3793
    %3857 = vmatpush1.msra.mxu0 %v3792
    %3858 = vmatprep.subr.mxu0 %v3795
    %3859 = vmatpush1.msra.mxu0 %v3794
    %3860 = vmatprep.subr.mxu0 %v3797
    %3861 = vmatpush1.msra.mxu0 %v3796
    %3862 = vmatprep.subr.mxu0 %v3799
    %3863 = vmatpush1.msra.mxu0 %v3798
    %3864 = vmatprep.subr.mxu0 %v3801
    %3865 = vmatpush1.msra.mxu0 %v3800
    %3866 = vmatprep.subr.mxu0 %v3803
    %3867 = vmatpush1.msra.mxu0 %v3802
    %3868 = vmatprep.subr.mxu0 %v3805
    %3869 = vmatpush1.msra.mxu0 %v3804
    %3870 = vmatprep.subr.mxu0 %v3807
    %3871 = vmatpush1.msra.mxu0 %v3806
    %3872 = vmatprep.subr.mxu0 %v3809
    %3873 = vmatpush1.msra.mxu0 %v3808
    %3874 = vmatprep.subr.mxu0 %v3811
    %3875 = vmatpush1.msra.mxu0 %v3810
    %3876 = vmatprep.subr.mxu0 %v3813
    %3877 = vmatpush1.msra.mxu0 %v3812
    %3878 = vmatprep.subr.mxu0 %v3815
    %3879 = vmatpush1.msra.mxu0 %v3814
    %3880 = vmatprep.subr.mxu0 %v3817
    %3881 = vmatpush1.msra.mxu0 %v3816
    %3882 = vmatprep.mubr.f32.mxu0 %v3753
    %3883 = vmatmul.mubr.f32.gmra.mrb[0].mxu0 %v3752
    %v3884 = vpop.f32.mrb[0].mxu0
    %v3885 = vadd.f32 0.0, %v3884
    %v3886 = vpop.f32.mrb[0].mxu0
    %v3887 = vadd.f32 0.0, %v3886
    %3888 = vdwg.mxu0
    %v3889 = vmul.f32 %v3885, 0.00048828125
    %v3890 = vmul.f32 %v3887, 0.00048828125
    %v3891 = vmul.f32 %v3889, %v3889
    %v3892 = vmul.f32 %v3890, %v3890
    %v3895 = vrot.slane %v3891, 7
    %v3896 = vrot.slane %v3892, 7
    %v3899 = vsub.f32 %v3889, %v3895
    %v3900 = vsub.f32 %v3890, %v3896
    %v3901 = vmax.f32 %v3899, 0.0
    %v3902 = vmax.f32 %v3900, 0.0
    %v3903 = vld [vmem:[%s18] ss:$2 sm:$0x3]
    %v3904 = vadd.f32 %v3901, 1e-05
    %v3905 = vadd.f32 %v3902, 1e-05
    %v3906 = vrsqrt.pop %v3904
    %v3907 = vrsqrt.pop %v3905
    %v3910 = vcombine.low %v3906, %v3907
    %v3912 = vunpack.c.l.s4 1966171168
    %v3913 = vunpack.c.0.s8 %v3912
    %v3914 = vlaneseq
    %v3915 = vshrl.u32 %v3914, 7
    %v3916 = vsub.s32 %v3913, %v3915
    %v3917 = vrot.slane %v3910, %v3916
    %v3918 = vcombine.high %v3917, %v3917
    %v3920 = vunpack.c.l.s4 1966171168
    %v3921 = vunpack.c.0.s8 %v3920
    %v3922 = vlaneseq
    %v3923 = vshrl.u32 %v3922, 7
    %v3924 = vsub.s32 %v3921, %v3923
    %v3925 = vrot.slane %v3918, %v3924
    %v3927 = vmul.f32 %v3903, %v3925
    %s3928 = scalar_lea.vmem %s18, 1
    %v3929 = vld [vmem:[%s3928] ss:$2 sm:$0x3]
    %v3931 = vlaneseq
    %v3932 = vshrl.u32 %v3931, 7
    %v3933 = vsub.s32 0, %v3932
    %v3934 = vrot.slane %v3927, %v3933
    %v3935 = vlaneseq
    %v3936 = vshrl.u32 %v3935, 7
    %v3937 = vsub.s32 1, %v3936
    %v3938 = vrot.slane %v3927, %v3937
    %v3941 = vmul.f32 %v3889, %v3934
    %v3942 = vmul.f32 %v3890, %v3938
    %v3945 = vcombine.low %v3941, %v3942
    %v3947 = vunpack.c.l.s4 1966171168
    %v3948 = vunpack.c.0.s8 %v3947
    %v3949 = vlaneseq
    %v3950 = vshrl.u32 %v3949, 7
    %v3951 = vsub.s32 %v3948, %v3950
    %v3952 = vrot.slane %v3945, %v3951
    %v3954 = vunpack.c.l.s4 1966171168
    %v3955 = vunpack.c.0.s8 %v3954
    %v3956 = vlaneseq
    %v3957 = vshrl.u32 %v3956, 7
    %v3958 = vsub.s32 %v3955, %v3957
    %v3959 = vrot.slane %v3952, %v3958
    %v3961 = vsub.f32 %v3929, %v3959
    %v3962 = vmul.f32 %v3638, %v3934
    %v3963 = vmul.f32 %v3640, %v3938
    %v3964 = vmul.f32 %v3644, %v3934
    %v3965 = vmul.f32 %v3646, %v3938
    %v3966 = vmul.f32 %v3650, %v3934
    %v3967 = vmul.f32 %v3652, %v3938
    %v3968 = vmul.f32 %v3656, %v3934
    %v3969 = vmul.f32 %v3658, %v3938
    %v3970 = vmul.f32 %v3662, %v3934
    %v3971 = vmul.f32 %v3664, %v3938
    %v3972 = vmul.f32 %v3668, %v3934
    %v3973 = vmul.f32 %v3670, %v3938
    %v3974 = vmul.f32 %v3674, %v3934
    %v3975 = vmul.f32 %v3676, %v3938
    %v3976 = vmul.f32 %v3680, %v3934
    %v3977 = vmul.f32 %v3682, %v3938
    %v3979 = vlaneseq
    %v3980 = vshrl.u32 %v3979, 7
    %v3981 = vsub.s32 0, %v3980
    %v3982 = vrot.slane %v3961, %v3981
    %v3983 = vlaneseq
    %v3984 = vshrl.u32 %v3983, 7
    %v3985 = vsub.s32 1, %v3984
    %v3986 = vrot.slane %v3961, %v3985
    %v3989 = vadd.f32 %v3962, %v3982
    %v3990 = vadd.f32 %v3963, %v3986
    %v3991 = vadd.f32 %v3964, %v3982
    %v3992 = vadd.f32 %v3965, %v3986
    %v3993 = vadd.f32 %v3966, %v3982
    %v3994 = vadd.f32 %v3967, %v3986
    %v3995 = vadd.f32 %v3968, %v3982
    %v3996 = vadd.f32 %v3969, %v3986
    %v3997 = vadd.f32 %v3970, %v3982
    %v3998 = vadd.f32 %v3971, %v3986
    %v3999 = vadd.f32 %v3972, %v3982
    %v4000 = vadd.f32 %v3973, %v3986
    %v4001 = vadd.f32 %v3974, %v3982
    %v4002 = vadd.f32 %v3975, %v3986
    %v4003 = vadd.f32 %v3976, %v3982
    %v4004 = vadd.f32 %v3977, %v3986
    %v4005 = vmax.f32 %v3989, 0.0
    %v4006 = vmax.f32 %v3990, 0.0
    %v4007 = vmax.f32 %v3991, 0.0
    %v4008 = vmax.f32 %v3992, 0.0
    %v4009 = vmax.f32 %v3993, 0.0
    %v4010 = vmax.f32 %v3994, 0.0
    %v4011 = vmax.f32 %v3995, 0.0
    %v4012 = vmax.f32 %v3996, 0.0
    %v4013 = vmax.f32 %v3997, 0.0
    %v4014 = vmax.f32 %v3998, 0.0
    %v4015 = vmax.f32 %v3999, 0.0
    %v4016 = vmax.f32 %v4000, 0.0
    %v4017 = vmax.f32 %v4001, 0.0
    %v4018 = vmax.f32 %v4002, 0.0
    %v4019 = vmax.f32 %v4003, 0.0
    %v4020 = vmax.f32 %v4004, 0.0
    %s4021 = sshll.u32 %s974, 4
    %4022 = dma.done %s194, %s4021
    %v4023 = vld [vmem:[#allocation7] sm:$0xff]
    %v4024 = vld [vmem:[#allocation7 + $0x8] sm:$0xff]
    %v4025 = vld [vmem:[#allocation7 + $0x10] sm:$0xff]
    %v4026 = vld [vmem:[#allocation7 + $0x18] sm:$0xff]
    %v4027 = vld [vmem:[#allocation7 + $0x20] sm:$0xff]
    %v4028 = vld [vmem:[#allocation7 + $0x28] sm:$0xff]
    %v4029 = vld [vmem:[#allocation7 + $0x30] sm:$0xff]
    %v4030 = vld [vmem:[#allocation7 + $0x38] sm:$0xff]
    %v4031 = vld [vmem:[#allocation7 + $0x40] sm:$0xff]
    %v4032 = vld [vmem:[#allocation7 + $0x48] sm:$0xff]
    %v4033 = vld [vmem:[#allocation7 + $0x50] sm:$0xff]
    %v4034 = vld [vmem:[#allocation7 + $0x58] sm:$0xff]
    %v4035 = vld [vmem:[#allocation7 + $0x60] sm:$0xff]
    %v4036 = vld [vmem:[#allocation7 + $0x68] sm:$0xff]
    %v4037 = vld [vmem:[#allocation7 + $0x70] sm:$0xff]
    %v4038 = vld [vmem:[#allocation7 + $0x78] sm:$0xff]
    %v4039 = vld [vmem:[#allocation7 + $0x80] sm:$0xff]
    %v4040 = vld [vmem:[#allocation7 + $0x88] sm:$0xff]
    %v4041 = vld [vmem:[#allocation7 + $0x90] sm:$0xff]
    %v4042 = vld [vmem:[#allocation7 + $0x98] sm:$0xff]
    %v4043 = vld [vmem:[#allocation7 + $0xa0] sm:$0xff]
    %v4044 = vld [vmem:[#allocation7 + $0xa8] sm:$0xff]
    %v4045 = vld [vmem:[#allocation7 + $0xb0] sm:$0xff]
    %v4046 = vld [vmem:[#allocation7 + $0xb8] sm:$0xff]
    %v4047 = vld [vmem:[#allocation7 + $0xc0] sm:$0xff]
    %v4048 = vld [vmem:[#allocation7 + $0xc8] sm:$0xff]
    %v4049 = vld [vmem:[#allocation7 + $0xd0] sm:$0xff]
    %v4050 = vld [vmem:[#allocation7 + $0xd8] sm:$0xff]
    %v4051 = vld [vmem:[#allocation7 + $0xe0] sm:$0xff]
    %v4052 = vld [vmem:[#allocation7 + $0xe8] sm:$0xff]
    %v4053 = vld [vmem:[#allocation7 + $0xf0] sm:$0xff]
    %v4054 = vld [vmem:[#allocation7 + $0xf8] sm:$0xff]
    %v4055 = vld [vmem:[#allocation7 + $0x100] sm:$0xff]
    %v4056 = vld [vmem:[#allocation7 + $0x108] sm:$0xff]
    %v4057 = vld [vmem:[#allocation7 + $0x110] sm:$0xff]
    %v4058 = vld [vmem:[#allocation7 + $0x118] sm:$0xff]
    %v4059 = vld [vmem:[#allocation7 + $0x120] sm:$0xff]
    %v4060 = vld [vmem:[#allocation7 + $0x128] sm:$0xff]
    %v4061 = vld [vmem:[#allocation7 + $0x130] sm:$0xff]
    %v4062 = vld [vmem:[#allocation7 + $0x138] sm:$0xff]
    %v4063 = vld [vmem:[#allocation7 + $0x140] sm:$0xff]
    %v4064 = vld [vmem:[#allocation7 + $0x148] sm:$0xff]
    %v4065 = vld [vmem:[#allocation7 + $0x150] sm:$0xff]
    %v4066 = vld [vmem:[#allocation7 + $0x158] sm:$0xff]
    %v4067 = vld [vmem:[#allocation7 + $0x160] sm:$0xff]
    %v4068 = vld [vmem:[#allocation7 + $0x168] sm:$0xff]
    %v4069 = vld [vmem:[#allocation7 + $0x170] sm:$0xff]
    %v4070 = vld [vmem:[#allocation7 + $0x178] sm:$0xff]
    %v4071 = vld [vmem:[#allocation7 + $0x180] sm:$0xff]
    %v4072 = vld [vmem:[#allocation7 + $0x188] sm:$0xff]
    %v4073 = vld [vmem:[#allocation7 + $0x190] sm:$0xff]
    %v4074 = vld [vmem:[#allocation7 + $0x198] sm:$0xff]
    %v4075 = vld [vmem:[#allocation7 + $0x1a0] sm:$0xff]
    %v4076 = vld [vmem:[#allocation7 + $0x1a8] sm:$0xff]
    %v4077 = vld [vmem:[#allocation7 + $0x1b0] sm:$0xff]
    %v4078 = vld [vmem:[#allocation7 + $0x1b8] sm:$0xff]
    %v4079 = vld [vmem:[#allocation7 + $0x1c0] sm:$0xff]
    %v4080 = vld [vmem:[#allocation7 + $0x1c8] sm:$0xff]
    %v4081 = vld [vmem:[#allocation7 + $0x1d0] sm:$0xff]
    %v4082 = vld [vmem:[#allocation7 + $0x1d8] sm:$0xff]
    %v4083 = vld [vmem:[#allocation7 + $0x1e0] sm:$0xff]
    %v4084 = vld [vmem:[#allocation7 + $0x1e8] sm:$0xff]
    %v4085 = vld [vmem:[#allocation7 + $0x1f0] sm:$0xff]
    %v4086 = vld [vmem:[#allocation7 + $0x1f8] sm:$0xff]
    %4087 = vmatprep.subr.mxu0 %v4024
    %4088 = vmatpush1.msra.mxu0 %v4023
    %4089 = vmatprep.subr.mxu0 %v4026
    %4090 = vmatpush1.msra.mxu0 %v4025
    %4091 = vmatprep.subr.mxu0 %v4028
    %4092 = vmatpush1.msra.mxu0 %v4027
    %4093 = vmatprep.subr.mxu0 %v4030
    %4094 = vmatpush1.msra.mxu0 %v4029
    %4095 = vmatprep.subr.mxu0 %v4032
    %4096 = vmatpush1.msra.mxu0 %v4031
    %4097 = vmatprep.subr.mxu0 %v4034
    %4098 = vmatpush1.msra.mxu0 %v4033
    %4099 = vmatprep.subr.mxu0 %v4036
    %4100 = vmatpush1.msra.mxu0 %v4035
    %4101 = vmatprep.subr.mxu0 %v4038
    %4102 = vmatpush1.msra.mxu0 %v4037
    %4103 = vmatprep.subr.mxu0 %v4040
    %4104 = vmatpush1.msra.mxu0 %v4039
    %4105 = vmatprep.subr.mxu0 %v4042
    %4106 = vmatpush1.msra.mxu0 %v4041
    %4107 = vmatprep.subr.mxu0 %v4044
    %4108 = vmatpush1.msra.mxu0 %v4043
    %4109 = vmatprep.subr.mxu0 %v4046
    %4110 = vmatpush1.msra.mxu0 %v4045
    %4111 = vmatprep.subr.mxu0 %v4048
    %4112 = vmatpush1.msra.mxu0 %v4047
    %4113 = vmatprep.subr.mxu0 %v4050
    %4114 = vmatpush1.msra.mxu0 %v4049
    %4115 = vmatprep.subr.mxu0 %v4052
    %4116 = vmatpush1.msra.mxu0 %v4051
    %4117 = vmatprep.subr.mxu0 %v4054
    %4118 = vmatpush1.msra.mxu0 %v4053
    %4119 = vmatprep.subr.mxu0 %v4056
    %4120 = vmatpush1.msra.mxu0 %v4055
    %4121 = vmatprep.subr.mxu0 %v4058
    %4122 = vmatpush1.msra.mxu0 %v4057
    %4123 = vmatprep.subr.mxu0 %v4060
    %4124 = vmatpush1.msra.mxu0 %v4059
    %4125 = vmatprep.subr.mxu0 %v4062
    %4126 = vmatpush1.msra.mxu0 %v4061
    %4127 = vmatprep.subr.mxu0 %v4064
    %4128 = vmatpush1.msra.mxu0 %v4063
    %4129 = vmatprep.subr.mxu0 %v4066
    %4130 = vmatpush1.msra.mxu0 %v4065
    %4131 = vmatprep.subr.mxu0 %v4068
    %4132 = vmatpush1.msra.mxu0 %v4067
    %4133 = vmatprep.subr.mxu0 %v4070
    %4134 = vmatpush1.msra.mxu0 %v4069
    %4135 = vmatprep.subr.mxu0 %v4072
    %4136 = vmatpush1.msra.mxu0 %v4071
    %4137 = vmatprep.subr.mxu0 %v4074
    %4138 = vmatpush1.msra.mxu0 %v4073
    %4139 = vmatprep.subr.mxu0 %v4076
    %4140 = vmatpush1.msra.mxu0 %v4075
    %4141 = vmatprep.subr.mxu0 %v4078
    %4142 = vmatpush1.msra.mxu0 %v4077
    %4143 = vmatprep.subr.mxu0 %v4080
    %4144 = vmatpush1.msra.mxu0 %v4079
    %4145 = vmatprep.subr.mxu0 %v4082
    %4146 = vmatpush1.msra.mxu0 %v4081
    %4147 = vmatprep.subr.mxu0 %v4084
    %4148 = vmatpush1.msra.mxu0 %v4083
    %4149 = vmatprep.subr.mxu0 %v4086
    %4150 = vmatpush1.msra.mxu0 %v4085
    %4151 = vmatprep.mubr.f32.mxu0 %v4006
    %4152 = vmatmul.mubr.f32.gmra.mrb[0].mxu0 %v4005
    %v4153 = vpop.f32.mrb[0].mxu0
    %v4154 = vadd.f32 0.0, %v4153
    %v4155 = vpop.f32.mrb[0].mxu0
    %v4156 = vadd.f32 0.0, %v4155
    %4157 = vmatprep.mubr.f32.mxu0 %v4008
    %4158 = vmatmul.mubr.f32.gmra.mrb[0].mxu0 %v4007
    %v4159 = vpop.f32.mrb[0].mxu0
    %v4160 = vadd.f32 0.0, %v4159
    %v4161 = vpop.f32.mrb[0].mxu0
    %v4162 = vadd.f32 0.0, %v4161
    %4163 = vmatprep.mubr.f32.mxu0 %v4010
    %4164 = vmatmul.mubr.f32.gmra.mrb[0].mxu0 %v4009
    %v4165 = vpop.f32.mrb[0].mxu0
    %v4166 = vadd.f32 0.0, %v4165
    %v4167 = vpop.f32.mrb[0].mxu0
    %v4168 = vadd.f32 0.0, %v4167
    %4169 = vmatprep.mubr.f32.mxu0 %v4012
    %4170 = vmatmul.mubr.f32.gmra.mrb[0].mxu0 %v4011
    %v4171 = vpop.f32.mrb[0].mxu0
    %v4172 = vadd.f32 0.0, %v4171
    %v4173 = vpop.f32.mrb[0].mxu0
    %v4174 = vadd.f32 0.0, %v4173
    %4175 = vmatprep.mubr.f32.mxu0 %v4014
    %4176 = vmatmul.mubr.f32.gmra.mrb[0].mxu0 %v4013
    %v4177 = vpop.f32.mrb[0].mxu0
    %v4178 = vadd.f32 0.0, %v4177
    %v4179 = vpop.f32.mrb[0].mxu0
    %v4180 = vadd.f32 0.0, %v4179
    %4181 = vmatprep.mubr.f32.mxu0 %v4016
    %4182 = vmatmul.mubr.f32.gmra.mrb[0].mxu0 %v4015
    %v4183 = vpop.f32.mrb[0].mxu0
    %v4184 = vadd.f32 0.0, %v4183
    %v4185 = vpop.f32.mrb[0].mxu0
    %v4186 = vadd.f32 0.0, %v4185
    %4187 = vmatprep.mubr.f32.mxu0 %v4018
    %4188 = vmatmul.mubr.f32.gmra.mrb[0].mxu0 %v4017
    %v4189 = vpop.f32.mrb[0].mxu0
    %v4190 = vadd.f32 0.0, %v4189
    %v4191 = vpop.f32.mrb[0].mxu0
    %v4192 = vadd.f32 0.0, %v4191
    %4193 = vmatprep.mubr.f32.mxu0 %v4020
    %4194 = vmatmul.mubr.f32.gmra.mrb[0].mxu0 %v4019
    %v4195 = vpop.f32.mrb[0].mxu0
    %v4196 = vadd.f32 0.0, %v4195
    %v4197 = vpop.f32.mrb[0].mxu0
    %v4198 = vadd.f32 0.0, %v4197
    %4199 = vdwg.mxu0
    %4200 = vst [vmem:[#allocation2] sm:$0xff] %v4154
    %4201 = vst [vmem:[#allocation2 + $0x8] sm:$0xff] %v4156
    %4202 = vst [vmem:[#allocation2 + $0x10] sm:$0xff] %v4160
    %4203 = vst [vmem:[#allocation2 + $0x18] sm:$0xff] %v4162
    %4204 = vst [vmem:[#allocation2 + $0x20] sm:$0xff] %v4166
    %4205 = vst [vmem:[#allocation2 + $0x28] sm:$0xff] %v4168
    %4206 = vst [vmem:[#allocation2 + $0x30] sm:$0xff] %v4172
    %4207 = vst [vmem:[#allocation2 + $0x38] sm:$0xff] %v4174
    %4208 = vst [vmem:[#allocation2 + $0x40] sm:$0xff] %v4178
    %4209 = vst [vmem:[#allocation2 + $0x48] sm:$0xff] %v4180
    %4210 = vst [vmem:[#allocation2 + $0x50] sm:$0xff] %v4184
    %4211 = vst [vmem:[#allocation2 + $0x58] sm:$0xff] %v4186
    %4212 = vst [vmem:[#allocation2 + $0x60] sm:$0xff] %v4190
    %4213 = vst [vmem:[#allocation2 + $0x68] sm:$0xff] %v4192
    %4214 = vst [vmem:[#allocation2 + $0x70] sm:$0xff] %v4196
    %4215 = vst [vmem:[#allocation2 + $0x78] sm:$0xff] %v4198
    %s4216 = scalar_lea.vmem [#allocation7], 512
    %v4217 = vld [vmem:[%s4216] sm:$0xff]
    %v4218 = vld [vmem:[%s4216 + $0x8] sm:$0xff]
    %v4219 = vld [vmem:[%s4216 + $0x10] sm:$0xff]
    %v4220 = vld [vmem:[%s4216 + $0x18] sm:$0xff]
    %v4221 = vld [vmem:[%s4216 + $0x20] sm:$0xff]
    %v4222 = vld [vmem:[%s4216 + $0x28] sm:$0xff]
    %v4223 = vld [vmem:[%s4216 + $0x30] sm:$0xff]
    %v4224 = vld [vmem:[%s4216 + $0x38] sm:$0xff]
    %v4225 = vld [vmem:[%s4216 + $0x40] sm:$0xff]
    %v4226 = vld [vmem:[%s4216 + $0x48] sm:$0xff]
    %v4227 = vld [vmem:[%s4216 + $0x50] sm:$0xff]
    %v4228 = vld [vmem:[%s4216 + $0x58] sm:$0xff]
    %v4229 = vld [vmem:[%s4216 + $0x60] sm:$0xff]
    %v4230 = vld [vmem:[%s4216 + $0x68] sm:$0xff]
    %v4231 = vld [vmem:[%s4216 + $0x70] sm:$0xff]
    %v4232 = vld [vmem:[%s4216 + $0x78] sm:$0xff]
    %v4233 = vld [vmem:[%s4216 + $0x80] sm:$0xff]
    %v4234 = vld [vmem:[%s4216 + $0x88] sm:$0xff]
    %v4235 = vld [vmem:[%s4216 + $0x90] sm:$0xff]
    %v4236 = vld [vmem:[%s4216 + $0x98] sm:$0xff]
    %v4237 = vld [vmem:[%s4216 + $0xa0] sm:$0xff]
    %v4238 = vld [vmem:[%s4216 + $0xa8] sm:$0xff]
    %v4239 = vld [vmem:[%s4216 + $0xb0] sm:$0xff]
    %v4240 = vld [vmem:[%s4216 + $0xb8] sm:$0xff]
    %v4241 = vld [vmem:[%s4216 + $0xc0] sm:$0xff]
    %v4242 = vld [vmem:[%s4216 + $0xc8] sm:$0xff]
    %v4243 = vld [vmem:[%s4216 + $0xd0] sm:$0xff]
    %v4244 = vld [vmem:[%s4216 + $0xd8] sm:$0xff]
    %v4245 = vld [vmem:[%s4216 + $0xe0] sm:$0xff]
    %v4246 = vld [vmem:[%s4216 + $0xe8] sm:$0xff]
    %v4247 = vld [vmem:[%s4216 + $0xf0] sm:$0xff]
    %v4248 = vld [vmem:[%s4216 + $0xf8] sm:$0xff]
    %v4249 = vld [vmem:[%s4216 + $0x100] sm:$0xff]
    %v4250 = vld [vmem:[%s4216 + $0x108] sm:$0xff]
    %v4251 = vld [vmem:[%s4216 + $0x110] sm:$0xff]
    %v4252 = vld [vmem:[%s4216 + $0x118] sm:$0xff]
    %v4253 = vld [vmem:[%s4216 + $0x120] sm:$0xff]
    %v4254 = vld [vmem:[%s4216 + $0x128] sm:$0xff]
    %v4255 = vld [vmem:[%s4216 + $0x130] sm:$0xff]
    %v4256 = vld [vmem:[%s4216 + $0x138] sm:$0xff]
    %v4257 = vld [vmem:[%s4216 + $0x140] sm:$0xff]
    %v4258 = vld [vmem:[%s4216 + $0x148] sm:$0xff]
    %v4259 = vld [vmem:[%s4216 + $0x150] sm:$0xff]
    %v4260 = vld [vmem:[%s4216 + $0x158] sm:$0xff]
    %v4261 = vld [vmem:[%s4216 + $0x160] sm:$0xff]
    %v4262 = vld [vmem:[%s4216 + $0x168] sm:$0xff]
    %v4263 = vld [vmem:[%s4216 + $0x170] sm:$0xff]
    %v4264 = vld [vmem:[%s4216 + $0x178] sm:$0xff]
    %v4265 = vld [vmem:[%s4216 + $0x180] sm:$0xff]
    %v4266 = vld [vmem:[%s4216 + $0x188] sm:$0xff]
    %v4267 = vld [vmem:[%s4216 + $0x190] sm:$0xff]
    %v4268 = vld [vmem:[%s4216 + $0x198] sm:$0xff]
    %v4269 = vld [vmem:[%s4216 + $0x1a0] sm:$0xff]
    %v4270 = vld [vmem:[%s4216 + $0x1a8] sm:$0xff]
    %v4271 = vld [vmem:[%s4216 + $0x1b0] sm:$0xff]
    %v4272 = vld [vmem:[%s4216 + $0x1b8] sm:$0xff]
    %v4273 = vld [vmem:[%s4216 + $0x1c0] sm:$0xff]
    %v4274 = vld [vmem:[%s4216 + $0x1c8] sm:$0xff]
    %v4275 = vld [vmem:[%s4216 + $0x1d0] sm:$0xff]
    %v4276 = vld [vmem:[%s4216 + $0x1d8] sm:$0xff]
    %v4277 = vld [vmem:[%s4216 + $0x1e0] sm:$0xff]
    %v4278 = vld [vmem:[%s4216 + $0x1e8] sm:$0xff]
    %v4279 = vld [vmem:[%s4216 + $0x1f0] sm:$0xff]
    %v4280 = vld [vmem:[%s4216 + $0x1f8] sm:$0xff]
    %4281 = vmatprep.subr.mxu0 %v4218
    %4282 = vmatpush1.msra.mxu0 %v4217
    %4283 = vmatprep.subr.mxu0 %v4220
    %4284 = vmatpush1.msra.mxu0 %v4219
    %4285 = vmatprep.subr.mxu0 %v4222
    %4286 = vmatpush1.msra.mxu0 %v4221
    %4287 = vmatprep.subr.mxu0 %v4224
    %4288 = vmatpush1.msra.mxu0 %v4223
    %4289 = vmatprep.subr.mxu0 %v4226
    %4290 = vmatpush1.msra.mxu0 %v4225
    %4291 = vmatprep.subr.mxu0 %v4228
    %4292 = vmatpush1.msra.mxu0 %v4227
    %4293 = vmatprep.subr.mxu0 %v4230
    %4294 = vmatpush1.msra.mxu0 %v4229
    %4295 = vmatprep.subr.mxu0 %v4232
    %4296 = vmatpush1.msra.mxu0 %v4231
    %4297 = vmatprep.subr.mxu0 %v4234
    %4298 = vmatpush1.msra.mxu0 %v4233
    %4299 = vmatprep.subr.mxu0 %v4236
    %4300 = vmatpush1.msra.mxu0 %v4235
    %4301 = vmatprep.subr.mxu0 %v4238
    %4302 = vmatpush1.msra.mxu0 %v4237
    %4303 = vmatprep.subr.mxu0 %v4240
    %4304 = vmatpush1.msra.mxu0 %v4239
    %4305 = vmatprep.subr.mxu0 %v4242
    %4306 = vmatpush1.msra.mxu0 %v4241
    %4307 = vmatprep.subr.mxu0 %v4244
    %4308 = vmatpush1.msra.mxu0 %v4243
    %4309 = vmatprep.subr.mxu0 %v4246
    %4310 = vmatpush1.msra.mxu0 %v4245
    %4311 = vmatprep.subr.mxu0 %v4248
    %4312 = vmatpush1.msra.mxu0 %v4247
    %4313 = vmatprep.subr.mxu0 %v4250
    %4314 = vmatpush1.msra.mxu0 %v4249
    %4315 = vmatprep.subr.mxu0 %v4252
    %4316 = vmatpush1.msra.mxu0 %v4251
    %4317 = vmatprep.subr.mxu0 %v4254
    %4318 = vmatpush1.msra.mxu0 %v4253
    %4319 = vmatprep.subr.mxu0 %v4256
    %4320 = vmatpush1.msra.mxu0 %v4255
    %4321 = vmatprep.subr.mxu0 %v4258
    %4322 = vmatpush1.msra.mxu0 %v4257
    %4323 = vmatprep.subr.mxu0 %v4260
    %4324 = vmatpush1.msra.mxu0 %v4259
    %4325 = vmatprep.subr.mxu0 %v4262
    %4326 = vmatpush1.msra.mxu0 %v4261
    %4327 = vmatprep.subr.mxu0 %v4264
    %4328 = vmatpush1.msra.mxu0 %v4263
    %4329 = vmatprep.subr.mxu0 %v4266
    %4330 = vmatpush1.msra.mxu0 %v4265
    %4331 = vmatprep.subr.mxu0 %v4268
    %4332 = vmatpush1.msra.mxu0 %v4267
    %4333 = vmatprep.subr.mxu0 %v4270
    %4334 = vmatpush1.msra.mxu0 %v4269
    %4335 = vmatprep.subr.mxu0 %v4272
    %4336 = vmatpush1.msra.mxu0 %v4271
    %4337 = vmatprep.subr.mxu0 %v4274
    %4338 = vmatpush1.msra.mxu0 %v4273
    %4339 = vmatprep.subr.mxu0 %v4276
    %4340 = vmatpush1.msra.mxu0 %v4275
    %4341 = vmatprep.subr.mxu0 %v4278
    %4342 = vmatpush1.msra.mxu0 %v4277
    %4343 = vmatprep.subr.mxu0 %v4280
    %4344 = vmatpush1.msra.mxu0 %v4279
    %4345 = vmatprep.mubr.f32.mxu0 %v4006
    %4346 = vmatmul.mubr.f32.gmra.mrb[0].mxu0 %v4005
    %v4347 = vpop.f32.mrb[0].mxu0
    %v4348 = vadd.f32 0.0, %v4347
    %v4349 = vpop.f32.mrb[0].mxu0
    %v4350 = vadd.f32 0.0, %v4349
    %4351 = vmatprep.mubr.f32.mxu0 %v4008
    %4352 = vmatmul.mubr.f32.gmra.mrb[0].mxu0 %v4007
    %v4353 = vpop.f32.mrb[0].mxu0
    %v4354 = vadd.f32 0.0, %v4353
    %v4355 = vpop.f32.mrb[0].mxu0
    %v4356 = vadd.f32 0.0, %v4355
    %4357 = vmatprep.mubr.f32.mxu0 %v4010
    %4358 = vmatmul.mubr.f32.gmra.mrb[0].mxu0 %v4009
    %v4359 = vpop.f32.mrb[0].mxu0
    %v4360 = vadd.f32 0.0, %v4359
    %v4361 = vpop.f32.mrb[0].mxu0
    %v4362 = vadd.f32 0.0, %v4361
    %4363 = vmatprep.mubr.f32.mxu0 %v4012
    %4364 = vmatmul.mubr.f32.gmra.mrb[0].mxu0 %v4011
    %v4365 = vpop.f32.mrb[0].mxu0
    %v4366 = vadd.f32 0.0, %v4365
    %v4367 = vpop.f32.mrb[0].mxu0
    %v4368 = vadd.f32 0.0, %v4367
    %4369 = vmatprep.mubr.f32.mxu0 %v4014
    %4370 = vmatmul.mubr.f32.gmra.mrb[0].mxu0 %v4013
    %v4371 = vpop.f32.mrb[0].mxu0
    %v4372 = vadd.f32 0.0, %v4371
    %v4373 = vpop.f32.mrb[0].mxu0
    %v4374 = vadd.f32 0.0, %v4373
    %4375 = vmatprep.mubr.f32.mxu0 %v4016
    %4376 = vmatmul.mubr.f32.gmra.mrb[0].mxu0 %v4015
    %v4377 = vpop.f32.mrb[0].mxu0
    %v4378 = vadd.f32 0.0, %v4377
    %v4379 = vpop.f32.mrb[0].mxu0
    %v4380 = vadd.f32 0.0, %v4379
    %4381 = vmatprep.mubr.f32.mxu0 %v4018
    %4382 = vmatmul.mubr.f32.gmra.mrb[0].mxu0 %v4017
    %v4383 = vpop.f32.mrb[0].mxu0
    %v4384 = vadd.f32 0.0, %v4383
    %v4385 = vpop.f32.mrb[0].mxu0
    %v4386 = vadd.f32 0.0, %v4385
    %4387 = vmatprep.mubr.f32.mxu0 %v4020
    %4388 = vmatmul.mubr.f32.gmra.mrb[0].mxu0 %v4019
    %v4389 = vpop.f32.mrb[0].mxu0
    %v4390 = vadd.f32 0.0, %v4389
    %v4391 = vpop.f32.mrb[0].mxu0
    %v4392 = vadd.f32 0.0, %v4391
    %4393 = vdwg.mxu0
    %4394 = vst [vmem:[#allocation2 + $0x80] sm:$0xff] %v4348
    %4395 = vst [vmem:[#allocation2 + $0x88] sm:$0xff] %v4350
    %4396 = vst [vmem:[#allocation2 + $0x90] sm:$0xff] %v4354
    %4397 = vst [vmem:[#allocation2 + $0x98] sm:$0xff] %v4356
    %4398 = vst [vmem:[#allocation2 + $0xa0] sm:$0xff] %v4360
    %4399 = vst [vmem:[#allocation2 + $0xa8] sm:$0xff] %v4362
    %4400 = vst [vmem:[#allocation2 + $0xb0] sm:$0xff] %v4366
    %4401 = vst [vmem:[#allocation2 + $0xb8] sm:$0xff] %v4368
    %4402 = vst [vmem:[#allocation2 + $0xc0] sm:$0xff] %v4372
    %4403 = vst [vmem:[#allocation2 + $0xc8] sm:$0xff] %v4374
    %4404 = vst [vmem:[#allocation2 + $0xd0] sm:$0xff] %v4378
    %4405 = vst [vmem:[#allocation2 + $0xd8] sm:$0xff] %v4380
    %4406 = vst [vmem:[#allocation2 + $0xe0] sm:$0xff] %v4384
    %4407 = vst [vmem:[#allocation2 + $0xe8] sm:$0xff] %v4386
    %4408 = vst [vmem:[#allocation2 + $0xf0] sm:$0xff] %v4390
    %4409 = vst [vmem:[#allocation2 + $0xf8] sm:$0xff] %v4392
    %s4410 = scalar_lea.vmem [#allocation7], 1024
    %v4411 = vld [vmem:[%s4410] sm:$0xff]
    %v4412 = vld [vmem:[%s4410 + $0x8] sm:$0xff]
    %v4413 = vld [vmem:[%s4410 + $0x10] sm:$0xff]
    %v4414 = vld [vmem:[%s4410 + $0x18] sm:$0xff]
    %v4415 = vld [vmem:[%s4410 + $0x20] sm:$0xff]
    %v4416 = vld [vmem:[%s4410 + $0x28] sm:$0xff]
    %v4417 = vld [vmem:[%s4410 + $0x30] sm:$0xff]
    %v4418 = vld [vmem:[%s4410 + $0x38] sm:$0xff]
    %v4419 = vld [vmem:[%s4410 + $0x40] sm:$0xff]
    %v4420 = vld [vmem:[%s4410 + $0x48] sm:$0xff]
    %v4421 = vld [vmem:[%s4410 + $0x50] sm:$0xff]
    %v4422 = vld [vmem:[%s4410 + $0x58] sm:$0xff]
    %v4423 = vld [vmem:[%s4410 + $0x60] sm:$0xff]
    %v4424 = vld [vmem:[%s4410 + $0x68] sm:$0xff]
    %v4425 = vld [vmem:[%s4410 + $0x70] sm:$0xff]
    %v4426 = vld [vmem:[%s4410 + $0x78] sm:$0xff]
    %v4427 = vld [vmem:[%s4410 + $0x80] sm:$0xff]
    %v4428 = vld [vmem:[%s4410 + $0x88] sm:$0xff]
    %v4429 = vld [vmem:[%s4410 + $0x90] sm:$0xff]
    %v4430 = vld [vmem:[%s4410 + $0x98] sm:$0xff]
    %v4431 = vld [vmem:[%s4410 + $0xa0] sm:$0xff]
    %v4432 = vld [vmem:[%s4410 + $0xa8] sm:$0xff]
    %v4433 = vld [vmem:[%s4410 + $0xb0] sm:$0xff]
    %v4434 = vld [vmem:[%s4410 + $0xb8] sm:$0xff]
    %v4435 = vld [vmem:[%s4410 + $0xc0] sm:$0xff]
    %v4436 = vld [vmem:[%s4410 + $0xc8] sm:$0xff]
    %v4437 = vld [vmem:[%s4410 + $0xd0] sm:$0xff]
    %v4438 = vld [vmem:[%s4410 + $0xd8] sm:$0xff]
    %v4439 = vld [vmem:[%s4410 + $0xe0] sm:$0xff]
    %v4440 = vld [vmem:[%s4410 + $0xe8] sm:$0xff]
    %v4441 = vld [vmem:[%s4410 + $0xf0] sm:$0xff]
    %v4442 = vld [vmem:[%s4410 + $0xf8] sm:$0xff]
    %v4443 = vld [vmem:[%s4410 + $0x100] sm:$0xff]
    %v4444 = vld [vmem:[%s4410 + $0x108] sm:$0xff]
    %v4445 = vld [vmem:[%s4410 + $0x110] sm:$0xff]
    %v4446 = vld [vmem:[%s4410 + $0x118] sm:$0xff]
    %v4447 = vld [vmem:[%s4410 + $0x120] sm:$0xff]
    %v4448 = vld [vmem:[%s4410 + $0x128] sm:$0xff]
    %v4449 = vld [vmem:[%s4410 + $0x130] sm:$0xff]
    %v4450 = vld [vmem:[%s4410 + $0x138] sm:$0xff]
    %v4451 = vld [vmem:[%s4410 + $0x140] sm:$0xff]
    %v4452 = vld [vmem:[%s4410 + $0x148] sm:$0xff]
    %v4453 = vld [vmem:[%s4410 + $0x150] sm:$0xff]
    %v4454 = vld [vmem:[%s4410 + $0x158] sm:$0xff]
    %v4455 = vld [vmem:[%s4410 + $0x160] sm:$0xff]
    %v4456 = vld [vmem:[%s4410 + $0x168] sm:$0xff]
    %v4457 = vld [vmem:[%s4410 + $0x170] sm:$0xff]
    %v4458 = vld [vmem:[%s4410 + $0x178] sm:$0xff]
    %v4459 = vld [vmem:[%s4410 + $0x180] sm:$0xff]
    %v4460 = vld [vmem:[%s4410 + $0x188] sm:$0xff]
    %v4461 = vld [vmem:[%s4410 + $0x190] sm:$0xff]
    %v4462 = vld [vmem:[%s4410 + $0x198] sm:$0xff]
    %v4463 = vld [vmem:[%s4410 + $0x1a0] sm:$0xff]
    %v4464 = vld [vmem:[%s4410 + $0x1a8] sm:$0xff]
    %v4465 = vld [vmem:[%s4410 + $0x1b0] sm:$0xff]
    %v4466 = vld [vmem:[%s4410 + $0x1b8] sm:$0xff]
    %v4467 = vld [vmem:[%s4410 + $0x1c0] sm:$0xff]
    %v4468 = vld [vmem:[%s4410 + $0x1c8] sm:$0xff]
    %v4469 = vld [vmem:[%s4410 + $0x1d0] sm:$0xff]
    %v4470 = vld [vmem:[%s4410 + $0x1d8] sm:$0xff]
    %v4471 = vld [vmem:[%s4410 + $0x1e0] sm:$0xff]
    %v4472 = vld [vmem:[%s4410 + $0x1e8] sm:$0xff]
    %v4473 = vld [vmem:[%s4410 + $0x1f0] sm:$0xff]
    %v4474 = vld [vmem:[%s4410 + $0x1f8] sm:$0xff]
    %4475 = vmatprep.subr.mxu0 %v4412
    %4476 = vmatpush1.msra.mxu0 %v4411
    %4477 = vmatprep.subr.mxu0 %v4414
    %4478 = vmatpush1.msra.mxu0 %v4413
    %4479 = vmatprep.subr.mxu0 %v4416
    %4480 = vmatpush1.msra.mxu0 %v4415
    %4481 = vmatprep.subr.mxu0 %v4418
    %4482 = vmatpush1.msra.mxu0 %v4417
    %4483 = vmatprep.subr.mxu0 %v4420
    %4484 = vmatpush1.msra.mxu0 %v4419
    %4485 = vmatprep.subr.mxu0 %v4422
    %4486 = vmatpush1.msra.mxu0 %v4421
    %4487 = vmatprep.subr.mxu0 %v4424
    %4488 = vmatpush1.msra.mxu0 %v4423
    %4489 = vmatprep.subr.mxu0 %v4426
    %4490 = vmatpush1.msra.mxu0 %v4425
    %4491 = vmatprep.subr.mxu0 %v4428
    %4492 = vmatpush1.msra.mxu0 %v4427
    %4493 = vmatprep.subr.mxu0 %v4430
    %4494 = vmatpush1.msra.mxu0 %v4429
    %4495 = vmatprep.subr.mxu0 %v4432
    %4496 = vmatpush1.msra.mxu0 %v4431
    %4497 = vmatprep.subr.mxu0 %v4434
    %4498 = vmatpush1.msra.mxu0 %v4433
    %4499 = vmatprep.subr.mxu0 %v4436
    %4500 = vmatpush1.msra.mxu0 %v4435
    %4501 = vmatprep.subr.mxu0 %v4438
    %4502 = vmatpush1.msra.mxu0 %v4437
    %4503 = vmatprep.subr.mxu0 %v4440
    %4504 = vmatpush1.msra.mxu0 %v4439
    %4505 = vmatprep.subr.mxu0 %v4442
    %4506 = vmatpush1.msra.mxu0 %v4441
    %4507 = vmatprep.subr.mxu0 %v4444
    %4508 = vmatpush1.msra.mxu0 %v4443
    %4509 = vmatprep.subr.mxu0 %v4446
    %4510 = vmatpush1.msra.mxu0 %v4445
    %4511 = vmatprep.subr.mxu0 %v4448
    %4512 = vmatpush1.msra.mxu0 %v4447
    %4513 = vmatprep.subr.mxu0 %v4450
    %4514 = vmatpush1.msra.mxu0 %v4449
    %4515 = vmatprep.subr.mxu0 %v4452
    %4516 = vmatpush1.msra.mxu0 %v4451
    %4517 = vmatprep.subr.mxu0 %v4454
    %4518 = vmatpush1.msra.mxu0 %v4453
    %4519 = vmatprep.subr.mxu0 %v4456
    %4520 = vmatpush1.msra.mxu0 %v4455
    %4521 = vmatprep.subr.mxu0 %v4458
    %4522 = vmatpush1.msra.mxu0 %v4457
    %4523 = vmatprep.subr.mxu0 %v4460
    %4524 = vmatpush1.msra.mxu0 %v4459
    %4525 = vmatprep.subr.mxu0 %v4462
    %4526 = vmatpush1.msra.mxu0 %v4461
    %4527 = vmatprep.subr.mxu0 %v4464
    %4528 = vmatpush1.msra.mxu0 %v4463
    %4529 = vmatprep.subr.mxu0 %v4466
    %4530 = vmatpush1.msra.mxu0 %v4465
    %4531 = vmatprep.subr.mxu0 %v4468
    %4532 = vmatpush1.msra.mxu0 %v4467
    %4533 = vmatprep.subr.mxu0 %v4470
    %4534 = vmatpush1.msra.mxu0 %v4469
    %4535 = vmatprep.subr.mxu0 %v4472
    %4536 = vmatpush1.msra.mxu0 %v4471
    %4537 = vmatprep.subr.mxu0 %v4474
    %4538 = vmatpush1.msra.mxu0 %v4473
    %4539 = vmatprep.mubr.f32.mxu0 %v4006
    %4540 = vmatmul.mubr.f32.gmra.mrb[0].mxu0 %v4005
    %v4541 = vpop.f32.mrb[0].mxu0
    %v4542 = vadd.f32 0.0, %v4541
    %v4543 = vpop.f32.mrb[0].mxu0
    %v4544 = vadd.f32 0.0, %v4543
    %4545 = vmatprep.mubr.f32.mxu0 %v4008
    %4546 = vmatmul.mubr.f32.gmra.mrb[0].mxu0 %v4007
    %v4547 = vpop.f32.mrb[0].mxu0
    %v4548 = vadd.f32 0.0, %v4547
    %v4549 = vpop.f32.mrb[0].mxu0
    %v4550 = vadd.f32 0.0, %v4549
    %4551 = vmatprep.mubr.f32.mxu0 %v4010
    %4552 = vmatmul.mubr.f32.gmra.mrb[0].mxu0 %v4009
    %v4553 = vpop.f32.mrb[0].mxu0
    %v4554 = vadd.f32 0.0, %v4553
    %v4555 = vpop.f32.mrb[0].mxu0
    %v4556 = vadd.f32 0.0, %v4555
    %4557 = vmatprep.mubr.f32.mxu0 %v4012
    %4558 = vmatmul.mubr.f32.gmra.mrb[0].mxu0 %v4011
    %v4559 = vpop.f32.mrb[0].mxu0
    %v4560 = vadd.f32 0.0, %v4559
    %v4561 = vpop.f32.mrb[0].mxu0
    %v4562 = vadd.f32 0.0, %v4561
    %4563 = vmatprep.mubr.f32.mxu0 %v4014
    %4564 = vmatmul.mubr.f32.gmra.mrb[0].mxu0 %v4013
    %v4565 = vpop.f32.mrb[0].mxu0
    %v4566 = vadd.f32 0.0, %v4565
    %v4567 = vpop.f32.mrb[0].mxu0
    %v4568 = vadd.f32 0.0, %v4567
    %4569 = vmatprep.mubr.f32.mxu0 %v4016
    %4570 = vmatmul.mubr.f32.gmra.mrb[0].mxu0 %v4015
    %v4571 = vpop.f32.mrb[0].mxu0
    %v4572 = vadd.f32 0.0, %v4571
    %v4573 = vpop.f32.mrb[0].mxu0
    %v4574 = vadd.f32 0.0, %v4573
    %4575 = vmatprep.mubr.f32.mxu0 %v4018
    %4576 = vmatmul.mubr.f32.gmra.mrb[0].mxu0 %v4017
    %v4577 = vpop.f32.mrb[0].mxu0
    %v4578 = vadd.f32 0.0, %v4577
    %v4579 = vpop.f32.mrb[0].mxu0
    %v4580 = vadd.f32 0.0, %v4579
    %4581 = vmatprep.mubr.f32.mxu0 %v4020
    %4582 = vmatmul.mubr.f32.gmra.mrb[0].mxu0 %v4019
    %v4583 = vpop.f32.mrb[0].mxu0
    %v4584 = vadd.f32 0.0, %v4583
    %v4585 = vpop.f32.mrb[0].mxu0
    %v4586 = vadd.f32 0.0, %v4585
    %4587 = vdwg.mxu0
    %4588 = vst [vmem:[#allocation2 + $0x100] sm:$0xff] %v4542
    %4589 = vst [vmem:[#allocation2 + $0x108] sm:$0xff] %v4544
    %4590 = vst [vmem:[#allocation2 + $0x110] sm:$0xff] %v4548
    %4591 = vst [vmem:[#allocation2 + $0x118] sm:$0xff] %v4550
    %4592 = vst [vmem:[#allocation2 + $0x120] sm:$0xff] %v4554
    %4593 = vst [vmem:[#allocation2 + $0x128] sm:$0xff] %v4556
    %4594 = vst [vmem:[#allocation2 + $0x130] sm:$0xff] %v4560
    %4595 = vst [vmem:[#allocation2 + $0x138] sm:$0xff] %v4562
    %4596 = vst [vmem:[#allocation2 + $0x140] sm:$0xff] %v4566
    %4597 = vst [vmem:[#allocation2 + $0x148] sm:$0xff] %v4568
    %4598 = vst [vmem:[#allocation2 + $0x150] sm:$0xff] %v4572
    %4599 = vst [vmem:[#allocation2 + $0x158] sm:$0xff] %v4574
    %4600 = vst [vmem:[#allocation2 + $0x160] sm:$0xff] %v4578
    %4601 = vst [vmem:[#allocation2 + $0x168] sm:$0xff] %v4580
    %4602 = vst [vmem:[#allocation2 + $0x170] sm:$0xff] %v4584
    %4603 = vst [vmem:[#allocation2 + $0x178] sm:$0xff] %v4586
    %s4604 = scalar_lea.vmem [#allocation7], 1536
    %v4605 = vld [vmem:[%s4604] sm:$0xff]
    %v4606 = vld [vmem:[%s4604 + $0x8] sm:$0xff]
    %v4607 = vld [vmem:[%s4604 + $0x10] sm:$0xff]
    %v4608 = vld [vmem:[%s4604 + $0x18] sm:$0xff]
    %v4609 = vld [vmem:[%s4604 + $0x20] sm:$0xff]
    %v4610 = vld [vmem:[%s4604 + $0x28] sm:$0xff]
    %v4611 = vld [vmem:[%s4604 + $0x30] sm:$0xff]
    %v4612 = vld [vmem:[%s4604 + $0x38] sm:$0xff]
    %v4613 = vld [vmem:[%s4604 + $0x40] sm:$0xff]
    %v4614 = vld [vmem:[%s4604 + $0x48] sm:$0xff]
    %v4615 = vld [vmem:[%s4604 + $0x50] sm:$0xff]
    %v4616 = vld [vmem:[%s4604 + $0x58] sm:$0xff]
    %v4617 = vld [vmem:[%s4604 + $0x60] sm:$0xff]
    %v4618 = vld [vmem:[%s4604 + $0x68] sm:$0xff]
    %v4619 = vld [vmem:[%s4604 + $0x70] sm:$0xff]
    %v4620 = vld [vmem:[%s4604 + $0x78] sm:$0xff]
    %v4621 = vld [vmem:[%s4604 + $0x80] sm:$0xff]
    %v4622 = vld [vmem:[%s4604 + $0x88] sm:$0xff]
    %v4623 = vld [vmem:[%s4604 + $0x90] sm:$0xff]
    %v4624 = vld [vmem:[%s4604 + $0x98] sm:$0xff]
    %v4625 = vld [vmem:[%s4604 + $0xa0] sm:$0xff]
    %v4626 = vld [vmem:[%s4604 + $0xa8] sm:$0xff]
    %v4627 = vld [vmem:[%s4604 + $0xb0] sm:$0xff]
    %v4628 = vld [vmem:[%s4604 + $0xb8] sm:$0xff]
    %v4629 = vld [vmem:[%s4604 + $0xc0] sm:$0xff]
    %v4630 = vld [vmem:[%s4604 + $0xc8] sm:$0xff]
    %v4631 = vld [vmem:[%s4604 + $0xd0] sm:$0xff]
    %v4632 = vld [vmem:[%s4604 + $0xd8] sm:$0xff]
    %v4633 = vld [vmem:[%s4604 + $0xe0] sm:$0xff]
    %v4634 = vld [vmem:[%s4604 + $0xe8] sm:$0xff]
    %v4635 = vld [vmem:[%s4604 + $0xf0] sm:$0xff]
    %v4636 = vld [vmem:[%s4604 + $0xf8] sm:$0xff]
    %v4637 = vld [vmem:[%s4604 + $0x100] sm:$0xff]
    %v4638 = vld [vmem:[%s4604 + $0x108] sm:$0xff]
    %v4639 = vld [vmem:[%s4604 + $0x110] sm:$0xff]
    %v4640 = vld [vmem:[%s4604 + $0x118] sm:$0xff]
    %v4641 = vld [vmem:[%s4604 + $0x120] sm:$0xff]
    %v4642 = vld [vmem:[%s4604 + $0x128] sm:$0xff]
    %v4643 = vld [vmem:[%s4604 + $0x130] sm:$0xff]
    %v4644 = vld [vmem:[%s4604 + $0x138] sm:$0xff]
    %v4645 = vld [vmem:[%s4604 + $0x140] sm:$0xff]
    %v4646 = vld [vmem:[%s4604 + $0x148] sm:$0xff]
    %v4647 = vld [vmem:[%s4604 + $0x150] sm:$0xff]
    %v4648 = vld [vmem:[%s4604 + $0x158] sm:$0xff]
    %v4649 = vld [vmem:[%s4604 + $0x160] sm:$0xff]
    %v4650 = vld [vmem:[%s4604 + $0x168] sm:$0xff]
    %v4651 = vld [vmem:[%s4604 + $0x170] sm:$0xff]
    %v4652 = vld [vmem:[%s4604 + $0x178] sm:$0xff]
    %v4653 = vld [vmem:[%s4604 + $0x180] sm:$0xff]
    %v4654 = vld [vmem:[%s4604 + $0x188] sm:$0xff]
    %v4655 = vld [vmem:[%s4604 + $0x190] sm:$0xff]
    %v4656 = vld [vmem:[%s4604 + $0x198] sm:$0xff]
    %v4657 = vld [vmem:[%s4604 + $0x1a0] sm:$0xff]
    %v4658 = vld [vmem:[%s4604 + $0x1a8] sm:$0xff]
    %v4659 = vld [vmem:[%s4604 + $0x1b0] sm:$0xff]
    %v4660 = vld [vmem:[%s4604 + $0x1b8] sm:$0xff]
    %v4661 = vld [vmem:[%s4604 + $0x1c0] sm:$0xff]
    %v4662 = vld [vmem:[%s4604 + $0x1c8] sm:$0xff]
    %v4663 = vld [vmem:[%s4604 + $0x1d0] sm:$0xff]
    %v4664 = vld [vmem:[%s4604 + $0x1d8] sm:$0xff]
    %v4665 = vld [vmem:[%s4604 + $0x1e0] sm:$0xff]
    %v4666 = vld [vmem:[%s4604 + $0x1e8] sm:$0xff]
    %v4667 = vld [vmem:[%s4604 + $0x1f0] sm:$0xff]
    %v4668 = vld [vmem:[%s4604 + $0x1f8] sm:$0xff]
    %4669 = vmatprep.subr.mxu0 %v4606
    %4670 = vmatpush1.msra.mxu0 %v4605
    %4671 = vmatprep.subr.mxu0 %v4608
    %4672 = vmatpush1.msra.mxu0 %v4607
    %4673 = vmatprep.subr.mxu0 %v4610
    %4674 = vmatpush1.msra.mxu0 %v4609
    %4675 = vmatprep.subr.mxu0 %v4612
    %4676 = vmatpush1.msra.mxu0 %v4611
    %4677 = vmatprep.subr.mxu0 %v4614
    %4678 = vmatpush1.msra.mxu0 %v4613
    %4679 = vmatprep.subr.mxu0 %v4616
    %4680 = vmatpush1.msra.mxu0 %v4615
    %4681 = vmatprep.subr.mxu0 %v4618
    %4682 = vmatpush1.msra.mxu0 %v4617
    %4683 = vmatprep.subr.mxu0 %v4620
    %4684 = vmatpush1.msra.mxu0 %v4619
    %4685 = vmatprep.subr.mxu0 %v4622
    %4686 = vmatpush1.msra.mxu0 %v4621
    %4687 = vmatprep.subr.mxu0 %v4624
    %4688 = vmatpush1.msra.mxu0 %v4623
    %4689 = vmatprep.subr.mxu0 %v4626
    %4690 = vmatpush1.msra.mxu0 %v4625
    %4691 = vmatprep.subr.mxu0 %v4628
    %4692 = vmatpush1.msra.mxu0 %v4627
    %4693 = vmatprep.subr.mxu0 %v4630
    %4694 = vmatpush1.msra.mxu0 %v4629
    %4695 = vmatprep.subr.mxu0 %v4632
    %4696 = vmatpush1.msra.mxu0 %v4631
    %4697 = vmatprep.subr.mxu0 %v4634
    %4698 = vmatpush1.msra.mxu0 %v4633
    %4699 = vmatprep.subr.mxu0 %v4636
    %4700 = vmatpush1.msra.mxu0 %v4635
    %4701 = vmatprep.subr.mxu0 %v4638
    %4702 = vmatpush1.msra.mxu0 %v4637
    %4703 = vmatprep.subr.mxu0 %v4640
    %4704 = vmatpush1.msra.mxu0 %v4639
    %4705 = vmatprep.subr.mxu0 %v4642
    %4706 = vmatpush1.msra.mxu0 %v4641
    %4707 = vmatprep.subr.mxu0 %v4644
    %4708 = vmatpush1.msra.mxu0 %v4643
    %4709 = vmatprep.subr.mxu0 %v4646
    %4710 = vmatpush1.msra.mxu0 %v4645
    %4711 = vmatprep.subr.mxu0 %v4648
    %4712 = vmatpush1.msra.mxu0 %v4647
    %4713 = vmatprep.subr.mxu0 %v4650
    %4714 = vmatpush1.msra.mxu0 %v4649
    %4715 = vmatprep.subr.mxu0 %v4652
    %4716 = vmatpush1.msra.mxu0 %v4651
    %4717 = vmatprep.subr.mxu0 %v4654
    %4718 = vmatpush1.msra.mxu0 %v4653
    %4719 = vmatprep.subr.mxu0 %v4656
    %4720 = vmatpush1.msra.mxu0 %v4655
    %4721 = vmatprep.subr.mxu0 %v4658
    %4722 = vmatpush1.msra.mxu0 %v4657
    %4723 = vmatprep.subr.mxu0 %v4660
    %4724 = vmatpush1.msra.mxu0 %v4659
    %4725 = vmatprep.subr.mxu0 %v4662
    %4726 = vmatpush1.msra.mxu0 %v4661
    %4727 = vmatprep.subr.mxu0 %v4664
    %4728 = vmatpush1.msra.mxu0 %v4663
    %4729 = vmatprep.subr.mxu0 %v4666
    %4730 = vmatpush1.msra.mxu0 %v4665
    %4731 = vmatprep.subr.mxu0 %v4668
    %4732 = vmatpush1.msra.mxu0 %v4667
    %4733 = vmatprep.mubr.f32.mxu0 %v4006
    %4734 = vmatmul.mubr.f32.gmra.mrb[0].mxu0 %v4005
    %v4735 = vpop.f32.mrb[0].mxu0
    %v4736 = vadd.f32 0.0, %v4735
    %v4737 = vpop.f32.mrb[0].mxu0
    %v4738 = vadd.f32 0.0, %v4737
    %4739 = vmatprep.mubr.f32.mxu0 %v4008
    %4740 = vmatmul.mubr.f32.gmra.mrb[0].mxu0 %v4007
    %v4741 = vpop.f32.mrb[0].mxu0
    %v4742 = vadd.f32 0.0, %v4741
    %v4743 = vpop.f32.mrb[0].mxu0
    %v4744 = vadd.f32 0.0, %v4743
    %4745 = vmatprep.mubr.f32.mxu0 %v4010
    %4746 = vmatmul.mubr.f32.gmra.mrb[0].mxu0 %v4009
    %v4747 = vpop.f32.mrb[0].mxu0
    %v4748 = vadd.f32 0.0, %v4747
    %v4749 = vpop.f32.mrb[0].mxu0
    %v4750 = vadd.f32 0.0, %v4749
    %4751 = vmatprep.mubr.f32.mxu0 %v4012
    %4752 = vmatmul.mubr.f32.gmra.mrb[0].mxu0 %v4011
    %v4753 = vpop.f32.mrb[0].mxu0
    %v4754 = vadd.f32 0.0, %v4753
    %v4755 = vpop.f32.mrb[0].mxu0
    %v4756 = vadd.f32 0.0, %v4755
    %4757 = vmatprep.mubr.f32.mxu0 %v4014
    %4758 = vmatmul.mubr.f32.gmra.mrb[0].mxu0 %v4013
    %v4759 = vpop.f32.mrb[0].mxu0
    %v4760 = vadd.f32 0.0, %v4759
    %v4761 = vpop.f32.mrb[0].mxu0
    %v4762 = vadd.f32 0.0, %v4761
    %4763 = vmatprep.mubr.f32.mxu0 %v4016
    %4764 = vmatmul.mubr.f32.gmra.mrb[0].mxu0 %v4015
    %v4765 = vpop.f32.mrb[0].mxu0
    %v4766 = vadd.f32 0.0, %v4765
    %v4767 = vpop.f32.mrb[0].mxu0
    %v4768 = vadd.f32 0.0, %v4767
    %4769 = vmatprep.mubr.f32.mxu0 %v4018
    %4770 = vmatmul.mubr.f32.gmra.mrb[0].mxu0 %v4017
    %v4771 = vpop.f32.mrb[0].mxu0
    %v4772 = vadd.f32 0.0, %v4771
    %v4773 = vpop.f32.mrb[0].mxu0
    %v4774 = vadd.f32 0.0, %v4773
    %4775 = vmatprep.mubr.f32.mxu0 %v4020
    %4776 = vmatmul.mubr.f32.gmra.mrb[0].mxu0 %v4019
    %v4777 = vpop.f32.mrb[0].mxu0
    %v4778 = vadd.f32 0.0, %v4777
    %v4779 = vpop.f32.mrb[0].mxu0
    %v4780 = vadd.f32 0.0, %v4779
    %4781 = vdwg.mxu0
    %4782 = vst [vmem:[#allocation2 + $0x180] sm:$0xff] %v4736
    %4783 = vst [vmem:[#allocation2 + $0x188] sm:$0xff] %v4738
    %4784 = vst [vmem:[#allocation2 + $0x190] sm:$0xff] %v4742
    %4785 = vst [vmem:[#allocation2 + $0x198] sm:$0xff] %v4744
    %4786 = vst [vmem:[#allocation2 + $0x1a0] sm:$0xff] %v4748
    %4787 = vst [vmem:[#allocation2 + $0x1a8] sm:$0xff] %v4750
    %4788 = vst [vmem:[#allocation2 + $0x1b0] sm:$0xff] %v4754
    %4789 = vst [vmem:[#allocation2 + $0x1b8] sm:$0xff] %v4756
    %4790 = vst [vmem:[#allocation2 + $0x1c0] sm:$0xff] %v4760
    %4791 = vst [vmem:[#allocation2 + $0x1c8] sm:$0xff] %v4762
    %4792 = vst [vmem:[#allocation2 + $0x1d0] sm:$0xff] %v4766
    %4793 = vst [vmem:[#allocation2 + $0x1d8] sm:$0xff] %v4768
    %4794 = vst [vmem:[#allocation2 + $0x1e0] sm:$0xff] %v4772
    %4795 = vst [vmem:[#allocation2 + $0x1e8] sm:$0xff] %v4774
    %4796 = vst [vmem:[#allocation2 + $0x1f0] sm:$0xff] %v4778
    %4797 = vst [vmem:[#allocation2 + $0x1f8] sm:$0xff] %v4780
    %v4798 = vld [vmem:[#allocation13] sm:$0xff]
    %v4799 = vld [vmem:[#allocation13 + $0x8] sm:$0xff]
    %v4800 = vld [vmem:[#allocation13 + $0x10] sm:$0xff]
    %v4801 = vld [vmem:[#allocation13 + $0x18] sm:$0xff]
    %v4802 = vld [vmem:[#allocation13 + $0x20] sm:$0xff]
    %v4803 = vld [vmem:[#allocation13 + $0x28] sm:$0xff]
    %v4804 = vld [vmem:[#allocation13 + $0x30] sm:$0xff]
    %v4805 = vld [vmem:[#allocation13 + $0x38] sm:$0xff]
    %v4806 = vld [vmem:[#allocation13 + $0x40] sm:$0xff]
    %v4807 = vld [vmem:[#allocation13 + $0x48] sm:$0xff]
    %v4808 = vld [vmem:[#allocation13 + $0x50] sm:$0xff]
    %v4809 = vld [vmem:[#allocation13 + $0x58] sm:$0xff]
    %v4810 = vld [vmem:[#allocation13 + $0x60] sm:$0xff]
    %v4811 = vld [vmem:[#allocation13 + $0x68] sm:$0xff]
    %v4812 = vld [vmem:[#allocation13 + $0x70] sm:$0xff]
    %v4813 = vld [vmem:[#allocation13 + $0x78] sm:$0xff]
    %v4814 = vld [vmem:[#allocation13 + $0x80] sm:$0xff]
    %v4815 = vld [vmem:[#allocation13 + $0x88] sm:$0xff]
    %v4816 = vld [vmem:[#allocation13 + $0x90] sm:$0xff]
    %v4817 = vld [vmem:[#allocation13 + $0x98] sm:$0xff]
    %v4818 = vld [vmem:[#allocation13 + $0xa0] sm:$0xff]
    %v4819 = vld [vmem:[#allocation13 + $0xa8] sm:$0xff]
    %v4820 = vld [vmem:[#allocation13 + $0xb0] sm:$0xff]
    %v4821 = vld [vmem:[#allocation13 + $0xb8] sm:$0xff]
    %v4822 = vld [vmem:[#allocation13 + $0xc0] sm:$0xff]
    %v4823 = vld [vmem:[#allocation13 + $0xc8] sm:$0xff]
    %v4824 = vld [vmem:[#allocation13 + $0xd0] sm:$0xff]
    %v4825 = vld [vmem:[#allocation13 + $0xd8] sm:$0xff]
    %v4826 = vld [vmem:[#allocation13 + $0xe0] sm:$0xff]
    %v4827 = vld [vmem:[#allocation13 + $0xe8] sm:$0xff]
    %v4828 = vld [vmem:[#allocation13 + $0xf0] sm:$0xff]
    %v4829 = vld [vmem:[#allocation13 + $0xf8] sm:$0xff]
    %v4830 = vld [vmem:[#allocation2] sm:$0xff]
    %v4831 = vld [vmem:[#allocation2 + $0x8] sm:$0xff]
    %v4832 = vld [vmem:[#allocation2 + $0x10] sm:$0xff]
    %v4833 = vld [vmem:[#allocation2 + $0x18] sm:$0xff]
    %v4834 = vld [vmem:[#allocation2 + $0x20] sm:$0xff]
    %v4835 = vld [vmem:[#allocation2 + $0x28] sm:$0xff]
    %v4836 = vld [vmem:[#allocation2 + $0x30] sm:$0xff]
    %v4837 = vld [vmem:[#allocation2 + $0x38] sm:$0xff]
    %v4838 = vld [vmem:[#allocation2 + $0x40] sm:$0xff]
    %v4839 = vld [vmem:[#allocation2 + $0x48] sm:$0xff]
    %v4840 = vld [vmem:[#allocation2 + $0x50] sm:$0xff]
    %v4841 = vld [vmem:[#allocation2 + $0x58] sm:$0xff]
    %v4842 = vld [vmem:[#allocation2 + $0x60] sm:$0xff]
    %v4843 = vld [vmem:[#allocation2 + $0x68] sm:$0xff]
    %v4844 = vld [vmem:[#allocation2 + $0x70] sm:$0xff]
    %v4845 = vld [vmem:[#allocation2 + $0x78] sm:$0xff]
    %v4846 = vld [vmem:[#allocation2 + $0x80] sm:$0xff]
    %v4847 = vld [vmem:[#allocation2 + $0x88] sm:$0xff]
    %v4848 = vld [vmem:[#allocation2 + $0x90] sm:$0xff]
    %v4849 = vld [vmem:[#allocation2 + $0x98] sm:$0xff]
    %v4850 = vld [vmem:[#allocation2 + $0xa0] sm:$0xff]
    %v4851 = vld [vmem:[#allocation2 + $0xa8] sm:$0xff]
    %v4852 = vld [vmem:[#allocation2 + $0xb0] sm:$0xff]
    %v4853 = vld [vmem:[#allocation2 + $0xb8] sm:$0xff]
    %v4854 = vld [vmem:[#allocation2 + $0xc0] sm:$0xff]
    %v4855 = vld [vmem:[#allocation2 + $0xc8] sm:$0xff]
    %v4856 = vld [vmem:[#allocation2 + $0xd0] sm:$0xff]
    %v4857 = vld [vmem:[#allocation2 + $0xd8] sm:$0xff]
    %v4858 = vld [vmem:[#allocation2 + $0xe0] sm:$0xff]
    %v4859 = vld [vmem:[#allocation2 + $0xe8] sm:$0xff]
    %v4860 = vld [vmem:[#allocation2 + $0xf0] sm:$0xff]
    %v4861 = vld [vmem:[#allocation2 + $0xf8] sm:$0xff]
    %v4862 = vld [vmem:[#allocation2 + $0x100] sm:$0xff]
    %v4863 = vld [vmem:[#allocation2 + $0x108] sm:$0xff]
    %v4864 = vld [vmem:[#allocation2 + $0x110] sm:$0xff]
    %v4865 = vld [vmem:[#allocation2 + $0x118] sm:$0xff]
    %v4866 = vld [vmem:[#allocation2 + $0x120] sm:$0xff]
    %v4867 = vld [vmem:[#allocation2 + $0x128] sm:$0xff]
    %v4868 = vld [vmem:[#allocation2 + $0x130] sm:$0xff]
    %v4869 = vld [vmem:[#allocation2 + $0x138] sm:$0xff]
    %v4870 = vld [vmem:[#allocation2 + $0x140] sm:$0xff]
    %v4871 = vld [vmem:[#allocation2 + $0x148] sm:$0xff]
    %v4872 = vld [vmem:[#allocation2 + $0x150] sm:$0xff]
    %v4873 = vld [vmem:[#allocation2 + $0x158] sm:$0xff]
    %v4874 = vld [vmem:[#allocation2 + $0x160] sm:$0xff]
    %v4875 = vld [vmem:[#allocation2 + $0x168] sm:$0xff]
    %v4876 = vld [vmem:[#allocation2 + $0x170] sm:$0xff]
    %v4877 = vld [vmem:[#allocation2 + $0x178] sm:$0xff]
    %v4878 = vld [vmem:[#allocation2 + $0x180] sm:$0xff]
    %v4879 = vld [vmem:[#allocation2 + $0x188] sm:$0xff]
    %v4880 = vld [vmem:[#allocation2 + $0x190] sm:$0xff]
    %v4881 = vld [vmem:[#allocation2 + $0x198] sm:$0xff]
    %v4882 = vld [vmem:[#allocation2 + $0x1a0] sm:$0xff]
    %v4883 = vld [vmem:[#allocation2 + $0x1a8] sm:$0xff]
    %v4884 = vld [vmem:[#allocation2 + $0x1b0] sm:$0xff]
    %v4885 = vld [vmem:[#allocation2 + $0x1b8] sm:$0xff]
    %v4886 = vld [vmem:[#allocation2 + $0x1c0] sm:$0xff]
    %v4887 = vld [vmem:[#allocation2 + $0x1c8] sm:$0xff]
    %v4888 = vld [vmem:[#allocation2 + $0x1d0] sm:$0xff]
    %v4889 = vld [vmem:[#allocation2 + $0x1d8] sm:$0xff]
    %v4890 = vld [vmem:[#allocation2 + $0x1e0] sm:$0xff]
    %v4891 = vld [vmem:[#allocation2 + $0x1e8] sm:$0xff]
    %v4892 = vld [vmem:[#allocation2 + $0x1f0] sm:$0xff]
    %v4893 = vld [vmem:[#allocation2 + $0x1f8] sm:$0xff]
    %4894 = vmatprep.subr.mxu0 %v4831
    %4895 = vmatpush1.msra.mxu0 %v4830
    %4896 = vmatprep.subr.mxu0 %v4833
    %4897 = vmatpush1.msra.mxu0 %v4832
    %4898 = vmatprep.subr.mxu0 %v4835
    %4899 = vmatpush1.msra.mxu0 %v4834
    %4900 = vmatprep.subr.mxu0 %v4837
    %4901 = vmatpush1.msra.mxu0 %v4836
    %4902 = vmatprep.subr.mxu0 %v4839
    %4903 = vmatpush1.msra.mxu0 %v4838
    %4904 = vmatprep.subr.mxu0 %v4841
    %4905 = vmatpush1.msra.mxu0 %v4840
    %4906 = vmatprep.subr.mxu0 %v4843
    %4907 = vmatpush1.msra.mxu0 %v4842
    %4908 = vmatprep.subr.mxu0 %v4845
    %4909 = vmatpush1.msra.mxu0 %v4844
    %4910 = vmatprep.subr.mxu0 %v4847
    %4911 = vmatpush1.msra.mxu0 %v4846
    %4912 = vmatprep.subr.mxu0 %v4849
    %4913 = vmatpush1.msra.mxu0 %v4848
    %4914 = vmatprep.subr.mxu0 %v4851
    %4915 = vmatpush1.msra.mxu0 %v4850
    %4916 = vmatprep.subr.mxu0 %v4853
    %4917 = vmatpush1.msra.mxu0 %v4852
    %4918 = vmatprep.subr.mxu0 %v4855
    %4919 = vmatpush1.msra.mxu0 %v4854
    %4920 = vmatprep.subr.mxu0 %v4857
    %4921 = vmatpush1.msra.mxu0 %v4856
    %4922 = vmatprep.subr.mxu0 %v4859
    %4923 = vmatpush1.msra.mxu0 %v4858
    %4924 = vmatprep.subr.mxu0 %v4861
    %4925 = vmatpush1.msra.mxu0 %v4860
    %4926 = vmatprep.subr.mxu0 %v4863
    %4927 = vmatpush1.msra.mxu0 %v4862
    %4928 = vmatprep.subr.mxu0 %v4865
    %4929 = vmatpush1.msra.mxu0 %v4864
    %4930 = vmatprep.subr.mxu0 %v4867
    %4931 = vmatpush1.msra.mxu0 %v4866
    %4932 = vmatprep.subr.mxu0 %v4869
    %4933 = vmatpush1.msra.mxu0 %v4868
    %4934 = vmatprep.subr.mxu0 %v4871
    %4935 = vmatpush1.msra.mxu0 %v4870
    %4936 = vmatprep.subr.mxu0 %v4873
    %4937 = vmatpush1.msra.mxu0 %v4872
    %4938 = vmatprep.subr.mxu0 %v4875
    %4939 = vmatpush1.msra.mxu0 %v4874
    %4940 = vmatprep.subr.mxu0 %v4877
    %4941 = vmatpush1.msra.mxu0 %v4876
    %4942 = vmatprep.subr.mxu0 %v4879
    %4943 = vmatpush1.msra.mxu0 %v4878
    %4944 = vmatprep.subr.mxu0 %v4881
    %4945 = vmatpush1.msra.mxu0 %v4880
    %4946 = vmatprep.subr.mxu0 %v4883
    %4947 = vmatpush1.msra.mxu0 %v4882
    %4948 = vmatprep.subr.mxu0 %v4885
    %4949 = vmatpush1.msra.mxu0 %v4884
    %4950 = vmatprep.subr.mxu0 %v4887
    %4951 = vmatpush1.msra.mxu0 %v4886
    %4952 = vmatprep.subr.mxu0 %v4889
    %4953 = vmatpush1.msra.mxu0 %v4888
    %4954 = vmatprep.subr.mxu0 %v4891
    %4955 = vmatpush1.msra.mxu0 %v4890
    %4956 = vmatprep.subr.mxu0 %v4893
    %4957 = vmatpush1.msra.mxu0 %v4892
    %4958 = vmatprep.mubr.f32.mxu0 %v4799
    %4959 = vmatmul.mubr.f32.gmra.mrb[0].mxu0 %v4798
    %v4960 = vpop.f32.mrb[0].mxu0
    %v4961 = vadd.f32 0.0, %v4960
    %v4962 = vpop.f32.mrb[0].mxu0
    %v4963 = vadd.f32 0.0, %v4962
    %4964 = vmatprep.mubr.f32.mxu0 %v4801
    %4965 = vmatmul.mubr.f32.gmra.mrb[0].mxu0 %v4800
    %v4966 = vpop.f32.mrb[0].mxu0
    %v4967 = vadd.f32 0.0, %v4966
    %v4968 = vpop.f32.mrb[0].mxu0
    %v4969 = vadd.f32 0.0, %v4968
    %4970 = vmatprep.mubr.f32.mxu0 %v4803
    %4971 = vmatmul.mubr.f32.gmra.mrb[0].mxu0 %v4802
    %v4972 = vpop.f32.mrb[0].mxu0
    %v4973 = vadd.f32 0.0, %v4972
    %v4974 = vpop.f32.mrb[0].mxu0
    %v4975 = vadd.f32 0.0, %v4974
    %4976 = vmatprep.mubr.f32.mxu0 %v4805
    %4977 = vmatmul.mubr.f32.gmra.mrb[0].mxu0 %v4804
    %v4978 = vpop.f32.mrb[0].mxu0
    %v4979 = vadd.f32 0.0, %v4978
    %v4980 = vpop.f32.mrb[0].mxu0
    %v4981 = vadd.f32 0.0, %v4980
    %4982 = vmatprep.mubr.f32.mxu0 %v4807
    %4983 = vmatmul.mubr.f32.gmra.mrb[0].mxu0 %v4806
    %v4984 = vpop.f32.mrb[0].mxu0
    %v4985 = vadd.f32 0.0, %v4984
    %v4986 = vpop.f32.mrb[0].mxu0
    %v4987 = vadd.f32 0.0, %v4986
    %4988 = vmatprep.mubr.f32.mxu0 %v4809
    %4989 = vmatmul.mubr.f32.gmra.mrb[0].mxu0 %v4808
    %v4990 = vpop.f32.mrb[0].mxu0
    %v4991 = vadd.f32 0.0, %v4990
    %v4992 = vpop.f32.mrb[0].mxu0
    %v4993 = vadd.f32 0.0, %v4992
    %4994 = vmatprep.mubr.f32.mxu0 %v4811
    %4995 = vmatmul.mubr.f32.gmra.mrb[0].mxu0 %v4810
    %v4996 = vpop.f32.mrb[0].mxu0
    %v4997 = vadd.f32 0.0, %v4996
    %v4998 = vpop.f32.mrb[0].mxu0
    %v4999 = vadd.f32 0.0, %v4998
    %5000 = vmatprep.mubr.f32.mxu0 %v4813
    %5001 = vmatmul.mubr.f32.gmra.mrb[0].mxu0 %v4812
    %v5002 = vpop.f32.mrb[0].mxu0
    %v5003 = vadd.f32 0.0, %v5002
    %v5004 = vpop.f32.mrb[0].mxu0
    %v5005 = vadd.f32 0.0, %v5004
    %5006 = vmatprep.mubr.f32.mxu0 %v4815
    %5007 = vmatmul.mubr.f32.gmra.mrb[0].mxu0 %v4814
    %v5008 = vpop.f32.mrb[0].mxu0
    %v5009 = vadd.f32 0.0, %v5008
    %v5010 = vpop.f32.mrb[0].mxu0
    %v5011 = vadd.f32 0.0, %v5010
    %5012 = vmatprep.mubr.f32.mxu0 %v4817
    %5013 = vmatmul.mubr.f32.gmra.mrb[0].mxu0 %v4816
    %v5014 = vpop.f32.mrb[0].mxu0
    %v5015 = vadd.f32 0.0, %v5014
    %v5016 = vpop.f32.mrb[0].mxu0
    %v5017 = vadd.f32 0.0, %v5016
    %5018 = vmatprep.mubr.f32.mxu0 %v4819
    %5019 = vmatmul.mubr.f32.gmra.mrb[0].mxu0 %v4818
    %v5020 = vpop.f32.mrb[0].mxu0
    %v5021 = vadd.f32 0.0, %v5020
    %v5022 = vpop.f32.mrb[0].mxu0
    %v5023 = vadd.f32 0.0, %v5022
    %5024 = vmatprep.mubr.f32.mxu0 %v4821
    %5025 = vmatmul.mubr.f32.gmra.mrb[0].mxu0 %v4820
    %v5026 = vpop.f32.mrb[0].mxu0
    %v5027 = vadd.f32 0.0, %v5026
    %v5028 = vpop.f32.mrb[0].mxu0
    %v5029 = vadd.f32 0.0, %v5028
    %5030 = vmatprep.mubr.f32.mxu0 %v4823
    %5031 = vmatmul.mubr.f32.gmra.mrb[0].mxu0 %v4822
    %v5032 = vpop.f32.mrb[0].mxu0
    %v5033 = vadd.f32 0.0, %v5032
    %v5034 = vpop.f32.mrb[0].mxu0
    %v5035 = vadd.f32 0.0, %v5034
    %5036 = vmatprep.mubr.f32.mxu0 %v4825
    %5037 = vmatmul.mubr.f32.gmra.mrb[0].mxu0 %v4824
    %v5038 = vpop.f32.mrb[0].mxu0
    %v5039 = vadd.f32 0.0, %v5038
    %v5040 = vpop.f32.mrb[0].mxu0
    %v5041 = vadd.f32 0.0, %v5040
    %5042 = vmatprep.mubr.f32.mxu0 %v4827
    %5043 = vmatmul.mubr.f32.gmra.mrb[0].mxu0 %v4826
    %v5044 = vpop.f32.mrb[0].mxu0
    %v5045 = vadd.f32 0.0, %v5044
    %v5046 = vpop.f32.mrb[0].mxu0
    %v5047 = vadd.f32 0.0, %v5046
    %5048 = vmatprep.mubr.f32.mxu0 %v4829
    %5049 = vmatmul.mubr.f32.gmra.mrb[0].mxu0 %v4828
    %v5050 = vpop.f32.mrb[0].mxu0
    %v5051 = vadd.f32 0.0, %v5050
    %v5052 = vpop.f32.mrb[0].mxu0
    %v5053 = vadd.f32 0.0, %v5052
    %5054 = vdwg.mxu0
    %v5055 = vtanh.pop %v4961
    %v5056 = vtanh.pop %v4963
    %v5057 = vtanh.pop %v4967
    %v5058 = vtanh.pop %v4969
    %v5059 = vtanh.pop %v4973
    %v5060 = vtanh.pop %v4975
    %v5061 = vtanh.pop %v4979
    %v5062 = vtanh.pop %v4981
    %v5063 = vtanh.pop %v4985
    %v5064 = vtanh.pop %v4987
    %v5065 = vtanh.pop %v4991
    %v5066 = vtanh.pop %v4993
    %v5067 = vtanh.pop %v4997
    %v5068 = vtanh.pop %v4999
    %v5069 = vtanh.pop %v5003
    %v5070 = vtanh.pop %v5005
    %v5071 = vtanh.pop %v5009
    %v5072 = vtanh.pop %v5011
    %v5073 = vtanh.pop %v5015
    %v5074 = vtanh.pop %v5017
    %v5075 = vtanh.pop %v5021
    %v5076 = vtanh.pop %v5023
    %v5077 = vtanh.pop %v5027
    %v5078 = vtanh.pop %v5029
    %v5079 = vtanh.pop %v5033
    %v5080 = vtanh.pop %v5035
    %v5081 = vtanh.pop %v5039
    %v5082 = vtanh.pop %v5041
    %v5083 = vtanh.pop %v5045
    %v5084 = vtanh.pop %v5047
    %v5085 = vtanh.pop %v5051
    %v5086 = vtanh.pop %v5053
    %5087 = vst [vmem:[%s19] sm:$0xff] %v5055
    %5088 = vst [vmem:[%s19 + $0x8] sm:$0xff] %v5056
    %5089 = vst [vmem:[%s19 + $0x10] sm:$0xff] %v5057
    %5090 = vst [vmem:[%s19 + $0x18] sm:$0xff] %v5058
    %5091 = vst [vmem:[%s19 + $0x20] sm:$0xff] %v5059
    %5092 = vst [vmem:[%s19 + $0x28] sm:$0xff] %v5060
    %5093 = vst [vmem:[%s19 + $0x30] sm:$0xff] %v5061
    %5094 = vst [vmem:[%s19 + $0x38] sm:$0xff] %v5062
    %5095 = vst [vmem:[%s19 + $0x40] sm:$0xff] %v5063
    %5096 = vst [vmem:[%s19 + $0x48] sm:$0xff] %v5064
    %5097 = vst [vmem:[%s19 + $0x50] sm:$0xff] %v5065
    %5098 = vst [vmem:[%s19 + $0x58] sm:$0xff] %v5066
    %5099 = vst [vmem:[%s19 + $0x60] sm:$0xff] %v5067
    %5100 = vst [vmem:[%s19 + $0x68] sm:$0xff] %v5068
    %5101 = vst [vmem:[%s19 + $0x70] sm:$0xff] %v5069
    %5102 = vst [vmem:[%s19 + $0x78] sm:$0xff] %v5070
    %5103 = vst [vmem:[%s19 + $0x80] sm:$0xff] %v5071
    %5104 = vst [vmem:[%s19 + $0x88] sm:$0xff] %v5072
    %5105 = vst [vmem:[%s19 + $0x90] sm:$0xff] %v5073
    %5106 = vst [vmem:[%s19 + $0x98] sm:$0xff] %v5074
    %5107 = vst [vmem:[%s19 + $0xa0] sm:$0xff] %v5075
    %5108 = vst [vmem:[%s19 + $0xa8] sm:$0xff] %v5076
    %5109 = vst [vmem:[%s19 + $0xb0] sm:$0xff] %v5077
    %5110 = vst [vmem:[%s19 + $0xb8] sm:$0xff] %v5078
    %5111 = vst [vmem:[%s19 + $0xc0] sm:$0xff] %v5079
    %5112 = vst [vmem:[%s19 + $0xc8] sm:$0xff] %v5080
    %5113 = vst [vmem:[%s19 + $0xd0] sm:$0xff] %v5081
    %5114 = vst [vmem:[%s19 + $0xd8] sm:$0xff] %v5082
    %5115 = vst [vmem:[%s19 + $0xe0] sm:$0xff] %v5083
    %5116 = vst [vmem:[%s19 + $0xe8] sm:$0xff] %v5084
    %5117 = vst [vmem:[%s19 + $0xf0] sm:$0xff] %v5085
    %5118 = vst [vmem:[%s19 + $0xf8] sm:$0xff] %v5086
    // Predicated region
    $region106: #{forward.1} parent=1 // pred_check
      _
    $region107: #{forward.1} parent=1 // pred_check_branch
      %5120 = sbr.rel (0) target = $region109
    $region108: #{forward.1} parent=1 // pred_region
      _
    $region109: #{forward.1} parent=1 // pred_fallthru
      _
    // Predicated region
    $region110: #{forward.1} parent=1 // pred_check
      _
    $region111: #{forward.1} parent=1 // pred_check_branch
      %5122 = sbr.rel (0) target = $region113
    $region112: #{forward.1} parent=1 // pred_region
      _
    $region113: #{forward.1} parent=1 // pred_fallthru
      _
    %5123 = vsyncpa [#allocation10], 1
    %5124 = vsyncpa [#allocation12], 1
    %5125 = vsyncpa [#allocation15], 1
    %5126 = vsyncpa [#allocation18], 1
  %5127 = vsyncmov [#allocation8]
  %s5128 = vpop.sfrf %5127
  %p5129 = scmp.eq.s32.totalorder %s5128, 0
  %p5130 = pneg %p5129
  %5132 = shalt.err (%p5130)
  %s5133 = scalar_lea.sflag [#allocation8], 1
  %5134 = vsyncmov %s5133
  %s5135 = vpop.sfrf %5134
  %p5136 = scmp.eq.s32.totalorder %s5135, 0
  %p5137 = pneg %p5136
  %5139 = shalt.err (%p5137)
  %s5140 = scalar_lea.sflag [#allocation8], 2
  %5141 = vsyncmov %s5140
  %s5142 = vpop.sfrf %5141
  %p5143 = scmp.eq.s32.totalorder %s5142, 0
  %p5144 = pneg %p5143
  %5146 = shalt.err (%p5144)
  %s5147 = scalar_lea.sflag [#allocation8], 3
  %5148 = vsyncmov %s5147
  %s5149 = vpop.sfrf %5148
  %p5150 = scmp.eq.s32.totalorder %s5149, 0
  %p5151 = pneg %p5150
  %5153 = shalt.err (%p5151)
  %s5154 = scalar_lea.sflag [#allocation8], 4
  %5155 = vsyncmov %s5154
  %s5156 = vpop.sfrf %5155
  %p5157 = scmp.eq.s32.totalorder %s5156, 0
  %p5158 = pneg %p5157
  %5160 = shalt.err (%p5158)

</llo_original>
